<compile_context>
chip_gen: v6e
topology: v6e:2x2x1
jax: 0.10.0
libtpu: 0.0.40
codegen_flags: <defaults>
</compile_context>

<pallas_src>
import functools

import jax
import jax.numpy as jnp
from jax import lax
from jax.experimental import pallas as pl
from jax.experimental.pallas import tpu as pltpu

C_PAD = 128      # lane width for hidden channels / contractions (64 real, zero padded)
C_IN = 8         # compact lane width of the HBM layer-1 input (3 real channels)
LAYERS = 4


# Flattened, spatially padded feature-map layout for an (H, W) layer:
#   buffer row of pixel (h, w) = P + h*(W+2) + (w+1),  P = W+3
#   rows [0, P) and [P + H*(W+2), ext) plus the per-row "columns" 0 and W+1 are
#   zero, so every 3x3 tap is a *contiguous* slice and boundaries need no masks.
def _ext(h, w):
    return h * (w + 2) + 2 * (w + 3)


def _p(w):
    return w + 3


# ------------------------------ fused kernel --------------------------------
def _fused_convnet_kernel(x_ref, w_ref, sh_ref, fcw_ref, fcb_ref,
                          logits_ref, emb_ref, buf, tmp, *, spatial):
    """Whole ConvNet forward for one batch element, entirely in VMEM.

    x_ref  : (1, ext(H1,W1), 8)   bf16  compact layer-1 input (padded layout)
    w_ref  : (4, 9, 128, 128)     bf16  conv taps, BN scale folded in
    sh_ref : (4, 1, 128)          f32   folded conv-bias + BN shift
    fcw_ref: (128, 128)           bf16  fc weight (in, out), zero padded
    fcb_ref: (1, 128)             f32   fc bias, zero padded
    buf    : (ext(H1,W1), 128)    bf16  feature map in padded layout (reused)
    tmp    : (H1*(W1+2), 128)     f32   conv output / pooling workspace
    """
    H1, W1 = spatial[0]
    ext1 = _ext(H1, W1)

    # Widen the compact 8-lane bf16 input to the 128-lane working layout once.
    buf[0:ext1, :] = jnp.zeros((ext1, C_PAD), jnp.bfloat16)
    buf[0:ext1, 0:C_IN] = x_ref[0]

    for li, (H, W) in enumerate(spatial):
        Wp = W + 2
        rows_y = H * Wp
        P = _p(W)

        # ---- 3x3 conv: 9 shifted-slice bf16 matmuls, f32 accumulation --------
        acc = None
        for dy in range(3):
            for dx in range(3):
                start = P + (dy - 1) * Wp + (dx - 1)
                part = jnp.dot(buf[start:start + rows_y, :],
                               w_ref[li, dy * 3 + dx],
                               preferred_element_type=jnp.float32)
                acc = part if acc is None else acc + part

        # folded conv-bias + eval-mode BatchNorm shift, then ReLU
        y = jnp.maximum(acc + sh_ref[li], 0.0)            # (rows_y, 128) f32
        tmp[0:rows_y, :] = y

        # ---- fused 2x2 / stride-2 maxpool ------------------------------------
        # Two shifted full-buffer max passes (horizontal, then vertical) and a
        # single strided row-compaction per output band.
        H2, W2 = H // 2, W // 2
        Wp2, P2, ext2 = W2 + 2, _p(W2), _ext(H2, W2)
        rows_v = rows_y - Wp - 1
        v = jnp.maximum(
            jnp.maximum(tmp[0:rows_v, :], tmp[1:rows_v + 1, :]),
            jnp.maximum(tmp[Wp:Wp + rows_v, :], tmp[Wp + 1:Wp + 1 + rows_v, :]))
        tmp[0:rows_v, :] = v

        # Zero only the halo rows of the next layer's layout (pads stay zero).
        buf[0:P2 + 1, :] = jnp.zeros((P2 + 1, C_PAD), jnp.bfloat16)
        bot = P2 + H2 * Wp2 - 1
        buf[bot:ext2, :] = jnp.zeros((ext2 - bot, C_PAD), jnp.bfloat16)
        zero2 = jnp.zeros((2, C_PAD), jnp.bfloat16)

        for hb in range(H2):
            src = 2 * hb * Wp + 1                     # pooled-max row of (2hb, 0)
            if W2 == 1:
                band = tmp[src:src + 1, :]
            else:
                band = tmp[pl.ds(src, W2, stride=2), :]      # (W2, 128) f32
            dst = P2 + hb * Wp2 + 1
            buf[dst:dst + W2, :] = band.astype(jnp.bfloat16)
            if hb + 1 < H2:
                # right pad of band hb + left pad of band hb+1
                buf[dst + W2:dst + W2 + 2, :] = zero2

    # ---- global average pool -> embedding -> fc (all fused) --------------------
    Hf, Wf = spatial[-1][0] // 2, spatial[-1][1] // 2
    Pf = _p(Wf)
    feat = buf[Pf:Pf + Hf * (Wf + 2), :].astype(jnp.float32)   # pad rows are zero
    emb = jnp.sum(feat, axis=0, keepdims=True) * (1.0 / (Hf * Wf))   # (1, 128) f32
    logits = jnp.dot(emb.astype(jnp.bfloat16), fcw_ref[...],
                     preferred_element_type=jnp.float32) + fcb_ref[...]
    emb_ref[0] = emb
    logits_ref[0] = logits


# ------------------------------ host-side prep ------------------------------
def _pad_to(x, size, axis):
    pad = [(0, 0)] * x.ndim
    pad[axis] = (0, size - x.shape[axis])
    return jnp.pad(x, pad)


def _prep_params(params):
    """Fold conv bias + eval BatchNorm into bf16 weights / f32 shift, pad to 128."""
    conv_w, shifts = [], []
    for blk in params["blocks"]:
        w, b = blk["w"], blk["b"]                         # (Cout, Cin, 3, 3), (Cout,)
        scale = blk["gamma"] / jnp.sqrt(blk["rvar"] + 1e-5)
        shift = blk["beta"] + scale * (b - blk["rmean"])
        cout, cin = w.shape[0], w.shape[1]
        # (Cout,Cin,3,3) -> (3,3,Cin,Cout) -> (9,Cin,Cout), BN scale folded in
        wt = jnp.transpose(w, (2, 3, 1, 0)).reshape(9, cin, cout) * scale[None, None, :]
        conv_w.append(_pad_to(_pad_to(wt, C_PAD, 2), C_PAD, 1))        # (9,128,128)
        shifts.append(_pad_to(shift[None, :], C_PAD, 1))               # (1,128)
    conv_w = jnp.stack(conv_w).astype(jnp.bfloat16)                    # (4,9,128,128)
    shifts = jnp.stack(shifts).astype(jnp.float32)                     # (4,1,128)
    fc_w = _pad_to(_pad_to(params["fc"]["w"], C_PAD, 0), C_PAD, 1).astype(jnp.bfloat16)
    fc_b = _pad_to(params["fc"]["b"][None, :], C_PAD, 1).astype(jnp.float32)
    return conv_w, shifts, fc_w, fc_b


def _prep_input(data_nchw, H, W):
    """NCHW f32 -> compact bf16, flattened, spatially padded (N, ext, 8) buffer."""
    x = jnp.transpose(data_nchw, (0, 2, 3, 1)).astype(jnp.bfloat16)    # NHWC bf16
    n = x.shape[0]
    x = _pad_to(x, C_IN, 3)                                            # channels -> 8
    x = jnp.pad(x, ((0, 0), (0, 0), (1, 1), (0, 0)))                   # width halo
    x = x.reshape(n, H * (W + 2), C_IN)
    p = _p(W)
    return jnp.pad(x, ((0, 0), (p, p), (0, 0)))                        # (N, ext, 8)


@functools.partial(jax.jit, static_argnames=("is_emb",))
def classifier_forward(params, data_nchw, is_emb=False):
    n, cin, H, W = data_nchw.shape
    assert cin <= C_IN and H % (2 ** LAYERS) == 0 and W % (2 ** LAYERS) == 0
    assert params["fc"]["w"].shape[1] <= C_PAD

    spatial = []
    h, w = H, W
    for _ in range(LAYERS):
        spatial.append((h, w))
        h, w = h // 2, w // 2
    spatial = tuple(spatial)

    conv_w, shifts, fc_w, fc_b = _prep_params(params)
    x = _prep_input(data_nchw, H, W)
    num_class = params["fc"]["w"].shape[1]
    hdim = params["blocks"][-1]["w"].shape[0]

    buf_rows = _ext(H, W)            # layer-1 input lives in buf after widening
    tmp_rows = H * (W + 2)           # layer-1 conv output rows (largest)

    kernel = functools.partial(_fused_convnet_kernel, spatial=spatial)
    logits_pad, emb_pad = pl.pallas_call(
        kernel,
        out_shape=(jax.ShapeDtypeStruct((n, 1, C_PAD), jnp.float32),
                   jax.ShapeDtypeStruct((n, 1, C_PAD), jnp.float32)),
        grid_spec=pltpu.PrefetchScalarGridSpec(
            num_scalar_prefetch=0,
            grid=(n,),
            in_specs=[
                pl.BlockSpec((1, buf_rows, C_IN), lambda i: (i, 0, 0)),
                pl.BlockSpec((LAYERS, 9, C_PAD, C_PAD), lambda i: (0, 0, 0, 0)),
                pl.BlockSpec((LAYERS, 1, C_PAD), lambda i: (0, 0, 0)),
                pl.BlockSpec((C_PAD, C_PAD), lambda i: (0, 0)),
                pl.BlockSpec((1, C_PAD), lambda i: (0, 0)),
            ],
            out_specs=(
                pl.BlockSpec((1, 1, C_PAD), lambda i: (i, 0, 0)),
                pl.BlockSpec((1, 1, C_PAD), lambda i: (i, 0, 0)),
            ),
            scratch_shapes=[
                pltpu.VMEM((buf_rows, C_PAD), jnp.bfloat16),   # feature map (bf16)
                pltpu.VMEM((tmp_rows, C_PAD), jnp.float32),    # conv-out / pool ws
            ],
        ),
        compiler_params=pltpu.CompilerParams(
            dimension_semantics=("parallel",),
            vmem_limit_bytes=48 * 1024 * 1024),
    )(x, conv_w, shifts, fc_w, fc_b)

    emb = emb_pad[:, 0, :hdim]
    if is_emb:
        return emb
    return logits_pad[:, 0, :num_class]


# ------------------------- pure-JAX f32 reference ---------------------------
def reference_forward(params, data_nchw):
    x = jnp.transpose(data_nchw, (0, 2, 3, 1)).astype(jnp.float32)
    for blk in params["blocks"]:
        w_hwio = jnp.transpose(blk["w"], (2, 3, 1, 0))
        y = lax.conv_general_dilated(x, w_hwio, (1, 1), "SAME",
                                     dimension_numbers=("NHWC", "HWIO", "NHWC"),
                                     precision=lax.Precision.HIGHEST)
        y = y + blk["b"]
        scale = blk["gamma"] / jnp.sqrt(blk["rvar"] + 1e-5)
        y = (y - blk["rmean"]) * scale + blk["beta"]
        y = jnp.maximum(y, 0.0)
        n, hh, ww, cc = y.shape
        x = y.reshape(n, hh // 2, 2, ww // 2, 2, cc).max(axis=(2, 4))
    emb = x.mean(axis=(1, 2))
    logits = jnp.dot(emb, params["fc"]["w"], precision=lax.Precision.HIGHEST)
    logits = logits + params["fc"]["b"]
    return logits, emb


# --------------------------- deterministic params ---------------------------
def make_params(key, num_class):
    chans = [(3, 64), (64, 64), (64, 64), (64, 64)]
    blocks = []
    for cin, cout in chans:
        key, k1, k2, k3, k4 = jax.random.split(key, 5)
        blocks.append(dict(
            w=jax.random.normal(k1, (cout, cin, 3, 3), jnp.float32)
              * (1.0 / (cin * 9) ** 0.5),
            b=0.01 * jax.random.normal(k2, (cout,), jnp.float32),
            gamma=1.0 + 0.1 * jax.random.normal(k3, (cout,), jnp.float32),
            beta=0.1 * jax.random.normal(k4, (cout,), jnp.float32),
            rmean=jnp.zeros((cout,), jnp.float32),
            rvar=jnp.ones((cout,), jnp.float32),
        ))
    key, kw = jax.random.split(key)
    fc = dict(w=jax.random.normal(kw, (64, num_class), jnp.float32) / 8.0,
              b=jnp.zeros((num_class,), jnp.float32))
    return {"blocks": blocks, "fc": fc}


# --------------------------------- main --------------------------------------
if __name__ == "__main__":
    num_class = 64
    key = jax.random.PRNGKey(0)
    kp, kd = jax.random.split(key)
    params = make_params(kp, num_class)

    # small input consistent with the ConvNet backbone (NCHW, 3 channels)
    data = jax.random.normal(kd, (2, 3, 16, 16), jnp.float32)

    logits = classifier_forward(params, data, is_emb=False)
    emb = classifier_forward(params, data, is_emb=True)
    jax.block_until_ready((logits, emb))

    assert logits.shape == (2, num_class)
    assert emb.shape == (2, 64)

    # correctness vs. f32 reference (kernel uses bf16 weights/activations on the MXU)
    ref_logits, ref_emb = reference_forward(params, data)

    def rel_err(a, b):
        return float(jnp.linalg.norm(a - b) / (jnp.linalg.norm(b) + 1e-12))

    e_l, e_e = rel_err(logits, ref_logits), rel_err(emb, ref_emb)
    assert e_l < 0.1, f"logits rel err {e_l}"
    assert e_e < 0.1, f"emb rel err {e_e}"

    print("KERNEL_OK")
</pallas_src>

<mosaic_0001>
module attributes {stable_mosaic.version = 11 : i64} {
  func.func @_fused_convnet_kernel(%arg0: i32, %arg1: memref<1x326x8xbf16, #tpu.memory_space<vmem>>, %arg2: memref<4x9x128x128xbf16, #tpu.memory_space<vmem>>, %arg3: memref<4x1x128xf32, #tpu.memory_space<vmem>>, %arg4: memref<128x128xbf16, #tpu.memory_space<vmem>>, %arg5: memref<1x128xf32, #tpu.memory_space<vmem>>, %arg6: memref<1x1x128xf32, #tpu.memory_space<vmem>>, %arg7: memref<1x1x128xf32, #tpu.memory_space<vmem>>, %arg8: memref<326x128xbf16, #tpu.memory_space<vmem>>, %arg9: memref<288x128xf32, #tpu.memory_space<vmem>>) attributes {dimension_semantics = [#tpu.dimension_semantics<parallel>], iteration_bounds = array<i64: 2>, scalar_prefetch = 0 : i64, scratch_operands = 2 : i64, tpu.core_type = #tpu.core_type<tc>, window_params = [{transform_indices = @transform_0, window_bounds = array<i64: 1, 326, 8>}, {pipeline_mode = #tpu.pipeline_mode<synchronous>, transform_indices = @transform_1, window_bounds = array<i64: 4, 9, 128, 128>}, {pipeline_mode = #tpu.pipeline_mode<synchronous>, transform_indices = @transform_2, window_bounds = array<i64: 4, 1, 128>}, {pipeline_mode = #tpu.pipeline_mode<synchronous>, transform_indices = @transform_3, window_bounds = array<i64: 128, 128>}, {pipeline_mode = #tpu.pipeline_mode<synchronous>, transform_indices = @transform_4, window_bounds = array<i64: 1, 128>}, {transform_indices = @transform_5, window_bounds = array<i64: 1, 1, 128>}, {transform_indices = @transform_6, window_bounds = array<i64: 1, 1, 128>}]} {
    %cst = arith.constant 0.000000e+00 : bf16
    %0 = vector.broadcast %cst : bf16 to vector<326x128xbf16>
    %c0 = arith.constant 0 : index
    %c0_0 = arith.constant 0 : index
    %1 = vector.load %arg8[%c0, %c0_0] : memref<326x128xbf16, #tpu.memory_space<vmem>>, vector<326x128xbf16>
    tpu.vector_store %arg8[%c0, %c0_0], %0 {strides = array<i32>} : memref<326x128xbf16, #tpu.memory_space<vmem>>, vector<326x128xbf16>,
    %c0_1 = arith.constant 0 : index
    %c0_2 = arith.constant 0 : index
    %c0_3 = arith.constant 0 : index
    %2 = vector.load %arg1[%c0_1, %c0_2, %c0_3] : memref<1x326x8xbf16, #tpu.memory_space<vmem>>, vector<1x326x8xbf16>
    %3 = vector.shape_cast %2 : vector<1x326x8xbf16> to vector<326x8xbf16>
    %c0_4 = arith.constant 0 : index
    %c0_5 = arith.constant 0 : index
    %4 = vector.load %arg8[%c0_4, %c0_5] : memref<326x128xbf16, #tpu.memory_space<vmem>>, vector<326x8xbf16>
    tpu.vector_store %arg8[%c0_4, %c0_5], %3 {strides = array<i32>} : memref<326x128xbf16, #tpu.memory_space<vmem>>, vector<326x8xbf16>,
    %c0_6 = arith.constant 0 : index
    %c0_7 = arith.constant 0 : index
    %5 = vector.load %arg8[%c0_6, %c0_7] : memref<326x128xbf16, #tpu.memory_space<vmem>>, vector<288x128xbf16>
    %c0_8 = arith.constant 0 : index
    %c0_9 = arith.constant 0 : index
    %c0_10 = arith.constant 0 : index
    %c0_11 = arith.constant 0 : index
    %6 = vector.load %arg2[%c0_8, %c0_9, %c0_10, %c0_11] : memref<4x9x128x128xbf16, #tpu.memory_space<vmem>>, vector<1x1x128x128xbf16>
    %7 = vector.shape_cast %6 : vector<1x1x128x128xbf16> to vector<128x128xbf16>
    %cst_12 = arith.constant dense<0.000000e+00> : vector<288x128xf32>
    %8 = tpu.matmul %5, %7, %cst_12 {dimension_numbers = #tpu.dot_dimension_numbers<[1], [0], [0], [1], [0, 0, 1, 1], [], []>} : vector<288x128xbf16>, vector<128x128xbf16>, vector<288x128xf32> -> vector<288x128xf32>
    %c1 = arith.constant 1 : index
    %c0_13 = arith.constant 0 : index
    %9 = vector.load %arg8[%c1, %c0_13] : memref<326x128xbf16, #tpu.memory_space<vmem>>, vector<288x128xbf16>
    %c0_14 = arith.constant 0 : index
    %c1_15 = arith.constant 1 : index
    %c0_16 = arith.constant 0 : index
    %c0_17 = arith.constant 0 : index
    %10 = vector.load %arg2[%c0_14, %c1_15, %c0_16, %c0_17] : memref<4x9x128x128xbf16, #tpu.memory_space<vmem>>, vector<1x1x128x128xbf16>
    %11 = vector.shape_cast %10 : vector<1x1x128x128xbf16> to vector<128x128xbf16>
    %cst_18 = arith.constant dense<0.000000e+00> : vector<288x128xf32>
    %12 = tpu.matmul %9, %11, %cst_18 {dimension_numbers = #tpu.dot_dimension_numbers<[1], [0], [0], [1], [0, 0, 1, 1], [], []>} : vector<288x128xbf16>, vector<128x128xbf16>, vector<288x128xf32> -> vector<288x128xf32>
    %13 = arith.addf %8, %12 : vector<288x128xf32>
    %c2 = arith.constant 2 : index
    %c0_19 = arith.constant 0 : index
    %14 = vector.load %arg8[%c2, %c0_19] : memref<326x128xbf16, #tpu.memory_space<vmem>>, vector<288x128xbf16>
    %c0_20 = arith.constant 0 : index
    %c2_21 = arith.constant 2 : index
    %c0_22 = arith.constant 0 : index
    %c0_23 = arith.constant 0 : index
    %15 = vector.load %arg2[%c0_20, %c2_21, %c0_22, %c0_23] : memref<4x9x128x128xbf16, #tpu.memory_space<vmem>>, vector<1x1x128x128xbf16>
    %16 = vector.shape_cast %15 : vector<1x1x128x128xbf16> to vector<128x128xbf16>
    %cst_24 = arith.constant dense<0.000000e+00> : vector<288x128xf32>
    %17 = tpu.matmul %14, %16, %cst_24 {dimension_numbers = #tpu.dot_dimension_numbers<[1], [0], [0], [1], [0, 0, 1, 1], [], []>} : vector<288x128xbf16>, vector<128x128xbf16>, vector<288x128xf32> -> vector<288x128xf32>
    %18 = arith.addf %13, %17 : vector<288x128xf32>
    %c18 = arith.constant 18 : index
    %c0_25 = arith.constant 0 : index
    %19 = vector.load %arg8[%c18, %c0_25] : memref<326x128xbf16, #tpu.memory_space<vmem>>, vector<288x128xbf16>
    %c0_26 = arith.constant 0 : index
    %c3 = arith.constant 3 : index
    %c0_27 = arith.constant 0 : index
    %c0_28 = arith.constant 0 : index
    %20 = vector.load %arg2[%c0_26, %c3, %c0_27, %c0_28] : memref<4x9x128x128xbf16, #tpu.memory_space<vmem>>, vector<1x1x128x128xbf16>
    %21 = vector.shape_cast %20 : vector<1x1x128x128xbf16> to vector<128x128xbf16>
    %cst_29 = arith.constant dense<0.000000e+00> : vector<288x128xf32>
    %22 = tpu.matmul %19, %21, %cst_29 {dimension_numbers = #tpu.dot_dimension_numbers<[1], [0], [0], [1], [0, 0, 1, 1], [], []>} : vector<288x128xbf16>, vector<128x128xbf16>, vector<288x128xf32> -> vector<288x128xf32>
    %23 = arith.addf %18, %22 : vector<288x128xf32>
    %c19 = arith.constant 19 : index
    %c0_30 = arith.constant 0 : index
    %24 = vector.load %arg8[%c19, %c0_30] : memref<326x128xbf16, #tpu.memory_space<vmem>>, vector<288x128xbf16>
    %c0_31 = arith.constant 0 : index
    %c4 = arith.constant 4 : index
    %c0_32 = arith.constant 0 : index
    %c0_33 = arith.constant 0 : index
    %25 = vector.load %arg2[%c0_31, %c4, %c0_32, %c0_33] : memref<4x9x128x128xbf16, #tpu.memory_space<vmem>>, vector<1x1x128x128xbf16>
    %26 = vector.shape_cast %25 : vector<1x1x128x128xbf16> to vector<128x128xbf16>
    %cst_34 = arith.constant dense<0.000000e+00> : vector<288x128xf32>
    %27 = tpu.matmul %24, %26, %cst_34 {dimension_numbers = #tpu.dot_dimension_numbers<[1], [0], [0], [1], [0, 0, 1, 1], [], []>} : vector<288x128xbf16>, vector<128x128xbf16>, vector<288x128xf32> -> vector<288x128xf32>
    %28 = arith.addf %23, %27 : vector<288x128xf32>
    %c20 = arith.constant 20 : index
    %c0_35 = arith.constant 0 : index
    %29 = vector.load %arg8[%c20, %c0_35] : memref<326x128xbf16, #tpu.memory_space<vmem>>, vector<288x128xbf16>
    %c0_36 = arith.constant 0 : index
    %c5 = arith.constant 5 : index
    %c0_37 = arith.constant 0 : index
    %c0_38 = arith.constant 0 : index
    %30 = vector.load %arg2[%c0_36, %c5, %c0_37, %c0_38] : memref<4x9x128x128xbf16, #tpu.memory_space<vmem>>, vector<1x1x128x128xbf16>
    %31 = vector.shape_cast %30 : vector<1x1x128x128xbf16> to vector<128x128xbf16>
    %cst_39 = arith.constant dense<0.000000e+00> : vector<288x128xf32>
    %32 = tpu.matmul %29, %31, %cst_39 {dimension_numbers = #tpu.dot_dimension_numbers<[1], [0], [0], [1], [0, 0, 1, 1], [], []>} : vector<288x128xbf16>, vector<128x128xbf16>, vector<288x128xf32> -> vector<288x128xf32>
    %33 = arith.addf %28, %32 : vector<288x128xf32>
    %c36 = arith.constant 36 : index
    %c0_40 = arith.constant 0 : index
    %34 = vector.load %arg8[%c36, %c0_40] : memref<326x128xbf16, #tpu.memory_space<vmem>>, vector<288x128xbf16>
    %c0_41 = arith.constant 0 : index
    %c6 = arith.constant 6 : index
    %c0_42 = arith.constant 0 : index
    %c0_43 = arith.constant 0 : index
    %35 = vector.load %arg2[%c0_41, %c6, %c0_42, %c0_43] : memref<4x9x128x128xbf16, #tpu.memory_space<vmem>>, vector<1x1x128x128xbf16>
    %36 = vector.shape_cast %35 : vector<1x1x128x128xbf16> to vector<128x128xbf16>
    %cst_44 = arith.constant dense<0.000000e+00> : vector<288x128xf32>
    %37 = tpu.matmul %34, %36, %cst_44 {dimension_numbers = #tpu.dot_dimension_numbers<[1], [0], [0], [1], [0, 0, 1, 1], [], []>} : vector<288x128xbf16>, vector<128x128xbf16>, vector<288x128xf32> -> vector<288x128xf32>
    %38 = arith.addf %33, %37 : vector<288x128xf32>
    %c37 = arith.constant 37 : index
    %c0_45 = arith.constant 0 : index
    %39 = vector.load %arg8[%c37, %c0_45] : memref<326x128xbf16, #tpu.memory_space<vmem>>, vector<288x128xbf16>
    %c0_46 = arith.constant 0 : index
    %c7 = arith.constant 7 : index
    %c0_47 = arith.constant 0 : index
    %c0_48 = arith.constant 0 : index
    %40 = vector.load %arg2[%c0_46, %c7, %c0_47, %c0_48] : memref<4x9x128x128xbf16, #tpu.memory_space<vmem>>, vector<1x1x128x128xbf16>
    %41 = vector.shape_cast %40 : vector<1x1x128x128xbf16> to vector<128x128xbf16>
    %cst_49 = arith.constant dense<0.000000e+00> : vector<288x128xf32>
    %42 = tpu.matmul %39, %41, %cst_49 {dimension_numbers = #tpu.dot_dimension_numbers<[1], [0], [0], [1], [0, 0, 1, 1], [], []>} : vector<288x128xbf16>, vector<128x128xbf16>, vector<288x128xf32> -> vector<288x128xf32>
    %43 = arith.addf %38, %42 : vector<288x128xf32>
    %c38 = arith.constant 38 : index
    %c0_50 = arith.constant 0 : index
    %44 = vector.load %arg8[%c38, %c0_50] : memref<326x128xbf16, #tpu.memory_space<vmem>>, vector<288x128xbf16>
    %c0_51 = arith.constant 0 : index
    %c8 = arith.constant 8 : index
    %c0_52 = arith.constant 0 : index
    %c0_53 = arith.constant 0 : index
    %45 = vector.load %arg2[%c0_51, %c8, %c0_52, %c0_53] : memref<4x9x128x128xbf16, #tpu.memory_space<vmem>>, vector<1x1x128x128xbf16>
    %46 = vector.shape_cast %45 : vector<1x1x128x128xbf16> to vector<128x128xbf16>
    %cst_54 = arith.constant dense<0.000000e+00> : vector<288x128xf32>
    %47 = tpu.matmul %44, %46, %cst_54 {dimension_numbers = #tpu.dot_dimension_numbers<[1], [0], [0], [1], [0, 0, 1, 1], [], []>} : vector<288x128xbf16>, vector<128x128xbf16>, vector<288x128xf32> -> vector<288x128xf32>
    %48 = arith.addf %43, %47 : vector<288x128xf32>
    %c0_55 = arith.constant 0 : index
    %c0_56 = arith.constant 0 : index
    %c0_57 = arith.constant 0 : index
    %49 = vector.load %arg3[%c0_55, %c0_56, %c0_57] : memref<4x1x128xf32, #tpu.memory_space<vmem>>, vector<1x1x128xf32>
    %50 = vector.shape_cast %49 : vector<1x1x128xf32> to vector<1x128xf32>
    %51 = vector.broadcast %50 : vector<1x128xf32> to vector<288x128xf32>
    %52 = arith.addf %48, %51 : vector<288x128xf32>
    %cst_58 = arith.constant 0.000000e+00 : f32
    %53 = vector.broadcast %cst_58 : f32 to vector<288x128xf32>
    %54 = arith.maximumf %52, %53 : vector<288x128xf32>
    %c0_59 = arith.constant 0 : index
    %c0_60 = arith.constant 0 : index
    %55 = vector.load %arg9[%c0_59, %c0_60] : memref<288x128xf32, #tpu.memory_space<vmem>>, vector<288x128xf32>
    tpu.vector_store %arg9[%c0_59, %c0_60], %54 {strides = array<i32>} : memref<288x128xf32, #tpu.memory_space<vmem>>, vector<288x128xf32>,
    %c0_61 = arith.constant 0 : index
    %c0_62 = arith.constant 0 : index
    %56 = vector.load %arg9[%c0_61, %c0_62] : memref<288x128xf32, #tpu.memory_space<vmem>>, vector<269x128xf32>
    %c1_63 = arith.constant 1 : index
    %c0_64 = arith.constant 0 : index
    %57 = vector.load %arg9[%c1_63, %c0_64] : memref<288x128xf32, #tpu.memory_space<vmem>>, vector<269x128xf32>
    %58 = arith.maximumf %56, %57 : vector<269x128xf32>
    %c18_65 = arith.constant 18 : index
    %c0_66 = arith.constant 0 : index
    %59 = vector.load %arg9[%c18_65, %c0_66] : memref<288x128xf32, #tpu.memory_space<vmem>>, vector<269x128xf32>
    %c19_67 = arith.constant 19 : index
    %c0_68 = arith.constant 0 : index
    %60 = vector.load %arg9[%c19_67, %c0_68] : memref<288x128xf32, #tpu.memory_space<vmem>>, vector<269x128xf32>
    %61 = arith.maximumf %59, %60 : vector<269x128xf32>
    %62 = arith.maximumf %58, %61 : vector<269x128xf32>
    %c0_69 = arith.constant 0 : index
    %c0_70 = arith.constant 0 : index
    %63 = vector.load %arg9[%c0_69, %c0_70] : memref<288x128xf32, #tpu.memory_space<vmem>>, vector<269x128xf32>
    tpu.vector_store %arg9[%c0_69, %c0_70], %62 {strides = array<i32>} : memref<288x128xf32, #tpu.memory_space<vmem>>, vector<269x128xf32>,
    %cst_71 = arith.constant 0.000000e+00 : bf16
    %64 = vector.broadcast %cst_71 : bf16 to vector<12x128xbf16>
    %c0_72 = arith.constant 0 : index
    %c0_73 = arith.constant 0 : index
    %65 = vector.load %arg8[%c0_72, %c0_73] : memref<326x128xbf16, #tpu.memory_space<vmem>>, vector<12x128xbf16>
    tpu.vector_store %arg8[%c0_72, %c0_73], %64 {strides = array<i32>} : memref<326x128xbf16, #tpu.memory_space<vmem>>, vector<12x128xbf16>,
    %cst_74 = arith.constant 0.000000e+00 : bf16
    %66 = vector.broadcast %cst_74 : bf16 to vector<12x128xbf16>
    %c90 = arith.constant 90 : index
    %c0_75 = arith.constant 0 : index
    %67 = vector.load %arg8[%c90, %c0_75] : memref<326x128xbf16, #tpu.memory_space<vmem>>, vector<12x128xbf16>
    tpu.vector_store %arg8[%c90, %c0_75], %66 {strides = array<i32>} : memref<326x128xbf16, #tpu.memory_space<vmem>>, vector<12x128xbf16>,
    %cst_76 = arith.constant 0.000000e+00 : bf16
    %68 = vector.broadcast %cst_76 : bf16 to vector<2x128xbf16>
    %c1_77 = arith.constant 1 : index
    %c0_78 = arith.constant 0 : index
    %69 = tpu.strided_load %arg9[%c1_77, %c0_78] {strides = array<i32: 2, 1>} : memref<288x128xf32, #tpu.memory_space<vmem>>, vector<8x128xf32>
    %70 = arith.truncf %69 : vector<8x128xf32> to vector<8x128xbf16>
    %c12 = arith.constant 12 : index
    %c0_79 = arith.constant 0 : index
    %71 = vector.load %arg8[%c12, %c0_79] : memref<326x128xbf16, #tpu.memory_space<vmem>>, vector<8x128xbf16>
    tpu.vector_store %arg8[%c12, %c0_79], %70 {strides = array<i32>} : memref<326x128xbf16, #tpu.memory_space<vmem>>, vector<8x128xbf16>,
    %c20_80 = arith.constant 20 : index
    %c0_81 = arith.constant 0 : index
    %72 = vector.load %arg8[%c20_80, %c0_81] : memref<326x128xbf16, #tpu.memory_space<vmem>>, vector<2x128xbf16>
    tpu.vector_store %arg8[%c20_80, %c0_81], %68 {strides = array<i32>} : memref<326x128xbf16, #tpu.memory_space<vmem>>, vector<2x128xbf16>,
    %c37_82 = arith.constant 37 : index
    %c0_83 = arith.constant 0 : index
    %73 = tpu.strided_load %arg9[%c37_82, %c0_83] {strides = array<i32: 2, 1>} : memref<288x128xf32, #tpu.memory_space<vmem>>, vector<8x128xf32>
    %74 = arith.truncf %73 : vector<8x128xf32> to vector<8x128xbf16>
    %c22 = arith.constant 22 : index
    %c0_84 = arith.constant 0 : index
    %75 = vector.load %arg8[%c22, %c0_84] : memref<326x128xbf16, #tpu.memory_space<vmem>>, vector<8x128xbf16>
    tpu.vector_store %arg8[%c22, %c0_84], %74 {strides = array<i32>} : memref<326x128xbf16, #tpu.memory_space<vmem>>, vector<8x128xbf16>,
    %c30 = arith.constant 30 : index
    %c0_85 = arith.constant 0 : index
    %76 = vector.load %arg8[%c30, %c0_85] : memref<326x128xbf16, #tpu.memory_space<vmem>>, vector<2x128xbf16>
    tpu.vector_store %arg8[%c30, %c0_85], %68 {strides = array<i32>} : memref<326x128xbf16, #tpu.memory_space<vmem>>, vector<2x128xbf16>,
    %c73 = arith.constant 73 : index
    %c0_86 = arith.constant 0 : index
    %77 = tpu.strided_load %arg9[%c73, %c0_86] {strides = array<i32: 2, 1>} : memref<288x128xf32, #tpu.memory_space<vmem>>, vector<8x128xf32>
    %78 = arith.truncf %77 : vector<8x128xf32> to vector<8x128xbf16>
    %c32 = arith.constant 32 : index
    %c0_87 = arith.constant 0 : index
    %79 = vector.load %arg8[%c32, %c0_87] : memref<326x128xbf16, #tpu.memory_space<vmem>>, vector<8x128xbf16>
    tpu.vector_store %arg8[%c32, %c0_87], %78 {strides = array<i32>} : memref<326x128xbf16, #tpu.memory_space<vmem>>, vector<8x128xbf16>,
    %c40 = arith.constant 40 : index
    %c0_88 = arith.constant 0 : index
    %80 = vector.load %arg8[%c40, %c0_88] : memref<326x128xbf16, #tpu.memory_space<vmem>>, vector<2x128xbf16>
    tpu.vector_store %arg8[%c40, %c0_88], %68 {strides = array<i32>} : memref<326x128xbf16, #tpu.memory_space<vmem>>, vector<2x128xbf16>,
    %c109 = arith.constant 109 : index
    %c0_89 = arith.constant 0 : index
    %81 = tpu.strided_load %arg9[%c109, %c0_89] {strides = array<i32: 2, 1>} : memref<288x128xf32, #tpu.memory_space<vmem>>, vector<8x128xf32>
    %82 = arith.truncf %81 : vector<8x128xf32> to vector<8x128xbf16>
    %c42 = arith.constant 42 : index
    %c0_90 = arith.constant 0 : index
    %83 = vector.load %arg8[%c42, %c0_90] : memref<326x128xbf16, #tpu.memory_space<vmem>>, vector<8x128xbf16>
    tpu.vector_store %arg8[%c42, %c0_90], %82 {strides = array<i32>} : memref<326x128xbf16, #tpu.memory_space<vmem>>, vector<8x128xbf16>,
    %c50 = arith.constant 50 : index
    %c0_91 = arith.constant 0 : index
    %84 = vector.load %arg8[%c50, %c0_91] : memref<326x128xbf16, #tpu.memory_space<vmem>>, vector<2x128xbf16>
    tpu.vector_store %arg8[%c50, %c0_91], %68 {strides = array<i32>} : memref<326x128xbf16, #tpu.memory_space<vmem>>, vector<2x128xbf16>,
    %c145 = arith.constant 145 : index
    %c0_92 = arith.constant 0 : index
    %85 = tpu.strided_load %arg9[%c145, %c0_92] {strides = array<i32: 2, 1>} : memref<288x128xf32, #tpu.memory_space<vmem>>, vector<8x128xf32>
    %86 = arith.truncf %85 : vector<8x128xf32> to vector<8x128xbf16>
    %c52 = arith.constant 52 : index
    %c0_93 = arith.constant 0 : index
    %87 = vector.load %arg8[%c52, %c0_93] : memref<326x128xbf16, #tpu.memory_space<vmem>>, vector<8x128xbf16>
    tpu.vector_store %arg8[%c52, %c0_93], %86 {strides = array<i32>} : memref<326x128xbf16, #tpu.memory_space<vmem>>, vector<8x128xbf16>,
    %c60 = arith.constant 60 : index
    %c0_94 = arith.constant 0 : index
    %88 = vector.load %arg8[%c60, %c0_94] : memref<326x128xbf16, #tpu.memory_space<vmem>>, vector<2x128xbf16>
    tpu.vector_store %arg8[%c60, %c0_94], %68 {strides = array<i32>} : memref<326x128xbf16, #tpu.memory_space<vmem>>, vector<2x128xbf16>,
    %c181 = arith.constant 181 : index
    %c0_95 = arith.constant 0 : index
    %89 = tpu.strided_load %arg9[%c181, %c0_95] {strides = array<i32: 2, 1>} : memref<288x128xf32, #tpu.memory_space<vmem>>, vector<8x128xf32>
    %90 = arith.truncf %89 : vector<8x128xf32> to vector<8x128xbf16>
    %c62 = arith.constant 62 : index
    %c0_96 = arith.constant 0 : index
    %91 = vector.load %arg8[%c62, %c0_96] : memref<326x128xbf16, #tpu.memory_space<vmem>>, vector<8x128xbf16>
    tpu.vector_store %arg8[%c62, %c0_96], %90 {strides = array<i32>} : memref<326x128xbf16, #tpu.memory_space<vmem>>, vector<8x128xbf16>,
    %c70 = arith.constant 70 : index
    %c0_97 = arith.constant 0 : index
    %92 = vector.load %arg8[%c70, %c0_97] : memref<326x128xbf16, #tpu.memory_space<vmem>>, vector<2x128xbf16>
    tpu.vector_store %arg8[%c70, %c0_97], %68 {strides = array<i32>} : memref<326x128xbf16, #tpu.memory_space<vmem>>, vector<2x128xbf16>,
    %c217 = arith.constant 217 : index
    %c0_98 = arith.constant 0 : index
    %93 = tpu.strided_load %arg9[%c217, %c0_98] {strides = array<i32: 2, 1>} : memref<288x128xf32, #tpu.memory_space<vmem>>, vector<8x128xf32>
    %94 = arith.truncf %93 : vector<8x128xf32> to vector<8x128xbf16>
    %c72 = arith.constant 72 : index
    %c0_99 = arith.constant 0 : index
    %95 = vector.load %arg8[%c72, %c0_99] : memref<326x128xbf16, #tpu.memory_space<vmem>>, vector<8x128xbf16>
    tpu.vector_store %arg8[%c72, %c0_99], %94 {strides = array<i32>} : memref<326x128xbf16, #tpu.memory_space<vmem>>, vector<8x128xbf16>,
    %c80 = arith.constant 80 : index
    %c0_100 = arith.constant 0 : index
    %96 = vector.load %arg8[%c80, %c0_100] : memref<326x128xbf16, #tpu.memory_space<vmem>>, vector<2x128xbf16>
    tpu.vector_store %arg8[%c80, %c0_100], %68 {strides = array<i32>} : memref<326x128xbf16, #tpu.memory_space<vmem>>, vector<2x128xbf16>,
    %c253 = arith.constant 253 : index
    %c0_101 = arith.constant 0 : index
    %97 = tpu.strided_load %arg9[%c253, %c0_101] {strides = array<i32: 2, 1>} : memref<288x128xf32, #tpu.memory_space<vmem>>, vector<8x128xf32>
    %98 = arith.truncf %97 : vector<8x128xf32> to vector<8x128xbf16>
    %c82 = arith.constant 82 : index
    %c0_102 = arith.constant 0 : index
    %99 = vector.load %arg8[%c82, %c0_102] : memref<326x128xbf16, #tpu.memory_space<vmem>>, vector<8x128xbf16>
    tpu.vector_store %arg8[%c82, %c0_102], %98 {strides = array<i32>} : memref<326x128xbf16, #tpu.memory_space<vmem>>, vector<8x128xbf16>,
    %c0_103 = arith.constant 0 : index
    %c0_104 = arith.constant 0 : index
    %100 = vector.load %arg8[%c0_103, %c0_104] : memref<326x128xbf16, #tpu.memory_space<vmem>>, vector<80x128xbf16>
    %c1_105 = arith.constant 1 : index
    %c0_106 = arith.constant 0 : index
    %c0_107 = arith.constant 0 : index
    %c0_108 = arith.constant 0 : index
    %101 = vector.load %arg2[%c1_105, %c0_106, %c0_107, %c0_108] : memref<4x9x128x128xbf16, #tpu.memory_space<vmem>>, vector<1x1x128x128xbf16>
    %102 = vector.shape_cast %101 : vector<1x1x128x128xbf16> to vector<128x128xbf16>
    %cst_109 = arith.constant dense<0.000000e+00> : vector<80x128xf32>
    %103 = tpu.matmul %100, %102, %cst_109 {dimension_numbers = #tpu.dot_dimension_numbers<[1], [0], [0], [1], [0, 0, 1, 1], [], []>} : vector<80x128xbf16>, vector<128x128xbf16>, vector<80x128xf32> -> vector<80x128xf32>
    %c1_110 = arith.constant 1 : index
    %c0_111 = arith.constant 0 : index
    %104 = vector.load %arg8[%c1_110, %c0_111] : memref<326x128xbf16, #tpu.memory_space<vmem>>, vector<80x128xbf16>
    %c1_112 = arith.constant 1 : index
    %c1_113 = arith.constant 1 : index
    %c0_114 = arith.constant 0 : index
    %c0_115 = arith.constant 0 : index
    %105 = vector.load %arg2[%c1_112, %c1_113, %c0_114, %c0_115] : memref<4x9x128x128xbf16, #tpu.memory_space<vmem>>, vector<1x1x128x128xbf16>
    %106 = vector.shape_cast %105 : vector<1x1x128x128xbf16> to vector<128x128xbf16>
    %cst_116 = arith.constant dense<0.000000e+00> : vector<80x128xf32>
    %107 = tpu.matmul %104, %106, %cst_116 {dimension_numbers = #tpu.dot_dimension_numbers<[1], [0], [0], [1], [0, 0, 1, 1], [], []>} : vector<80x128xbf16>, vector<128x128xbf16>, vector<80x128xf32> -> vector<80x128xf32>
    %108 = arith.addf %103, %107 : vector<80x128xf32>
    %c2_117 = arith.constant 2 : index
    %c0_118 = arith.constant 0 : index
    %109 = vector.load %arg8[%c2_117, %c0_118] : memref<326x128xbf16, #tpu.memory_space<vmem>>, vector<80x128xbf16>
    %c1_119 = arith.constant 1 : index
    %c2_120 = arith.constant 2 : index
    %c0_121 = arith.constant 0 : index
    %c0_122 = arith.constant 0 : index
    %110 = vector.load %arg2[%c1_119, %c2_120, %c0_121, %c0_122] : memref<4x9x128x128xbf16, #tpu.memory_space<vmem>>, vector<1x1x128x128xbf16>
    %111 = vector.shape_cast %110 : vector<1x1x128x128xbf16> to vector<128x128xbf16>
    %cst_123 = arith.constant dense<0.000000e+00> : vector<80x128xf32>
    %112 = tpu.matmul %109, %111, %cst_123 {dimension_numbers = #tpu.dot_dimension_numbers<[1], [0], [0], [1], [0, 0, 1, 1], [], []>} : vector<80x128xbf16>, vector<128x128xbf16>, vector<80x128xf32> -> vector<80x128xf32>
    %113 = arith.addf %108, %112 : vector<80x128xf32>
    %c10 = arith.constant 10 : index
    %c0_124 = arith.constant 0 : index
    %114 = vector.load %arg8[%c10, %c0_124] : memref<326x128xbf16, #tpu.memory_space<vmem>>, vector<80x128xbf16>
    %c1_125 = arith.constant 1 : index
    %c3_126 = arith.constant 3 : index
    %c0_127 = arith.constant 0 : index
    %c0_128 = arith.constant 0 : index
    %115 = vector.load %arg2[%c1_125, %c3_126, %c0_127, %c0_128] : memref<4x9x128x128xbf16, #tpu.memory_space<vmem>>, vector<1x1x128x128xbf16>
    %116 = vector.shape_cast %115 : vector<1x1x128x128xbf16> to vector<128x128xbf16>
    %cst_129 = arith.constant dense<0.000000e+00> : vector<80x128xf32>
    %117 = tpu.matmul %114, %116, %cst_129 {dimension_numbers = #tpu.dot_dimension_numbers<[1], [0], [0], [1], [0, 0, 1, 1], [], []>} : vector<80x128xbf16>, vector<128x128xbf16>, vector<80x128xf32> -> vector<80x128xf32>
    %118 = arith.addf %113, %117 : vector<80x128xf32>
    %c11 = arith.constant 11 : index
    %c0_130 = arith.constant 0 : index
    %119 = vector.load %arg8[%c11, %c0_130] : memref<326x128xbf16, #tpu.memory_space<vmem>>, vector<80x128xbf16>
    %c1_131 = arith.constant 1 : index
    %c4_132 = arith.constant 4 : index
    %c0_133 = arith.constant 0 : index
    %c0_134 = arith.constant 0 : index
    %120 = vector.load %arg2[%c1_131, %c4_132, %c0_133, %c0_134] : memref<4x9x128x128xbf16, #tpu.memory_space<vmem>>, vector<1x1x128x128xbf16>
    %121 = vector.shape_cast %120 : vector<1x1x128x128xbf16> to vector<128x128xbf16>
    %cst_135 = arith.constant dense<0.000000e+00> : vector<80x128xf32>
    %122 = tpu.matmul %119, %121, %cst_135 {dimension_numbers = #tpu.dot_dimension_numbers<[1], [0], [0], [1], [0, 0, 1, 1], [], []>} : vector<80x128xbf16>, vector<128x128xbf16>, vector<80x128xf32> -> vector<80x128xf32>
    %123 = arith.addf %118, %122 : vector<80x128xf32>
    %c12_136 = arith.constant 12 : index
    %c0_137 = arith.constant 0 : index
    %124 = vector.load %arg8[%c12_136, %c0_137] : memref<326x128xbf16, #tpu.memory_space<vmem>>, vector<80x128xbf16>
    %c1_138 = arith.constant 1 : index
    %c5_139 = arith.constant 5 : index
    %c0_140 = arith.constant 0 : index
    %c0_141 = arith.constant 0 : index
    %125 = vector.load %arg2[%c1_138, %c5_139, %c0_140, %c0_141] : memref<4x9x128x128xbf16, #tpu.memory_space<vmem>>, vector<1x1x128x128xbf16>
    %126 = vector.shape_cast %125 : vector<1x1x128x128xbf16> to vector<128x128xbf16>
    %cst_142 = arith.constant dense<0.000000e+00> : vector<80x128xf32>
    %127 = tpu.matmul %124, %126, %cst_142 {dimension_numbers = #tpu.dot_dimension_numbers<[1], [0], [0], [1], [0, 0, 1, 1], [], []>} : vector<80x128xbf16>, vector<128x128xbf16>, vector<80x128xf32> -> vector<80x128xf32>
    %128 = arith.addf %123, %127 : vector<80x128xf32>
    %c20_143 = arith.constant 20 : index
    %c0_144 = arith.constant 0 : index
    %129 = vector.load %arg8[%c20_143, %c0_144] : memref<326x128xbf16, #tpu.memory_space<vmem>>, vector<80x128xbf16>
    %c1_145 = arith.constant 1 : index
    %c6_146 = arith.constant 6 : index
    %c0_147 = arith.constant 0 : index
    %c0_148 = arith.constant 0 : index
    %130 = vector.load %arg2[%c1_145, %c6_146, %c0_147, %c0_148] : memref<4x9x128x128xbf16, #tpu.memory_space<vmem>>, vector<1x1x128x128xbf16>
    %131 = vector.shape_cast %130 : vector<1x1x128x128xbf16> to vector<128x128xbf16>
    %cst_149 = arith.constant dense<0.000000e+00> : vector<80x128xf32>
    %132 = tpu.matmul %129, %131, %cst_149 {dimension_numbers = #tpu.dot_dimension_numbers<[1], [0], [0], [1], [0, 0, 1, 1], [], []>} : vector<80x128xbf16>, vector<128x128xbf16>, vector<80x128xf32> -> vector<80x128xf32>
    %133 = arith.addf %128, %132 : vector<80x128xf32>
    %c21 = arith.constant 21 : index
    %c0_150 = arith.constant 0 : index
    %134 = vector.load %arg8[%c21, %c0_150] : memref<326x128xbf16, #tpu.memory_space<vmem>>, vector<80x128xbf16>
    %c1_151 = arith.constant 1 : index
    %c7_152 = arith.constant 7 : index
    %c0_153 = arith.constant 0 : index
    %c0_154 = arith.constant 0 : index
    %135 = vector.load %arg2[%c1_151, %c7_152, %c0_153, %c0_154] : memref<4x9x128x128xbf16, #tpu.memory_space<vmem>>, vector<1x1x128x128xbf16>
    %136 = vector.shape_cast %135 : vector<1x1x128x128xbf16> to vector<128x128xbf16>
    %cst_155 = arith.constant dense<0.000000e+00> : vector<80x128xf32>
    %137 = tpu.matmul %134, %136, %cst_155 {dimension_numbers = #tpu.dot_dimension_numbers<[1], [0], [0], [1], [0, 0, 1, 1], [], []>} : vector<80x128xbf16>, vector<128x128xbf16>, vector<80x128xf32> -> vector<80x128xf32>
    %138 = arith.addf %133, %137 : vector<80x128xf32>
    %c22_156 = arith.constant 22 : index
    %c0_157 = arith.constant 0 : index
    %139 = vector.load %arg8[%c22_156, %c0_157] : memref<326x128xbf16, #tpu.memory_space<vmem>>, vector<80x128xbf16>
    %c1_158 = arith.constant 1 : index
    %c8_159 = arith.constant 8 : index
    %c0_160 = arith.constant 0 : index
    %c0_161 = arith.constant 0 : index
    %140 = vector.load %arg2[%c1_158, %c8_159, %c0_160, %c0_161] : memref<4x9x128x128xbf16, #tpu.memory_space<vmem>>, vector<1x1x128x128xbf16>
    %141 = vector.shape_cast %140 : vector<1x1x128x128xbf16> to vector<128x128xbf16>
    %cst_162 = arith.constant dense<0.000000e+00> : vector<80x128xf32>
    %142 = tpu.matmul %139, %141, %cst_162 {dimension_numbers = #tpu.dot_dimension_numbers<[1], [0], [0], [1], [0, 0, 1, 1], [], []>} : vector<80x128xbf16>, vector<128x128xbf16>, vector<80x128xf32> -> vector<80x128xf32>
    %143 = arith.addf %138, %142 : vector<80x128xf32>
    %c1_163 = arith.constant 1 : index
    %c0_164 = arith.constant 0 : index
    %c0_165 = arith.constant 0 : index
    %144 = vector.load %arg3[%c1_163, %c0_164, %c0_165] : memref<4x1x128xf32, #tpu.memory_space<vmem>>, vector<1x1x128xf32>
    %145 = vector.shape_cast %144 : vector<1x1x128xf32> to vector<1x128xf32>
    %146 = vector.broadcast %145 : vector<1x128xf32> to vector<80x128xf32>
    %147 = arith.addf %143, %146 : vector<80x128xf32>
    %cst_166 = arith.constant 0.000000e+00 : f32
    %148 = vector.broadcast %cst_166 : f32 to vector<80x128xf32>
    %149 = arith.maximumf %147, %148 : vector<80x128xf32>
    %c0_167 = arith.constant 0 : index
    %c0_168 = arith.constant 0 : index
    %150 = vector.load %arg9[%c0_167, %c0_168] : memref<288x128xf32, #tpu.memory_space<vmem>>, vector<80x128xf32>
    tpu.vector_store %arg9[%c0_167, %c0_168], %149 {strides = array<i32>} : memref<288x128xf32, #tpu.memory_space<vmem>>, vector<80x128xf32>,
    %c0_169 = arith.constant 0 : index
    %c0_170 = arith.constant 0 : index
    %151 = vector.load %arg9[%c0_169, %c0_170] : memref<288x128xf32, #tpu.memory_space<vmem>>, vector<69x128xf32>
    %c1_171 = arith.constant 1 : index
    %c0_172 = arith.constant 0 : index
    %152 = vector.load %arg9[%c1_171, %c0_172] : memref<288x128xf32, #tpu.memory_space<vmem>>, vector<69x128xf32>
    %153 = arith.maximumf %151, %152 : vector<69x128xf32>
    %c10_173 = arith.constant 10 : index
    %c0_174 = arith.constant 0 : index
    %154 = vector.load %arg9[%c10_173, %c0_174] : memref<288x128xf32, #tpu.memory_space<vmem>>, vector<69x128xf32>
    %c11_175 = arith.constant 11 : index
    %c0_176 = arith.constant 0 : index
    %155 = vector.load %arg9[%c11_175, %c0_176] : memref<288x128xf32, #tpu.memory_space<vmem>>, vector<69x128xf32>
    %156 = arith.maximumf %154, %155 : vector<69x128xf32>
    %157 = arith.maximumf %153, %156 : vector<69x128xf32>
    %c0_177 = arith.constant 0 : index
    %c0_178 = arith.constant 0 : index
    %158 = vector.load %arg9[%c0_177, %c0_178] : memref<288x128xf32, #tpu.memory_space<vmem>>, vector<69x128xf32>
    tpu.vector_store %arg9[%c0_177, %c0_178], %157 {strides = array<i32>} : memref<288x128xf32, #tpu.memory_space<vmem>>, vector<69x128xf32>,
    %cst_179 = arith.constant 0.000000e+00 : bf16
    %159 = vector.broadcast %cst_179 : bf16 to vector<8x128xbf16>
    %c0_180 = arith.constant 0 : index
    %c0_181 = arith.constant 0 : index
    %160 = vector.load %arg8[%c0_180, %c0_181] : memref<326x128xbf16, #tpu.memory_space<vmem>>, vector<8x128xbf16>
    tpu.vector_store %arg8[%c0_180, %c0_181], %159 {strides = array<i32>} : memref<326x128xbf16, #tpu.memory_space<vmem>>, vector<8x128xbf16>,
    %cst_182 = arith.constant 0.000000e+00 : bf16
    %161 = vector.broadcast %cst_182 : bf16 to vector<8x128xbf16>
    %c30_183 = arith.constant 30 : index
    %c0_184 = arith.constant 0 : index
    %162 = vector.load %arg8[%c30_183, %c0_184] : memref<326x128xbf16, #tpu.memory_space<vmem>>, vector<8x128xbf16>
    tpu.vector_store %arg8[%c30_183, %c0_184], %161 {strides = array<i32>} : memref<326x128xbf16, #tpu.memory_space<vmem>>, vector<8x128xbf16>,
    %cst_185 = arith.constant 0.000000e+00 : bf16
    %163 = vector.broadcast %cst_185 : bf16 to vector<2x128xbf16>
    %c1_186 = arith.constant 1 : index
    %c0_187 = arith.constant 0 : index
    %164 = tpu.strided_load %arg9[%c1_186, %c0_187] {strides = array<i32: 2, 1>} : memref<288x128xf32, #tpu.memory_space<vmem>>, vector<4x128xf32>
    %165 = arith.truncf %164 : vector<4x128xf32> to vector<4x128xbf16>
    %c8_188 = arith.constant 8 : index
    %c0_189 = arith.constant 0 : index
    %166 = vector.load %arg8[%c8_188, %c0_189] : memref<326x128xbf16, #tpu.memory_space<vmem>>, vector<4x128xbf16>
    tpu.vector_store %arg8[%c8_188, %c0_189], %165 {strides = array<i32>} : memref<326x128xbf16, #tpu.memory_space<vmem>>, vector<4x128xbf16>,
    %c12_190 = arith.constant 12 : index
    %c0_191 = arith.constant 0 : index
    %167 = vector.load %arg8[%c12_190, %c0_191] : memref<326x128xbf16, #tpu.memory_space<vmem>>, vector<2x128xbf16>
    tpu.vector_store %arg8[%c12_190, %c0_191], %163 {strides = array<i32>} : memref<326x128xbf16, #tpu.memory_space<vmem>>, vector<2x128xbf16>,
    %c21_192 = arith.constant 21 : index
    %c0_193 = arith.constant 0 : index
    %168 = tpu.strided_load %arg9[%c21_192, %c0_193] {strides = array<i32: 2, 1>} : memref<288x128xf32, #tpu.memory_space<vmem>>, vector<4x128xf32>
    %169 = arith.truncf %168 : vector<4x128xf32> to vector<4x128xbf16>
    %c14 = arith.constant 14 : index
    %c0_194 = arith.constant 0 : index
    %170 = vector.load %arg8[%c14, %c0_194] : memref<326x128xbf16, #tpu.memory_space<vmem>>, vector<4x128xbf16>
    tpu.vector_store %arg8[%c14, %c0_194], %169 {strides = array<i32>} : memref<326x128xbf16, #tpu.memory_space<vmem>>, vector<4x128xbf16>,
    %c18_195 = arith.constant 18 : index
    %c0_196 = arith.constant 0 : index
    %171 = vector.load %arg8[%c18_195, %c0_196] : memref<326x128xbf16, #tpu.memory_space<vmem>>, vector<2x128xbf16>
    tpu.vector_store %arg8[%c18_195, %c0_196], %163 {strides = array<i32>} : memref<326x128xbf16, #tpu.memory_space<vmem>>, vector<2x128xbf16>,
    %c41 = arith.constant 41 : index
    %c0_197 = arith.constant 0 : index
    %172 = tpu.strided_load %arg9[%c41, %c0_197] {strides = array<i32: 2, 1>} : memref<288x128xf32, #tpu.memory_space<vmem>>, vector<4x128xf32>
    %173 = arith.truncf %172 : vector<4x128xf32> to vector<4x128xbf16>
    %c20_198 = arith.constant 20 : index
    %c0_199 = arith.constant 0 : index
    %174 = vector.load %arg8[%c20_198, %c0_199] : memref<326x128xbf16, #tpu.memory_space<vmem>>, vector<4x128xbf16>
    tpu.vector_store %arg8[%c20_198, %c0_199], %173 {strides = array<i32>} : memref<326x128xbf16, #tpu.memory_space<vmem>>, vector<4x128xbf16>,
    %c24 = arith.constant 24 : index
    %c0_200 = arith.constant 0 : index
    %175 = vector.load %arg8[%c24, %c0_200] : memref<326x128xbf16, #tpu.memory_space<vmem>>, vector<2x128xbf16>
    tpu.vector_store %arg8[%c24, %c0_200], %163 {strides = array<i32>} : memref<326x128xbf16, #tpu.memory_space<vmem>>, vector<2x128xbf16>,
    %c61 = arith.constant 61 : index
    %c0_201 = arith.constant 0 : index
    %176 = tpu.strided_load %arg9[%c61, %c0_201] {strides = array<i32: 2, 1>} : memref<288x128xf32, #tpu.memory_space<vmem>>, vector<4x128xf32>
    %177 = arith.truncf %176 : vector<4x128xf32> to vector<4x128xbf16>
    %c26 = arith.constant 26 : index
    %c0_202 = arith.constant 0 : index
    %178 = vector.load %arg8[%c26, %c0_202] : memref<326x128xbf16, #tpu.memory_space<vmem>>, vector<4x128xbf16>
    tpu.vector_store %arg8[%c26, %c0_202], %177 {strides = array<i32>} : memref<326x128xbf16, #tpu.memory_space<vmem>>, vector<4x128xbf16>,
    %c0_203 = arith.constant 0 : index
    %c0_204 = arith.constant 0 : index
    %179 = vector.load %arg8[%c0_203, %c0_204] : memref<326x128xbf16, #tpu.memory_space<vmem>>, vector<24x128xbf16>
    %c2_205 = arith.constant 2 : index
    %c0_206 = arith.constant 0 : index
    %c0_207 = arith.constant 0 : index
    %c0_208 = arith.constant 0 : index
    %180 = vector.load %arg2[%c2_205, %c0_206, %c0_207, %c0_208] : memref<4x9x128x128xbf16, #tpu.memory_space<vmem>>, vector<1x1x128x128xbf16>
    %181 = vector.shape_cast %180 : vector<1x1x128x128xbf16> to vector<128x128xbf16>
    %cst_209 = arith.constant dense<0.000000e+00> : vector<24x128xf32>
    %182 = tpu.matmul %179, %181, %cst_209 {dimension_numbers = #tpu.dot_dimension_numbers<[1], [0], [0], [1], [0, 0, 1, 1], [], []>} : vector<24x128xbf16>, vector<128x128xbf16>, vector<24x128xf32> -> vector<24x128xf32>
    %c1_210 = arith.constant 1 : index
    %c0_211 = arith.constant 0 : index
    %183 = vector.load %arg8[%c1_210, %c0_211] : memref<326x128xbf16, #tpu.memory_space<vmem>>, vector<24x128xbf16>
    %c2_212 = arith.constant 2 : index
    %c1_213 = arith.constant 1 : index
    %c0_214 = arith.constant 0 : index
    %c0_215 = arith.constant 0 : index
    %184 = vector.load %arg2[%c2_212, %c1_213, %c0_214, %c0_215] : memref<4x9x128x128xbf16, #tpu.memory_space<vmem>>, vector<1x1x128x128xbf16>
    %185 = vector.shape_cast %184 : vector<1x1x128x128xbf16> to vector<128x128xbf16>
    %cst_216 = arith.constant dense<0.000000e+00> : vector<24x128xf32>
    %186 = tpu.matmul %183, %185, %cst_216 {dimension_numbers = #tpu.dot_dimension_numbers<[1], [0], [0], [1], [0, 0, 1, 1], [], []>} : vector<24x128xbf16>, vector<128x128xbf16>, vector<24x128xf32> -> vector<24x128xf32>
    %187 = arith.addf %182, %186 : vector<24x128xf32>
    %c2_217 = arith.constant 2 : index
    %c0_218 = arith.constant 0 : index
    %188 = vector.load %arg8[%c2_217, %c0_218] : memref<326x128xbf16, #tpu.memory_space<vmem>>, vector<24x128xbf16>
    %c2_219 = arith.constant 2 : index
    %c2_220 = arith.constant 2 : index
    %c0_221 = arith.constant 0 : index
    %c0_222 = arith.constant 0 : index
    %189 = vector.load %arg2[%c2_219, %c2_220, %c0_221, %c0_222] : memref<4x9x128x128xbf16, #tpu.memory_space<vmem>>, vector<1x1x128x128xbf16>
    %190 = vector.shape_cast %189 : vector<1x1x128x128xbf16> to vector<128x128xbf16>
    %cst_223 = arith.constant dense<0.000000e+00> : vector<24x128xf32>
    %191 = tpu.matmul %188, %190, %cst_223 {dimension_numbers = #tpu.dot_dimension_numbers<[1], [0], [0], [1], [0, 0, 1, 1], [], []>} : vector<24x128xbf16>, vector<128x128xbf16>, vector<24x128xf32> -> vector<24x128xf32>
    %192 = arith.addf %187, %191 : vector<24x128xf32>
    %c6_224 = arith.constant 6 : index
    %c0_225 = arith.constant 0 : index
    %193 = vector.load %arg8[%c6_224, %c0_225] : memref<326x128xbf16, #tpu.memory_space<vmem>>, vector<24x128xbf16>
    %c2_226 = arith.constant 2 : index
    %c3_227 = arith.constant 3 : index
    %c0_228 = arith.constant 0 : index
    %c0_229 = arith.constant 0 : index
    %194 = vector.load %arg2[%c2_226, %c3_227, %c0_228, %c0_229] : memref<4x9x128x128xbf16, #tpu.memory_space<vmem>>, vector<1x1x128x128xbf16>
    %195 = vector.shape_cast %194 : vector<1x1x128x128xbf16> to vector<128x128xbf16>
    %cst_230 = arith.constant dense<0.000000e+00> : vector<24x128xf32>
    %196 = tpu.matmul %193, %195, %cst_230 {dimension_numbers = #tpu.dot_dimension_numbers<[1], [0], [0], [1], [0, 0, 1, 1], [], []>} : vector<24x128xbf16>, vector<128x128xbf16>, vector<24x128xf32> -> vector<24x128xf32>
    %197 = arith.addf %192, %196 : vector<24x128xf32>
    %c7_231 = arith.constant 7 : index
    %c0_232 = arith.constant 0 : index
    %198 = vector.load %arg8[%c7_231, %c0_232] : memref<326x128xbf16, #tpu.memory_space<vmem>>, vector<24x128xbf16>
    %c2_233 = arith.constant 2 : index
    %c4_234 = arith.constant 4 : index
    %c0_235 = arith.constant 0 : index
    %c0_236 = arith.constant 0 : index
    %199 = vector.load %arg2[%c2_233, %c4_234, %c0_235, %c0_236] : memref<4x9x128x128xbf16, #tpu.memory_space<vmem>>, vector<1x1x128x128xbf16>
    %200 = vector.shape_cast %199 : vector<1x1x128x128xbf16> to vector<128x128xbf16>
    %cst_237 = arith.constant dense<0.000000e+00> : vector<24x128xf32>
    %201 = tpu.matmul %198, %200, %cst_237 {dimension_numbers = #tpu.dot_dimension_numbers<[1], [0], [0], [1], [0, 0, 1, 1], [], []>} : vector<24x128xbf16>, vector<128x128xbf16>, vector<24x128xf32> -> vector<24x128xf32>
    %202 = arith.addf %197, %201 : vector<24x128xf32>
    %c8_238 = arith.constant 8 : index
    %c0_239 = arith.constant 0 : index
    %203 = vector.load %arg8[%c8_238, %c0_239] : memref<326x128xbf16, #tpu.memory_space<vmem>>, vector<24x128xbf16>
    %c2_240 = arith.constant 2 : index
    %c5_241 = arith.constant 5 : index
    %c0_242 = arith.constant 0 : index
    %c0_243 = arith.constant 0 : index
    %204 = vector.load %arg2[%c2_240, %c5_241, %c0_242, %c0_243] : memref<4x9x128x128xbf16, #tpu.memory_space<vmem>>, vector<1x1x128x128xbf16>
    %205 = vector.shape_cast %204 : vector<1x1x128x128xbf16> to vector<128x128xbf16>
    %cst_244 = arith.constant dense<0.000000e+00> : vector<24x128xf32>
    %206 = tpu.matmul %203, %205, %cst_244 {dimension_numbers = #tpu.dot_dimension_numbers<[1], [0], [0], [1], [0, 0, 1, 1], [], []>} : vector<24x128xbf16>, vector<128x128xbf16>, vector<24x128xf32> -> vector<24x128xf32>
    %207 = arith.addf %202, %206 : vector<24x128xf32>
    %c12_245 = arith.constant 12 : index
    %c0_246 = arith.constant 0 : index
    %208 = vector.load %arg8[%c12_245, %c0_246] : memref<326x128xbf16, #tpu.memory_space<vmem>>, vector<24x128xbf16>
    %c2_247 = arith.constant 2 : index
    %c6_248 = arith.constant 6 : index
    %c0_249 = arith.constant 0 : index
    %c0_250 = arith.constant 0 : index
    %209 = vector.load %arg2[%c2_247, %c6_248, %c0_249, %c0_250] : memref<4x9x128x128xbf16, #tpu.memory_space<vmem>>, vector<1x1x128x128xbf16>
    %210 = vector.shape_cast %209 : vector<1x1x128x128xbf16> to vector<128x128xbf16>
    %cst_251 = arith.constant dense<0.000000e+00> : vector<24x128xf32>
    %211 = tpu.matmul %208, %210, %cst_251 {dimension_numbers = #tpu.dot_dimension_numbers<[1], [0], [0], [1], [0, 0, 1, 1], [], []>} : vector<24x128xbf16>, vector<128x128xbf16>, vector<24x128xf32> -> vector<24x128xf32>
    %212 = arith.addf %207, %211 : vector<24x128xf32>
    %c13 = arith.constant 13 : index
    %c0_252 = arith.constant 0 : index
    %213 = vector.load %arg8[%c13, %c0_252] : memref<326x128xbf16, #tpu.memory_space<vmem>>, vector<24x128xbf16>
    %c2_253 = arith.constant 2 : index
    %c7_254 = arith.constant 7 : index
    %c0_255 = arith.constant 0 : index
    %c0_256 = arith.constant 0 : index
    %214 = vector.load %arg2[%c2_253, %c7_254, %c0_255, %c0_256] : memref<4x9x128x128xbf16, #tpu.memory_space<vmem>>, vector<1x1x128x128xbf16>
    %215 = vector.shape_cast %214 : vector<1x1x128x128xbf16> to vector<128x128xbf16>
    %cst_257 = arith.constant dense<0.000000e+00> : vector<24x128xf32>
    %216 = tpu.matmul %213, %215, %cst_257 {dimension_numbers = #tpu.dot_dimension_numbers<[1], [0], [0], [1], [0, 0, 1, 1], [], []>} : vector<24x128xbf16>, vector<128x128xbf16>, vector<24x128xf32> -> vector<24x128xf32>
    %217 = arith.addf %212, %216 : vector<24x128xf32>
    %c14_258 = arith.constant 14 : index
    %c0_259 = arith.constant 0 : index
    %218 = vector.load %arg8[%c14_258, %c0_259] : memref<326x128xbf16, #tpu.memory_space<vmem>>, vector<24x128xbf16>
    %c2_260 = arith.constant 2 : index
    %c8_261 = arith.constant 8 : index
    %c0_262 = arith.constant 0 : index
    %c0_263 = arith.constant 0 : index
    %219 = vector.load %arg2[%c2_260, %c8_261, %c0_262, %c0_263] : memref<4x9x128x128xbf16, #tpu.memory_space<vmem>>, vector<1x1x128x128xbf16>
    %220 = vector.shape_cast %219 : vector<1x1x128x128xbf16> to vector<128x128xbf16>
    %cst_264 = arith.constant dense<0.000000e+00> : vector<24x128xf32>
    %221 = tpu.matmul %218, %220, %cst_264 {dimension_numbers = #tpu.dot_dimension_numbers<[1], [0], [0], [1], [0, 0, 1, 1], [], []>} : vector<24x128xbf16>, vector<128x128xbf16>, vector<24x128xf32> -> vector<24x128xf32>
    %222 = arith.addf %217, %221 : vector<24x128xf32>
    %c2_265 = arith.constant 2 : index
    %c0_266 = arith.constant 0 : index
    %c0_267 = arith.constant 0 : index
    %223 = vector.load %arg3[%c2_265, %c0_266, %c0_267] : memref<4x1x128xf32, #tpu.memory_space<vmem>>, vector<1x1x128xf32>
    %224 = vector.shape_cast %223 : vector<1x1x128xf32> to vector<1x128xf32>
    %225 = vector.broadcast %224 : vector<1x128xf32> to vector<24x128xf32>
    %226 = arith.addf %222, %225 : vector<24x128xf32>
    %cst_268 = arith.constant 0.000000e+00 : f32
    %227 = vector.broadcast %cst_268 : f32 to vector<24x128xf32>
    %228 = arith.maximumf %226, %227 : vector<24x128xf32>
    %c0_269 = arith.constant 0 : index
    %c0_270 = arith.constant 0 : index
    %229 = vector.load %arg9[%c0_269, %c0_270] : memref<288x128xf32, #tpu.memory_space<vmem>>, vector<24x128xf32>
    tpu.vector_store %arg9[%c0_269, %c0_270], %228 {strides = array<i32>} : memref<288x128xf32, #tpu.memory_space<vmem>>, vector<24x128xf32>,
    %c0_271 = arith.constant 0 : index
    %c0_272 = arith.constant 0 : index
    %230 = vector.load %arg9[%c0_271, %c0_272] : memref<288x128xf32, #tpu.memory_space<vmem>>, vector<17x128xf32>
    %c1_273 = arith.constant 1 : index
    %c0_274 = arith.constant 0 : index
    %231 = vector.load %arg9[%c1_273, %c0_274] : memref<288x128xf32, #tpu.memory_space<vmem>>, vector<17x128xf32>
    %232 = arith.maximumf %230, %231 : vector<17x128xf32>
    %c6_275 = arith.constant 6 : index
    %c0_276 = arith.constant 0 : index
    %233 = vector.load %arg9[%c6_275, %c0_276] : memref<288x128xf32, #tpu.memory_space<vmem>>, vector<17x128xf32>
    %c7_277 = arith.constant 7 : index
    %c0_278 = arith.constant 0 : index
    %234 = vector.load %arg9[%c7_277, %c0_278] : memref<288x128xf32, #tpu.memory_space<vmem>>, vector<17x128xf32>
    %235 = arith.maximumf %233, %234 : vector<17x128xf32>
    %236 = arith.maximumf %232, %235 : vector<17x128xf32>
    %c0_279 = arith.constant 0 : index
    %c0_280 = arith.constant 0 : index
    %237 = vector.load %arg9[%c0_279, %c0_280] : memref<288x128xf32, #tpu.memory_space<vmem>>, vector<17x128xf32>
    tpu.vector_store %arg9[%c0_279, %c0_280], %236 {strides = array<i32>} : memref<288x128xf32, #tpu.memory_space<vmem>>, vector<17x128xf32>,
    %cst_281 = arith.constant 0.000000e+00 : bf16
    %238 = vector.broadcast %cst_281 : bf16 to vector<6x128xbf16>
    %c0_282 = arith.constant 0 : index
    %c0_283 = arith.constant 0 : index
    %239 = vector.load %arg8[%c0_282, %c0_283] : memref<326x128xbf16, #tpu.memory_space<vmem>>, vector<6x128xbf16>
    tpu.vector_store %arg8[%c0_282, %c0_283], %238 {strides = array<i32>} : memref<326x128xbf16, #tpu.memory_space<vmem>>, vector<6x128xbf16>,
    %cst_284 = arith.constant 0.000000e+00 : bf16
    %240 = vector.broadcast %cst_284 : bf16 to vector<6x128xbf16>
    %c12_285 = arith.constant 12 : index
    %c0_286 = arith.constant 0 : index
    %241 = vector.load %arg8[%c12_285, %c0_286] : memref<326x128xbf16, #tpu.memory_space<vmem>>, vector<6x128xbf16>
    tpu.vector_store %arg8[%c12_285, %c0_286], %240 {strides = array<i32>} : memref<326x128xbf16, #tpu.memory_space<vmem>>, vector<6x128xbf16>,
    %cst_287 = arith.constant 0.000000e+00 : bf16
    %242 = vector.broadcast %cst_287 : bf16 to vector<2x128xbf16>
    %c1_288 = arith.constant 1 : index
    %c0_289 = arith.constant 0 : index
    %243 = tpu.strided_load %arg9[%c1_288, %c0_289] {strides = array<i32: 2, 1>} : memref<288x128xf32, #tpu.memory_space<vmem>>, vector<2x128xf32>
    %244 = arith.truncf %243 : vector<2x128xf32> to vector<2x128xbf16>
    %c6_290 = arith.constant 6 : index
    %c0_291 = arith.constant 0 : index
    %245 = vector.load %arg8[%c6_290, %c0_291] : memref<326x128xbf16, #tpu.memory_space<vmem>>, vector<2x128xbf16>
    tpu.vector_store %arg8[%c6_290, %c0_291], %244 {strides = array<i32>} : memref<326x128xbf16, #tpu.memory_space<vmem>>, vector<2x128xbf16>,
    %c8_292 = arith.constant 8 : index
    %c0_293 = arith.constant 0 : index
    %246 = vector.load %arg8[%c8_292, %c0_293] : memref<326x128xbf16, #tpu.memory_space<vmem>>, vector<2x128xbf16>
    tpu.vector_store %arg8[%c8_292, %c0_293], %242 {strides = array<i32>} : memref<326x128xbf16, #tpu.memory_space<vmem>>, vector<2x128xbf16>,
    %c13_294 = arith.constant 13 : index
    %c0_295 = arith.constant 0 : index
    %247 = tpu.strided_load %arg9[%c13_294, %c0_295] {strides = array<i32: 2, 1>} : memref<288x128xf32, #tpu.memory_space<vmem>>, vector<2x128xf32>
    %248 = arith.truncf %247 : vector<2x128xf32> to vector<2x128xbf16>
    %c10_296 = arith.constant 10 : index
    %c0_297 = arith.constant 0 : index
    %249 = vector.load %arg8[%c10_296, %c0_297] : memref<326x128xbf16, #tpu.memory_space<vmem>>, vector<2x128xbf16>
    tpu.vector_store %arg8[%c10_296, %c0_297], %248 {strides = array<i32>} : memref<326x128xbf16, #tpu.memory_space<vmem>>, vector<2x128xbf16>,
    %c0_298 = arith.constant 0 : index
    %c0_299 = arith.constant 0 : index
    %250 = vector.load %arg8[%c0_298, %c0_299] : memref<326x128xbf16, #tpu.memory_space<vmem>>, vector<8x128xbf16>
    %c3_300 = arith.constant 3 : index
    %c0_301 = arith.constant 0 : index
    %c0_302 = arith.constant 0 : index
    %c0_303 = arith.constant 0 : index
    %251 = vector.load %arg2[%c3_300, %c0_301, %c0_302, %c0_303] : memref<4x9x128x128xbf16, #tpu.memory_space<vmem>>, vector<1x1x128x128xbf16>
    %252 = vector.shape_cast %251 : vector<1x1x128x128xbf16> to vector<128x128xbf16>
    %cst_304 = arith.constant dense<0.000000e+00> : vector<8x128xf32>
    %253 = tpu.matmul %250, %252, %cst_304 {dimension_numbers = #tpu.dot_dimension_numbers<[1], [0], [0], [1], [0, 0, 1, 1], [], []>} : vector<8x128xbf16>, vector<128x128xbf16>, vector<8x128xf32> -> vector<8x128xf32>
    %c1_305 = arith.constant 1 : index
    %c0_306 = arith.constant 0 : index
    %254 = vector.load %arg8[%c1_305, %c0_306] : memref<326x128xbf16, #tpu.memory_space<vmem>>, vector<8x128xbf16>
    %c3_307 = arith.constant 3 : index
    %c1_308 = arith.constant 1 : index
    %c0_309 = arith.constant 0 : index
    %c0_310 = arith.constant 0 : index
    %255 = vector.load %arg2[%c3_307, %c1_308, %c0_309, %c0_310] : memref<4x9x128x128xbf16, #tpu.memory_space<vmem>>, vector<1x1x128x128xbf16>
    %256 = vector.shape_cast %255 : vector<1x1x128x128xbf16> to vector<128x128xbf16>
    %cst_311 = arith.constant dense<0.000000e+00> : vector<8x128xf32>
    %257 = tpu.matmul %254, %256, %cst_311 {dimension_numbers = #tpu.dot_dimension_numbers<[1], [0], [0], [1], [0, 0, 1, 1], [], []>} : vector<8x128xbf16>, vector<128x128xbf16>, vector<8x128xf32> -> vector<8x128xf32>
    %258 = arith.addf %253, %257 : vector<8x128xf32>
    %c2_312 = arith.constant 2 : index
    %c0_313 = arith.constant 0 : index
    %259 = vector.load %arg8[%c2_312, %c0_313] : memref<326x128xbf16, #tpu.memory_space<vmem>>, vector<8x128xbf16>
    %c3_314 = arith.constant 3 : index
    %c2_315 = arith.constant 2 : index
    %c0_316 = arith.constant 0 : index
    %c0_317 = arith.constant 0 : index
    %260 = vector.load %arg2[%c3_314, %c2_315, %c0_316, %c0_317] : memref<4x9x128x128xbf16, #tpu.memory_space<vmem>>, vector<1x1x128x128xbf16>
    %261 = vector.shape_cast %260 : vector<1x1x128x128xbf16> to vector<128x128xbf16>
    %cst_318 = arith.constant dense<0.000000e+00> : vector<8x128xf32>
    %262 = tpu.matmul %259, %261, %cst_318 {dimension_numbers = #tpu.dot_dimension_numbers<[1], [0], [0], [1], [0, 0, 1, 1], [], []>} : vector<8x128xbf16>, vector<128x128xbf16>, vector<8x128xf32> -> vector<8x128xf32>
    %263 = arith.addf %258, %262 : vector<8x128xf32>
    %c4_319 = arith.constant 4 : index
    %c0_320 = arith.constant 0 : index
    %264 = vector.load %arg8[%c4_319, %c0_320] : memref<326x128xbf16, #tpu.memory_space<vmem>>, vector<8x128xbf16>
    %c3_321 = arith.constant 3 : index
    %c3_322 = arith.constant 3 : index
    %c0_323 = arith.constant 0 : index
    %c0_324 = arith.constant 0 : index
    %265 = vector.load %arg2[%c3_321, %c3_322, %c0_323, %c0_324] : memref<4x9x128x128xbf16, #tpu.memory_space<vmem>>, vector<1x1x128x128xbf16>
    %266 = vector.shape_cast %265 : vector<1x1x128x128xbf16> to vector<128x128xbf16>
    %cst_325 = arith.constant dense<0.000000e+00> : vector<8x128xf32>
    %267 = tpu.matmul %264, %266, %cst_325 {dimension_numbers = #tpu.dot_dimension_numbers<[1], [0], [0], [1], [0, 0, 1, 1], [], []>} : vector<8x128xbf16>, vector<128x128xbf16>, vector<8x128xf32> -> vector<8x128xf32>
    %268 = arith.addf %263, %267 : vector<8x128xf32>
    %c5_326 = arith.constant 5 : index
    %c0_327 = arith.constant 0 : index
    %269 = vector.load %arg8[%c5_326, %c0_327] : memref<326x128xbf16, #tpu.memory_space<vmem>>, vector<8x128xbf16>
    %c3_328 = arith.constant 3 : index
    %c4_329 = arith.constant 4 : index
    %c0_330 = arith.constant 0 : index
    %c0_331 = arith.constant 0 : index
    %270 = vector.load %arg2[%c3_328, %c4_329, %c0_330, %c0_331] : memref<4x9x128x128xbf16, #tpu.memory_space<vmem>>, vector<1x1x128x128xbf16>
    %271 = vector.shape_cast %270 : vector<1x1x128x128xbf16> to vector<128x128xbf16>
    %cst_332 = arith.constant dense<0.000000e+00> : vector<8x128xf32>
    %272 = tpu.matmul %269, %271, %cst_332 {dimension_numbers = #tpu.dot_dimension_numbers<[1], [0], [0], [1], [0, 0, 1, 1], [], []>} : vector<8x128xbf16>, vector<128x128xbf16>, vector<8x128xf32> -> vector<8x128xf32>
    %273 = arith.addf %268, %272 : vector<8x128xf32>
    %c6_333 = arith.constant 6 : index
    %c0_334 = arith.constant 0 : index
    %274 = vector.load %arg8[%c6_333, %c0_334] : memref<326x128xbf16, #tpu.memory_space<vmem>>, vector<8x128xbf16>
    %c3_335 = arith.constant 3 : index
    %c5_336 = arith.constant 5 : index
    %c0_337 = arith.constant 0 : index
    %c0_338 = arith.constant 0 : index
    %275 = vector.load %arg2[%c3_335, %c5_336, %c0_337, %c0_338] : memref<4x9x128x128xbf16, #tpu.memory_space<vmem>>, vector<1x1x128x128xbf16>
    %276 = vector.shape_cast %275 : vector<1x1x128x128xbf16> to vector<128x128xbf16>
    %cst_339 = arith.constant dense<0.000000e+00> : vector<8x128xf32>
    %277 = tpu.matmul %274, %276, %cst_339 {dimension_numbers = #tpu.dot_dimension_numbers<[1], [0], [0], [1], [0, 0, 1, 1], [], []>} : vector<8x128xbf16>, vector<128x128xbf16>, vector<8x128xf32> -> vector<8x128xf32>
    %278 = arith.addf %273, %277 : vector<8x128xf32>
    %c8_340 = arith.constant 8 : index
    %c0_341 = arith.constant 0 : index
    %279 = vector.load %arg8[%c8_340, %c0_341] : memref<326x128xbf16, #tpu.memory_space<vmem>>, vector<8x128xbf16>
    %c3_342 = arith.constant 3 : index
    %c6_343 = arith.constant 6 : index
    %c0_344 = arith.constant 0 : index
    %c0_345 = arith.constant 0 : index
    %280 = vector.load %arg2[%c3_342, %c6_343, %c0_344, %c0_345] : memref<4x9x128x128xbf16, #tpu.memory_space<vmem>>, vector<1x1x128x128xbf16>
    %281 = vector.shape_cast %280 : vector<1x1x128x128xbf16> to vector<128x128xbf16>
    %cst_346 = arith.constant dense<0.000000e+00> : vector<8x128xf32>
    %282 = tpu.matmul %279, %281, %cst_346 {dimension_numbers = #tpu.dot_dimension_numbers<[1], [0], [0], [1], [0, 0, 1, 1], [], []>} : vector<8x128xbf16>, vector<128x128xbf16>, vector<8x128xf32> -> vector<8x128xf32>
    %283 = arith.addf %278, %282 : vector<8x128xf32>
    %c9 = arith.constant 9 : index
    %c0_347 = arith.constant 0 : index
    %284 = vector.load %arg8[%c9, %c0_347] : memref<326x128xbf16, #tpu.memory_space<vmem>>, vector<8x128xbf16>
    %c3_348 = arith.constant 3 : index
    %c7_349 = arith.constant 7 : index
    %c0_350 = arith.constant 0 : index
    %c0_351 = arith.constant 0 : index
    %285 = vector.load %arg2[%c3_348, %c7_349, %c0_350, %c0_351] : memref<4x9x128x128xbf16, #tpu.memory_space<vmem>>, vector<1x1x128x128xbf16>
    %286 = vector.shape_cast %285 : vector<1x1x128x128xbf16> to vector<128x128xbf16>
    %cst_352 = arith.constant dense<0.000000e+00> : vector<8x128xf32>
    %287 = tpu.matmul %284, %286, %cst_352 {dimension_numbers = #tpu.dot_dimension_numbers<[1], [0], [0], [1], [0, 0, 1, 1], [], []>} : vector<8x128xbf16>, vector<128x128xbf16>, vector<8x128xf32> -> vector<8x128xf32>
    %288 = arith.addf %283, %287 : vector<8x128xf32>
    %c10_353 = arith.constant 10 : index
    %c0_354 = arith.constant 0 : index
    %289 = vector.load %arg8[%c10_353, %c0_354] : memref<326x128xbf16, #tpu.memory_space<vmem>>, vector<8x128xbf16>
    %c3_355 = arith.constant 3 : index
    %c8_356 = arith.constant 8 : index
    %c0_357 = arith.constant 0 : index
    %c0_358 = arith.constant 0 : index
    %290 = vector.load %arg2[%c3_355, %c8_356, %c0_357, %c0_358] : memref<4x9x128x128xbf16, #tpu.memory_space<vmem>>, vector<1x1x128x128xbf16>
    %291 = vector.shape_cast %290 : vector<1x1x128x128xbf16> to vector<128x128xbf16>
    %cst_359 = arith.constant dense<0.000000e+00> : vector<8x128xf32>
    %292 = tpu.matmul %289, %291, %cst_359 {dimension_numbers = #tpu.dot_dimension_numbers<[1], [0], [0], [1], [0, 0, 1, 1], [], []>} : vector<8x128xbf16>, vector<128x128xbf16>, vector<8x128xf32> -> vector<8x128xf32>
    %293 = arith.addf %288, %292 : vector<8x128xf32>
    %c3_360 = arith.constant 3 : index
    %c0_361 = arith.constant 0 : index
    %c0_362 = arith.constant 0 : index
    %294 = vector.load %arg3[%c3_360, %c0_361, %c0_362] : memref<4x1x128xf32, #tpu.memory_space<vmem>>, vector<1x1x128xf32>
    %295 = vector.shape_cast %294 : vector<1x1x128xf32> to vector<1x128xf32>
    %296 = vector.broadcast %295 : vector<1x128xf32> to vector<8x128xf32>
    %297 = arith.addf %293, %296 : vector<8x128xf32>
    %cst_363 = arith.constant 0.000000e+00 : f32
    %298 = vector.broadcast %cst_363 : f32 to vector<8x128xf32>
    %299 = arith.maximumf %297, %298 : vector<8x128xf32>
    %c0_364 = arith.constant 0 : index
    %c0_365 = arith.constant 0 : index
    %300 = vector.load %arg9[%c0_364, %c0_365] : memref<288x128xf32, #tpu.memory_space<vmem>>, vector<8x128xf32>
    tpu.vector_store %arg9[%c0_364, %c0_365], %299 {strides = array<i32>} : memref<288x128xf32, #tpu.memory_space<vmem>>, vector<8x128xf32>,
    %c0_366 = arith.constant 0 : index
    %c0_367 = arith.constant 0 : index
    %301 = vector.load %arg9[%c0_366, %c0_367] : memref<288x128xf32, #tpu.memory_space<vmem>>, vector<3x128xf32>
    %c1_368 = arith.constant 1 : index
    %c0_369 = arith.constant 0 : index
    %302 = vector.load %arg9[%c1_368, %c0_369] : memref<288x128xf32, #tpu.memory_space<vmem>>, vector<3x128xf32>
    %303 = arith.maximumf %301, %302 : vector<3x128xf32>
    %c4_370 = arith.constant 4 : index
    %c0_371 = arith.constant 0 : index
    %304 = vector.load %arg9[%c4_370, %c0_371] : memref<288x128xf32, #tpu.memory_space<vmem>>, vector<3x128xf32>
    %c5_372 = arith.constant 5 : index
    %c0_373 = arith.constant 0 : index
    %305 = vector.load %arg9[%c5_372, %c0_373] : memref<288x128xf32, #tpu.memory_space<vmem>>, vector<3x128xf32>
    %306 = arith.maximumf %304, %305 : vector<3x128xf32>
    %307 = arith.maximumf %303, %306 : vector<3x128xf32>
    %c0_374 = arith.constant 0 : index
    %c0_375 = arith.constant 0 : index
    %308 = vector.load %arg9[%c0_374, %c0_375] : memref<288x128xf32, #tpu.memory_space<vmem>>, vector<3x128xf32>
    tpu.vector_store %arg9[%c0_374, %c0_375], %307 {strides = array<i32>} : memref<288x128xf32, #tpu.memory_space<vmem>>, vector<3x128xf32>,
    %cst_376 = arith.constant 0.000000e+00 : bf16
    %309 = vector.broadcast %cst_376 : bf16 to vector<5x128xbf16>
    %c0_377 = arith.constant 0 : index
    %c0_378 = arith.constant 0 : index
    %310 = vector.load %arg8[%c0_377, %c0_378] : memref<326x128xbf16, #tpu.memory_space<vmem>>, vector<5x128xbf16>
    tpu.vector_store %arg8[%c0_377, %c0_378], %309 {strides = array<i32>} : memref<326x128xbf16, #tpu.memory_space<vmem>>, vector<5x128xbf16>,
    %cst_379 = arith.constant 0.000000e+00 : bf16
    %311 = vector.broadcast %cst_379 : bf16 to vector<5x128xbf16>
    %c6_380 = arith.constant 6 : index
    %c0_381 = arith.constant 0 : index
    %312 = vector.load %arg8[%c6_380, %c0_381] : memref<326x128xbf16, #tpu.memory_space<vmem>>, vector<5x128xbf16>
    tpu.vector_store %arg8[%c6_380, %c0_381], %311 {strides = array<i32>} : memref<326x128xbf16, #tpu.memory_space<vmem>>, vector<5x128xbf16>,
    %c1_382 = arith.constant 1 : index
    %c0_383 = arith.constant 0 : index
    %313 = vector.load %arg9[%c1_382, %c0_383] : memref<288x128xf32, #tpu.memory_space<vmem>>, vector<1x128xf32>
    %314 = arith.truncf %313 : vector<1x128xf32> to vector<1x128xbf16>
    %c5_384 = arith.constant 5 : index
    %c0_385 = arith.constant 0 : index
    %315 = vector.load %arg8[%c5_384, %c0_385] : memref<326x128xbf16, #tpu.memory_space<vmem>>, vector<1x128xbf16>
    tpu.vector_store %arg8[%c5_384, %c0_385], %314 {strides = array<i32>} : memref<326x128xbf16, #tpu.memory_space<vmem>>, vector<1x128xbf16>,
    %c4_386 = arith.constant 4 : index
    %c0_387 = arith.constant 0 : index
    %316 = vector.load %arg8[%c4_386, %c0_387] : memref<326x128xbf16, #tpu.memory_space<vmem>>, vector<3x128xbf16>
    %317 = arith.extf %316 : vector<3x128xbf16> to vector<3x128xf32>
    %cst_388 = arith.constant dense<0.000000e+00> : vector<128xf32>
    %318 = vector.multi_reduction <add>, %317, %cst_388 [0] : vector<3x128xf32> to vector<128xf32>
    %319 = vector.shape_cast %318 : vector<128xf32> to vector<1x128xf32>
    %cst_389 = arith.constant 1.000000e+00 : f32
    %320 = vector.broadcast %cst_389 : f32 to vector<1x128xf32>
    %321 = arith.mulf %319, %320 : vector<1x128xf32>
    %322 = arith.truncf %321 : vector<1x128xf32> to vector<1x128xbf16>
    %c0_390 = arith.constant 0 : index
    %c0_391 = arith.constant 0 : index
    %323 = vector.load %arg4[%c0_390, %c0_391] : memref<128x128xbf16, #tpu.memory_space<vmem>>, vector<128x128xbf16>
    %cst_392 = arith.constant dense<0.000000e+00> : vector<1x128xf32>
    %324 = tpu.matmul %322, %323, %cst_392 {dimension_numbers = #tpu.dot_dimension_numbers<[1], [0], [0], [1], [0, 0, 1, 1], [], []>} : vector<1x128xbf16>, vector<128x128xbf16>, vector<1x128xf32> -> vector<1x128xf32>
    %c0_393 = arith.constant 0 : index
    %c0_394 = arith.constant 0 : index
    %325 = vector.load %arg5[%c0_393, %c0_394] : memref<1x128xf32, #tpu.memory_space<vmem>>, vector<1x128xf32>
    %326 = arith.addf %324, %325 : vector<1x128xf32>
    %c0_395 = arith.constant 0 : index
    %c0_396 = arith.constant 0 : index
    %c0_397 = arith.constant 0 : index
    %327 = vector.load %arg7[%c0_395, %c0_396, %c0_397] : memref<1x1x128xf32, #tpu.memory_space<vmem>>, vector<1x1x128xf32>
    %328 = vector.shape_cast %327 : vector<1x1x128xf32> to vector<1x128xf32>
    %329 = vector.shape_cast %321 : vector<1x128xf32> to vector<1x1x128xf32>
    tpu.vector_store %arg7[%c0_395, %c0_396, %c0_397], %329 {strides = array<i32>} : memref<1x1x128xf32, #tpu.memory_space<vmem>>, vector<1x1x128xf32>,
    %c0_398 = arith.constant 0 : index
    %c0_399 = arith.constant 0 : index
    %c0_400 = arith.constant 0 : index
    %330 = vector.load %arg6[%c0_398, %c0_399, %c0_400] : memref<1x1x128xf32, #tpu.memory_space<vmem>>, vector<1x1x128xf32>
    %331 = vector.shape_cast %330 : vector<1x1x128xf32> to vector<1x128xf32>
    %332 = vector.shape_cast %326 : vector<1x128xf32> to vector<1x1x128xf32>
    tpu.vector_store %arg6[%c0_398, %c0_399, %c0_400], %332 {strides = array<i32>} : memref<1x1x128xf32, #tpu.memory_space<vmem>>, vector<1x1x128xf32>,
    return
  }
  func.func @transform_0(%arg0: i32) -> (i32, i32, i32) {
    %c0_i32 = arith.constant 0 : i32
    %c0_i32_0 = arith.constant 0 : i32
    %c0_i32_1 = arith.constant 0 : i32
    return %arg0, %c0_i32, %c0_i32_0 : i32, i32, i32
  }
  func.func @transform_1(%arg0: i32) -> (i32, i32, i32, i32) {
    %c0_i32 = arith.constant 0 : i32
    %c0_i32_0 = arith.constant 0 : i32
    %c0_i32_1 = arith.constant 0 : i32
    %c0_i32_2 = arith.constant 0 : i32
    %c0_i32_3 = arith.constant 0 : i32
    return %c0_i32, %c0_i32_0, %c0_i32_1, %c0_i32_2 : i32, i32, i32, i32
  }
  func.func @transform_2(%arg0: i32) -> (i32, i32, i32) {
    %c0_i32 = arith.constant 0 : i32
    %c0_i32_0 = arith.constant 0 : i32
    %c0_i32_1 = arith.constant 0 : i32
    %c0_i32_2 = arith.constant 0 : i32
    return %c0_i32, %c0_i32_0, %c0_i32_1 : i32, i32, i32
  }
  func.func @transform_3(%arg0: i32) -> (i32, i32) {
    %c0_i32 = arith.constant 0 : i32
    %c0_i32_0 = arith.constant 0 : i32
    %c0_i32_1 = arith.constant 0 : i32
    return %c0_i32, %c0_i32_0 : i32, i32
  }
  func.func @transform_4(%arg0: i32) -> (i32, i32) {
    %c0_i32 = arith.constant 0 : i32
    %c0_i32_0 = arith.constant 0 : i32
    %c0_i32_1 = arith.constant 0 : i32
    return %c0_i32, %c0_i32_0 : i32, i32
  }
  func.func @transform_5(%arg0: i32) -> (i32, i32, i32) {
    %c0_i32 = arith.constant 0 : i32
    %c0_i32_0 = arith.constant 0 : i32
    %c0_i32_1 = arith.constant 0 : i32
    return %arg0, %c0_i32, %c0_i32_0 : i32, i32, i32
  }
  func.func @transform_6(%arg0: i32) -> (i32, i32, i32) {
    %c0_i32 = arith.constant 0 : i32
    %c0_i32_0 = arith.constant 0 : i32
    %c0_i32_1 = arith.constant 0 : i32
    return %arg0, %c0_i32, %c0_i32_0 : i32, i32, i32
  }
}

</mosaic_0001>

<llo_original>
// kernel: classifier_forward.1
$region0: #{classifier_forward.1}
  #allocation0 [shape = 'u32[]', space=smem, size = 0x4, offset = 0x4, fixed_abs, tag = 'smem constant byte address 0x4 - core index']
  #allocation1 [shape = 'u32[144,128]{1,0:T(1,128)}', space=vmem, size = 0x12000, scoped, tag = 'internal scratch']
  #allocation2 [shape = 'bf16[326,128]{1,0:T(8,128)(2,1)}', space=vmem, size = 0x14800, scoped, tag = 'scratch operand']
  #allocation3 [shape = 'f32[288,128]{1,0:T(8,128)}', space=vmem, size = 0x24000, scoped, tag = 'scratch operand']
  %s0 = inlined_call_operand.vmem [shape: bf16[2,326,8], index: 0, kind: input, shape index: {}]
  %s1 = inlined_call_operand.vmem [shape: bf16[4,9,128,128], index: 1, kind: input, shape index: {}]
  %s2 = inlined_call_operand.vmem [shape: f32[4,1,128], index: 2, kind: input, shape index: {}]
  %s3 = inlined_call_operand.vmem [shape: bf16[128,128], index: 3, kind: input, shape index: {}]
  %s4 = inlined_call_operand.vmem [shape: f32[1,128], index: 4, kind: input, shape index: {}]
  %s5 = inlined_call_operand.hbm [shape: f32[2,1,128], index: 5, kind: output, shape index: {0}]
  %s6 = inlined_call_operand.hbm [shape: f32[2,1,128], index: 6, kind: output, shape index: {1}]
  %7 = xla_tuple %s5, %s6
  %s8 = sld [smem:[#allocation0]]
  $region61: #{classifier_forward.1} parent=0
    _
  %s10 = ssub.s32 1, %s8
  %s11 = scalar_select 0, %s10, %s8
  $region1: #{classifier_forward.1} parent=0
    #allocation4 [shape = 'u8[1024]{0}', space=vmem, size = 0x400, scoped, tag = 'output window, operand 0']
    #allocation5 [shape = 's32[2]{0}', space=sflag, size = 0x8, scoped, tag = 'scoped memory for classifier_forward.1']
    #allocation6 [shape = 'u8[1024]{0}', space=vmem, size = 0x400, scoped, tag = 'output window, operand 1']
    #allocation7 [shape = 's32[2]{0}', space=sflag, size = 0x8, scoped, tag = 'scoped memory for classifier_forward.1']
    %12 = vsyncpa [#allocation5], 0
    %s13 = scalar_lea.sflag [#allocation5], 1
    %14 = vsyncpa %s13, 0
    %15 = vsyncpa [#allocation7], 0
    %s16 = scalar_lea.sflag [#allocation7], 1
    %17 = vsyncpa %s16, 0
    loop: start=0, step=1, limit=4
    $region2: #{classifier_forward.1} parent=1 // loop_pre_header
      _
    $region3: #{classifier_forward.1} parent=1 // loop_header
      %s19 = sphi 0, %s23
      %p20 = scmp.ge.s32.totalorder %s19, 4
      %s29 = sphi 0, %s31
      %s32 = sphi 0, %s29
      %s33 = sphi 0, %s32
      %s49 = sphi 0, %s33
      %s53 = sphi 0, %s53
      %s55 = sphi 0, %s53
      %s56 = sphi 0, %s55
      %s70 = sphi 0, %s56
      %s74 = sphi 0, %s74
      %s76 = sphi 0, %s74
      %s77 = sphi 0, %s76
      %s91 = sphi 0, %s77
      %s95 = sphi 0, %s95
      %s97 = sphi 0, %s95
      %s98 = sphi 0, %s97
      %s112 = sphi 0, %s98
      %s116 = sphi 0, %s116
      %s118 = sphi 0, %s116
      %s119 = sphi 0, %s118
      %s133 = sphi 0, %s119
      %s139 = sphi 0, %s141
      %s142 = sphi 0, %s139
      %s143 = sphi 0, %s142
      %s159 = sphi 0, %s143
      %s165 = sphi 0, %s167
      %s168 = sphi 0, %s165
      %s169 = sphi 0, %s168
      %s185 = sphi 0, %s169
    $region4: #{classifier_forward.1} parent=1 // loop_header_branch
      %22 = sbr.rel (%p20) target = $region8
    $region5: #{classifier_forward.1} parent=1 // loop_body
      %s24 = ssub.s32 %s19, 1
      %s25 = ssub.s32 %s19, 2
      %s26 = sadd.s32 %s19, 1
      %s27 = ssub.s32 %s19, %s26
      %p28 = scmp.eq.s32.totalorder %s27, 0
      %s30 = sadd.s32 %s29, 1
      %s31 = scalar_select %p28, %s29, %s30
      %p34 = pneg %p28
      %p35 = scmp.eq.s32.totalorder %s19, 1
      %p36 = por %p34, %p35
      %p37 = scmp.ne.s32.totalorder %s29, %s32
      %p38 = scmp.eq.s32.totalorder %s19, 0
      %p39 = por %p37, %p38
      %p40 = scmp.ne.s32.totalorder %s29, %s32
      %p41 = scmp.eq.s32.totalorder %s24, 1
      %p42 = por %p40, %p41
      %p43 = scmp.ne.s32.totalorder %s32, %s33
      %p44 = scmp.eq.s32.totalorder %s24, 0
      %p45 = por %p43, %p44
      %p46 = scmp.ne.s32.totalorder %s32, %s33
      %p47 = scmp.eq.s32.totalorder %s25, 1
      %p48 = por %p46, %p47
      %p50 = scmp.ne.s32.totalorder %s33, %s49
      %p51 = scmp.eq.s32.totalorder %s25, 0
      %p52 = por %p50, %p51
      %s54 = sadd.s32 %s53, 1
      %p57 = scmp.eq.s32.totalorder %s19, 1
      %p58 = scmp.ne.s32.totalorder %s53, %s55
      %p59 = scmp.eq.s32.totalorder %s19, 0
      %p60 = por %p58, %p59
      %p61 = scmp.ne.s32.totalorder %s53, %s55
      %p62 = scmp.eq.s32.totalorder %s24, 1
      %p63 = por %p61, %p62
      %p64 = scmp.ne.s32.totalorder %s55, %s56
      %p65 = scmp.eq.s32.totalorder %s24, 0
      %p66 = por %p64, %p65
      %p67 = scmp.ne.s32.totalorder %s55, %s56
      %p68 = scmp.eq.s32.totalorder %s25, 1
      %p69 = por %p67, %p68
      %p71 = scmp.ne.s32.totalorder %s56, %s70
      %p72 = scmp.eq.s32.totalorder %s25, 0
      %p73 = por %p71, %p72
      %s75 = sadd.s32 %s74, 1
      %p78 = scmp.eq.s32.totalorder %s19, 1
      %p79 = scmp.ne.s32.totalorder %s74, %s76
      %p80 = scmp.eq.s32.totalorder %s19, 0
      %p81 = por %p79, %p80
      %p82 = scmp.ne.s32.totalorder %s74, %s76
      %p83 = scmp.eq.s32.totalorder %s24, 1
      %p84 = por %p82, %p83
      %p85 = scmp.ne.s32.totalorder %s76, %s77
      %p86 = scmp.eq.s32.totalorder %s24, 0
      %p87 = por %p85, %p86
      %p88 = scmp.ne.s32.totalorder %s76, %s77
      %p89 = scmp.eq.s32.totalorder %s25, 1
      %p90 = por %p88, %p89
      %p92 = scmp.ne.s32.totalorder %s77, %s91
      %p93 = scmp.eq.s32.totalorder %s25, 0
      %p94 = por %p92, %p93
      %s96 = sadd.s32 %s95, 1
      %p99 = scmp.eq.s32.totalorder %s19, 1
      %p100 = scmp.ne.s32.totalorder %s95, %s97
      %p101 = scmp.eq.s32.totalorder %s19, 0
      %p102 = por %p100, %p101
      %p103 = scmp.ne.s32.totalorder %s95, %s97
      %p104 = scmp.eq.s32.totalorder %s24, 1
      %p105 = por %p103, %p104
      %p106 = scmp.ne.s32.totalorder %s97, %s98
      %p107 = scmp.eq.s32.totalorder %s24, 0
      %p108 = por %p106, %p107
      %p109 = scmp.ne.s32.totalorder %s97, %s98
      %p110 = scmp.eq.s32.totalorder %s25, 1
      %p111 = por %p109, %p110
      %p113 = scmp.ne.s32.totalorder %s98, %s112
      %p114 = scmp.eq.s32.totalorder %s25, 0
      %p115 = por %p113, %p114
      %s117 = sadd.s32 %s116, 1
      %p120 = scmp.eq.s32.totalorder %s19, 1
      %p121 = scmp.ne.s32.totalorder %s116, %s118
      %p122 = scmp.eq.s32.totalorder %s19, 0
      %p123 = por %p121, %p122
      %p124 = scmp.ne.s32.totalorder %s116, %s118
      %p125 = scmp.eq.s32.totalorder %s24, 1
      %p126 = por %p124, %p125
      %p127 = scmp.ne.s32.totalorder %s118, %s119
      %p128 = scmp.eq.s32.totalorder %s24, 0
      %p129 = por %p127, %p128
      %p130 = scmp.ne.s32.totalorder %s118, %s119
      %p131 = scmp.eq.s32.totalorder %s25, 1
      %p132 = por %p130, %p131
      %p134 = scmp.ne.s32.totalorder %s119, %s133
      %p135 = scmp.eq.s32.totalorder %s25, 0
      %p136 = por %p134, %p135
      %s137 = ssub.s32 %s19, %s26
      %p138 = scmp.eq.s32.totalorder %s137, 0
      %s140 = sadd.s32 %s139, 1
      %s141 = scalar_select %p138, %s139, %s140
      %p144 = pneg %p138
      %p145 = scmp.eq.s32.totalorder %s19, 1
      %p146 = por %p144, %p145
      %p147 = scmp.ne.s32.totalorder %s139, %s142
      %p148 = scmp.eq.s32.totalorder %s19, 0
      %p149 = por %p147, %p148
      %p150 = scmp.ne.s32.totalorder %s139, %s142
      %p151 = scmp.eq.s32.totalorder %s24, 1
      %p152 = por %p150, %p151
      %p153 = scmp.ne.s32.totalorder %s142, %s143
      %p154 = scmp.eq.s32.totalorder %s24, 0
      %p155 = por %p153, %p154
      %p156 = scmp.ne.s32.totalorder %s142, %s143
      %p157 = scmp.eq.s32.totalorder %s25, 1
      %p158 = por %p156, %p157
      %p160 = scmp.ne.s32.totalorder %s143, %s159
      %p161 = scmp.eq.s32.totalorder %s25, 0
      %p162 = por %p160, %p161
      %s163 = ssub.s32 %s19, %s26
      %p164 = scmp.eq.s32.totalorder %s163, 0
      %s166 = sadd.s32 %s165, 1
      %s167 = scalar_select %p164, %s165, %s166
      %p170 = pneg %p164
      %p171 = scmp.eq.s32.totalorder %s19, 1
      %p172 = por %p170, %p171
      %p173 = scmp.ne.s32.totalorder %s165, %s168
      %p174 = scmp.eq.s32.totalorder %s19, 0
      %p175 = por %p173, %p174
      %p176 = scmp.ne.s32.totalorder %s165, %s168
      %p177 = scmp.eq.s32.totalorder %s24, 1
      %p178 = por %p176, %p177
      %p179 = scmp.ne.s32.totalorder %s168, %s169
      %p180 = scmp.eq.s32.totalorder %s24, 0
      %p181 = por %p179, %p180
      %p182 = scmp.ne.s32.totalorder %s168, %s169
      %p183 = scmp.eq.s32.totalorder %s25, 1
      %p184 = por %p182, %p183
      %p186 = scmp.ne.s32.totalorder %s169, %s185
      %p187 = scmp.eq.s32.totalorder %s25, 0
      %p188 = por %p186, %p187
      %p189 = scmp.le.s32.totalorder 1, %s19
      %p190 = scmp.lt.s32.totalorder %s19, 3
      %p191 = pnand %p189, %p190
      %p192 = pneg %p191
      // Predicated region
      $region9: #{classifier_forward.1} parent=5 // pred_check
        _
      $region10: #{classifier_forward.1} parent=5 // pred_check_branch
        %194 = sbr.rel (%p191) target = $region12
      $region11: #{classifier_forward.1} parent=5 // pred_region
        %s195 = ssub.s32 %s19, 1
        // Predicated region
        $region13: #{classifier_forward.1} parent=11 // pred_check
          %p196 = pneg %p66
        $region14: #{classifier_forward.1} parent=11 // pred_check_branch
          %198 = sbr.rel (%p196) target = $region16
        $region15: #{classifier_forward.1} parent=11 // pred_region
          _
        $region16: #{classifier_forward.1} parent=11 // pred_fallthru
          _
        // Predicated region
        $region17: #{classifier_forward.1} parent=11 // pred_check
          %p199 = pneg %p87
        $region18: #{classifier_forward.1} parent=11 // pred_check_branch
          %201 = sbr.rel (%p199) target = $region20
        $region19: #{classifier_forward.1} parent=11 // pred_region
          _
        $region20: #{classifier_forward.1} parent=11 // pred_fallthru
          _
        // Predicated region
        $region21: #{classifier_forward.1} parent=11 // pred_check
          %p202 = pneg %p108
        $region22: #{classifier_forward.1} parent=11 // pred_check_branch
          %204 = sbr.rel (%p202) target = $region24
        $region23: #{classifier_forward.1} parent=11 // pred_region
          _
        $region24: #{classifier_forward.1} parent=11 // pred_fallthru
          _
        // Predicated region
        $region25: #{classifier_forward.1} parent=11 // pred_check
          %p205 = pneg %p129
        $region26: #{classifier_forward.1} parent=11 // pred_check_branch
          %207 = sbr.rel (%p205) target = $region28
        $region27: #{classifier_forward.1} parent=11 // pred_region
          _
        $region28: #{classifier_forward.1} parent=11 // pred_fallthru
          _
      $region12: #{classifier_forward.1} parent=5 // pred_fallthru
        _
      %p208 = scmp.lt.s32.totalorder %s19, 2
      // Predicated region
      $region29: #{classifier_forward.1} parent=5 // pred_check
        %p209 = pneg %p208
      $region30: #{classifier_forward.1} parent=5 // pred_check_branch
        %211 = sbr.rel (%p209) target = $region32
      $region31: #{classifier_forward.1} parent=5 // pred_region
        // Predicated region
        $region33: #{classifier_forward.1} parent=31 // pred_check
          %p212 = pneg %p39
        $region34: #{classifier_forward.1} parent=31 // pred_check_branch
          %214 = sbr.rel (%p212) target = $region36
        $region35: #{classifier_forward.1} parent=31 // pred_region
          %p215 = scmp.lt.s32.totalorder %s19, 1
          %s216 = scalar_select %p215, %s19, 1
          %s217 = smul.addr %s216, 41
          %s218 = smul.addr %s217, 4
          %s219 = scalar_lea.vmem %s0, %s218
        $region36: #{classifier_forward.1} parent=31 // pred_fallthru
          _
      $region32: #{classifier_forward.1} parent=5 // pred_fallthru
        _
      %p220 = scmp.le.s32.totalorder 1, %s19
      %p221 = scmp.lt.s32.totalorder %s19, 3
      %p222 = pnand %p220, %p221
      %p223 = pneg %p222
      // Predicated region
      $region37: #{classifier_forward.1} parent=5 // pred_check
        _
      $region38: #{classifier_forward.1} parent=5 // pred_check_branch
        %225 = sbr.rel (%p222) target = $region40
      $region39: #{classifier_forward.1} parent=5 // pred_region
        %s226 = ssub.s32 %s19, 1
        %p227 = scmp.lt.s32.totalorder %s24, 1
        %s228 = scalar_select %p227, %s24, 1
        %s229 = smul.addr %s228, 41
        %s230 = smul.addr %s229, 4
        %s231 = scalar_lea.vmem %s0, %s230
        %p232 = pneg %p45
        %p233 = pneg %p42
        %p234 = pneg %p66
        %p235 = pneg %p63
        %p236 = pneg %p87
        %p237 = pneg %p84
        %p238 = pneg %p108
        %p239 = pneg %p105
        %p240 = pneg %p129
        %p241 = pneg %p126
        %p242 = pneg %p155
        %p243 = pneg %p152
        %s244 = sand.u32 %s142, 1
        %s245 = scalar_lea.sflag [#allocation5], %s244
        %s246 = sand.u32 %s142, 1
        %s247 = scalar_lea.vmem [#allocation4], %s246
        %p248 = pneg %p181
        %p249 = pneg %p178
        %s250 = sand.u32 %s168, 1
        %s251 = scalar_lea.sflag [#allocation7], %s250
        %s252 = sand.u32 %s168, 1
        %s253 = scalar_lea.vmem [#allocation6], %s252
        %p254 = scmp.lt.s32.totalorder %s24, 1
        %s255 = scalar_select %p254, %s24, 1
        %s256 = smul.addr %s255, 41
        %s257 = smul.addr %s256, 4
        %s258 = scalar_lea.vmem %s0, %s257
        %260 = vst [vmem:[#allocation2] sm:$0xf] 0
        %261 = vst [vmem:[#allocation2 + $0x4] sm:$0xf] 0
        %262 = vst [vmem:[#allocation2 + $0x8] sm:$0xf] 0
        %263 = vst [vmem:[#allocation2 + $0xc] sm:$0xf] 0
        %264 = vst [vmem:[#allocation2 + $0x10] sm:$0xf] 0
        %265 = vst [vmem:[#allocation2 + $0x14] sm:$0xf] 0
        %266 = vst [vmem:[#allocation2 + $0x18] sm:$0xf] 0
        %267 = vst [vmem:[#allocation2 + $0x1c] sm:$0xf] 0
        %268 = vst [vmem:[#allocation2 + $0x20] sm:$0xf] 0
        %269 = vst [vmem:[#allocation2 + $0x24] sm:$0xf] 0
        %270 = vst [vmem:[#allocation2 + $0x28] sm:$0xf] 0
        %271 = vst [vmem:[#allocation2 + $0x2c] sm:$0xf] 0
        %272 = vst [vmem:[#allocation2 + $0x30] sm:$0xf] 0
        %273 = vst [vmem:[#allocation2 + $0x34] sm:$0xf] 0
        %274 = vst [vmem:[#allocation2 + $0x38] sm:$0xf] 0
        %275 = vst [vmem:[#allocation2 + $0x3c] sm:$0xf] 0
        %276 = vst [vmem:[#allocation2 + $0x40] sm:$0xf] 0
        %277 = vst [vmem:[#allocation2 + $0x44] sm:$0xf] 0
        %278 = vst [vmem:[#allocation2 + $0x48] sm:$0xf] 0
        %279 = vst [vmem:[#allocation2 + $0x4c] sm:$0xf] 0
        %280 = vst [vmem:[#allocation2 + $0x50] sm:$0xf] 0
        %281 = vst [vmem:[#allocation2 + $0x54] sm:$0xf] 0
        %282 = vst [vmem:[#allocation2 + $0x58] sm:$0xf] 0
        %283 = vst [vmem:[#allocation2 + $0x5c] sm:$0xf] 0
        %284 = vst [vmem:[#allocation2 + $0x60] sm:$0xf] 0
        %285 = vst [vmem:[#allocation2 + $0x64] sm:$0xf] 0
        %286 = vst [vmem:[#allocation2 + $0x68] sm:$0xf] 0
        %287 = vst [vmem:[#allocation2 + $0x6c] sm:$0xf] 0
        %288 = vst [vmem:[#allocation2 + $0x70] sm:$0xf] 0
        %289 = vst [vmem:[#allocation2 + $0x74] sm:$0xf] 0
        %290 = vst [vmem:[#allocation2 + $0x78] sm:$0xf] 0
        %291 = vst [vmem:[#allocation2 + $0x7c] sm:$0xf] 0
        %292 = vst [vmem:[#allocation2 + $0x80] sm:$0xf] 0
        %293 = vst [vmem:[#allocation2 + $0x84] sm:$0xf] 0
        %294 = vst [vmem:[#allocation2 + $0x88] sm:$0xf] 0
        %295 = vst [vmem:[#allocation2 + $0x8c] sm:$0xf] 0
        %296 = vst [vmem:[#allocation2 + $0x90] sm:$0xf] 0
        %297 = vst [vmem:[#allocation2 + $0x94] sm:$0xf] 0
        %298 = vst [vmem:[#allocation2 + $0x98] sm:$0xf] 0
        %299 = vst [vmem:[#allocation2 + $0x9c] sm:$0xf] 0
        %300 = vst [vmem:[#allocation2 + $0xa0] sm:$0x7] 0
        %v301 = vld [vmem:[%s258] sm:$0xf]
        %v302 = vld [vmem:[%s258 + $0x4] sm:$0xf]
        %v303 = vld [vmem:[%s258 + $0x8] sm:$0xf]
        %v304 = vld [vmem:[%s258 + $0xc] sm:$0xf]
        %v305 = vld [vmem:[%s258 + $0x10] sm:$0xf]
        %v306 = vld [vmem:[%s258 + $0x14] sm:$0xf]
        %v307 = vld [vmem:[%s258 + $0x18] sm:$0xf]
        %v308 = vld [vmem:[%s258 + $0x1c] sm:$0xf]
        %v309 = vld [vmem:[%s258 + $0x20] sm:$0xf]
        %v310 = vld [vmem:[%s258 + $0x24] sm:$0xf]
        %v311 = vld [vmem:[%s258 + $0x28] sm:$0xf]
        %v312 = vld [vmem:[%s258 + $0x2c] sm:$0xf]
        %v313 = vld [vmem:[%s258 + $0x30] sm:$0xf]
        %v314 = vld [vmem:[%s258 + $0x34] sm:$0xf]
        %v315 = vld [vmem:[%s258 + $0x38] sm:$0xf]
        %v316 = vld [vmem:[%s258 + $0x3c] sm:$0xf]
        %v317 = vld [vmem:[%s258 + $0x40] sm:$0xf]
        %v318 = vld [vmem:[%s258 + $0x44] sm:$0xf]
        %v319 = vld [vmem:[%s258 + $0x48] sm:$0xf]
        %v320 = vld [vmem:[%s258 + $0x4c] sm:$0xf]
        %v321 = vld [vmem:[%s258 + $0x50] sm:$0xf]
        %v322 = vld [vmem:[%s258 + $0x54] sm:$0xf]
        %v323 = vld [vmem:[%s258 + $0x58] sm:$0xf]
        %v324 = vld [vmem:[%s258 + $0x5c] sm:$0xf]
        %v325 = vld [vmem:[%s258 + $0x60] sm:$0xf]
        %v326 = vld [vmem:[%s258 + $0x64] sm:$0xf]
        %v327 = vld [vmem:[%s258 + $0x68] sm:$0xf]
        %v328 = vld [vmem:[%s258 + $0x6c] sm:$0xf]
        %v329 = vld [vmem:[%s258 + $0x70] sm:$0xf]
        %v330 = vld [vmem:[%s258 + $0x74] sm:$0xf]
        %v331 = vld [vmem:[%s258 + $0x78] sm:$0xf]
        %v332 = vld [vmem:[%s258 + $0x7c] sm:$0xf]
        %v333 = vld [vmem:[%s258 + $0x80] sm:$0xf]
        %v334 = vld [vmem:[%s258 + $0x84] sm:$0xf]
        %v335 = vld [vmem:[%s258 + $0x88] sm:$0xf]
        %v336 = vld [vmem:[%s258 + $0x8c] sm:$0xf]
        %v337 = vld [vmem:[%s258 + $0x90] sm:$0xf]
        %v338 = vld [vmem:[%s258 + $0x94] sm:$0xf]
        %v339 = vld [vmem:[%s258 + $0x98] sm:$0xf]
        %v340 = vld [vmem:[%s258 + $0x9c] sm:$0xf]
        %v341 = vld [vmem:[%s258 + $0xa0] sm:$0x7]
        %vm342 = vcmask 60416
        %343 = vst.msk [vmem:[#allocation2] sm:$0xf] %vm342, %v301
        %344 = vst.msk [vmem:[#allocation2 + $0x4] sm:$0xf] %vm342, %v302
        %345 = vst.msk [vmem:[#allocation2 + $0x8] sm:$0xf] %vm342, %v303
        %346 = vst.msk [vmem:[#allocation2 + $0xc] sm:$0xf] %vm342, %v304
        %347 = vst.msk [vmem:[#allocation2 + $0x10] sm:$0xf] %vm342, %v305
        %348 = vst.msk [vmem:[#allocation2 + $0x14] sm:$0xf] %vm342, %v306
        %349 = vst.msk [vmem:[#allocation2 + $0x18] sm:$0xf] %vm342, %v307
        %350 = vst.msk [vmem:[#allocation2 + $0x1c] sm:$0xf] %vm342, %v308
        %351 = vst.msk [vmem:[#allocation2 + $0x20] sm:$0xf] %vm342, %v309
        %352 = vst.msk [vmem:[#allocation2 + $0x24] sm:$0xf] %vm342, %v310
        %353 = vst.msk [vmem:[#allocation2 + $0x28] sm:$0xf] %vm342, %v311
        %354 = vst.msk [vmem:[#allocation2 + $0x2c] sm:$0xf] %vm342, %v312
        %355 = vst.msk [vmem:[#allocation2 + $0x30] sm:$0xf] %vm342, %v313
        %356 = vst.msk [vmem:[#allocation2 + $0x34] sm:$0xf] %vm342, %v314
        %357 = vst.msk [vmem:[#allocation2 + $0x38] sm:$0xf] %vm342, %v315
        %358 = vst.msk [vmem:[#allocation2 + $0x3c] sm:$0xf] %vm342, %v316
        %359 = vst.msk [vmem:[#allocation2 + $0x40] sm:$0xf] %vm342, %v317
        %360 = vst.msk [vmem:[#allocation2 + $0x44] sm:$0xf] %vm342, %v318
        %361 = vst.msk [vmem:[#allocation2 + $0x48] sm:$0xf] %vm342, %v319
        %362 = vst.msk [vmem:[#allocation2 + $0x4c] sm:$0xf] %vm342, %v320
        %363 = vst.msk [vmem:[#allocation2 + $0x50] sm:$0xf] %vm342, %v321
        %364 = vst.msk [vmem:[#allocation2 + $0x54] sm:$0xf] %vm342, %v322
        %365 = vst.msk [vmem:[#allocation2 + $0x58] sm:$0xf] %vm342, %v323
        %366 = vst.msk [vmem:[#allocation2 + $0x5c] sm:$0xf] %vm342, %v324
        %367 = vst.msk [vmem:[#allocation2 + $0x60] sm:$0xf] %vm342, %v325
        %368 = vst.msk [vmem:[#allocation2 + $0x64] sm:$0xf] %vm342, %v326
        %369 = vst.msk [vmem:[#allocation2 + $0x68] sm:$0xf] %vm342, %v327
        %370 = vst.msk [vmem:[#allocation2 + $0x6c] sm:$0xf] %vm342, %v328
        %371 = vst.msk [vmem:[#allocation2 + $0x70] sm:$0xf] %vm342, %v329
        %372 = vst.msk [vmem:[#allocation2 + $0x74] sm:$0xf] %vm342, %v330
        %373 = vst.msk [vmem:[#allocation2 + $0x78] sm:$0xf] %vm342, %v331
        %374 = vst.msk [vmem:[#allocation2 + $0x7c] sm:$0xf] %vm342, %v332
        %375 = vst.msk [vmem:[#allocation2 + $0x80] sm:$0xf] %vm342, %v333
        %376 = vst.msk [vmem:[#allocation2 + $0x84] sm:$0xf] %vm342, %v334
        %377 = vst.msk [vmem:[#allocation2 + $0x88] sm:$0xf] %vm342, %v335
        %378 = vst.msk [vmem:[#allocation2 + $0x8c] sm:$0xf] %vm342, %v336
        %379 = vst.msk [vmem:[#allocation2 + $0x90] sm:$0xf] %vm342, %v337
        %380 = vst.msk [vmem:[#allocation2 + $0x94] sm:$0xf] %vm342, %v338
        %381 = vst.msk [vmem:[#allocation2 + $0x98] sm:$0xf] %vm342, %v339
        %382 = vst.msk [vmem:[#allocation2 + $0x9c] sm:$0xf] %vm342, %v340
        %vm383 = vcmask 59392
        %384 = vst.msk [vmem:[#allocation2 + $0xa0] sm:$0x7] %vm383, %v341
        %v385 = vld [vmem:[#allocation2] sm:$0xf]
        %v386 = vld [vmem:[#allocation2 + $0x4] sm:$0xf]
        %v387 = vld [vmem:[#allocation2 + $0x8] sm:$0xf]
        %v388 = vld [vmem:[#allocation2 + $0xc] sm:$0xf]
        %v389 = vld [vmem:[#allocation2 + $0x10] sm:$0xf]
        %v390 = vld [vmem:[#allocation2 + $0x14] sm:$0xf]
        %v391 = vld [vmem:[#allocation2 + $0x18] sm:$0xf]
        %v392 = vld [vmem:[#allocation2 + $0x1c] sm:$0xf]
        %v393 = vld [vmem:[#allocation2 + $0x20] sm:$0xf]
        %v394 = vld [vmem:[#allocation2 + $0x24] sm:$0xf]
        %v395 = vld [vmem:[#allocation2 + $0x28] sm:$0xf]
        %v396 = vld [vmem:[#allocation2 + $0x2c] sm:$0xf]
        %v397 = vld [vmem:[#allocation2 + $0x30] sm:$0xf]
        %v398 = vld [vmem:[#allocation2 + $0x34] sm:$0xf]
        %v399 = vld [vmem:[#allocation2 + $0x38] sm:$0xf]
        %v400 = vld [vmem:[#allocation2 + $0x3c] sm:$0xf]
        %v401 = vld [vmem:[#allocation2 + $0x40] sm:$0xf]
        %v402 = vld [vmem:[#allocation2 + $0x44] sm:$0xf]
        %v403 = vld [vmem:[#allocation2 + $0x48] sm:$0xf]
        %v404 = vld [vmem:[#allocation2 + $0x4c] sm:$0xf]
        %v405 = vld [vmem:[#allocation2 + $0x50] sm:$0xf]
        %v406 = vld [vmem:[#allocation2 + $0x54] sm:$0xf]
        %v407 = vld [vmem:[#allocation2 + $0x58] sm:$0xf]
        %v408 = vld [vmem:[#allocation2 + $0x5c] sm:$0xf]
        %v409 = vld [vmem:[#allocation2 + $0x60] sm:$0xf]
        %v410 = vld [vmem:[#allocation2 + $0x64] sm:$0xf]
        %v411 = vld [vmem:[#allocation2 + $0x68] sm:$0xf]
        %v412 = vld [vmem:[#allocation2 + $0x6c] sm:$0xf]
        %v413 = vld [vmem:[#allocation2 + $0x70] sm:$0xf]
        %v414 = vld [vmem:[#allocation2 + $0x74] sm:$0xf]
        %v415 = vld [vmem:[#allocation2 + $0x78] sm:$0xf]
        %v416 = vld [vmem:[#allocation2 + $0x7c] sm:$0xf]
        %v417 = vld [vmem:[#allocation2 + $0x80] sm:$0xf]
        %v418 = vld [vmem:[#allocation2 + $0x84] sm:$0xf]
        %v419 = vld [vmem:[#allocation2 + $0x88] sm:$0xf]
        %v420 = vld [vmem:[#allocation2 + $0x8c] sm:$0xf]
        %v421 = vld [vmem:[%s1] sm:$0xf]
        %v422 = vld [vmem:[%s1 + $0x4] sm:$0xf]
        %v423 = vld [vmem:[%s1 + $0x8] sm:$0xf]
        %v424 = vld [vmem:[%s1 + $0xc] sm:$0xf]
        %v425 = vld [vmem:[%s1 + $0x10] sm:$0xf]
        %v426 = vld [vmem:[%s1 + $0x14] sm:$0xf]
        %v427 = vld [vmem:[%s1 + $0x18] sm:$0xf]
        %v428 = vld [vmem:[%s1 + $0x1c] sm:$0xf]
        %v429 = vld [vmem:[%s1 + $0x20] sm:$0xf]
        %v430 = vld [vmem:[%s1 + $0x24] sm:$0xf]
        %v431 = vld [vmem:[%s1 + $0x28] sm:$0xf]
        %v432 = vld [vmem:[%s1 + $0x2c] sm:$0xf]
        %v433 = vld [vmem:[%s1 + $0x30] sm:$0xf]
        %v434 = vld [vmem:[%s1 + $0x34] sm:$0xf]
        %v435 = vld [vmem:[%s1 + $0x38] sm:$0xf]
        %v436 = vld [vmem:[%s1 + $0x3c] sm:$0xf]
        %v437 = vld [vmem:[#allocation2 + $0x90] sm:$0x1]
        %s438 = scalar_lea.vmem %s1, 64
        %v439 = vld [vmem:[%s438] sm:$0xf]
        %v440 = vld [vmem:[%s438 + $0x4] sm:$0xf]
        %v441 = vld [vmem:[%s438 + $0x8] sm:$0xf]
        %v442 = vld [vmem:[%s438 + $0xc] sm:$0xf]
        %v443 = vld [vmem:[%s438 + $0x10] sm:$0xf]
        %v444 = vld [vmem:[%s438 + $0x14] sm:$0xf]
        %v445 = vld [vmem:[%s438 + $0x18] sm:$0xf]
        %v446 = vld [vmem:[%s438 + $0x1c] sm:$0xf]
        %v447 = vld [vmem:[%s438 + $0x20] sm:$0xf]
        %v448 = vld [vmem:[%s438 + $0x24] sm:$0xf]
        %v449 = vld [vmem:[%s438 + $0x28] sm:$0xf]
        %v450 = vld [vmem:[%s438 + $0x2c] sm:$0xf]
        %v451 = vld [vmem:[%s438 + $0x30] sm:$0xf]
        %v452 = vld [vmem:[%s438 + $0x34] sm:$0xf]
        %v453 = vld [vmem:[%s438 + $0x38] sm:$0xf]
        %v454 = vld [vmem:[%s438 + $0x3c] sm:$0xf]
        %v492 = vunpack.c.l.b16 %v385
        %v493 = vunpack.c.l.b16 %v386
        %v494 = vunpack.c.l.b16 %v387
        %v495 = vunpack.c.l.b16 %v388
        %v496 = vunpack.c.l.b16 %v389
        %v497 = vunpack.c.l.b16 %v390
        %v498 = vunpack.c.l.b16 %v391
        %v499 = vunpack.c.l.b16 %v392
        %v500 = vunpack.c.l.b16 %v393
        %v501 = vunpack.c.l.b16 %v394
        %v502 = vunpack.c.l.b16 %v395
        %v503 = vunpack.c.l.b16 %v396
        %v504 = vunpack.c.l.b16 %v397
        %v505 = vunpack.c.l.b16 %v398
        %v506 = vunpack.c.l.b16 %v399
        %v507 = vunpack.c.l.b16 %v400
        %v508 = vunpack.c.l.b16 %v401
        %v509 = vunpack.c.l.b16 %v402
        %v510 = vunpack.c.l.b16 %v403
        %v511 = vunpack.c.l.b16 %v404
        %v512 = vunpack.c.l.b16 %v405
        %v513 = vunpack.c.l.b16 %v406
        %v514 = vunpack.c.l.b16 %v407
        %v515 = vunpack.c.l.b16 %v408
        %v516 = vunpack.c.l.b16 %v409
        %v517 = vunpack.c.l.b16 %v410
        %v518 = vunpack.c.l.b16 %v411
        %v519 = vunpack.c.l.b16 %v412
        %v520 = vunpack.c.l.b16 %v413
        %v521 = vunpack.c.l.b16 %v414
        %v522 = vunpack.c.l.b16 %v415
        %v523 = vunpack.c.l.b16 %v416
        %v524 = vunpack.c.l.b16 %v417
        %v525 = vunpack.c.l.b16 %v418
        %v526 = vunpack.c.l.b16 %v419
        %v527 = vunpack.c.l.b16 %v420
        %v528 = vunpack.c.l.b16 %v437
        %v529 = vpack.c.b16 %v493, %v492
        %v530 = vpack.c.b16 %v495, %v494
        %v531 = vpack.c.b16 %v497, %v496
        %v532 = vpack.c.b16 %v499, %v498
        %v533 = vpack.c.b16 %v501, %v500
        %v534 = vpack.c.b16 %v503, %v502
        %v535 = vpack.c.b16 %v505, %v504
        %v536 = vpack.c.b16 %v507, %v506
        %v537 = vpack.c.b16 %v509, %v508
        %v538 = vpack.c.b16 %v511, %v510
        %v539 = vpack.c.b16 %v513, %v512
        %v540 = vpack.c.b16 %v515, %v514
        %v541 = vpack.c.b16 %v517, %v516
        %v542 = vpack.c.b16 %v519, %v518
        %v543 = vpack.c.b16 %v521, %v520
        %v544 = vpack.c.b16 %v523, %v522
        %v545 = vpack.c.b16 %v525, %v524
        %v546 = vpack.c.b16 %v527, %v526
        %v547 = vpack.c.b16 %v528, %v528
        %vm548 = vsmask.f32 7424
        %v550 = vshrl.u32 %v529, 16
        %v552 = vshll.u32 %v529, 16
        %v554 = vrot.slane %v552, 1
        %v555 = vor.u32 %v550, %v554
        %v557 = vshll.u32 %v530, 16
        %v559 = vrot.slane %v557, 1
        %v560 = vsel %vm548, %v555, %v559
        %v561 = vshrl.u32 %v530, 16
        %v563 = vor.u32 %v561, %v559
        %v565 = vshll.u32 %v531, 16
        %v567 = vrot.slane %v565, 1
        %v568 = vsel %vm548, %v563, %v567
        %v569 = vshrl.u32 %v531, 16
        %v571 = vor.u32 %v569, %v567
        %v573 = vshll.u32 %v532, 16
        %v575 = vrot.slane %v573, 1
        %v576 = vsel %vm548, %v571, %v575
        %v577 = vshrl.u32 %v532, 16
        %v579 = vor.u32 %v577, %v575
        %v581 = vshll.u32 %v533, 16
        %v583 = vrot.slane %v581, 1
        %v584 = vsel %vm548, %v579, %v583
        %v585 = vshrl.u32 %v533, 16
        %v587 = vor.u32 %v585, %v583
        %v589 = vshll.u32 %v534, 16
        %v591 = vrot.slane %v589, 1
        %v592 = vsel %vm548, %v587, %v591
        %v593 = vshrl.u32 %v534, 16
        %v595 = vor.u32 %v593, %v591
        %v597 = vshll.u32 %v535, 16
        %v599 = vrot.slane %v597, 1
        %v600 = vsel %vm548, %v595, %v599
        %v601 = vshrl.u32 %v535, 16
        %v603 = vor.u32 %v601, %v599
        %v605 = vshll.u32 %v536, 16
        %v607 = vrot.slane %v605, 1
        %v608 = vsel %vm548, %v603, %v607
        %v609 = vshrl.u32 %v536, 16
        %v611 = vor.u32 %v609, %v607
        %v613 = vshll.u32 %v537, 16
        %v615 = vrot.slane %v613, 1
        %v616 = vsel %vm548, %v611, %v615
        %v617 = vshrl.u32 %v537, 16
        %v619 = vor.u32 %v617, %v615
        %v621 = vshll.u32 %v538, 16
        %v623 = vrot.slane %v621, 1
        %v624 = vsel %vm548, %v619, %v623
        %v625 = vshrl.u32 %v538, 16
        %v627 = vor.u32 %v625, %v623
        %v629 = vshll.u32 %v539, 16
        %v631 = vrot.slane %v629, 1
        %v632 = vsel %vm548, %v627, %v631
        %v633 = vshrl.u32 %v539, 16
        %v635 = vor.u32 %v633, %v631
        %v637 = vshll.u32 %v540, 16
        %v639 = vrot.slane %v637, 1
        %v640 = vsel %vm548, %v635, %v639
        %v641 = vshrl.u32 %v540, 16
        %v643 = vor.u32 %v641, %v639
        %v645 = vshll.u32 %v541, 16
        %v647 = vrot.slane %v645, 1
        %v648 = vsel %vm548, %v643, %v647
        %v649 = vshrl.u32 %v541, 16
        %v651 = vor.u32 %v649, %v647
        %v653 = vshll.u32 %v542, 16
        %v655 = vrot.slane %v653, 1
        %v656 = vsel %vm548, %v651, %v655
        %v657 = vshrl.u32 %v542, 16
        %v659 = vor.u32 %v657, %v655
        %v661 = vshll.u32 %v543, 16
        %v663 = vrot.slane %v661, 1
        %v664 = vsel %vm548, %v659, %v663
        %v665 = vshrl.u32 %v543, 16
        %v667 = vor.u32 %v665, %v663
        %v669 = vshll.u32 %v544, 16
        %v671 = vrot.slane %v669, 1
        %v672 = vsel %vm548, %v667, %v671
        %v673 = vshrl.u32 %v544, 16
        %v675 = vor.u32 %v673, %v671
        %v677 = vshll.u32 %v545, 16
        %v679 = vrot.slane %v677, 1
        %v680 = vsel %vm548, %v675, %v679
        %v681 = vshrl.u32 %v545, 16
        %v683 = vor.u32 %v681, %v679
        %v685 = vshll.u32 %v546, 16
        %v687 = vrot.slane %v685, 1
        %v688 = vsel %vm548, %v683, %v687
        %v689 = vshrl.u32 %v546, 16
        %v691 = vor.u32 %v689, %v687
        %v693 = vshll.u32 %v547, 16
        %v695 = vrot.slane %v693, 1
        %v696 = vsel %vm548, %v691, %v695
        %v731 = vunpack.c.l.b16 %v439
        %v732 = vunpack.c.l.b16 %v440
        %v733 = vunpack.c.l.b16 %v441
        %v734 = vunpack.c.l.b16 %v442
        %v735 = vunpack.c.l.b16 %v443
        %v736 = vunpack.c.l.b16 %v444
        %v737 = vunpack.c.l.b16 %v445
        %v738 = vunpack.c.l.b16 %v446
        %v739 = vunpack.c.l.b16 %v447
        %v740 = vunpack.c.l.b16 %v448
        %v741 = vunpack.c.l.b16 %v449
        %v742 = vunpack.c.l.b16 %v450
        %v743 = vunpack.c.l.b16 %v451
        %v744 = vunpack.c.l.b16 %v452
        %v745 = vunpack.c.l.b16 %v453
        %v746 = vunpack.c.l.b16 %v454
        %v747 = vpack.c.b16 %v732, %v731
        %v748 = vpack.c.b16 %v734, %v733
        %v749 = vpack.c.b16 %v736, %v735
        %v750 = vpack.c.b16 %v738, %v737
        %v751 = vpack.c.b16 %v740, %v739
        %v752 = vpack.c.b16 %v742, %v741
        %v753 = vpack.c.b16 %v744, %v743
        %v754 = vpack.c.b16 %v746, %v745
        %763 = vmatprep.subr.bf16.mxu0 0
        %764 = vmatpush1.bf16.msra.mxu0 %v754
        %765 = vmatprep.subr.bf16.mxu0 0
        %766 = vmatpush1.bf16.msra.mxu0 %v753
        %767 = vmatprep.subr.bf16.mxu0 0
        %768 = vmatpush1.bf16.msra.mxu0 %v752
        %769 = vmatprep.subr.bf16.mxu0 0
        %770 = vmatpush1.bf16.msra.mxu0 %v751
        %771 = vmatprep.subr.bf16.mxu0 0
        %772 = vmatpush1.bf16.msra.mxu0 %v750
        %773 = vmatprep.subr.bf16.mxu0 0
        %774 = vmatpush1.bf16.msra.mxu0 %v749
        %775 = vmatprep.subr.bf16.mxu0 0
        %776 = vmatpush1.bf16.msra.mxu0 %v748
        %777 = vmatprep.subr.bf16.mxu0 0
        %778 = vmatpush1.bf16.msra.mxu0 %v747
        %779 = vmatprep.subr.bf16.mxu0 0
        %780 = vmatpush2.bf16.msra.mxu0 0
        %781 = vmatprep.subr.bf16.mxu0 0
        %782 = vmatpush2.bf16.msra.mxu0 0
        %783 = vmatprep.subr.bf16.mxu0 0
        %784 = vmatpush2.bf16.msra.mxu0 0
        %785 = vmatprep.subr.bf16.mxu0 0
        %786 = vmatpush2.bf16.msra.mxu0 0
        %787 = vmatprep.subr.bf16.mxu0 0
        %788 = vmatpush2.bf16.msra.mxu0 0
        %789 = vmatprep.subr.bf16.mxu0 0
        %790 = vmatpush2.bf16.msra.mxu0 0
        %791 = vmatprep.subr.bf16.mxu0 0
        %792 = vmatpush2.bf16.msra.mxu0 0
        %793 = vmatprep.subr.bf16.mxu0 0
        %794 = vmatpush2.bf16.msra.mxu0 0
        %795 = vmatprep.mubr.bf16.mxu0 0
        %796 = vmatmul.mubr.bf16.gmra.mxu0 %v560
        %v797 = vpop.f32.mrf.mxu0
        %v798 = vadd.f32 0.0, %v797
        %v799 = vpop.f32.mrf.mxu0
        %v800 = vpop.f32.mrf.mxu0
        %v801 = vadd.f32 0.0, %v800
        %v802 = vpop.f32.mrf.mxu0
        %803 = vmatprep.mubr.bf16.mxu0 0
        %804 = vmatmul.mubr.bf16.gmra.mxu0 %v568
        %v805 = vpop.f32.mrf.mxu0
        %v806 = vadd.f32 0.0, %v805
        %v807 = vpop.f32.mrf.mxu0
        %v808 = vpop.f32.mrf.mxu0
        %v809 = vadd.f32 0.0, %v808
        %v810 = vpop.f32.mrf.mxu0
        %811 = vmatprep.mubr.bf16.mxu0 0
        %812 = vmatmul.mubr.bf16.gmra.mxu0 %v576
        %v813 = vpop.f32.mrf.mxu0
        %v814 = vadd.f32 0.0, %v813
        %v815 = vpop.f32.mrf.mxu0
        %v816 = vpop.f32.mrf.mxu0
        %v817 = vadd.f32 0.0, %v816
        %v818 = vpop.f32.mrf.mxu0
        %819 = vmatprep.mubr.bf16.mxu0 0
        %820 = vmatmul.mubr.bf16.gmra.mxu0 %v584
        %v821 = vpop.f32.mrf.mxu0
        %v822 = vadd.f32 0.0, %v821
        %v823 = vpop.f32.mrf.mxu0
        %v824 = vpop.f32.mrf.mxu0
        %v825 = vadd.f32 0.0, %v824
        %v826 = vpop.f32.mrf.mxu0
        %827 = vmatprep.mubr.bf16.mxu0 0
        %828 = vmatmul.mubr.bf16.gmra.mxu0 %v592
        %v829 = vpop.f32.mrf.mxu0
        %v830 = vadd.f32 0.0, %v829
        %v831 = vpop.f32.mrf.mxu0
        %v832 = vpop.f32.mrf.mxu0
        %v833 = vadd.f32 0.0, %v832
        %v834 = vpop.f32.mrf.mxu0
        %835 = vmatprep.mubr.bf16.mxu0 0
        %836 = vmatmul.mubr.bf16.gmra.mxu0 %v600
        %v837 = vpop.f32.mrf.mxu0
        %v838 = vadd.f32 0.0, %v837
        %v839 = vpop.f32.mrf.mxu0
        %v840 = vpop.f32.mrf.mxu0
        %v841 = vadd.f32 0.0, %v840
        %v842 = vpop.f32.mrf.mxu0
        %843 = vmatprep.mubr.bf16.mxu0 0
        %844 = vmatmul.mubr.bf16.gmra.mxu0 %v608
        %v845 = vpop.f32.mrf.mxu0
        %v846 = vadd.f32 0.0, %v845
        %v847 = vpop.f32.mrf.mxu0
        %v848 = vpop.f32.mrf.mxu0
        %v849 = vadd.f32 0.0, %v848
        %v850 = vpop.f32.mrf.mxu0
        %851 = vmatprep.mubr.bf16.mxu0 0
        %852 = vmatmul.mubr.bf16.gmra.mxu0 %v616
        %v853 = vpop.f32.mrf.mxu0
        %v854 = vadd.f32 0.0, %v853
        %v855 = vpop.f32.mrf.mxu0
        %v856 = vpop.f32.mrf.mxu0
        %v857 = vadd.f32 0.0, %v856
        %v858 = vpop.f32.mrf.mxu0
        %859 = vmatprep.mubr.bf16.mxu0 0
        %860 = vmatmul.mubr.bf16.gmra.mxu0 %v624
        %v861 = vpop.f32.mrf.mxu0
        %v862 = vadd.f32 0.0, %v861
        %v863 = vpop.f32.mrf.mxu0
        %v864 = vpop.f32.mrf.mxu0
        %v865 = vadd.f32 0.0, %v864
        %v866 = vpop.f32.mrf.mxu0
        %867 = vmatprep.mubr.bf16.mxu0 0
        %868 = vmatmul.mubr.bf16.gmra.mxu0 %v632
        %v869 = vpop.f32.mrf.mxu0
        %v870 = vadd.f32 0.0, %v869
        %v871 = vpop.f32.mrf.mxu0
        %v872 = vpop.f32.mrf.mxu0
        %v873 = vadd.f32 0.0, %v872
        %v874 = vpop.f32.mrf.mxu0
        %875 = vmatprep.mubr.bf16.mxu0 0
        %876 = vmatmul.mubr.bf16.gmra.mxu0 %v640
        %v877 = vpop.f32.mrf.mxu0
        %v878 = vadd.f32 0.0, %v877
        %v879 = vpop.f32.mrf.mxu0
        %v880 = vpop.f32.mrf.mxu0
        %v881 = vadd.f32 0.0, %v880
        %v882 = vpop.f32.mrf.mxu0
        %883 = vmatprep.mubr.bf16.mxu0 0
        %884 = vmatmul.mubr.bf16.gmra.mxu0 %v648
        %v885 = vpop.f32.mrf.mxu0
        %v886 = vadd.f32 0.0, %v885
        %v887 = vpop.f32.mrf.mxu0
        %v888 = vpop.f32.mrf.mxu0
        %v889 = vadd.f32 0.0, %v888
        %v890 = vpop.f32.mrf.mxu0
        %891 = vmatprep.mubr.bf16.mxu0 0
        %892 = vmatmul.mubr.bf16.gmra.mxu0 %v656
        %v893 = vpop.f32.mrf.mxu0
        %v894 = vadd.f32 0.0, %v893
        %v895 = vpop.f32.mrf.mxu0
        %v896 = vpop.f32.mrf.mxu0
        %v897 = vadd.f32 0.0, %v896
        %v898 = vpop.f32.mrf.mxu0
        %899 = vmatprep.mubr.bf16.mxu0 0
        %900 = vmatmul.mubr.bf16.gmra.mxu0 %v664
        %v901 = vpop.f32.mrf.mxu0
        %v902 = vadd.f32 0.0, %v901
        %v903 = vpop.f32.mrf.mxu0
        %v904 = vpop.f32.mrf.mxu0
        %v905 = vadd.f32 0.0, %v904
        %v906 = vpop.f32.mrf.mxu0
        %907 = vmatprep.mubr.bf16.mxu0 0
        %908 = vmatmul.mubr.bf16.gmra.mxu0 %v672
        %v909 = vpop.f32.mrf.mxu0
        %v910 = vadd.f32 0.0, %v909
        %v911 = vpop.f32.mrf.mxu0
        %v912 = vpop.f32.mrf.mxu0
        %v913 = vadd.f32 0.0, %v912
        %v914 = vpop.f32.mrf.mxu0
        %915 = vmatprep.mubr.bf16.mxu0 0
        %916 = vmatmul.mubr.bf16.gmra.mxu0 %v680
        %v917 = vpop.f32.mrf.mxu0
        %v918 = vadd.f32 0.0, %v917
        %v919 = vpop.f32.mrf.mxu0
        %v920 = vpop.f32.mrf.mxu0
        %v921 = vadd.f32 0.0, %v920
        %v922 = vpop.f32.mrf.mxu0
        %923 = vmatprep.mubr.bf16.mxu0 0
        %924 = vmatmul.mubr.bf16.gmra.mxu0 %v688
        %v925 = vpop.f32.mrf.mxu0
        %v926 = vadd.f32 0.0, %v925
        %v927 = vpop.f32.mrf.mxu0
        %v928 = vpop.f32.mrf.mxu0
        %v929 = vadd.f32 0.0, %v928
        %v930 = vpop.f32.mrf.mxu0
        %931 = vmatprep.mubr.bf16.mxu0 0
        %932 = vmatmul.mubr.bf16.gmra.mxu0 %v696
        %v933 = vpop.f32.mrf.mxu0
        %v934 = vadd.f32 0.0, %v933
        %v935 = vpop.f32.mrf.mxu0
        %v936 = vpop.f32.mrf.mxu0
        %v937 = vadd.f32 0.0, %v936
        %v938 = vpop.f32.mrf.mxu0
        %939 = vdwg.mxu0
        %v974 = vunpack.c.l.b16 %v421
        %v975 = vunpack.c.l.b16 %v422
        %v976 = vunpack.c.l.b16 %v423
        %v977 = vunpack.c.l.b16 %v424
        %v978 = vunpack.c.l.b16 %v425
        %v979 = vunpack.c.l.b16 %v426
        %v980 = vunpack.c.l.b16 %v427
        %v981 = vunpack.c.l.b16 %v428
        %v982 = vunpack.c.l.b16 %v429
        %v983 = vunpack.c.l.b16 %v430
        %v984 = vunpack.c.l.b16 %v431
        %v985 = vunpack.c.l.b16 %v432
        %v986 = vunpack.c.l.b16 %v433
        %v987 = vunpack.c.l.b16 %v434
        %v988 = vunpack.c.l.b16 %v435
        %v989 = vunpack.c.l.b16 %v436
        %v990 = vpack.c.b16 %v975, %v974
        %v991 = vpack.c.b16 %v977, %v976
        %v992 = vpack.c.b16 %v979, %v978
        %v993 = vpack.c.b16 %v981, %v980
        %v994 = vpack.c.b16 %v983, %v982
        %v995 = vpack.c.b16 %v985, %v984
        %v996 = vpack.c.b16 %v987, %v986
        %v997 = vpack.c.b16 %v989, %v988
        %1006 = vmatprep.subr.bf16.mxu0 0
        %1007 = vmatpush1.bf16.msra.mxu0 %v997
        %1008 = vmatprep.subr.bf16.mxu0 0
        %1009 = vmatpush1.bf16.msra.mxu0 %v996
        %1010 = vmatprep.subr.bf16.mxu0 0
        %1011 = vmatpush1.bf16.msra.mxu0 %v995
        %1012 = vmatprep.subr.bf16.mxu0 0
        %1013 = vmatpush1.bf16.msra.mxu0 %v994
        %1014 = vmatprep.subr.bf16.mxu0 0
        %1015 = vmatpush1.bf16.msra.mxu0 %v993
        %1016 = vmatprep.subr.bf16.mxu0 0
        %1017 = vmatpush1.bf16.msra.mxu0 %v992
        %1018 = vmatprep.subr.bf16.mxu0 0
        %1019 = vmatpush1.bf16.msra.mxu0 %v991
        %1020 = vmatprep.subr.bf16.mxu0 0
        %1021 = vmatpush1.bf16.msra.mxu0 %v990
        %1022 = vmatprep.subr.bf16.mxu0 0
        %1023 = vmatpush2.bf16.msra.mxu0 0
        %1024 = vmatprep.subr.bf16.mxu0 0
        %1025 = vmatpush2.bf16.msra.mxu0 0
        %1026 = vmatprep.subr.bf16.mxu0 0
        %1027 = vmatpush2.bf16.msra.mxu0 0
        %1028 = vmatprep.subr.bf16.mxu0 0
        %1029 = vmatpush2.bf16.msra.mxu0 0
        %1030 = vmatprep.subr.bf16.mxu0 0
        %1031 = vmatpush2.bf16.msra.mxu0 0
        %1032 = vmatprep.subr.bf16.mxu0 0
        %1033 = vmatpush2.bf16.msra.mxu0 0
        %1034 = vmatprep.subr.bf16.mxu0 0
        %1035 = vmatpush2.bf16.msra.mxu0 0
        %1036 = vmatprep.subr.bf16.mxu0 0
        %1037 = vmatpush2.bf16.msra.mxu0 0
        %1038 = vmatprep.mubr.bf16.mxu0 0
        %1039 = vmatmul.mubr.bf16.gmra.mxu0 %v529
        %v1040 = vpop.f32.mrf.mxu0
        %v1041 = vadd.f32 %v798, %v1040
        %v1042 = vpop.f32.mrf.mxu0
        %v1043 = vpop.f32.mrf.mxu0
        %v1044 = vadd.f32 %v801, %v1043
        %v1045 = vpop.f32.mrf.mxu0
        %1046 = vmatprep.mubr.bf16.mxu0 0
        %1047 = vmatmul.mubr.bf16.gmra.mxu0 %v530
        %v1048 = vpop.f32.mrf.mxu0
        %v1049 = vadd.f32 %v806, %v1048
        %v1050 = vpop.f32.mrf.mxu0
        %v1051 = vpop.f32.mrf.mxu0
        %v1052 = vadd.f32 %v809, %v1051
        %v1053 = vpop.f32.mrf.mxu0
        %1054 = vmatprep.mubr.bf16.mxu0 0
        %1055 = vmatmul.mubr.bf16.gmra.mxu0 %v531
        %v1056 = vpop.f32.mrf.mxu0
        %v1057 = vadd.f32 %v814, %v1056
        %v1058 = vpop.f32.mrf.mxu0
        %v1059 = vpop.f32.mrf.mxu0
        %v1060 = vadd.f32 %v817, %v1059
        %v1061 = vpop.f32.mrf.mxu0
        %1062 = vmatprep.mubr.bf16.mxu0 0
        %1063 = vmatmul.mubr.bf16.gmra.mxu0 %v532
        %v1064 = vpop.f32.mrf.mxu0
        %v1065 = vadd.f32 %v822, %v1064
        %v1066 = vpop.f32.mrf.mxu0
        %v1067 = vpop.f32.mrf.mxu0
        %v1068 = vadd.f32 %v825, %v1067
        %v1069 = vpop.f32.mrf.mxu0
        %1070 = vmatprep.mubr.bf16.mxu0 0
        %1071 = vmatmul.mubr.bf16.gmra.mxu0 %v533
        %v1072 = vpop.f32.mrf.mxu0
        %v1073 = vadd.f32 %v830, %v1072
        %v1074 = vpop.f32.mrf.mxu0
        %v1075 = vpop.f32.mrf.mxu0
        %v1076 = vadd.f32 %v833, %v1075
        %v1077 = vpop.f32.mrf.mxu0
        %1078 = vmatprep.mubr.bf16.mxu0 0
        %1079 = vmatmul.mubr.bf16.gmra.mxu0 %v534
        %v1080 = vpop.f32.mrf.mxu0
        %v1081 = vadd.f32 %v838, %v1080
        %v1082 = vpop.f32.mrf.mxu0
        %v1083 = vpop.f32.mrf.mxu0
        %v1084 = vadd.f32 %v841, %v1083
        %v1085 = vpop.f32.mrf.mxu0
        %1086 = vmatprep.mubr.bf16.mxu0 0
        %1087 = vmatmul.mubr.bf16.gmra.mxu0 %v535
        %v1088 = vpop.f32.mrf.mxu0
        %v1089 = vadd.f32 %v846, %v1088
        %v1090 = vpop.f32.mrf.mxu0
        %v1091 = vpop.f32.mrf.mxu0
        %v1092 = vadd.f32 %v849, %v1091
        %v1093 = vpop.f32.mrf.mxu0
        %1094 = vmatprep.mubr.bf16.mxu0 0
        %1095 = vmatmul.mubr.bf16.gmra.mxu0 %v536
        %v1096 = vpop.f32.mrf.mxu0
        %v1097 = vadd.f32 %v854, %v1096
        %v1098 = vpop.f32.mrf.mxu0
        %v1099 = vpop.f32.mrf.mxu0
        %v1100 = vadd.f32 %v857, %v1099
        %v1101 = vpop.f32.mrf.mxu0
        %1102 = vmatprep.mubr.bf16.mxu0 0
        %1103 = vmatmul.mubr.bf16.gmra.mxu0 %v537
        %v1104 = vpop.f32.mrf.mxu0
        %v1105 = vadd.f32 %v862, %v1104
        %v1106 = vpop.f32.mrf.mxu0
        %v1107 = vpop.f32.mrf.mxu0
        %v1108 = vadd.f32 %v865, %v1107
        %v1109 = vpop.f32.mrf.mxu0
        %1110 = vmatprep.mubr.bf16.mxu0 0
        %1111 = vmatmul.mubr.bf16.gmra.mxu0 %v538
        %v1112 = vpop.f32.mrf.mxu0
        %v1113 = vadd.f32 %v870, %v1112
        %v1114 = vpop.f32.mrf.mxu0
        %v1115 = vpop.f32.mrf.mxu0
        %v1116 = vadd.f32 %v873, %v1115
        %v1117 = vpop.f32.mrf.mxu0
        %1118 = vmatprep.mubr.bf16.mxu0 0
        %1119 = vmatmul.mubr.bf16.gmra.mxu0 %v539
        %v1120 = vpop.f32.mrf.mxu0
        %v1121 = vadd.f32 %v878, %v1120
        %v1122 = vpop.f32.mrf.mxu0
        %v1123 = vpop.f32.mrf.mxu0
        %v1124 = vadd.f32 %v881, %v1123
        %v1125 = vpop.f32.mrf.mxu0
        %1126 = vmatprep.mubr.bf16.mxu0 0
        %1127 = vmatmul.mubr.bf16.gmra.mxu0 %v540
        %v1128 = vpop.f32.mrf.mxu0
        %v1129 = vadd.f32 %v886, %v1128
        %v1130 = vpop.f32.mrf.mxu0
        %v1131 = vpop.f32.mrf.mxu0
        %v1132 = vadd.f32 %v889, %v1131
        %v1133 = vpop.f32.mrf.mxu0
        %1134 = vmatprep.mubr.bf16.mxu0 0
        %1135 = vmatmul.mubr.bf16.gmra.mxu0 %v541
        %v1136 = vpop.f32.mrf.mxu0
        %v1137 = vadd.f32 %v894, %v1136
        %v1138 = vpop.f32.mrf.mxu0
        %v1139 = vpop.f32.mrf.mxu0
        %v1140 = vadd.f32 %v897, %v1139
        %v1141 = vpop.f32.mrf.mxu0
        %1142 = vmatprep.mubr.bf16.mxu0 0
        %1143 = vmatmul.mubr.bf16.gmra.mxu0 %v542
        %v1144 = vpop.f32.mrf.mxu0
        %v1145 = vadd.f32 %v902, %v1144
        %v1146 = vpop.f32.mrf.mxu0
        %v1147 = vpop.f32.mrf.mxu0
        %v1148 = vadd.f32 %v905, %v1147
        %v1149 = vpop.f32.mrf.mxu0
        %1150 = vmatprep.mubr.bf16.mxu0 0
        %1151 = vmatmul.mubr.bf16.gmra.mxu0 %v543
        %v1152 = vpop.f32.mrf.mxu0
        %v1153 = vadd.f32 %v910, %v1152
        %v1154 = vpop.f32.mrf.mxu0
        %v1155 = vpop.f32.mrf.mxu0
        %v1156 = vadd.f32 %v913, %v1155
        %v1157 = vpop.f32.mrf.mxu0
        %1158 = vmatprep.mubr.bf16.mxu0 0
        %1159 = vmatmul.mubr.bf16.gmra.mxu0 %v544
        %v1160 = vpop.f32.mrf.mxu0
        %v1161 = vadd.f32 %v918, %v1160
        %v1162 = vpop.f32.mrf.mxu0
        %v1163 = vpop.f32.mrf.mxu0
        %v1164 = vadd.f32 %v921, %v1163
        %v1165 = vpop.f32.mrf.mxu0
        %1166 = vmatprep.mubr.bf16.mxu0 0
        %1167 = vmatmul.mubr.bf16.gmra.mxu0 %v545
        %v1168 = vpop.f32.mrf.mxu0
        %v1169 = vadd.f32 %v926, %v1168
        %v1170 = vpop.f32.mrf.mxu0
        %v1171 = vpop.f32.mrf.mxu0
        %v1172 = vadd.f32 %v929, %v1171
        %v1173 = vpop.f32.mrf.mxu0
        %1174 = vmatprep.mubr.bf16.mxu0 0
        %1175 = vmatmul.mubr.bf16.gmra.mxu0 %v546
        %v1176 = vpop.f32.mrf.mxu0
        %v1177 = vadd.f32 %v934, %v1176
        %v1178 = vpop.f32.mrf.mxu0
        %v1179 = vpop.f32.mrf.mxu0
        %v1180 = vadd.f32 %v937, %v1179
        %v1181 = vpop.f32.mrf.mxu0
        %1182 = vdwg.mxu0
        %v1183 = vld [vmem:[#allocation2] sm:$0xe]
        %s1184 = scalar_lea.vmem %s1, 128
        %v1185 = vld [vmem:[%s1184] sm:$0xf]
        %v1186 = vld [vmem:[%s1184 + $0x4] sm:$0xf]
        %v1187 = vld [vmem:[%s1184 + $0x8] sm:$0xf]
        %v1188 = vld [vmem:[%s1184 + $0xc] sm:$0xf]
        %v1189 = vld [vmem:[%s1184 + $0x10] sm:$0xf]
        %v1190 = vld [vmem:[%s1184 + $0x14] sm:$0xf]
        %v1191 = vld [vmem:[%s1184 + $0x18] sm:$0xf]
        %v1192 = vld [vmem:[%s1184 + $0x1c] sm:$0xf]
        %v1193 = vld [vmem:[%s1184 + $0x20] sm:$0xf]
        %v1194 = vld [vmem:[%s1184 + $0x24] sm:$0xf]
        %v1195 = vld [vmem:[%s1184 + $0x28] sm:$0xf]
        %v1196 = vld [vmem:[%s1184 + $0x2c] sm:$0xf]
        %v1197 = vld [vmem:[%s1184 + $0x30] sm:$0xf]
        %v1198 = vld [vmem:[%s1184 + $0x34] sm:$0xf]
        %v1199 = vld [vmem:[%s1184 + $0x38] sm:$0xf]
        %v1200 = vld [vmem:[%s1184 + $0x3c] sm:$0xf]
        %v1202 = vunpack.c.l.b16 %v1183
        %v1203 = vpack.c.b16 %v493, %v1202
        %vm1204 = vcmask 1046528
        %v1205 = vrot.slane %v1203, 1
        %v1206 = vrot.slane %v530, 1
        %v1207 = vsel %vm1204, %v1205, %v1206
        %v1208 = vrot.slane %v531, 1
        %v1209 = vsel %vm1204, %v1206, %v1208
        %v1210 = vrot.slane %v532, 1
        %v1211 = vsel %vm1204, %v1208, %v1210
        %v1212 = vrot.slane %v533, 1
        %v1213 = vsel %vm1204, %v1210, %v1212
        %v1214 = vrot.slane %v534, 1
        %v1215 = vsel %vm1204, %v1212, %v1214
        %v1216 = vrot.slane %v535, 1
        %v1217 = vsel %vm1204, %v1214, %v1216
        %v1218 = vrot.slane %v536, 1
        %v1219 = vsel %vm1204, %v1216, %v1218
        %v1220 = vrot.slane %v537, 1
        %v1221 = vsel %vm1204, %v1218, %v1220
        %v1222 = vrot.slane %v538, 1
        %v1223 = vsel %vm1204, %v1220, %v1222
        %v1224 = vrot.slane %v539, 1
        %v1225 = vsel %vm1204, %v1222, %v1224
        %v1226 = vrot.slane %v540, 1
        %v1227 = vsel %vm1204, %v1224, %v1226
        %v1228 = vrot.slane %v541, 1
        %v1229 = vsel %vm1204, %v1226, %v1228
        %v1230 = vrot.slane %v542, 1
        %v1231 = vsel %vm1204, %v1228, %v1230
        %v1232 = vrot.slane %v543, 1
        %v1233 = vsel %vm1204, %v1230, %v1232
        %v1234 = vrot.slane %v544, 1
        %v1235 = vsel %vm1204, %v1232, %v1234
        %v1236 = vrot.slane %v545, 1
        %v1237 = vsel %vm1204, %v1234, %v1236
        %v1238 = vrot.slane %v546, 1
        %v1239 = vsel %vm1204, %v1236, %v1238
        %v1240 = vrot.slane %v547, 1
        %v1241 = vsel %vm1204, %v1238, %v1240
        %v1276 = vunpack.c.l.b16 %v1185
        %v1277 = vunpack.c.l.b16 %v1186
        %v1278 = vunpack.c.l.b16 %v1187
        %v1279 = vunpack.c.l.b16 %v1188
        %v1280 = vunpack.c.l.b16 %v1189
        %v1281 = vunpack.c.l.b16 %v1190
        %v1282 = vunpack.c.l.b16 %v1191
        %v1283 = vunpack.c.l.b16 %v1192
        %v1284 = vunpack.c.l.b16 %v1193
        %v1285 = vunpack.c.l.b16 %v1194
        %v1286 = vunpack.c.l.b16 %v1195
        %v1287 = vunpack.c.l.b16 %v1196
        %v1288 = vunpack.c.l.b16 %v1197
        %v1289 = vunpack.c.l.b16 %v1198
        %v1290 = vunpack.c.l.b16 %v1199
        %v1291 = vunpack.c.l.b16 %v1200
        %v1292 = vpack.c.b16 %v1277, %v1276
        %v1293 = vpack.c.b16 %v1279, %v1278
        %v1294 = vpack.c.b16 %v1281, %v1280
        %v1295 = vpack.c.b16 %v1283, %v1282
        %v1296 = vpack.c.b16 %v1285, %v1284
        %v1297 = vpack.c.b16 %v1287, %v1286
        %v1298 = vpack.c.b16 %v1289, %v1288
        %v1299 = vpack.c.b16 %v1291, %v1290
        %1308 = vmatprep.subr.bf16.mxu0 0
        %1309 = vmatpush1.bf16.msra.mxu0 %v1299
        %1310 = vmatprep.subr.bf16.mxu0 0
        %1311 = vmatpush1.bf16.msra.mxu0 %v1298
        %1312 = vmatprep.subr.bf16.mxu0 0
        %1313 = vmatpush1.bf16.msra.mxu0 %v1297
        %1314 = vmatprep.subr.bf16.mxu0 0
        %1315 = vmatpush1.bf16.msra.mxu0 %v1296
        %1316 = vmatprep.subr.bf16.mxu0 0
        %1317 = vmatpush1.bf16.msra.mxu0 %v1295
        %1318 = vmatprep.subr.bf16.mxu0 0
        %1319 = vmatpush1.bf16.msra.mxu0 %v1294
        %1320 = vmatprep.subr.bf16.mxu0 0
        %1321 = vmatpush1.bf16.msra.mxu0 %v1293
        %1322 = vmatprep.subr.bf16.mxu0 0
        %1323 = vmatpush1.bf16.msra.mxu0 %v1292
        %1324 = vmatprep.subr.bf16.mxu0 0
        %1325 = vmatpush2.bf16.msra.mxu0 0
        %1326 = vmatprep.subr.bf16.mxu0 0
        %1327 = vmatpush2.bf16.msra.mxu0 0
        %1328 = vmatprep.subr.bf16.mxu0 0
        %1329 = vmatpush2.bf16.msra.mxu0 0
        %1330 = vmatprep.subr.bf16.mxu0 0
        %1331 = vmatpush2.bf16.msra.mxu0 0
        %1332 = vmatprep.subr.bf16.mxu0 0
        %1333 = vmatpush2.bf16.msra.mxu0 0
        %1334 = vmatprep.subr.bf16.mxu0 0
        %1335 = vmatpush2.bf16.msra.mxu0 0
        %1336 = vmatprep.subr.bf16.mxu0 0
        %1337 = vmatpush2.bf16.msra.mxu0 0
        %1338 = vmatprep.subr.bf16.mxu0 0
        %1339 = vmatpush2.bf16.msra.mxu0 0
        %1340 = vmatprep.mubr.bf16.mxu0 0
        %1341 = vmatmul.mubr.bf16.gmra.mxu0 %v1207
        %v1342 = vpop.f32.mrf.mxu0
        %v1343 = vadd.f32 0.0, %v1342
        %v1344 = vpop.f32.mrf.mxu0
        %v1345 = vpop.f32.mrf.mxu0
        %v1346 = vadd.f32 0.0, %v1345
        %v1347 = vpop.f32.mrf.mxu0
        %1348 = vmatprep.mubr.bf16.mxu0 0
        %1349 = vmatmul.mubr.bf16.gmra.mxu0 %v1209
        %v1350 = vpop.f32.mrf.mxu0
        %v1351 = vadd.f32 0.0, %v1350
        %v1352 = vpop.f32.mrf.mxu0
        %v1353 = vpop.f32.mrf.mxu0
        %v1354 = vadd.f32 0.0, %v1353
        %v1355 = vpop.f32.mrf.mxu0
        %1356 = vmatprep.mubr.bf16.mxu0 0
        %1357 = vmatmul.mubr.bf16.gmra.mxu0 %v1211
        %v1358 = vpop.f32.mrf.mxu0
        %v1359 = vadd.f32 0.0, %v1358
        %v1360 = vpop.f32.mrf.mxu0
        %v1361 = vpop.f32.mrf.mxu0
        %v1362 = vadd.f32 0.0, %v1361
        %v1363 = vpop.f32.mrf.mxu0
        %1364 = vmatprep.mubr.bf16.mxu0 0
        %1365 = vmatmul.mubr.bf16.gmra.mxu0 %v1213
        %v1366 = vpop.f32.mrf.mxu0
        %v1367 = vadd.f32 0.0, %v1366
        %v1368 = vpop.f32.mrf.mxu0
        %v1369 = vpop.f32.mrf.mxu0
        %v1370 = vadd.f32 0.0, %v1369
        %v1371 = vpop.f32.mrf.mxu0
        %1372 = vmatprep.mubr.bf16.mxu0 0
        %1373 = vmatmul.mubr.bf16.gmra.mxu0 %v1215
        %v1374 = vpop.f32.mrf.mxu0
        %v1375 = vadd.f32 0.0, %v1374
        %v1376 = vpop.f32.mrf.mxu0
        %v1377 = vpop.f32.mrf.mxu0
        %v1378 = vadd.f32 0.0, %v1377
        %v1379 = vpop.f32.mrf.mxu0
        %1380 = vmatprep.mubr.bf16.mxu0 0
        %1381 = vmatmul.mubr.bf16.gmra.mxu0 %v1217
        %v1382 = vpop.f32.mrf.mxu0
        %v1383 = vadd.f32 0.0, %v1382
        %v1384 = vpop.f32.mrf.mxu0
        %v1385 = vpop.f32.mrf.mxu0
        %v1386 = vadd.f32 0.0, %v1385
        %v1387 = vpop.f32.mrf.mxu0
        %1388 = vmatprep.mubr.bf16.mxu0 0
        %1389 = vmatmul.mubr.bf16.gmra.mxu0 %v1219
        %v1390 = vpop.f32.mrf.mxu0
        %v1391 = vadd.f32 0.0, %v1390
        %v1392 = vpop.f32.mrf.mxu0
        %v1393 = vpop.f32.mrf.mxu0
        %v1394 = vadd.f32 0.0, %v1393
        %v1395 = vpop.f32.mrf.mxu0
        %1396 = vmatprep.mubr.bf16.mxu0 0
        %1397 = vmatmul.mubr.bf16.gmra.mxu0 %v1221
        %v1398 = vpop.f32.mrf.mxu0
        %v1399 = vadd.f32 0.0, %v1398
        %v1400 = vpop.f32.mrf.mxu0
        %v1401 = vpop.f32.mrf.mxu0
        %v1402 = vadd.f32 0.0, %v1401
        %v1403 = vpop.f32.mrf.mxu0
        %1404 = vmatprep.mubr.bf16.mxu0 0
        %1405 = vmatmul.mubr.bf16.gmra.mxu0 %v1223
        %v1406 = vpop.f32.mrf.mxu0
        %v1407 = vadd.f32 0.0, %v1406
        %v1408 = vpop.f32.mrf.mxu0
        %v1409 = vpop.f32.mrf.mxu0
        %v1410 = vadd.f32 0.0, %v1409
        %v1411 = vpop.f32.mrf.mxu0
        %1412 = vmatprep.mubr.bf16.mxu0 0
        %1413 = vmatmul.mubr.bf16.gmra.mxu0 %v1225
        %v1414 = vpop.f32.mrf.mxu0
        %v1415 = vadd.f32 0.0, %v1414
        %v1416 = vpop.f32.mrf.mxu0
        %v1417 = vpop.f32.mrf.mxu0
        %v1418 = vadd.f32 0.0, %v1417
        %v1419 = vpop.f32.mrf.mxu0
        %1420 = vmatprep.mubr.bf16.mxu0 0
        %1421 = vmatmul.mubr.bf16.gmra.mxu0 %v1227
        %v1422 = vpop.f32.mrf.mxu0
        %v1423 = vadd.f32 0.0, %v1422
        %v1424 = vpop.f32.mrf.mxu0
        %v1425 = vpop.f32.mrf.mxu0
        %v1426 = vadd.f32 0.0, %v1425
        %v1427 = vpop.f32.mrf.mxu0
        %1428 = vmatprep.mubr.bf16.mxu0 0
        %1429 = vmatmul.mubr.bf16.gmra.mxu0 %v1229
        %v1430 = vpop.f32.mrf.mxu0
        %v1431 = vadd.f32 0.0, %v1430
        %v1432 = vpop.f32.mrf.mxu0
        %v1433 = vpop.f32.mrf.mxu0
        %v1434 = vadd.f32 0.0, %v1433
        %v1435 = vpop.f32.mrf.mxu0
        %1436 = vmatprep.mubr.bf16.mxu0 0
        %1437 = vmatmul.mubr.bf16.gmra.mxu0 %v1231
        %v1438 = vpop.f32.mrf.mxu0
        %v1439 = vadd.f32 0.0, %v1438
        %v1440 = vpop.f32.mrf.mxu0
        %v1441 = vpop.f32.mrf.mxu0
        %v1442 = vadd.f32 0.0, %v1441
        %v1443 = vpop.f32.mrf.mxu0
        %1444 = vmatprep.mubr.bf16.mxu0 0
        %1445 = vmatmul.mubr.bf16.gmra.mxu0 %v1233
        %v1446 = vpop.f32.mrf.mxu0
        %v1447 = vadd.f32 0.0, %v1446
        %v1448 = vpop.f32.mrf.mxu0
        %v1449 = vpop.f32.mrf.mxu0
        %v1450 = vadd.f32 0.0, %v1449
        %v1451 = vpop.f32.mrf.mxu0
        %1452 = vmatprep.mubr.bf16.mxu0 0
        %1453 = vmatmul.mubr.bf16.gmra.mxu0 %v1235
        %v1454 = vpop.f32.mrf.mxu0
        %v1455 = vadd.f32 0.0, %v1454
        %v1456 = vpop.f32.mrf.mxu0
        %v1457 = vpop.f32.mrf.mxu0
        %v1458 = vadd.f32 0.0, %v1457
        %v1459 = vpop.f32.mrf.mxu0
        %1460 = vmatprep.mubr.bf16.mxu0 0
        %1461 = vmatmul.mubr.bf16.gmra.mxu0 %v1237
        %v1462 = vpop.f32.mrf.mxu0
        %v1463 = vadd.f32 0.0, %v1462
        %v1464 = vpop.f32.mrf.mxu0
        %v1465 = vpop.f32.mrf.mxu0
        %v1466 = vadd.f32 0.0, %v1465
        %v1467 = vpop.f32.mrf.mxu0
        %1468 = vmatprep.mubr.bf16.mxu0 0
        %1469 = vmatmul.mubr.bf16.gmra.mxu0 %v1239
        %v1470 = vpop.f32.mrf.mxu0
        %v1471 = vadd.f32 0.0, %v1470
        %v1472 = vpop.f32.mrf.mxu0
        %v1473 = vpop.f32.mrf.mxu0
        %v1474 = vadd.f32 0.0, %v1473
        %v1475 = vpop.f32.mrf.mxu0
        %1476 = vmatprep.mubr.bf16.mxu0 0
        %1477 = vmatmul.mubr.bf16.gmra.mxu0 %v1241
        %v1478 = vpop.f32.mrf.mxu0
        %v1479 = vadd.f32 0.0, %v1478
        %v1480 = vpop.f32.mrf.mxu0
        %v1481 = vpop.f32.mrf.mxu0
        %v1482 = vadd.f32 0.0, %v1481
        %v1483 = vpop.f32.mrf.mxu0
        %1484 = vdwg.mxu0
        %v1485 = vadd.f32 %v1041, %v1343
        %v1486 = vadd.f32 %v1044, %v1346
        %v1487 = vadd.f32 %v1049, %v1351
        %v1488 = vadd.f32 %v1052, %v1354
        %v1489 = vadd.f32 %v1057, %v1359
        %v1490 = vadd.f32 %v1060, %v1362
        %v1491 = vadd.f32 %v1065, %v1367
        %v1492 = vadd.f32 %v1068, %v1370
        %v1493 = vadd.f32 %v1073, %v1375
        %v1494 = vadd.f32 %v1076, %v1378
        %v1495 = vadd.f32 %v1081, %v1383
        %v1496 = vadd.f32 %v1084, %v1386
        %v1497 = vadd.f32 %v1089, %v1391
        %v1498 = vadd.f32 %v1092, %v1394
        %v1499 = vadd.f32 %v1097, %v1399
        %v1500 = vadd.f32 %v1100, %v1402
        %v1501 = vadd.f32 %v1105, %v1407
        %v1502 = vadd.f32 %v1108, %v1410
        %v1503 = vadd.f32 %v1113, %v1415
        %v1504 = vadd.f32 %v1116, %v1418
        %v1505 = vadd.f32 %v1121, %v1423
        %v1506 = vadd.f32 %v1124, %v1426
        %v1507 = vadd.f32 %v1129, %v1431
        %v1508 = vadd.f32 %v1132, %v1434
        %v1509 = vadd.f32 %v1137, %v1439
        %v1510 = vadd.f32 %v1140, %v1442
        %v1511 = vadd.f32 %v1145, %v1447
        %v1512 = vadd.f32 %v1148, %v1450
        %v1513 = vadd.f32 %v1153, %v1455
        %v1514 = vadd.f32 %v1156, %v1458
        %v1515 = vadd.f32 %v1161, %v1463
        %v1516 = vadd.f32 %v1164, %v1466
        %v1517 = vadd.f32 %v1169, %v1471
        %v1518 = vadd.f32 %v1172, %v1474
        %v1519 = vadd.f32 %v1177, %v1479
        %v1520 = vadd.f32 %v1180, %v1482
        %v1521 = vld [vmem:[#allocation2 + $0x8] sm:$0xe]
        %v1522 = vld [vmem:[#allocation2 + $0xc] sm:$0xf]
        %v1523 = vld [vmem:[#allocation2 + $0x10] sm:$0xf]
        %v1524 = vld [vmem:[#allocation2 + $0x14] sm:$0xf]
        %v1525 = vld [vmem:[#allocation2 + $0x18] sm:$0xf]
        %v1526 = vld [vmem:[#allocation2 + $0x1c] sm:$0xf]
        %v1527 = vld [vmem:[#allocation2 + $0x20] sm:$0xf]
        %v1528 = vld [vmem:[#allocation2 + $0x24] sm:$0xf]
        %v1529 = vld [vmem:[#allocation2 + $0x28] sm:$0xf]
        %v1530 = vld [vmem:[#allocation2 + $0x2c] sm:$0xf]
        %v1531 = vld [vmem:[#allocation2 + $0x30] sm:$0xf]
        %v1532 = vld [vmem:[#allocation2 + $0x34] sm:$0xf]
        %v1533 = vld [vmem:[#allocation2 + $0x38] sm:$0xf]
        %v1534 = vld [vmem:[#allocation2 + $0x3c] sm:$0xf]
        %v1535 = vld [vmem:[#allocation2 + $0x40] sm:$0xf]
        %v1536 = vld [vmem:[#allocation2 + $0x44] sm:$0xf]
        %v1537 = vld [vmem:[#allocation2 + $0x48] sm:$0xf]
        %v1538 = vld [vmem:[#allocation2 + $0x4c] sm:$0xf]
        %v1539 = vld [vmem:[#allocation2 + $0x50] sm:$0xf]
        %v1540 = vld [vmem:[#allocation2 + $0x54] sm:$0xf]
        %v1541 = vld [vmem:[#allocation2 + $0x58] sm:$0xf]
        %v1542 = vld [vmem:[#allocation2 + $0x5c] sm:$0xf]
        %v1543 = vld [vmem:[#allocation2 + $0x60] sm:$0xf]
        %v1544 = vld [vmem:[#allocation2 + $0x64] sm:$0xf]
        %v1545 = vld [vmem:[#allocation2 + $0x68] sm:$0xf]
        %v1546 = vld [vmem:[#allocation2 + $0x6c] sm:$0xf]
        %v1547 = vld [vmem:[#allocation2 + $0x70] sm:$0xf]
        %v1548 = vld [vmem:[#allocation2 + $0x74] sm:$0xf]
        %v1549 = vld [vmem:[#allocation2 + $0x78] sm:$0xf]
        %v1550 = vld [vmem:[#allocation2 + $0x7c] sm:$0xf]
        %v1551 = vld [vmem:[#allocation2 + $0x80] sm:$0xf]
        %v1552 = vld [vmem:[#allocation2 + $0x84] sm:$0xf]
        %v1553 = vld [vmem:[#allocation2 + $0x88] sm:$0xf]
        %v1554 = vld [vmem:[#allocation2 + $0x8c] sm:$0xf]
        %v1555 = vld [vmem:[#allocation2 + $0x90] sm:$0xf]
        %v1556 = vld [vmem:[#allocation2 + $0x94] sm:$0xf]
        %v1557 = vld [vmem:[#allocation2 + $0x98] sm:$0x1]
        %s1558 = scalar_lea.vmem %s1, 192
        %v1559 = vld [vmem:[%s1558] sm:$0xf]
        %v1560 = vld [vmem:[%s1558 + $0x4] sm:$0xf]
        %v1561 = vld [vmem:[%s1558 + $0x8] sm:$0xf]
        %v1562 = vld [vmem:[%s1558 + $0xc] sm:$0xf]
        %v1563 = vld [vmem:[%s1558 + $0x10] sm:$0xf]
        %v1564 = vld [vmem:[%s1558 + $0x14] sm:$0xf]
        %v1565 = vld [vmem:[%s1558 + $0x18] sm:$0xf]
        %v1566 = vld [vmem:[%s1558 + $0x1c] sm:$0xf]
        %v1567 = vld [vmem:[%s1558 + $0x20] sm:$0xf]
        %v1568 = vld [vmem:[%s1558 + $0x24] sm:$0xf]
        %v1569 = vld [vmem:[%s1558 + $0x28] sm:$0xf]
        %v1570 = vld [vmem:[%s1558 + $0x2c] sm:$0xf]
        %v1571 = vld [vmem:[%s1558 + $0x30] sm:$0xf]
        %v1572 = vld [vmem:[%s1558 + $0x34] sm:$0xf]
        %v1573 = vld [vmem:[%s1558 + $0x38] sm:$0xf]
        %v1574 = vld [vmem:[%s1558 + $0x3c] sm:$0xf]
        %v1612 = vunpack.c.l.b16 %v1521
        %v1613 = vunpack.c.l.b16 %v1522
        %v1614 = vunpack.c.l.b16 %v1523
        %v1615 = vunpack.c.l.b16 %v1524
        %v1616 = vunpack.c.l.b16 %v1525
        %v1617 = vunpack.c.l.b16 %v1526
        %v1618 = vunpack.c.l.b16 %v1527
        %v1619 = vunpack.c.l.b16 %v1528
        %v1620 = vunpack.c.l.b16 %v1529
        %v1621 = vunpack.c.l.b16 %v1530
        %v1622 = vunpack.c.l.b16 %v1531
        %v1623 = vunpack.c.l.b16 %v1532
        %v1624 = vunpack.c.l.b16 %v1533
        %v1625 = vunpack.c.l.b16 %v1534
        %v1626 = vunpack.c.l.b16 %v1535
        %v1627 = vunpack.c.l.b16 %v1536
        %v1628 = vunpack.c.l.b16 %v1537
        %v1629 = vunpack.c.l.b16 %v1538
        %v1630 = vunpack.c.l.b16 %v1539
        %v1631 = vunpack.c.l.b16 %v1540
        %v1632 = vunpack.c.l.b16 %v1541
        %v1633 = vunpack.c.l.b16 %v1542
        %v1634 = vunpack.c.l.b16 %v1543
        %v1635 = vunpack.c.l.b16 %v1544
        %v1636 = vunpack.c.l.b16 %v1545
        %v1637 = vunpack.c.l.b16 %v1546
        %v1638 = vunpack.c.l.b16 %v1547
        %v1639 = vunpack.c.l.b16 %v1548
        %v1640 = vunpack.c.l.b16 %v1549
        %v1641 = vunpack.c.l.b16 %v1550
        %v1642 = vunpack.c.l.b16 %v1551
        %v1643 = vunpack.c.l.b16 %v1552
        %v1644 = vunpack.c.l.b16 %v1553
        %v1645 = vunpack.c.l.b16 %v1554
        %v1646 = vunpack.c.l.b16 %v1555
        %v1647 = vunpack.c.l.b16 %v1556
        %v1648 = vunpack.c.l.b16 %v1557
        %v1649 = vpack.c.b16 %v1613, %v1612
        %v1650 = vpack.c.b16 %v1615, %v1614
        %v1651 = vpack.c.b16 %v1617, %v1616
        %v1652 = vpack.c.b16 %v1619, %v1618
        %v1653 = vpack.c.b16 %v1621, %v1620
        %v1654 = vpack.c.b16 %v1623, %v1622
        %v1655 = vpack.c.b16 %v1625, %v1624
        %v1656 = vpack.c.b16 %v1627, %v1626
        %v1657 = vpack.c.b16 %v1629, %v1628
        %v1658 = vpack.c.b16 %v1631, %v1630
        %v1659 = vpack.c.b16 %v1633, %v1632
        %v1660 = vpack.c.b16 %v1635, %v1634
        %v1661 = vpack.c.b16 %v1637, %v1636
        %v1662 = vpack.c.b16 %v1639, %v1638
        %v1663 = vpack.c.b16 %v1641, %v1640
        %v1664 = vpack.c.b16 %v1643, %v1642
        %v1665 = vpack.c.b16 %v1645, %v1644
        %v1666 = vpack.c.b16 %v1647, %v1646
        %v1667 = vpack.c.b16 %v1648, %v1648
        %v1668 = vrot.slane %v1649, 1
        %v1669 = vrot.slane %v1650, 1
        %v1670 = vsel %vm1204, %v1668, %v1669
        %v1671 = vrot.slane %v1651, 1
        %v1672 = vsel %vm1204, %v1669, %v1671
        %v1673 = vrot.slane %v1652, 1
        %v1674 = vsel %vm1204, %v1671, %v1673
        %v1675 = vrot.slane %v1653, 1
        %v1676 = vsel %vm1204, %v1673, %v1675
        %v1677 = vrot.slane %v1654, 1
        %v1678 = vsel %vm1204, %v1675, %v1677
        %v1679 = vrot.slane %v1655, 1
        %v1680 = vsel %vm1204, %v1677, %v1679
        %v1681 = vrot.slane %v1656, 1
        %v1682 = vsel %vm1204, %v1679, %v1681
        %v1683 = vrot.slane %v1657, 1
        %v1684 = vsel %vm1204, %v1681, %v1683
        %v1685 = vrot.slane %v1658, 1
        %v1686 = vsel %vm1204, %v1683, %v1685
        %v1687 = vrot.slane %v1659, 1
        %v1688 = vsel %vm1204, %v1685, %v1687
        %v1689 = vrot.slane %v1660, 1
        %v1690 = vsel %vm1204, %v1687, %v1689
        %v1691 = vrot.slane %v1661, 1
        %v1692 = vsel %vm1204, %v1689, %v1691
        %v1693 = vrot.slane %v1662, 1
        %v1694 = vsel %vm1204, %v1691, %v1693
        %v1695 = vrot.slane %v1663, 1
        %v1696 = vsel %vm1204, %v1693, %v1695
        %v1697 = vrot.slane %v1664, 1
        %v1698 = vsel %vm1204, %v1695, %v1697
        %v1699 = vrot.slane %v1665, 1
        %v1700 = vsel %vm1204, %v1697, %v1699
        %v1701 = vrot.slane %v1666, 1
        %v1702 = vsel %vm1204, %v1699, %v1701
        %v1703 = vrot.slane %v1667, 1
        %v1704 = vsel %vm1204, %v1701, %v1703
        %v1739 = vunpack.c.l.b16 %v1559
        %v1740 = vunpack.c.l.b16 %v1560
        %v1741 = vunpack.c.l.b16 %v1561
        %v1742 = vunpack.c.l.b16 %v1562
        %v1743 = vunpack.c.l.b16 %v1563
        %v1744 = vunpack.c.l.b16 %v1564
        %v1745 = vunpack.c.l.b16 %v1565
        %v1746 = vunpack.c.l.b16 %v1566
        %v1747 = vunpack.c.l.b16 %v1567
        %v1748 = vunpack.c.l.b16 %v1568
        %v1749 = vunpack.c.l.b16 %v1569
        %v1750 = vunpack.c.l.b16 %v1570
        %v1751 = vunpack.c.l.b16 %v1571
        %v1752 = vunpack.c.l.b16 %v1572
        %v1753 = vunpack.c.l.b16 %v1573
        %v1754 = vunpack.c.l.b16 %v1574
        %v1755 = vpack.c.b16 %v1740, %v1739
        %v1756 = vpack.c.b16 %v1742, %v1741
        %v1757 = vpack.c.b16 %v1744, %v1743
        %v1758 = vpack.c.b16 %v1746, %v1745
        %v1759 = vpack.c.b16 %v1748, %v1747
        %v1760 = vpack.c.b16 %v1750, %v1749
        %v1761 = vpack.c.b16 %v1752, %v1751
        %v1762 = vpack.c.b16 %v1754, %v1753
        %1771 = vmatprep.subr.bf16.mxu0 0
        %1772 = vmatpush1.bf16.msra.mxu0 %v1762
        %1773 = vmatprep.subr.bf16.mxu0 0
        %1774 = vmatpush1.bf16.msra.mxu0 %v1761
        %1775 = vmatprep.subr.bf16.mxu0 0
        %1776 = vmatpush1.bf16.msra.mxu0 %v1760
        %1777 = vmatprep.subr.bf16.mxu0 0
        %1778 = vmatpush1.bf16.msra.mxu0 %v1759
        %1779 = vmatprep.subr.bf16.mxu0 0
        %1780 = vmatpush1.bf16.msra.mxu0 %v1758
        %1781 = vmatprep.subr.bf16.mxu0 0
        %1782 = vmatpush1.bf16.msra.mxu0 %v1757
        %1783 = vmatprep.subr.bf16.mxu0 0
        %1784 = vmatpush1.bf16.msra.mxu0 %v1756
        %1785 = vmatprep.subr.bf16.mxu0 0
        %1786 = vmatpush1.bf16.msra.mxu0 %v1755
        %1787 = vmatprep.subr.bf16.mxu0 0
        %1788 = vmatpush2.bf16.msra.mxu0 0
        %1789 = vmatprep.subr.bf16.mxu0 0
        %1790 = vmatpush2.bf16.msra.mxu0 0
        %1791 = vmatprep.subr.bf16.mxu0 0
        %1792 = vmatpush2.bf16.msra.mxu0 0
        %1793 = vmatprep.subr.bf16.mxu0 0
        %1794 = vmatpush2.bf16.msra.mxu0 0
        %1795 = vmatprep.subr.bf16.mxu0 0
        %1796 = vmatpush2.bf16.msra.mxu0 0
        %1797 = vmatprep.subr.bf16.mxu0 0
        %1798 = vmatpush2.bf16.msra.mxu0 0
        %1799 = vmatprep.subr.bf16.mxu0 0
        %1800 = vmatpush2.bf16.msra.mxu0 0
        %1801 = vmatprep.subr.bf16.mxu0 0
        %1802 = vmatpush2.bf16.msra.mxu0 0
        %1803 = vmatprep.mubr.bf16.mxu0 0
        %1804 = vmatmul.mubr.bf16.gmra.mxu0 %v1670
        %v1805 = vpop.f32.mrf.mxu0
        %v1806 = vadd.f32 0.0, %v1805
        %v1807 = vpop.f32.mrf.mxu0
        %v1808 = vpop.f32.mrf.mxu0
        %v1809 = vadd.f32 0.0, %v1808
        %v1810 = vpop.f32.mrf.mxu0
        %1811 = vmatprep.mubr.bf16.mxu0 0
        %1812 = vmatmul.mubr.bf16.gmra.mxu0 %v1672
        %v1813 = vpop.f32.mrf.mxu0
        %v1814 = vadd.f32 0.0, %v1813
        %v1815 = vpop.f32.mrf.mxu0
        %v1816 = vpop.f32.mrf.mxu0
        %v1817 = vadd.f32 0.0, %v1816
        %v1818 = vpop.f32.mrf.mxu0
        %1819 = vmatprep.mubr.bf16.mxu0 0
        %1820 = vmatmul.mubr.bf16.gmra.mxu0 %v1674
        %v1821 = vpop.f32.mrf.mxu0
        %v1822 = vadd.f32 0.0, %v1821
        %v1823 = vpop.f32.mrf.mxu0
        %v1824 = vpop.f32.mrf.mxu0
        %v1825 = vadd.f32 0.0, %v1824
        %v1826 = vpop.f32.mrf.mxu0
        %1827 = vmatprep.mubr.bf16.mxu0 0
        %1828 = vmatmul.mubr.bf16.gmra.mxu0 %v1676
        %v1829 = vpop.f32.mrf.mxu0
        %v1830 = vadd.f32 0.0, %v1829
        %v1831 = vpop.f32.mrf.mxu0
        %v1832 = vpop.f32.mrf.mxu0
        %v1833 = vadd.f32 0.0, %v1832
        %v1834 = vpop.f32.mrf.mxu0
        %1835 = vmatprep.mubr.bf16.mxu0 0
        %1836 = vmatmul.mubr.bf16.gmra.mxu0 %v1678
        %v1837 = vpop.f32.mrf.mxu0
        %v1838 = vadd.f32 0.0, %v1837
        %v1839 = vpop.f32.mrf.mxu0
        %v1840 = vpop.f32.mrf.mxu0
        %v1841 = vadd.f32 0.0, %v1840
        %v1842 = vpop.f32.mrf.mxu0
        %1843 = vmatprep.mubr.bf16.mxu0 0
        %1844 = vmatmul.mubr.bf16.gmra.mxu0 %v1680
        %v1845 = vpop.f32.mrf.mxu0
        %v1846 = vadd.f32 0.0, %v1845
        %v1847 = vpop.f32.mrf.mxu0
        %v1848 = vpop.f32.mrf.mxu0
        %v1849 = vadd.f32 0.0, %v1848
        %v1850 = vpop.f32.mrf.mxu0
        %1851 = vmatprep.mubr.bf16.mxu0 0
        %1852 = vmatmul.mubr.bf16.gmra.mxu0 %v1682
        %v1853 = vpop.f32.mrf.mxu0
        %v1854 = vadd.f32 0.0, %v1853
        %v1855 = vpop.f32.mrf.mxu0
        %v1856 = vpop.f32.mrf.mxu0
        %v1857 = vadd.f32 0.0, %v1856
        %v1858 = vpop.f32.mrf.mxu0
        %1859 = vmatprep.mubr.bf16.mxu0 0
        %1860 = vmatmul.mubr.bf16.gmra.mxu0 %v1684
        %v1861 = vpop.f32.mrf.mxu0
        %v1862 = vadd.f32 0.0, %v1861
        %v1863 = vpop.f32.mrf.mxu0
        %v1864 = vpop.f32.mrf.mxu0
        %v1865 = vadd.f32 0.0, %v1864
        %v1866 = vpop.f32.mrf.mxu0
        %1867 = vmatprep.mubr.bf16.mxu0 0
        %1868 = vmatmul.mubr.bf16.gmra.mxu0 %v1686
        %v1869 = vpop.f32.mrf.mxu0
        %v1870 = vadd.f32 0.0, %v1869
        %v1871 = vpop.f32.mrf.mxu0
        %v1872 = vpop.f32.mrf.mxu0
        %v1873 = vadd.f32 0.0, %v1872
        %v1874 = vpop.f32.mrf.mxu0
        %1875 = vmatprep.mubr.bf16.mxu0 0
        %1876 = vmatmul.mubr.bf16.gmra.mxu0 %v1688
        %v1877 = vpop.f32.mrf.mxu0
        %v1878 = vadd.f32 0.0, %v1877
        %v1879 = vpop.f32.mrf.mxu0
        %v1880 = vpop.f32.mrf.mxu0
        %v1881 = vadd.f32 0.0, %v1880
        %v1882 = vpop.f32.mrf.mxu0
        %1883 = vmatprep.mubr.bf16.mxu0 0
        %1884 = vmatmul.mubr.bf16.gmra.mxu0 %v1690
        %v1885 = vpop.f32.mrf.mxu0
        %v1886 = vadd.f32 0.0, %v1885
        %v1887 = vpop.f32.mrf.mxu0
        %v1888 = vpop.f32.mrf.mxu0
        %v1889 = vadd.f32 0.0, %v1888
        %v1890 = vpop.f32.mrf.mxu0
        %1891 = vmatprep.mubr.bf16.mxu0 0
        %1892 = vmatmul.mubr.bf16.gmra.mxu0 %v1692
        %v1893 = vpop.f32.mrf.mxu0
        %v1894 = vadd.f32 0.0, %v1893
        %v1895 = vpop.f32.mrf.mxu0
        %v1896 = vpop.f32.mrf.mxu0
        %v1897 = vadd.f32 0.0, %v1896
        %v1898 = vpop.f32.mrf.mxu0
        %1899 = vmatprep.mubr.bf16.mxu0 0
        %1900 = vmatmul.mubr.bf16.gmra.mxu0 %v1694
        %v1901 = vpop.f32.mrf.mxu0
        %v1902 = vadd.f32 0.0, %v1901
        %v1903 = vpop.f32.mrf.mxu0
        %v1904 = vpop.f32.mrf.mxu0
        %v1905 = vadd.f32 0.0, %v1904
        %v1906 = vpop.f32.mrf.mxu0
        %1907 = vmatprep.mubr.bf16.mxu0 0
        %1908 = vmatmul.mubr.bf16.gmra.mxu0 %v1696
        %v1909 = vpop.f32.mrf.mxu0
        %v1910 = vadd.f32 0.0, %v1909
        %v1911 = vpop.f32.mrf.mxu0
        %v1912 = vpop.f32.mrf.mxu0
        %v1913 = vadd.f32 0.0, %v1912
        %v1914 = vpop.f32.mrf.mxu0
        %1915 = vmatprep.mubr.bf16.mxu0 0
        %1916 = vmatmul.mubr.bf16.gmra.mxu0 %v1698
        %v1917 = vpop.f32.mrf.mxu0
        %v1918 = vadd.f32 0.0, %v1917
        %v1919 = vpop.f32.mrf.mxu0
        %v1920 = vpop.f32.mrf.mxu0
        %v1921 = vadd.f32 0.0, %v1920
        %v1922 = vpop.f32.mrf.mxu0
        %1923 = vmatprep.mubr.bf16.mxu0 0
        %1924 = vmatmul.mubr.bf16.gmra.mxu0 %v1700
        %v1925 = vpop.f32.mrf.mxu0
        %v1926 = vadd.f32 0.0, %v1925
        %v1927 = vpop.f32.mrf.mxu0
        %v1928 = vpop.f32.mrf.mxu0
        %v1929 = vadd.f32 0.0, %v1928
        %v1930 = vpop.f32.mrf.mxu0
        %1931 = vmatprep.mubr.bf16.mxu0 0
        %1932 = vmatmul.mubr.bf16.gmra.mxu0 %v1702
        %v1933 = vpop.f32.mrf.mxu0
        %v1934 = vadd.f32 0.0, %v1933
        %v1935 = vpop.f32.mrf.mxu0
        %v1936 = vpop.f32.mrf.mxu0
        %v1937 = vadd.f32 0.0, %v1936
        %v1938 = vpop.f32.mrf.mxu0
        %1939 = vmatprep.mubr.bf16.mxu0 0
        %1940 = vmatmul.mubr.bf16.gmra.mxu0 %v1704
        %v1941 = vpop.f32.mrf.mxu0
        %v1942 = vadd.f32 0.0, %v1941
        %v1943 = vpop.f32.mrf.mxu0
        %v1944 = vpop.f32.mrf.mxu0
        %v1945 = vadd.f32 0.0, %v1944
        %v1946 = vpop.f32.mrf.mxu0
        %1947 = vdwg.mxu0
        %v1948 = vadd.f32 %v1485, %v1806
        %v1949 = vadd.f32 %v1486, %v1809
        %v1950 = vadd.f32 %v1487, %v1814
        %v1951 = vadd.f32 %v1488, %v1817
        %v1952 = vadd.f32 %v1489, %v1822
        %v1953 = vadd.f32 %v1490, %v1825
        %v1954 = vadd.f32 %v1491, %v1830
        %v1955 = vadd.f32 %v1492, %v1833
        %v1956 = vadd.f32 %v1493, %v1838
        %v1957 = vadd.f32 %v1494, %v1841
        %v1958 = vadd.f32 %v1495, %v1846
        %v1959 = vadd.f32 %v1496, %v1849
        %v1960 = vadd.f32 %v1497, %v1854
        %v1961 = vadd.f32 %v1498, %v1857
        %v1962 = vadd.f32 %v1499, %v1862
        %v1963 = vadd.f32 %v1500, %v1865
        %v1964 = vadd.f32 %v1501, %v1870
        %v1965 = vadd.f32 %v1502, %v1873
        %v1966 = vadd.f32 %v1503, %v1878
        %v1967 = vadd.f32 %v1504, %v1881
        %v1968 = vadd.f32 %v1505, %v1886
        %v1969 = vadd.f32 %v1506, %v1889
        %v1970 = vadd.f32 %v1507, %v1894
        %v1971 = vadd.f32 %v1508, %v1897
        %v1972 = vadd.f32 %v1509, %v1902
        %v1973 = vadd.f32 %v1510, %v1905
        %v1974 = vadd.f32 %v1511, %v1910
        %v1975 = vadd.f32 %v1512, %v1913
        %v1976 = vadd.f32 %v1513, %v1918
        %v1977 = vadd.f32 %v1514, %v1921
        %v1978 = vadd.f32 %v1515, %v1926
        %v1979 = vadd.f32 %v1516, %v1929
        %v1980 = vadd.f32 %v1517, %v1934
        %v1981 = vadd.f32 %v1518, %v1937
        %v1982 = vadd.f32 %v1519, %v1942
        %v1983 = vadd.f32 %v1520, %v1945
        %v1984 = vld [vmem:[#allocation2 + $0x98] sm:$0x3]
        %s1985 = scalar_lea.vmem %s1, 256
        %v1986 = vld [vmem:[%s1985] sm:$0xf]
        %v1987 = vld [vmem:[%s1985 + $0x4] sm:$0xf]
        %v1988 = vld [vmem:[%s1985 + $0x8] sm:$0xf]
        %v1989 = vld [vmem:[%s1985 + $0xc] sm:$0xf]
        %v1990 = vld [vmem:[%s1985 + $0x10] sm:$0xf]
        %v1991 = vld [vmem:[%s1985 + $0x14] sm:$0xf]
        %v1992 = vld [vmem:[%s1985 + $0x18] sm:$0xf]
        %v1993 = vld [vmem:[%s1985 + $0x1c] sm:$0xf]
        %v1994 = vld [vmem:[%s1985 + $0x20] sm:$0xf]
        %v1995 = vld [vmem:[%s1985 + $0x24] sm:$0xf]
        %v1996 = vld [vmem:[%s1985 + $0x28] sm:$0xf]
        %v1997 = vld [vmem:[%s1985 + $0x2c] sm:$0xf]
        %v1998 = vld [vmem:[%s1985 + $0x30] sm:$0xf]
        %v1999 = vld [vmem:[%s1985 + $0x34] sm:$0xf]
        %v2000 = vld [vmem:[%s1985 + $0x38] sm:$0xf]
        %v2001 = vld [vmem:[%s1985 + $0x3c] sm:$0xf]
        %v2003 = vunpack.c.l.b16 %v1984
        %v2004 = vpack.c.b16 %v2003, %v2003
        %vm2005 = vsmask.f32 6400
        %v2007 = vshrl.u32 %v1649, 16
        %v2009 = vrot.slane %v2007, 1
        %v2010 = vshll.u32 %v1649, 16
        %v2012 = vrot.slane %v2010, 2
        %v2013 = vor.u32 %v2009, %v2012
        %v2015 = vshrl.u32 %v1650, 16
        %v2017 = vrot.slane %v2015, 1
        %v2018 = vshll.u32 %v1650, 16
        %v2020 = vrot.slane %v2018, 2
        %v2021 = vor.u32 %v2017, %v2020
        %v2022 = vsel %vm2005, %v2013, %v2021
        %v2024 = vshrl.u32 %v1651, 16
        %v2026 = vrot.slane %v2024, 1
        %v2027 = vshll.u32 %v1651, 16
        %v2029 = vrot.slane %v2027, 2
        %v2030 = vor.u32 %v2026, %v2029
        %v2031 = vsel %vm2005, %v2021, %v2030
        %v2033 = vshrl.u32 %v1652, 16
        %v2035 = vrot.slane %v2033, 1
        %v2036 = vshll.u32 %v1652, 16
        %v2038 = vrot.slane %v2036, 2
        %v2039 = vor.u32 %v2035, %v2038
        %v2040 = vsel %vm2005, %v2030, %v2039
        %v2042 = vshrl.u32 %v1653, 16
        %v2044 = vrot.slane %v2042, 1
        %v2045 = vshll.u32 %v1653, 16
        %v2047 = vrot.slane %v2045, 2
        %v2048 = vor.u32 %v2044, %v2047
        %v2049 = vsel %vm2005, %v2039, %v2048
        %v2051 = vshrl.u32 %v1654, 16
        %v2053 = vrot.slane %v2051, 1
        %v2054 = vshll.u32 %v1654, 16
        %v2056 = vrot.slane %v2054, 2
        %v2057 = vor.u32 %v2053, %v2056
        %v2058 = vsel %vm2005, %v2048, %v2057
        %v2060 = vshrl.u32 %v1655, 16
        %v2062 = vrot.slane %v2060, 1
        %v2063 = vshll.u32 %v1655, 16
        %v2065 = vrot.slane %v2063, 2
        %v2066 = vor.u32 %v2062, %v2065
        %v2067 = vsel %vm2005, %v2057, %v2066
        %v2069 = vshrl.u32 %v1656, 16
        %v2071 = vrot.slane %v2069, 1
        %v2072 = vshll.u32 %v1656, 16
        %v2074 = vrot.slane %v2072, 2
        %v2075 = vor.u32 %v2071, %v2074
        %v2076 = vsel %vm2005, %v2066, %v2075
        %v2078 = vshrl.u32 %v1657, 16
        %v2080 = vrot.slane %v2078, 1
        %v2081 = vshll.u32 %v1657, 16
        %v2083 = vrot.slane %v2081, 2
        %v2084 = vor.u32 %v2080, %v2083
        %v2085 = vsel %vm2005, %v2075, %v2084
        %v2087 = vshrl.u32 %v1658, 16
        %v2089 = vrot.slane %v2087, 1
        %v2090 = vshll.u32 %v1658, 16
        %v2092 = vrot.slane %v2090, 2
        %v2093 = vor.u32 %v2089, %v2092
        %v2094 = vsel %vm2005, %v2084, %v2093
        %v2096 = vshrl.u32 %v1659, 16
        %v2098 = vrot.slane %v2096, 1
        %v2099 = vshll.u32 %v1659, 16
        %v2101 = vrot.slane %v2099, 2
        %v2102 = vor.u32 %v2098, %v2101
        %v2103 = vsel %vm2005, %v2093, %v2102
        %v2105 = vshrl.u32 %v1660, 16
        %v2107 = vrot.slane %v2105, 1
        %v2108 = vshll.u32 %v1660, 16
        %v2110 = vrot.slane %v2108, 2
        %v2111 = vor.u32 %v2107, %v2110
        %v2112 = vsel %vm2005, %v2102, %v2111
        %v2114 = vshrl.u32 %v1661, 16
        %v2116 = vrot.slane %v2114, 1
        %v2117 = vshll.u32 %v1661, 16
        %v2119 = vrot.slane %v2117, 2
        %v2120 = vor.u32 %v2116, %v2119
        %v2121 = vsel %vm2005, %v2111, %v2120
        %v2123 = vshrl.u32 %v1662, 16
        %v2125 = vrot.slane %v2123, 1
        %v2126 = vshll.u32 %v1662, 16
        %v2128 = vrot.slane %v2126, 2
        %v2129 = vor.u32 %v2125, %v2128
        %v2130 = vsel %vm2005, %v2120, %v2129
        %v2132 = vshrl.u32 %v1663, 16
        %v2134 = vrot.slane %v2132, 1
        %v2135 = vshll.u32 %v1663, 16
        %v2137 = vrot.slane %v2135, 2
        %v2138 = vor.u32 %v2134, %v2137
        %v2139 = vsel %vm2005, %v2129, %v2138
        %v2141 = vshrl.u32 %v1664, 16
        %v2143 = vrot.slane %v2141, 1
        %v2144 = vshll.u32 %v1664, 16
        %v2146 = vrot.slane %v2144, 2
        %v2147 = vor.u32 %v2143, %v2146
        %v2148 = vsel %vm2005, %v2138, %v2147
        %v2150 = vshrl.u32 %v1665, 16
        %v2152 = vrot.slane %v2150, 1
        %v2153 = vshll.u32 %v1665, 16
        %v2155 = vrot.slane %v2153, 2
        %v2156 = vor.u32 %v2152, %v2155
        %v2157 = vsel %vm2005, %v2147, %v2156
        %v2159 = vshrl.u32 %v1666, 16
        %v2161 = vrot.slane %v2159, 1
        %v2162 = vshll.u32 %v1666, 16
        %v2164 = vrot.slane %v2162, 2
        %v2165 = vor.u32 %v2161, %v2164
        %v2166 = vsel %vm2005, %v2156, %v2165
        %v2168 = vshrl.u32 %v2004, 16
        %v2170 = vrot.slane %v2168, 1
        %v2171 = vshll.u32 %v2004, 16
        %v2173 = vrot.slane %v2171, 2
        %v2174 = vor.u32 %v2170, %v2173
        %v2175 = vsel %vm2005, %v2165, %v2174
        %v2210 = vunpack.c.l.b16 %v1986
        %v2211 = vunpack.c.l.b16 %v1987
        %v2212 = vunpack.c.l.b16 %v1988
        %v2213 = vunpack.c.l.b16 %v1989
        %v2214 = vunpack.c.l.b16 %v1990
        %v2215 = vunpack.c.l.b16 %v1991
        %v2216 = vunpack.c.l.b16 %v1992
        %v2217 = vunpack.c.l.b16 %v1993
        %v2218 = vunpack.c.l.b16 %v1994
        %v2219 = vunpack.c.l.b16 %v1995
        %v2220 = vunpack.c.l.b16 %v1996
        %v2221 = vunpack.c.l.b16 %v1997
        %v2222 = vunpack.c.l.b16 %v1998
        %v2223 = vunpack.c.l.b16 %v1999
        %v2224 = vunpack.c.l.b16 %v2000
        %v2225 = vunpack.c.l.b16 %v2001
        %v2226 = vpack.c.b16 %v2211, %v2210
        %v2227 = vpack.c.b16 %v2213, %v2212
        %v2228 = vpack.c.b16 %v2215, %v2214
        %v2229 = vpack.c.b16 %v2217, %v2216
        %v2230 = vpack.c.b16 %v2219, %v2218
        %v2231 = vpack.c.b16 %v2221, %v2220
        %v2232 = vpack.c.b16 %v2223, %v2222
        %v2233 = vpack.c.b16 %v2225, %v2224
        %2242 = vmatprep.subr.bf16.mxu0 0
        %2243 = vmatpush1.bf16.msra.mxu0 %v2233
        %2244 = vmatprep.subr.bf16.mxu0 0
        %2245 = vmatpush1.bf16.msra.mxu0 %v2232
        %2246 = vmatprep.subr.bf16.mxu0 0
        %2247 = vmatpush1.bf16.msra.mxu0 %v2231
        %2248 = vmatprep.subr.bf16.mxu0 0
        %2249 = vmatpush1.bf16.msra.mxu0 %v2230
        %2250 = vmatprep.subr.bf16.mxu0 0
        %2251 = vmatpush1.bf16.msra.mxu0 %v2229
        %2252 = vmatprep.subr.bf16.mxu0 0
        %2253 = vmatpush1.bf16.msra.mxu0 %v2228
        %2254 = vmatprep.subr.bf16.mxu0 0
        %2255 = vmatpush1.bf16.msra.mxu0 %v2227
        %2256 = vmatprep.subr.bf16.mxu0 0
        %2257 = vmatpush1.bf16.msra.mxu0 %v2226
        %2258 = vmatprep.subr.bf16.mxu0 0
        %2259 = vmatpush2.bf16.msra.mxu0 0
        %2260 = vmatprep.subr.bf16.mxu0 0
        %2261 = vmatpush2.bf16.msra.mxu0 0
        %2262 = vmatprep.subr.bf16.mxu0 0
        %2263 = vmatpush2.bf16.msra.mxu0 0
        %2264 = vmatprep.subr.bf16.mxu0 0
        %2265 = vmatpush2.bf16.msra.mxu0 0
        %2266 = vmatprep.subr.bf16.mxu0 0
        %2267 = vmatpush2.bf16.msra.mxu0 0
        %2268 = vmatprep.subr.bf16.mxu0 0
        %2269 = vmatpush2.bf16.msra.mxu0 0
        %2270 = vmatprep.subr.bf16.mxu0 0
        %2271 = vmatpush2.bf16.msra.mxu0 0
        %2272 = vmatprep.subr.bf16.mxu0 0
        %2273 = vmatpush2.bf16.msra.mxu0 0
        %2274 = vmatprep.mubr.bf16.mxu0 0
        %2275 = vmatmul.mubr.bf16.gmra.mxu0 %v2022
        %v2276 = vpop.f32.mrf.mxu0
        %v2277 = vadd.f32 0.0, %v2276
        %v2278 = vpop.f32.mrf.mxu0
        %v2279 = vpop.f32.mrf.mxu0
        %v2280 = vadd.f32 0.0, %v2279
        %v2281 = vpop.f32.mrf.mxu0
        %2282 = vmatprep.mubr.bf16.mxu0 0
        %2283 = vmatmul.mubr.bf16.gmra.mxu0 %v2031
        %v2284 = vpop.f32.mrf.mxu0
        %v2285 = vadd.f32 0.0, %v2284
        %v2286 = vpop.f32.mrf.mxu0
        %v2287 = vpop.f32.mrf.mxu0
        %v2288 = vadd.f32 0.0, %v2287
        %v2289 = vpop.f32.mrf.mxu0
        %2290 = vmatprep.mubr.bf16.mxu0 0
        %2291 = vmatmul.mubr.bf16.gmra.mxu0 %v2040
        %v2292 = vpop.f32.mrf.mxu0
        %v2293 = vadd.f32 0.0, %v2292
        %v2294 = vpop.f32.mrf.mxu0
        %v2295 = vpop.f32.mrf.mxu0
        %v2296 = vadd.f32 0.0, %v2295
        %v2297 = vpop.f32.mrf.mxu0
        %2298 = vmatprep.mubr.bf16.mxu0 0
        %2299 = vmatmul.mubr.bf16.gmra.mxu0 %v2049
        %v2300 = vpop.f32.mrf.mxu0
        %v2301 = vadd.f32 0.0, %v2300
        %v2302 = vpop.f32.mrf.mxu0
        %v2303 = vpop.f32.mrf.mxu0
        %v2304 = vadd.f32 0.0, %v2303
        %v2305 = vpop.f32.mrf.mxu0
        %2306 = vmatprep.mubr.bf16.mxu0 0
        %2307 = vmatmul.mubr.bf16.gmra.mxu0 %v2058
        %v2308 = vpop.f32.mrf.mxu0
        %v2309 = vadd.f32 0.0, %v2308
        %v2310 = vpop.f32.mrf.mxu0
        %v2311 = vpop.f32.mrf.mxu0
        %v2312 = vadd.f32 0.0, %v2311
        %v2313 = vpop.f32.mrf.mxu0
        %2314 = vmatprep.mubr.bf16.mxu0 0
        %2315 = vmatmul.mubr.bf16.gmra.mxu0 %v2067
        %v2316 = vpop.f32.mrf.mxu0
        %v2317 = vadd.f32 0.0, %v2316
        %v2318 = vpop.f32.mrf.mxu0
        %v2319 = vpop.f32.mrf.mxu0
        %v2320 = vadd.f32 0.0, %v2319
        %v2321 = vpop.f32.mrf.mxu0
        %2322 = vmatprep.mubr.bf16.mxu0 0
        %2323 = vmatmul.mubr.bf16.gmra.mxu0 %v2076
        %v2324 = vpop.f32.mrf.mxu0
        %v2325 = vadd.f32 0.0, %v2324
        %v2326 = vpop.f32.mrf.mxu0
        %v2327 = vpop.f32.mrf.mxu0
        %v2328 = vadd.f32 0.0, %v2327
        %v2329 = vpop.f32.mrf.mxu0
        %2330 = vmatprep.mubr.bf16.mxu0 0
        %2331 = vmatmul.mubr.bf16.gmra.mxu0 %v2085
        %v2332 = vpop.f32.mrf.mxu0
        %v2333 = vadd.f32 0.0, %v2332
        %v2334 = vpop.f32.mrf.mxu0
        %v2335 = vpop.f32.mrf.mxu0
        %v2336 = vadd.f32 0.0, %v2335
        %v2337 = vpop.f32.mrf.mxu0
        %2338 = vmatprep.mubr.bf16.mxu0 0
        %2339 = vmatmul.mubr.bf16.gmra.mxu0 %v2094
        %v2340 = vpop.f32.mrf.mxu0
        %v2341 = vadd.f32 0.0, %v2340
        %v2342 = vpop.f32.mrf.mxu0
        %v2343 = vpop.f32.mrf.mxu0
        %v2344 = vadd.f32 0.0, %v2343
        %v2345 = vpop.f32.mrf.mxu0
        %2346 = vmatprep.mubr.bf16.mxu0 0
        %2347 = vmatmul.mubr.bf16.gmra.mxu0 %v2103
        %v2348 = vpop.f32.mrf.mxu0
        %v2349 = vadd.f32 0.0, %v2348
        %v2350 = vpop.f32.mrf.mxu0
        %v2351 = vpop.f32.mrf.mxu0
        %v2352 = vadd.f32 0.0, %v2351
        %v2353 = vpop.f32.mrf.mxu0
        %2354 = vmatprep.mubr.bf16.mxu0 0
        %2355 = vmatmul.mubr.bf16.gmra.mxu0 %v2112
        %v2356 = vpop.f32.mrf.mxu0
        %v2357 = vadd.f32 0.0, %v2356
        %v2358 = vpop.f32.mrf.mxu0
        %v2359 = vpop.f32.mrf.mxu0
        %v2360 = vadd.f32 0.0, %v2359
        %v2361 = vpop.f32.mrf.mxu0
        %2362 = vmatprep.mubr.bf16.mxu0 0
        %2363 = vmatmul.mubr.bf16.gmra.mxu0 %v2121
        %v2364 = vpop.f32.mrf.mxu0
        %v2365 = vadd.f32 0.0, %v2364
        %v2366 = vpop.f32.mrf.mxu0
        %v2367 = vpop.f32.mrf.mxu0
        %v2368 = vadd.f32 0.0, %v2367
        %v2369 = vpop.f32.mrf.mxu0
        %2370 = vmatprep.mubr.bf16.mxu0 0
        %2371 = vmatmul.mubr.bf16.gmra.mxu0 %v2130
        %v2372 = vpop.f32.mrf.mxu0
        %v2373 = vadd.f32 0.0, %v2372
        %v2374 = vpop.f32.mrf.mxu0
        %v2375 = vpop.f32.mrf.mxu0
        %v2376 = vadd.f32 0.0, %v2375
        %v2377 = vpop.f32.mrf.mxu0
        %2378 = vmatprep.mubr.bf16.mxu0 0
        %2379 = vmatmul.mubr.bf16.gmra.mxu0 %v2139
        %v2380 = vpop.f32.mrf.mxu0
        %v2381 = vadd.f32 0.0, %v2380
        %v2382 = vpop.f32.mrf.mxu0
        %v2383 = vpop.f32.mrf.mxu0
        %v2384 = vadd.f32 0.0, %v2383
        %v2385 = vpop.f32.mrf.mxu0
        %2386 = vmatprep.mubr.bf16.mxu0 0
        %2387 = vmatmul.mubr.bf16.gmra.mxu0 %v2148
        %v2388 = vpop.f32.mrf.mxu0
        %v2389 = vadd.f32 0.0, %v2388
        %v2390 = vpop.f32.mrf.mxu0
        %v2391 = vpop.f32.mrf.mxu0
        %v2392 = vadd.f32 0.0, %v2391
        %v2393 = vpop.f32.mrf.mxu0
        %2394 = vmatprep.mubr.bf16.mxu0 0
        %2395 = vmatmul.mubr.bf16.gmra.mxu0 %v2157
        %v2396 = vpop.f32.mrf.mxu0
        %v2397 = vadd.f32 0.0, %v2396
        %v2398 = vpop.f32.mrf.mxu0
        %v2399 = vpop.f32.mrf.mxu0
        %v2400 = vadd.f32 0.0, %v2399
        %v2401 = vpop.f32.mrf.mxu0
        %2402 = vmatprep.mubr.bf16.mxu0 0
        %2403 = vmatmul.mubr.bf16.gmra.mxu0 %v2166
        %v2404 = vpop.f32.mrf.mxu0
        %v2405 = vadd.f32 0.0, %v2404
        %v2406 = vpop.f32.mrf.mxu0
        %v2407 = vpop.f32.mrf.mxu0
        %v2408 = vadd.f32 0.0, %v2407
        %v2409 = vpop.f32.mrf.mxu0
        %2410 = vmatprep.mubr.bf16.mxu0 0
        %2411 = vmatmul.mubr.bf16.gmra.mxu0 %v2175
        %v2412 = vpop.f32.mrf.mxu0
        %v2413 = vadd.f32 0.0, %v2412
        %v2414 = vpop.f32.mrf.mxu0
        %v2415 = vpop.f32.mrf.mxu0
        %v2416 = vadd.f32 0.0, %v2415
        %v2417 = vpop.f32.mrf.mxu0
        %2418 = vdwg.mxu0
        %v2419 = vadd.f32 %v1948, %v2277
        %v2420 = vadd.f32 %v1949, %v2280
        %v2421 = vadd.f32 %v1950, %v2285
        %v2422 = vadd.f32 %v1951, %v2288
        %v2423 = vadd.f32 %v1952, %v2293
        %v2424 = vadd.f32 %v1953, %v2296
        %v2425 = vadd.f32 %v1954, %v2301
        %v2426 = vadd.f32 %v1955, %v2304
        %v2427 = vadd.f32 %v1956, %v2309
        %v2428 = vadd.f32 %v1957, %v2312
        %v2429 = vadd.f32 %v1958, %v2317
        %v2430 = vadd.f32 %v1959, %v2320
        %v2431 = vadd.f32 %v1960, %v2325
        %v2432 = vadd.f32 %v1961, %v2328
        %v2433 = vadd.f32 %v1962, %v2333
        %v2434 = vadd.f32 %v1963, %v2336
        %v2435 = vadd.f32 %v1964, %v2341
        %v2436 = vadd.f32 %v1965, %v2344
        %v2437 = vadd.f32 %v1966, %v2349
        %v2438 = vadd.f32 %v1967, %v2352
        %v2439 = vadd.f32 %v1968, %v2357
        %v2440 = vadd.f32 %v1969, %v2360
        %v2441 = vadd.f32 %v1970, %v2365
        %v2442 = vadd.f32 %v1971, %v2368
        %v2443 = vadd.f32 %v1972, %v2373
        %v2444 = vadd.f32 %v1973, %v2376
        %v2445 = vadd.f32 %v1974, %v2381
        %v2446 = vadd.f32 %v1975, %v2384
        %v2447 = vadd.f32 %v1976, %v2389
        %v2448 = vadd.f32 %v1977, %v2392
        %v2449 = vadd.f32 %v1978, %v2397
        %v2450 = vadd.f32 %v1979, %v2400
        %v2451 = vadd.f32 %v1980, %v2405
        %v2452 = vadd.f32 %v1981, %v2408
        %v2453 = vadd.f32 %v1982, %v2413
        %v2454 = vadd.f32 %v1983, %v2416
        %v2455 = vld [vmem:[#allocation2 + $0x8] sm:$0xc]
        %s2456 = scalar_lea.vmem %s1, 320
        %v2457 = vld [vmem:[%s2456] sm:$0xf]
        %v2458 = vld [vmem:[%s2456 + $0x4] sm:$0xf]
        %v2459 = vld [vmem:[%s2456 + $0x8] sm:$0xf]
        %v2460 = vld [vmem:[%s2456 + $0xc] sm:$0xf]
        %v2461 = vld [vmem:[%s2456 + $0x10] sm:$0xf]
        %v2462 = vld [vmem:[%s2456 + $0x14] sm:$0xf]
        %v2463 = vld [vmem:[%s2456 + $0x18] sm:$0xf]
        %v2464 = vld [vmem:[%s2456 + $0x1c] sm:$0xf]
        %v2465 = vld [vmem:[%s2456 + $0x20] sm:$0xf]
        %v2466 = vld [vmem:[%s2456 + $0x24] sm:$0xf]
        %v2467 = vld [vmem:[%s2456 + $0x28] sm:$0xf]
        %v2468 = vld [vmem:[%s2456 + $0x2c] sm:$0xf]
        %v2469 = vld [vmem:[%s2456 + $0x30] sm:$0xf]
        %v2470 = vld [vmem:[%s2456 + $0x34] sm:$0xf]
        %v2471 = vld [vmem:[%s2456 + $0x38] sm:$0xf]
        %v2472 = vld [vmem:[%s2456 + $0x3c] sm:$0xf]
        %v2474 = vunpack.c.l.b16 %v2455
        %v2475 = vpack.c.b16 %v1613, %v2474
        %vm2476 = vcmask 1045504
        %v2477 = vrot.slane %v2475, 2
        %v2478 = vrot.slane %v1650, 2
        %v2479 = vsel %vm2476, %v2477, %v2478
        %v2480 = vrot.slane %v1651, 2
        %v2481 = vsel %vm2476, %v2478, %v2480
        %v2482 = vrot.slane %v1652, 2
        %v2483 = vsel %vm2476, %v2480, %v2482
        %v2484 = vrot.slane %v1653, 2
        %v2485 = vsel %vm2476, %v2482, %v2484
        %v2486 = vrot.slane %v1654, 2
        %v2487 = vsel %vm2476, %v2484, %v2486
        %v2488 = vrot.slane %v1655, 2
        %v2489 = vsel %vm2476, %v2486, %v2488
        %v2490 = vrot.slane %v1656, 2
        %v2491 = vsel %vm2476, %v2488, %v2490
        %v2492 = vrot.slane %v1657, 2
        %v2493 = vsel %vm2476, %v2490, %v2492
        %v2494 = vrot.slane %v1658, 2
        %v2495 = vsel %vm2476, %v2492, %v2494
        %v2496 = vrot.slane %v1659, 2
        %v2497 = vsel %vm2476, %v2494, %v2496
        %v2498 = vrot.slane %v1660, 2
        %v2499 = vsel %vm2476, %v2496, %v2498
        %v2500 = vrot.slane %v1661, 2
        %v2501 = vsel %vm2476, %v2498, %v2500
        %v2502 = vrot.slane %v1662, 2
        %v2503 = vsel %vm2476, %v2500, %v2502
        %v2504 = vrot.slane %v1663, 2
        %v2505 = vsel %vm2476, %v2502, %v2504
        %v2506 = vrot.slane %v1664, 2
        %v2507 = vsel %vm2476, %v2504, %v2506
        %v2508 = vrot.slane %v1665, 2
        %v2509 = vsel %vm2476, %v2506, %v2508
        %v2510 = vrot.slane %v1666, 2
        %v2511 = vsel %vm2476, %v2508, %v2510
        %v2512 = vrot.slane %v2004, 2
        %v2513 = vsel %vm2476, %v2510, %v2512
        %v2548 = vunpack.c.l.b16 %v2457
        %v2549 = vunpack.c.l.b16 %v2458
        %v2550 = vunpack.c.l.b16 %v2459
        %v2551 = vunpack.c.l.b16 %v2460
        %v2552 = vunpack.c.l.b16 %v2461
        %v2553 = vunpack.c.l.b16 %v2462
        %v2554 = vunpack.c.l.b16 %v2463
        %v2555 = vunpack.c.l.b16 %v2464
        %v2556 = vunpack.c.l.b16 %v2465
        %v2557 = vunpack.c.l.b16 %v2466
        %v2558 = vunpack.c.l.b16 %v2467
        %v2559 = vunpack.c.l.b16 %v2468
        %v2560 = vunpack.c.l.b16 %v2469
        %v2561 = vunpack.c.l.b16 %v2470
        %v2562 = vunpack.c.l.b16 %v2471
        %v2563 = vunpack.c.l.b16 %v2472
        %v2564 = vpack.c.b16 %v2549, %v2548
        %v2565 = vpack.c.b16 %v2551, %v2550
        %v2566 = vpack.c.b16 %v2553, %v2552
        %v2567 = vpack.c.b16 %v2555, %v2554
        %v2568 = vpack.c.b16 %v2557, %v2556
        %v2569 = vpack.c.b16 %v2559, %v2558
        %v2570 = vpack.c.b16 %v2561, %v2560
        %v2571 = vpack.c.b16 %v2563, %v2562
        %2580 = vmatprep.subr.bf16.mxu0 0
        %2581 = vmatpush1.bf16.msra.mxu0 %v2571
        %2582 = vmatprep.subr.bf16.mxu0 0
        %2583 = vmatpush1.bf16.msra.mxu0 %v2570
        %2584 = vmatprep.subr.bf16.mxu0 0
        %2585 = vmatpush1.bf16.msra.mxu0 %v2569
        %2586 = vmatprep.subr.bf16.mxu0 0
        %2587 = vmatpush1.bf16.msra.mxu0 %v2568
        %2588 = vmatprep.subr.bf16.mxu0 0
        %2589 = vmatpush1.bf16.msra.mxu0 %v2567
        %2590 = vmatprep.subr.bf16.mxu0 0
        %2591 = vmatpush1.bf16.msra.mxu0 %v2566
        %2592 = vmatprep.subr.bf16.mxu0 0
        %2593 = vmatpush1.bf16.msra.mxu0 %v2565
        %2594 = vmatprep.subr.bf16.mxu0 0
        %2595 = vmatpush1.bf16.msra.mxu0 %v2564
        %2596 = vmatprep.subr.bf16.mxu0 0
        %2597 = vmatpush2.bf16.msra.mxu0 0
        %2598 = vmatprep.subr.bf16.mxu0 0
        %2599 = vmatpush2.bf16.msra.mxu0 0
        %2600 = vmatprep.subr.bf16.mxu0 0
        %2601 = vmatpush2.bf16.msra.mxu0 0
        %2602 = vmatprep.subr.bf16.mxu0 0
        %2603 = vmatpush2.bf16.msra.mxu0 0
        %2604 = vmatprep.subr.bf16.mxu0 0
        %2605 = vmatpush2.bf16.msra.mxu0 0
        %2606 = vmatprep.subr.bf16.mxu0 0
        %2607 = vmatpush2.bf16.msra.mxu0 0
        %2608 = vmatprep.subr.bf16.mxu0 0
        %2609 = vmatpush2.bf16.msra.mxu0 0
        %2610 = vmatprep.subr.bf16.mxu0 0
        %2611 = vmatpush2.bf16.msra.mxu0 0
        %2612 = vmatprep.mubr.bf16.mxu0 0
        %2613 = vmatmul.mubr.bf16.gmra.mxu0 %v2479
        %v2614 = vpop.f32.mrf.mxu0
        %v2615 = vadd.f32 0.0, %v2614
        %v2616 = vpop.f32.mrf.mxu0
        %v2617 = vpop.f32.mrf.mxu0
        %v2618 = vadd.f32 0.0, %v2617
        %v2619 = vpop.f32.mrf.mxu0
        %2620 = vmatprep.mubr.bf16.mxu0 0
        %2621 = vmatmul.mubr.bf16.gmra.mxu0 %v2481
        %v2622 = vpop.f32.mrf.mxu0
        %v2623 = vadd.f32 0.0, %v2622
        %v2624 = vpop.f32.mrf.mxu0
        %v2625 = vpop.f32.mrf.mxu0
        %v2626 = vadd.f32 0.0, %v2625
        %v2627 = vpop.f32.mrf.mxu0
        %2628 = vmatprep.mubr.bf16.mxu0 0
        %2629 = vmatmul.mubr.bf16.gmra.mxu0 %v2483
        %v2630 = vpop.f32.mrf.mxu0
        %v2631 = vadd.f32 0.0, %v2630
        %v2632 = vpop.f32.mrf.mxu0
        %v2633 = vpop.f32.mrf.mxu0
        %v2634 = vadd.f32 0.0, %v2633
        %v2635 = vpop.f32.mrf.mxu0
        %2636 = vmatprep.mubr.bf16.mxu0 0
        %2637 = vmatmul.mubr.bf16.gmra.mxu0 %v2485
        %v2638 = vpop.f32.mrf.mxu0
        %v2639 = vadd.f32 0.0, %v2638
        %v2640 = vpop.f32.mrf.mxu0
        %v2641 = vpop.f32.mrf.mxu0
        %v2642 = vadd.f32 0.0, %v2641
        %v2643 = vpop.f32.mrf.mxu0
        %2644 = vmatprep.mubr.bf16.mxu0 0
        %2645 = vmatmul.mubr.bf16.gmra.mxu0 %v2487
        %v2646 = vpop.f32.mrf.mxu0
        %v2647 = vadd.f32 0.0, %v2646
        %v2648 = vpop.f32.mrf.mxu0
        %v2649 = vpop.f32.mrf.mxu0
        %v2650 = vadd.f32 0.0, %v2649
        %v2651 = vpop.f32.mrf.mxu0
        %2652 = vmatprep.mubr.bf16.mxu0 0
        %2653 = vmatmul.mubr.bf16.gmra.mxu0 %v2489
        %v2654 = vpop.f32.mrf.mxu0
        %v2655 = vadd.f32 0.0, %v2654
        %v2656 = vpop.f32.mrf.mxu0
        %v2657 = vpop.f32.mrf.mxu0
        %v2658 = vadd.f32 0.0, %v2657
        %v2659 = vpop.f32.mrf.mxu0
        %2660 = vmatprep.mubr.bf16.mxu0 0
        %2661 = vmatmul.mubr.bf16.gmra.mxu0 %v2491
        %v2662 = vpop.f32.mrf.mxu0
        %v2663 = vadd.f32 0.0, %v2662
        %v2664 = vpop.f32.mrf.mxu0
        %v2665 = vpop.f32.mrf.mxu0
        %v2666 = vadd.f32 0.0, %v2665
        %v2667 = vpop.f32.mrf.mxu0
        %2668 = vmatprep.mubr.bf16.mxu0 0
        %2669 = vmatmul.mubr.bf16.gmra.mxu0 %v2493
        %v2670 = vpop.f32.mrf.mxu0
        %v2671 = vadd.f32 0.0, %v2670
        %v2672 = vpop.f32.mrf.mxu0
        %v2673 = vpop.f32.mrf.mxu0
        %v2674 = vadd.f32 0.0, %v2673
        %v2675 = vpop.f32.mrf.mxu0
        %2676 = vmatprep.mubr.bf16.mxu0 0
        %2677 = vmatmul.mubr.bf16.gmra.mxu0 %v2495
        %v2678 = vpop.f32.mrf.mxu0
        %v2679 = vadd.f32 0.0, %v2678
        %v2680 = vpop.f32.mrf.mxu0
        %v2681 = vpop.f32.mrf.mxu0
        %v2682 = vadd.f32 0.0, %v2681
        %v2683 = vpop.f32.mrf.mxu0
        %2684 = vmatprep.mubr.bf16.mxu0 0
        %2685 = vmatmul.mubr.bf16.gmra.mxu0 %v2497
        %v2686 = vpop.f32.mrf.mxu0
        %v2687 = vadd.f32 0.0, %v2686
        %v2688 = vpop.f32.mrf.mxu0
        %v2689 = vpop.f32.mrf.mxu0
        %v2690 = vadd.f32 0.0, %v2689
        %v2691 = vpop.f32.mrf.mxu0
        %2692 = vmatprep.mubr.bf16.mxu0 0
        %2693 = vmatmul.mubr.bf16.gmra.mxu0 %v2499
        %v2694 = vpop.f32.mrf.mxu0
        %v2695 = vadd.f32 0.0, %v2694
        %v2696 = vpop.f32.mrf.mxu0
        %v2697 = vpop.f32.mrf.mxu0
        %v2698 = vadd.f32 0.0, %v2697
        %v2699 = vpop.f32.mrf.mxu0
        %2700 = vmatprep.mubr.bf16.mxu0 0
        %2701 = vmatmul.mubr.bf16.gmra.mxu0 %v2501
        %v2702 = vpop.f32.mrf.mxu0
        %v2703 = vadd.f32 0.0, %v2702
        %v2704 = vpop.f32.mrf.mxu0
        %v2705 = vpop.f32.mrf.mxu0
        %v2706 = vadd.f32 0.0, %v2705
        %v2707 = vpop.f32.mrf.mxu0
        %2708 = vmatprep.mubr.bf16.mxu0 0
        %2709 = vmatmul.mubr.bf16.gmra.mxu0 %v2503
        %v2710 = vpop.f32.mrf.mxu0
        %v2711 = vadd.f32 0.0, %v2710
        %v2712 = vpop.f32.mrf.mxu0
        %v2713 = vpop.f32.mrf.mxu0
        %v2714 = vadd.f32 0.0, %v2713
        %v2715 = vpop.f32.mrf.mxu0
        %2716 = vmatprep.mubr.bf16.mxu0 0
        %2717 = vmatmul.mubr.bf16.gmra.mxu0 %v2505
        %v2718 = vpop.f32.mrf.mxu0
        %v2719 = vadd.f32 0.0, %v2718
        %v2720 = vpop.f32.mrf.mxu0
        %v2721 = vpop.f32.mrf.mxu0
        %v2722 = vadd.f32 0.0, %v2721
        %v2723 = vpop.f32.mrf.mxu0
        %2724 = vmatprep.mubr.bf16.mxu0 0
        %2725 = vmatmul.mubr.bf16.gmra.mxu0 %v2507
        %v2726 = vpop.f32.mrf.mxu0
        %v2727 = vadd.f32 0.0, %v2726
        %v2728 = vpop.f32.mrf.mxu0
        %v2729 = vpop.f32.mrf.mxu0
        %v2730 = vadd.f32 0.0, %v2729
        %v2731 = vpop.f32.mrf.mxu0
        %2732 = vmatprep.mubr.bf16.mxu0 0
        %2733 = vmatmul.mubr.bf16.gmra.mxu0 %v2509
        %v2734 = vpop.f32.mrf.mxu0
        %v2735 = vadd.f32 0.0, %v2734
        %v2736 = vpop.f32.mrf.mxu0
        %v2737 = vpop.f32.mrf.mxu0
        %v2738 = vadd.f32 0.0, %v2737
        %v2739 = vpop.f32.mrf.mxu0
        %2740 = vmatprep.mubr.bf16.mxu0 0
        %2741 = vmatmul.mubr.bf16.gmra.mxu0 %v2511
        %v2742 = vpop.f32.mrf.mxu0
        %v2743 = vadd.f32 0.0, %v2742
        %v2744 = vpop.f32.mrf.mxu0
        %v2745 = vpop.f32.mrf.mxu0
        %v2746 = vadd.f32 0.0, %v2745
        %v2747 = vpop.f32.mrf.mxu0
        %2748 = vmatprep.mubr.bf16.mxu0 0
        %2749 = vmatmul.mubr.bf16.gmra.mxu0 %v2513
        %v2750 = vpop.f32.mrf.mxu0
        %v2751 = vadd.f32 0.0, %v2750
        %v2752 = vpop.f32.mrf.mxu0
        %v2753 = vpop.f32.mrf.mxu0
        %v2754 = vadd.f32 0.0, %v2753
        %v2755 = vpop.f32.mrf.mxu0
        %2756 = vdwg.mxu0
        %v2757 = vadd.f32 %v2419, %v2615
        %v2758 = vadd.f32 %v2420, %v2618
        %v2759 = vadd.f32 %v2421, %v2623
        %v2760 = vadd.f32 %v2422, %v2626
        %v2761 = vadd.f32 %v2423, %v2631
        %v2762 = vadd.f32 %v2424, %v2634
        %v2763 = vadd.f32 %v2425, %v2639
        %v2764 = vadd.f32 %v2426, %v2642
        %v2765 = vadd.f32 %v2427, %v2647
        %v2766 = vadd.f32 %v2428, %v2650
        %v2767 = vadd.f32 %v2429, %v2655
        %v2768 = vadd.f32 %v2430, %v2658
        %v2769 = vadd.f32 %v2431, %v2663
        %v2770 = vadd.f32 %v2432, %v2666
        %v2771 = vadd.f32 %v2433, %v2671
        %v2772 = vadd.f32 %v2434, %v2674
        %v2773 = vadd.f32 %v2435, %v2679
        %v2774 = vadd.f32 %v2436, %v2682
        %v2775 = vadd.f32 %v2437, %v2687
        %v2776 = vadd.f32 %v2438, %v2690
        %v2777 = vadd.f32 %v2439, %v2695
        %v2778 = vadd.f32 %v2440, %v2698
        %v2779 = vadd.f32 %v2441, %v2703
        %v2780 = vadd.f32 %v2442, %v2706
        %v2781 = vadd.f32 %v2443, %v2711
        %v2782 = vadd.f32 %v2444, %v2714
        %v2783 = vadd.f32 %v2445, %v2719
        %v2784 = vadd.f32 %v2446, %v2722
        %v2785 = vadd.f32 %v2447, %v2727
        %v2786 = vadd.f32 %v2448, %v2730
        %v2787 = vadd.f32 %v2449, %v2735
        %v2788 = vadd.f32 %v2450, %v2738
        %v2789 = vadd.f32 %v2451, %v2743
        %v2790 = vadd.f32 %v2452, %v2746
        %v2791 = vadd.f32 %v2453, %v2751
        %v2792 = vadd.f32 %v2454, %v2754
        %v2793 = vld [vmem:[#allocation2 + $0x10] sm:$0xc]
        %v2794 = vld [vmem:[#allocation2 + $0x14] sm:$0xf]
        %v2795 = vld [vmem:[#allocation2 + $0x18] sm:$0xf]
        %v2796 = vld [vmem:[#allocation2 + $0x1c] sm:$0xf]
        %v2797 = vld [vmem:[#allocation2 + $0x20] sm:$0xf]
        %v2798 = vld [vmem:[#allocation2 + $0x24] sm:$0xf]
        %v2799 = vld [vmem:[#allocation2 + $0x28] sm:$0xf]
        %v2800 = vld [vmem:[#allocation2 + $0x2c] sm:$0xf]
        %v2801 = vld [vmem:[#allocation2 + $0x30] sm:$0xf]
        %v2802 = vld [vmem:[#allocation2 + $0x34] sm:$0xf]
        %v2803 = vld [vmem:[#allocation2 + $0x38] sm:$0xf]
        %v2804 = vld [vmem:[#allocation2 + $0x3c] sm:$0xf]
        %v2805 = vld [vmem:[#allocation2 + $0x40] sm:$0xf]
        %v2806 = vld [vmem:[#allocation2 + $0x44] sm:$0xf]
        %v2807 = vld [vmem:[#allocation2 + $0x48] sm:$0xf]
        %v2808 = vld [vmem:[#allocation2 + $0x4c] sm:$0xf]
        %v2809 = vld [vmem:[#allocation2 + $0x50] sm:$0xf]
        %v2810 = vld [vmem:[#allocation2 + $0x54] sm:$0xf]
        %v2811 = vld [vmem:[#allocation2 + $0x58] sm:$0xf]
        %v2812 = vld [vmem:[#allocation2 + $0x5c] sm:$0xf]
        %v2813 = vld [vmem:[#allocation2 + $0x60] sm:$0xf]
        %v2814 = vld [vmem:[#allocation2 + $0x64] sm:$0xf]
        %v2815 = vld [vmem:[#allocation2 + $0x68] sm:$0xf]
        %v2816 = vld [vmem:[#allocation2 + $0x6c] sm:$0xf]
        %v2817 = vld [vmem:[#allocation2 + $0x70] sm:$0xf]
        %v2818 = vld [vmem:[#allocation2 + $0x74] sm:$0xf]
        %v2819 = vld [vmem:[#allocation2 + $0x78] sm:$0xf]
        %v2820 = vld [vmem:[#allocation2 + $0x7c] sm:$0xf]
        %v2821 = vld [vmem:[#allocation2 + $0x80] sm:$0xf]
        %v2822 = vld [vmem:[#allocation2 + $0x84] sm:$0xf]
        %v2823 = vld [vmem:[#allocation2 + $0x88] sm:$0xf]
        %v2824 = vld [vmem:[#allocation2 + $0x8c] sm:$0xf]
        %v2825 = vld [vmem:[#allocation2 + $0x90] sm:$0xf]
        %v2826 = vld [vmem:[#allocation2 + $0x94] sm:$0xf]
        %v2827 = vld [vmem:[#allocation2 + $0x98] sm:$0xf]
        %v2828 = vld [vmem:[#allocation2 + $0x9c] sm:$0xf]
        %v2829 = vld [vmem:[#allocation2 + $0xa0] sm:$0x3]
        %s2830 = scalar_lea.vmem %s1, 384
        %v2831 = vld [vmem:[%s2830] sm:$0xf]
        %v2832 = vld [vmem:[%s2830 + $0x4] sm:$0xf]
        %v2833 = vld [vmem:[%s2830 + $0x8] sm:$0xf]
        %v2834 = vld [vmem:[%s2830 + $0xc] sm:$0xf]
        %v2835 = vld [vmem:[%s2830 + $0x10] sm:$0xf]
        %v2836 = vld [vmem:[%s2830 + $0x14] sm:$0xf]
        %v2837 = vld [vmem:[%s2830 + $0x18] sm:$0xf]
        %v2838 = vld [vmem:[%s2830 + $0x1c] sm:$0xf]
        %v2839 = vld [vmem:[%s2830 + $0x20] sm:$0xf]
        %v2840 = vld [vmem:[%s2830 + $0x24] sm:$0xf]
        %v2841 = vld [vmem:[%s2830 + $0x28] sm:$0xf]
        %v2842 = vld [vmem:[%s2830 + $0x2c] sm:$0xf]
        %v2843 = vld [vmem:[%s2830 + $0x30] sm:$0xf]
        %v2844 = vld [vmem:[%s2830 + $0x34] sm:$0xf]
        %v2845 = vld [vmem:[%s2830 + $0x38] sm:$0xf]
        %v2846 = vld [vmem:[%s2830 + $0x3c] sm:$0xf]
        %v2884 = vunpack.c.l.b16 %v2793
        %v2885 = vunpack.c.l.b16 %v2794
        %v2886 = vunpack.c.l.b16 %v2795
        %v2887 = vunpack.c.l.b16 %v2796
        %v2888 = vunpack.c.l.b16 %v2797
        %v2889 = vunpack.c.l.b16 %v2798
        %v2890 = vunpack.c.l.b16 %v2799
        %v2891 = vunpack.c.l.b16 %v2800
        %v2892 = vunpack.c.l.b16 %v2801
        %v2893 = vunpack.c.l.b16 %v2802
        %v2894 = vunpack.c.l.b16 %v2803
        %v2895 = vunpack.c.l.b16 %v2804
        %v2896 = vunpack.c.l.b16 %v2805
        %v2897 = vunpack.c.l.b16 %v2806
        %v2898 = vunpack.c.l.b16 %v2807
        %v2899 = vunpack.c.l.b16 %v2808
        %v2900 = vunpack.c.l.b16 %v2809
        %v2901 = vunpack.c.l.b16 %v2810
        %v2902 = vunpack.c.l.b16 %v2811
        %v2903 = vunpack.c.l.b16 %v2812
        %v2904 = vunpack.c.l.b16 %v2813
        %v2905 = vunpack.c.l.b16 %v2814
        %v2906 = vunpack.c.l.b16 %v2815
        %v2907 = vunpack.c.l.b16 %v2816
        %v2908 = vunpack.c.l.b16 %v2817
        %v2909 = vunpack.c.l.b16 %v2818
        %v2910 = vunpack.c.l.b16 %v2819
        %v2911 = vunpack.c.l.b16 %v2820
        %v2912 = vunpack.c.l.b16 %v2821
        %v2913 = vunpack.c.l.b16 %v2822
        %v2914 = vunpack.c.l.b16 %v2823
        %v2915 = vunpack.c.l.b16 %v2824
        %v2916 = vunpack.c.l.b16 %v2825
        %v2917 = vunpack.c.l.b16 %v2826
        %v2918 = vunpack.c.l.b16 %v2827
        %v2919 = vunpack.c.l.b16 %v2828
        %v2920 = vunpack.c.l.b16 %v2829
        %v2921 = vpack.c.b16 %v2885, %v2884
        %v2922 = vpack.c.b16 %v2887, %v2886
        %v2923 = vpack.c.b16 %v2889, %v2888
        %v2924 = vpack.c.b16 %v2891, %v2890
        %v2925 = vpack.c.b16 %v2893, %v2892
        %v2926 = vpack.c.b16 %v2895, %v2894
        %v2927 = vpack.c.b16 %v2897, %v2896
        %v2928 = vpack.c.b16 %v2899, %v2898
        %v2929 = vpack.c.b16 %v2901, %v2900
        %v2930 = vpack.c.b16 %v2903, %v2902
        %v2931 = vpack.c.b16 %v2905, %v2904
        %v2932 = vpack.c.b16 %v2907, %v2906
        %v2933 = vpack.c.b16 %v2909, %v2908
        %v2934 = vpack.c.b16 %v2911, %v2910
        %v2935 = vpack.c.b16 %v2913, %v2912
        %v2936 = vpack.c.b16 %v2915, %v2914
        %v2937 = vpack.c.b16 %v2917, %v2916
        %v2938 = vpack.c.b16 %v2919, %v2918
        %v2939 = vpack.c.b16 %v2920, %v2920
        %v2940 = vrot.slane %v2921, 2
        %v2941 = vrot.slane %v2922, 2
        %v2942 = vsel %vm2476, %v2940, %v2941
        %v2943 = vrot.slane %v2923, 2
        %v2944 = vsel %vm2476, %v2941, %v2943
        %v2945 = vrot.slane %v2924, 2
        %v2946 = vsel %vm2476, %v2943, %v2945
        %v2947 = vrot.slane %v2925, 2
        %v2948 = vsel %vm2476, %v2945, %v2947
        %v2949 = vrot.slane %v2926, 2
        %v2950 = vsel %vm2476, %v2947, %v2949
        %v2951 = vrot.slane %v2927, 2
        %v2952 = vsel %vm2476, %v2949, %v2951
        %v2953 = vrot.slane %v2928, 2
        %v2954 = vsel %vm2476, %v2951, %v2953
        %v2955 = vrot.slane %v2929, 2
        %v2956 = vsel %vm2476, %v2953, %v2955
        %v2957 = vrot.slane %v2930, 2
        %v2958 = vsel %vm2476, %v2955, %v2957
        %v2959 = vrot.slane %v2931, 2
        %v2960 = vsel %vm2476, %v2957, %v2959
        %v2961 = vrot.slane %v2932, 2
        %v2962 = vsel %vm2476, %v2959, %v2961
        %v2963 = vrot.slane %v2933, 2
        %v2964 = vsel %vm2476, %v2961, %v2963
        %v2965 = vrot.slane %v2934, 2
        %v2966 = vsel %vm2476, %v2963, %v2965
        %v2967 = vrot.slane %v2935, 2
        %v2968 = vsel %vm2476, %v2965, %v2967
        %v2969 = vrot.slane %v2936, 2
        %v2970 = vsel %vm2476, %v2967, %v2969
        %v2971 = vrot.slane %v2937, 2
        %v2972 = vsel %vm2476, %v2969, %v2971
        %v2973 = vrot.slane %v2938, 2
        %v2974 = vsel %vm2476, %v2971, %v2973
        %v2975 = vrot.slane %v2939, 2
        %v2976 = vsel %vm2476, %v2973, %v2975
        %v3011 = vunpack.c.l.b16 %v2831
        %v3012 = vunpack.c.l.b16 %v2832
        %v3013 = vunpack.c.l.b16 %v2833
        %v3014 = vunpack.c.l.b16 %v2834
        %v3015 = vunpack.c.l.b16 %v2835
        %v3016 = vunpack.c.l.b16 %v2836
        %v3017 = vunpack.c.l.b16 %v2837
        %v3018 = vunpack.c.l.b16 %v2838
        %v3019 = vunpack.c.l.b16 %v2839
        %v3020 = vunpack.c.l.b16 %v2840
        %v3021 = vunpack.c.l.b16 %v2841
        %v3022 = vunpack.c.l.b16 %v2842
        %v3023 = vunpack.c.l.b16 %v2843
        %v3024 = vunpack.c.l.b16 %v2844
        %v3025 = vunpack.c.l.b16 %v2845
        %v3026 = vunpack.c.l.b16 %v2846
        %v3027 = vpack.c.b16 %v3012, %v3011
        %v3028 = vpack.c.b16 %v3014, %v3013
        %v3029 = vpack.c.b16 %v3016, %v3015
        %v3030 = vpack.c.b16 %v3018, %v3017
        %v3031 = vpack.c.b16 %v3020, %v3019
        %v3032 = vpack.c.b16 %v3022, %v3021
        %v3033 = vpack.c.b16 %v3024, %v3023
        %v3034 = vpack.c.b16 %v3026, %v3025
        %3043 = vmatprep.subr.bf16.mxu0 0
        %3044 = vmatpush1.bf16.msra.mxu0 %v3034
        %3045 = vmatprep.subr.bf16.mxu0 0
        %3046 = vmatpush1.bf16.msra.mxu0 %v3033
        %3047 = vmatprep.subr.bf16.mxu0 0
        %3048 = vmatpush1.bf16.msra.mxu0 %v3032
        %3049 = vmatprep.subr.bf16.mxu0 0
        %3050 = vmatpush1.bf16.msra.mxu0 %v3031
        %3051 = vmatprep.subr.bf16.mxu0 0
        %3052 = vmatpush1.bf16.msra.mxu0 %v3030
        %3053 = vmatprep.subr.bf16.mxu0 0
        %3054 = vmatpush1.bf16.msra.mxu0 %v3029
        %3055 = vmatprep.subr.bf16.mxu0 0
        %3056 = vmatpush1.bf16.msra.mxu0 %v3028
        %3057 = vmatprep.subr.bf16.mxu0 0
        %3058 = vmatpush1.bf16.msra.mxu0 %v3027
        %3059 = vmatprep.subr.bf16.mxu0 0
        %3060 = vmatpush2.bf16.msra.mxu0 0
        %3061 = vmatprep.subr.bf16.mxu0 0
        %3062 = vmatpush2.bf16.msra.mxu0 0
        %3063 = vmatprep.subr.bf16.mxu0 0
        %3064 = vmatpush2.bf16.msra.mxu0 0
        %3065 = vmatprep.subr.bf16.mxu0 0
        %3066 = vmatpush2.bf16.msra.mxu0 0
        %3067 = vmatprep.subr.bf16.mxu0 0
        %3068 = vmatpush2.bf16.msra.mxu0 0
        %3069 = vmatprep.subr.bf16.mxu0 0
        %3070 = vmatpush2.bf16.msra.mxu0 0
        %3071 = vmatprep.subr.bf16.mxu0 0
        %3072 = vmatpush2.bf16.msra.mxu0 0
        %3073 = vmatprep.subr.bf16.mxu0 0
        %3074 = vmatpush2.bf16.msra.mxu0 0
        %3075 = vmatprep.mubr.bf16.mxu0 0
        %3076 = vmatmul.mubr.bf16.gmra.mxu0 %v2942
        %v3077 = vpop.f32.mrf.mxu0
        %v3078 = vadd.f32 0.0, %v3077
        %v3079 = vpop.f32.mrf.mxu0
        %v3080 = vpop.f32.mrf.mxu0
        %v3081 = vadd.f32 0.0, %v3080
        %v3082 = vpop.f32.mrf.mxu0
        %3083 = vmatprep.mubr.bf16.mxu0 0
        %3084 = vmatmul.mubr.bf16.gmra.mxu0 %v2944
        %v3085 = vpop.f32.mrf.mxu0
        %v3086 = vadd.f32 0.0, %v3085
        %v3087 = vpop.f32.mrf.mxu0
        %v3088 = vpop.f32.mrf.mxu0
        %v3089 = vadd.f32 0.0, %v3088
        %v3090 = vpop.f32.mrf.mxu0
        %3091 = vmatprep.mubr.bf16.mxu0 0
        %3092 = vmatmul.mubr.bf16.gmra.mxu0 %v2946
        %v3093 = vpop.f32.mrf.mxu0
        %v3094 = vadd.f32 0.0, %v3093
        %v3095 = vpop.f32.mrf.mxu0
        %v3096 = vpop.f32.mrf.mxu0
        %v3097 = vadd.f32 0.0, %v3096
        %v3098 = vpop.f32.mrf.mxu0
        %3099 = vmatprep.mubr.bf16.mxu0 0
        %3100 = vmatmul.mubr.bf16.gmra.mxu0 %v2948
        %v3101 = vpop.f32.mrf.mxu0
        %v3102 = vadd.f32 0.0, %v3101
        %v3103 = vpop.f32.mrf.mxu0
        %v3104 = vpop.f32.mrf.mxu0
        %v3105 = vadd.f32 0.0, %v3104
        %v3106 = vpop.f32.mrf.mxu0
        %3107 = vmatprep.mubr.bf16.mxu0 0
        %3108 = vmatmul.mubr.bf16.gmra.mxu0 %v2950
        %v3109 = vpop.f32.mrf.mxu0
        %v3110 = vadd.f32 0.0, %v3109
        %v3111 = vpop.f32.mrf.mxu0
        %v3112 = vpop.f32.mrf.mxu0
        %v3113 = vadd.f32 0.0, %v3112
        %v3114 = vpop.f32.mrf.mxu0
        %3115 = vmatprep.mubr.bf16.mxu0 0
        %3116 = vmatmul.mubr.bf16.gmra.mxu0 %v2952
        %v3117 = vpop.f32.mrf.mxu0
        %v3118 = vadd.f32 0.0, %v3117
        %v3119 = vpop.f32.mrf.mxu0
        %v3120 = vpop.f32.mrf.mxu0
        %v3121 = vadd.f32 0.0, %v3120
        %v3122 = vpop.f32.mrf.mxu0
        %3123 = vmatprep.mubr.bf16.mxu0 0
        %3124 = vmatmul.mubr.bf16.gmra.mxu0 %v2954
        %v3125 = vpop.f32.mrf.mxu0
        %v3126 = vadd.f32 0.0, %v3125
        %v3127 = vpop.f32.mrf.mxu0
        %v3128 = vpop.f32.mrf.mxu0
        %v3129 = vadd.f32 0.0, %v3128
        %v3130 = vpop.f32.mrf.mxu0
        %3131 = vmatprep.mubr.bf16.mxu0 0
        %3132 = vmatmul.mubr.bf16.gmra.mxu0 %v2956
        %v3133 = vpop.f32.mrf.mxu0
        %v3134 = vadd.f32 0.0, %v3133
        %v3135 = vpop.f32.mrf.mxu0
        %v3136 = vpop.f32.mrf.mxu0
        %v3137 = vadd.f32 0.0, %v3136
        %v3138 = vpop.f32.mrf.mxu0
        %3139 = vmatprep.mubr.bf16.mxu0 0
        %3140 = vmatmul.mubr.bf16.gmra.mxu0 %v2958
        %v3141 = vpop.f32.mrf.mxu0
        %v3142 = vadd.f32 0.0, %v3141
        %v3143 = vpop.f32.mrf.mxu0
        %v3144 = vpop.f32.mrf.mxu0
        %v3145 = vadd.f32 0.0, %v3144
        %v3146 = vpop.f32.mrf.mxu0
        %3147 = vmatprep.mubr.bf16.mxu0 0
        %3148 = vmatmul.mubr.bf16.gmra.mxu0 %v2960
        %v3149 = vpop.f32.mrf.mxu0
        %v3150 = vadd.f32 0.0, %v3149
        %v3151 = vpop.f32.mrf.mxu0
        %v3152 = vpop.f32.mrf.mxu0
        %v3153 = vadd.f32 0.0, %v3152
        %v3154 = vpop.f32.mrf.mxu0
        %3155 = vmatprep.mubr.bf16.mxu0 0
        %3156 = vmatmul.mubr.bf16.gmra.mxu0 %v2962
        %v3157 = vpop.f32.mrf.mxu0
        %v3158 = vadd.f32 0.0, %v3157
        %v3159 = vpop.f32.mrf.mxu0
        %v3160 = vpop.f32.mrf.mxu0
        %v3161 = vadd.f32 0.0, %v3160
        %v3162 = vpop.f32.mrf.mxu0
        %3163 = vmatprep.mubr.bf16.mxu0 0
        %3164 = vmatmul.mubr.bf16.gmra.mxu0 %v2964
        %v3165 = vpop.f32.mrf.mxu0
        %v3166 = vadd.f32 0.0, %v3165
        %v3167 = vpop.f32.mrf.mxu0
        %v3168 = vpop.f32.mrf.mxu0
        %v3169 = vadd.f32 0.0, %v3168
        %v3170 = vpop.f32.mrf.mxu0
        %3171 = vmatprep.mubr.bf16.mxu0 0
        %3172 = vmatmul.mubr.bf16.gmra.mxu0 %v2966
        %v3173 = vpop.f32.mrf.mxu0
        %v3174 = vadd.f32 0.0, %v3173
        %v3175 = vpop.f32.mrf.mxu0
        %v3176 = vpop.f32.mrf.mxu0
        %v3177 = vadd.f32 0.0, %v3176
        %v3178 = vpop.f32.mrf.mxu0
        %3179 = vmatprep.mubr.bf16.mxu0 0
        %3180 = vmatmul.mubr.bf16.gmra.mxu0 %v2968
        %v3181 = vpop.f32.mrf.mxu0
        %v3182 = vadd.f32 0.0, %v3181
        %v3183 = vpop.f32.mrf.mxu0
        %v3184 = vpop.f32.mrf.mxu0
        %v3185 = vadd.f32 0.0, %v3184
        %v3186 = vpop.f32.mrf.mxu0
        %3187 = vmatprep.mubr.bf16.mxu0 0
        %3188 = vmatmul.mubr.bf16.gmra.mxu0 %v2970
        %v3189 = vpop.f32.mrf.mxu0
        %v3190 = vadd.f32 0.0, %v3189
        %v3191 = vpop.f32.mrf.mxu0
        %v3192 = vpop.f32.mrf.mxu0
        %v3193 = vadd.f32 0.0, %v3192
        %v3194 = vpop.f32.mrf.mxu0
        %3195 = vmatprep.mubr.bf16.mxu0 0
        %3196 = vmatmul.mubr.bf16.gmra.mxu0 %v2972
        %v3197 = vpop.f32.mrf.mxu0
        %v3198 = vadd.f32 0.0, %v3197
        %v3199 = vpop.f32.mrf.mxu0
        %v3200 = vpop.f32.mrf.mxu0
        %v3201 = vadd.f32 0.0, %v3200
        %v3202 = vpop.f32.mrf.mxu0
        %3203 = vmatprep.mubr.bf16.mxu0 0
        %3204 = vmatmul.mubr.bf16.gmra.mxu0 %v2974
        %v3205 = vpop.f32.mrf.mxu0
        %v3206 = vadd.f32 0.0, %v3205
        %v3207 = vpop.f32.mrf.mxu0
        %v3208 = vpop.f32.mrf.mxu0
        %v3209 = vadd.f32 0.0, %v3208
        %v3210 = vpop.f32.mrf.mxu0
        %3211 = vmatprep.mubr.bf16.mxu0 0
        %3212 = vmatmul.mubr.bf16.gmra.mxu0 %v2976
        %v3213 = vpop.f32.mrf.mxu0
        %v3214 = vadd.f32 0.0, %v3213
        %v3215 = vpop.f32.mrf.mxu0
        %v3216 = vpop.f32.mrf.mxu0
        %v3217 = vadd.f32 0.0, %v3216
        %v3218 = vpop.f32.mrf.mxu0
        %3219 = vdwg.mxu0
        %v3220 = vadd.f32 %v2757, %v3078
        %v3221 = vadd.f32 %v2758, %v3081
        %v3222 = vadd.f32 %v2759, %v3086
        %v3223 = vadd.f32 %v2760, %v3089
        %v3224 = vadd.f32 %v2761, %v3094
        %v3225 = vadd.f32 %v2762, %v3097
        %v3226 = vadd.f32 %v2763, %v3102
        %v3227 = vadd.f32 %v2764, %v3105
        %v3228 = vadd.f32 %v2765, %v3110
        %v3229 = vadd.f32 %v2766, %v3113
        %v3230 = vadd.f32 %v2767, %v3118
        %v3231 = vadd.f32 %v2768, %v3121
        %v3232 = vadd.f32 %v2769, %v3126
        %v3233 = vadd.f32 %v2770, %v3129
        %v3234 = vadd.f32 %v2771, %v3134
        %v3235 = vadd.f32 %v2772, %v3137
        %v3236 = vadd.f32 %v2773, %v3142
        %v3237 = vadd.f32 %v2774, %v3145
        %v3238 = vadd.f32 %v2775, %v3150
        %v3239 = vadd.f32 %v2776, %v3153
        %v3240 = vadd.f32 %v2777, %v3158
        %v3241 = vadd.f32 %v2778, %v3161
        %v3242 = vadd.f32 %v2779, %v3166
        %v3243 = vadd.f32 %v2780, %v3169
        %v3244 = vadd.f32 %v2781, %v3174
        %v3245 = vadd.f32 %v2782, %v3177
        %v3246 = vadd.f32 %v2783, %v3182
        %v3247 = vadd.f32 %v2784, %v3185
        %v3248 = vadd.f32 %v2785, %v3190
        %v3249 = vadd.f32 %v2786, %v3193
        %v3250 = vadd.f32 %v2787, %v3198
        %v3251 = vadd.f32 %v2788, %v3201
        %v3252 = vadd.f32 %v2789, %v3206
        %v3253 = vadd.f32 %v2790, %v3209
        %v3254 = vadd.f32 %v2791, %v3214
        %v3255 = vadd.f32 %v2792, %v3217
        %v3256 = vld [vmem:[#allocation2 + $0xa0] sm:$0x7]
        %s3257 = scalar_lea.vmem %s1, 448
        %v3258 = vld [vmem:[%s3257] sm:$0xf]
        %v3259 = vld [vmem:[%s3257 + $0x4] sm:$0xf]
        %v3260 = vld [vmem:[%s3257 + $0x8] sm:$0xf]
        %v3261 = vld [vmem:[%s3257 + $0xc] sm:$0xf]
        %v3262 = vld [vmem:[%s3257 + $0x10] sm:$0xf]
        %v3263 = vld [vmem:[%s3257 + $0x14] sm:$0xf]
        %v3264 = vld [vmem:[%s3257 + $0x18] sm:$0xf]
        %v3265 = vld [vmem:[%s3257 + $0x1c] sm:$0xf]
        %v3266 = vld [vmem:[%s3257 + $0x20] sm:$0xf]
        %v3267 = vld [vmem:[%s3257 + $0x24] sm:$0xf]
        %v3268 = vld [vmem:[%s3257 + $0x28] sm:$0xf]
        %v3269 = vld [vmem:[%s3257 + $0x2c] sm:$0xf]
        %v3270 = vld [vmem:[%s3257 + $0x30] sm:$0xf]
        %v3271 = vld [vmem:[%s3257 + $0x34] sm:$0xf]
        %v3272 = vld [vmem:[%s3257 + $0x38] sm:$0xf]
        %v3273 = vld [vmem:[%s3257 + $0x3c] sm:$0xf]
        %v3275 = vunpack.c.l.b16 %v3256
        %v3276 = vpack.c.b16 %v3275, %v3275
        %vm3277 = vsmask.f32 5376
        %v3279 = vshrl.u32 %v2921, 16
        %v3281 = vrot.slane %v3279, 2
        %v3282 = vshll.u32 %v2921, 16
        %v3284 = vrot.slane %v3282, 3
        %v3285 = vor.u32 %v3281, %v3284
        %v3287 = vshrl.u32 %v2922, 16
        %v3289 = vrot.slane %v3287, 2
        %v3290 = vshll.u32 %v2922, 16
        %v3292 = vrot.slane %v3290, 3
        %v3293 = vor.u32 %v3289, %v3292
        %v3294 = vsel %vm3277, %v3285, %v3293
        %v3296 = vshrl.u32 %v2923, 16
        %v3298 = vrot.slane %v3296, 2
        %v3299 = vshll.u32 %v2923, 16
        %v3301 = vrot.slane %v3299, 3
        %v3302 = vor.u32 %v3298, %v3301
        %v3303 = vsel %vm3277, %v3293, %v3302
        %v3305 = vshrl.u32 %v2924, 16
        %v3307 = vrot.slane %v3305, 2
        %v3308 = vshll.u32 %v2924, 16
        %v3310 = vrot.slane %v3308, 3
        %v3311 = vor.u32 %v3307, %v3310
        %v3312 = vsel %vm3277, %v3302, %v3311
        %v3314 = vshrl.u32 %v2925, 16
        %v3316 = vrot.slane %v3314, 2
        %v3317 = vshll.u32 %v2925, 16
        %v3319 = vrot.slane %v3317, 3
        %v3320 = vor.u32 %v3316, %v3319
        %v3321 = vsel %vm3277, %v3311, %v3320
        %v3323 = vshrl.u32 %v2926, 16
        %v3325 = vrot.slane %v3323, 2
        %v3326 = vshll.u32 %v2926, 16
        %v3328 = vrot.slane %v3326, 3
        %v3329 = vor.u32 %v3325, %v3328
        %v3330 = vsel %vm3277, %v3320, %v3329
        %v3332 = vshrl.u32 %v2927, 16
        %v3334 = vrot.slane %v3332, 2
        %v3335 = vshll.u32 %v2927, 16
        %v3337 = vrot.slane %v3335, 3
        %v3338 = vor.u32 %v3334, %v3337
        %v3339 = vsel %vm3277, %v3329, %v3338
        %v3341 = vshrl.u32 %v2928, 16
        %v3343 = vrot.slane %v3341, 2
        %v3344 = vshll.u32 %v2928, 16
        %v3346 = vrot.slane %v3344, 3
        %v3347 = vor.u32 %v3343, %v3346
        %v3348 = vsel %vm3277, %v3338, %v3347
        %v3350 = vshrl.u32 %v2929, 16
        %v3352 = vrot.slane %v3350, 2
        %v3353 = vshll.u32 %v2929, 16
        %v3355 = vrot.slane %v3353, 3
        %v3356 = vor.u32 %v3352, %v3355
        %v3357 = vsel %vm3277, %v3347, %v3356
        %v3359 = vshrl.u32 %v2930, 16
        %v3361 = vrot.slane %v3359, 2
        %v3362 = vshll.u32 %v2930, 16
        %v3364 = vrot.slane %v3362, 3
        %v3365 = vor.u32 %v3361, %v3364
        %v3366 = vsel %vm3277, %v3356, %v3365
        %v3368 = vshrl.u32 %v2931, 16
        %v3370 = vrot.slane %v3368, 2
        %v3371 = vshll.u32 %v2931, 16
        %v3373 = vrot.slane %v3371, 3
        %v3374 = vor.u32 %v3370, %v3373
        %v3375 = vsel %vm3277, %v3365, %v3374
        %v3377 = vshrl.u32 %v2932, 16
        %v3379 = vrot.slane %v3377, 2
        %v3380 = vshll.u32 %v2932, 16
        %v3382 = vrot.slane %v3380, 3
        %v3383 = vor.u32 %v3379, %v3382
        %v3384 = vsel %vm3277, %v3374, %v3383
        %v3386 = vshrl.u32 %v2933, 16
        %v3388 = vrot.slane %v3386, 2
        %v3389 = vshll.u32 %v2933, 16
        %v3391 = vrot.slane %v3389, 3
        %v3392 = vor.u32 %v3388, %v3391
        %v3393 = vsel %vm3277, %v3383, %v3392
        %v3395 = vshrl.u32 %v2934, 16
        %v3397 = vrot.slane %v3395, 2
        %v3398 = vshll.u32 %v2934, 16
        %v3400 = vrot.slane %v3398, 3
        %v3401 = vor.u32 %v3397, %v3400
        %v3402 = vsel %vm3277, %v3392, %v3401
        %v3404 = vshrl.u32 %v2935, 16
        %v3406 = vrot.slane %v3404, 2
        %v3407 = vshll.u32 %v2935, 16
        %v3409 = vrot.slane %v3407, 3
        %v3410 = vor.u32 %v3406, %v3409
        %v3411 = vsel %vm3277, %v3401, %v3410
        %v3413 = vshrl.u32 %v2936, 16
        %v3415 = vrot.slane %v3413, 2
        %v3416 = vshll.u32 %v2936, 16
        %v3418 = vrot.slane %v3416, 3
        %v3419 = vor.u32 %v3415, %v3418
        %v3420 = vsel %vm3277, %v3410, %v3419
        %v3422 = vshrl.u32 %v2937, 16
        %v3424 = vrot.slane %v3422, 2
        %v3425 = vshll.u32 %v2937, 16
        %v3427 = vrot.slane %v3425, 3
        %v3428 = vor.u32 %v3424, %v3427
        %v3429 = vsel %vm3277, %v3419, %v3428
        %v3431 = vshrl.u32 %v2938, 16
        %v3433 = vrot.slane %v3431, 2
        %v3434 = vshll.u32 %v2938, 16
        %v3436 = vrot.slane %v3434, 3
        %v3437 = vor.u32 %v3433, %v3436
        %v3438 = vsel %vm3277, %v3428, %v3437
        %v3440 = vshrl.u32 %v3276, 16
        %v3442 = vrot.slane %v3440, 2
        %v3443 = vshll.u32 %v3276, 16
        %v3445 = vrot.slane %v3443, 3
        %v3446 = vor.u32 %v3442, %v3445
        %v3447 = vsel %vm3277, %v3437, %v3446
        %v3482 = vunpack.c.l.b16 %v3258
        %v3483 = vunpack.c.l.b16 %v3259
        %v3484 = vunpack.c.l.b16 %v3260
        %v3485 = vunpack.c.l.b16 %v3261
        %v3486 = vunpack.c.l.b16 %v3262
        %v3487 = vunpack.c.l.b16 %v3263
        %v3488 = vunpack.c.l.b16 %v3264
        %v3489 = vunpack.c.l.b16 %v3265
        %v3490 = vunpack.c.l.b16 %v3266
        %v3491 = vunpack.c.l.b16 %v3267
        %v3492 = vunpack.c.l.b16 %v3268
        %v3493 = vunpack.c.l.b16 %v3269
        %v3494 = vunpack.c.l.b16 %v3270
        %v3495 = vunpack.c.l.b16 %v3271
        %v3496 = vunpack.c.l.b16 %v3272
        %v3497 = vunpack.c.l.b16 %v3273
        %v3498 = vpack.c.b16 %v3483, %v3482
        %v3499 = vpack.c.b16 %v3485, %v3484
        %v3500 = vpack.c.b16 %v3487, %v3486
        %v3501 = vpack.c.b16 %v3489, %v3488
        %v3502 = vpack.c.b16 %v3491, %v3490
        %v3503 = vpack.c.b16 %v3493, %v3492
        %v3504 = vpack.c.b16 %v3495, %v3494
        %v3505 = vpack.c.b16 %v3497, %v3496
        %3514 = vmatprep.subr.bf16.mxu0 0
        %3515 = vmatpush1.bf16.msra.mxu0 %v3505
        %3516 = vmatprep.subr.bf16.mxu0 0
        %3517 = vmatpush1.bf16.msra.mxu0 %v3504
        %3518 = vmatprep.subr.bf16.mxu0 0
        %3519 = vmatpush1.bf16.msra.mxu0 %v3503
        %3520 = vmatprep.subr.bf16.mxu0 0
        %3521 = vmatpush1.bf16.msra.mxu0 %v3502
        %3522 = vmatprep.subr.bf16.mxu0 0
        %3523 = vmatpush1.bf16.msra.mxu0 %v3501
        %3524 = vmatprep.subr.bf16.mxu0 0
        %3525 = vmatpush1.bf16.msra.mxu0 %v3500
        %3526 = vmatprep.subr.bf16.mxu0 0
        %3527 = vmatpush1.bf16.msra.mxu0 %v3499
        %3528 = vmatprep.subr.bf16.mxu0 0
        %3529 = vmatpush1.bf16.msra.mxu0 %v3498
        %3530 = vmatprep.subr.bf16.mxu0 0
        %3531 = vmatpush2.bf16.msra.mxu0 0
        %3532 = vmatprep.subr.bf16.mxu0 0
        %3533 = vmatpush2.bf16.msra.mxu0 0
        %3534 = vmatprep.subr.bf16.mxu0 0
        %3535 = vmatpush2.bf16.msra.mxu0 0
        %3536 = vmatprep.subr.bf16.mxu0 0
        %3537 = vmatpush2.bf16.msra.mxu0 0
        %3538 = vmatprep.subr.bf16.mxu0 0
        %3539 = vmatpush2.bf16.msra.mxu0 0
        %3540 = vmatprep.subr.bf16.mxu0 0
        %3541 = vmatpush2.bf16.msra.mxu0 0
        %3542 = vmatprep.subr.bf16.mxu0 0
        %3543 = vmatpush2.bf16.msra.mxu0 0
        %3544 = vmatprep.subr.bf16.mxu0 0
        %3545 = vmatpush2.bf16.msra.mxu0 0
        %3546 = vmatprep.mubr.bf16.mxu0 0
        %3547 = vmatmul.mubr.bf16.gmra.mxu0 %v3294
        %v3548 = vpop.f32.mrf.mxu0
        %v3549 = vadd.f32 0.0, %v3548
        %v3550 = vpop.f32.mrf.mxu0
        %v3551 = vpop.f32.mrf.mxu0
        %v3552 = vadd.f32 0.0, %v3551
        %v3553 = vpop.f32.mrf.mxu0
        %3554 = vmatprep.mubr.bf16.mxu0 0
        %3555 = vmatmul.mubr.bf16.gmra.mxu0 %v3303
        %v3556 = vpop.f32.mrf.mxu0
        %v3557 = vadd.f32 0.0, %v3556
        %v3558 = vpop.f32.mrf.mxu0
        %v3559 = vpop.f32.mrf.mxu0
        %v3560 = vadd.f32 0.0, %v3559
        %v3561 = vpop.f32.mrf.mxu0
        %3562 = vmatprep.mubr.bf16.mxu0 0
        %3563 = vmatmul.mubr.bf16.gmra.mxu0 %v3312
        %v3564 = vpop.f32.mrf.mxu0
        %v3565 = vadd.f32 0.0, %v3564
        %v3566 = vpop.f32.mrf.mxu0
        %v3567 = vpop.f32.mrf.mxu0
        %v3568 = vadd.f32 0.0, %v3567
        %v3569 = vpop.f32.mrf.mxu0
        %3570 = vmatprep.mubr.bf16.mxu0 0
        %3571 = vmatmul.mubr.bf16.gmra.mxu0 %v3321
        %v3572 = vpop.f32.mrf.mxu0
        %v3573 = vadd.f32 0.0, %v3572
        %v3574 = vpop.f32.mrf.mxu0
        %v3575 = vpop.f32.mrf.mxu0
        %v3576 = vadd.f32 0.0, %v3575
        %v3577 = vpop.f32.mrf.mxu0
        %3578 = vmatprep.mubr.bf16.mxu0 0
        %3579 = vmatmul.mubr.bf16.gmra.mxu0 %v3330
        %v3580 = vpop.f32.mrf.mxu0
        %v3581 = vadd.f32 0.0, %v3580
        %v3582 = vpop.f32.mrf.mxu0
        %v3583 = vpop.f32.mrf.mxu0
        %v3584 = vadd.f32 0.0, %v3583
        %v3585 = vpop.f32.mrf.mxu0
        %3586 = vmatprep.mubr.bf16.mxu0 0
        %3587 = vmatmul.mubr.bf16.gmra.mxu0 %v3339
        %v3588 = vpop.f32.mrf.mxu0
        %v3589 = vadd.f32 0.0, %v3588
        %v3590 = vpop.f32.mrf.mxu0
        %v3591 = vpop.f32.mrf.mxu0
        %v3592 = vadd.f32 0.0, %v3591
        %v3593 = vpop.f32.mrf.mxu0
        %3594 = vmatprep.mubr.bf16.mxu0 0
        %3595 = vmatmul.mubr.bf16.gmra.mxu0 %v3348
        %v3596 = vpop.f32.mrf.mxu0
        %v3597 = vadd.f32 0.0, %v3596
        %v3598 = vpop.f32.mrf.mxu0
        %v3599 = vpop.f32.mrf.mxu0
        %v3600 = vadd.f32 0.0, %v3599
        %v3601 = vpop.f32.mrf.mxu0
        %3602 = vmatprep.mubr.bf16.mxu0 0
        %3603 = vmatmul.mubr.bf16.gmra.mxu0 %v3357
        %v3604 = vpop.f32.mrf.mxu0
        %v3605 = vadd.f32 0.0, %v3604
        %v3606 = vpop.f32.mrf.mxu0
        %v3607 = vpop.f32.mrf.mxu0
        %v3608 = vadd.f32 0.0, %v3607
        %v3609 = vpop.f32.mrf.mxu0
        %3610 = vmatprep.mubr.bf16.mxu0 0
        %3611 = vmatmul.mubr.bf16.gmra.mxu0 %v3366
        %v3612 = vpop.f32.mrf.mxu0
        %v3613 = vadd.f32 0.0, %v3612
        %v3614 = vpop.f32.mrf.mxu0
        %v3615 = vpop.f32.mrf.mxu0
        %v3616 = vadd.f32 0.0, %v3615
        %v3617 = vpop.f32.mrf.mxu0
        %3618 = vmatprep.mubr.bf16.mxu0 0
        %3619 = vmatmul.mubr.bf16.gmra.mxu0 %v3375
        %v3620 = vpop.f32.mrf.mxu0
        %v3621 = vadd.f32 0.0, %v3620
        %v3622 = vpop.f32.mrf.mxu0
        %v3623 = vpop.f32.mrf.mxu0
        %v3624 = vadd.f32 0.0, %v3623
        %v3625 = vpop.f32.mrf.mxu0
        %3626 = vmatprep.mubr.bf16.mxu0 0
        %3627 = vmatmul.mubr.bf16.gmra.mxu0 %v3384
        %v3628 = vpop.f32.mrf.mxu0
        %v3629 = vadd.f32 0.0, %v3628
        %v3630 = vpop.f32.mrf.mxu0
        %v3631 = vpop.f32.mrf.mxu0
        %v3632 = vadd.f32 0.0, %v3631
        %v3633 = vpop.f32.mrf.mxu0
        %3634 = vmatprep.mubr.bf16.mxu0 0
        %3635 = vmatmul.mubr.bf16.gmra.mxu0 %v3393
        %v3636 = vpop.f32.mrf.mxu0
        %v3637 = vadd.f32 0.0, %v3636
        %v3638 = vpop.f32.mrf.mxu0
        %v3639 = vpop.f32.mrf.mxu0
        %v3640 = vadd.f32 0.0, %v3639
        %v3641 = vpop.f32.mrf.mxu0
        %3642 = vmatprep.mubr.bf16.mxu0 0
        %3643 = vmatmul.mubr.bf16.gmra.mxu0 %v3402
        %v3644 = vpop.f32.mrf.mxu0
        %v3645 = vadd.f32 0.0, %v3644
        %v3646 = vpop.f32.mrf.mxu0
        %v3647 = vpop.f32.mrf.mxu0
        %v3648 = vadd.f32 0.0, %v3647
        %v3649 = vpop.f32.mrf.mxu0
        %3650 = vmatprep.mubr.bf16.mxu0 0
        %3651 = vmatmul.mubr.bf16.gmra.mxu0 %v3411
        %v3652 = vpop.f32.mrf.mxu0
        %v3653 = vadd.f32 0.0, %v3652
        %v3654 = vpop.f32.mrf.mxu0
        %v3655 = vpop.f32.mrf.mxu0
        %v3656 = vadd.f32 0.0, %v3655
        %v3657 = vpop.f32.mrf.mxu0
        %3658 = vmatprep.mubr.bf16.mxu0 0
        %3659 = vmatmul.mubr.bf16.gmra.mxu0 %v3420
        %v3660 = vpop.f32.mrf.mxu0
        %v3661 = vadd.f32 0.0, %v3660
        %v3662 = vpop.f32.mrf.mxu0
        %v3663 = vpop.f32.mrf.mxu0
        %v3664 = vadd.f32 0.0, %v3663
        %v3665 = vpop.f32.mrf.mxu0
        %3666 = vmatprep.mubr.bf16.mxu0 0
        %3667 = vmatmul.mubr.bf16.gmra.mxu0 %v3429
        %v3668 = vpop.f32.mrf.mxu0
        %v3669 = vadd.f32 0.0, %v3668
        %v3670 = vpop.f32.mrf.mxu0
        %v3671 = vpop.f32.mrf.mxu0
        %v3672 = vadd.f32 0.0, %v3671
        %v3673 = vpop.f32.mrf.mxu0
        %3674 = vmatprep.mubr.bf16.mxu0 0
        %3675 = vmatmul.mubr.bf16.gmra.mxu0 %v3438
        %v3676 = vpop.f32.mrf.mxu0
        %v3677 = vadd.f32 0.0, %v3676
        %v3678 = vpop.f32.mrf.mxu0
        %v3679 = vpop.f32.mrf.mxu0
        %v3680 = vadd.f32 0.0, %v3679
        %v3681 = vpop.f32.mrf.mxu0
        %3682 = vmatprep.mubr.bf16.mxu0 0
        %3683 = vmatmul.mubr.bf16.gmra.mxu0 %v3447
        %v3684 = vpop.f32.mrf.mxu0
        %v3685 = vadd.f32 0.0, %v3684
        %v3686 = vpop.f32.mrf.mxu0
        %v3687 = vpop.f32.mrf.mxu0
        %v3688 = vadd.f32 0.0, %v3687
        %v3689 = vpop.f32.mrf.mxu0
        %3690 = vdwg.mxu0
        %v3691 = vadd.f32 %v3220, %v3549
        %v3692 = vadd.f32 %v3221, %v3552
        %v3693 = vadd.f32 %v3222, %v3557
        %v3694 = vadd.f32 %v3223, %v3560
        %v3695 = vadd.f32 %v3224, %v3565
        %v3696 = vadd.f32 %v3225, %v3568
        %v3697 = vadd.f32 %v3226, %v3573
        %v3698 = vadd.f32 %v3227, %v3576
        %v3699 = vadd.f32 %v3228, %v3581
        %v3700 = vadd.f32 %v3229, %v3584
        %v3701 = vadd.f32 %v3230, %v3589
        %v3702 = vadd.f32 %v3231, %v3592
        %v3703 = vadd.f32 %v3232, %v3597
        %v3704 = vadd.f32 %v3233, %v3600
        %v3705 = vadd.f32 %v3234, %v3605
        %v3706 = vadd.f32 %v3235, %v3608
        %v3707 = vadd.f32 %v3236, %v3613
        %v3708 = vadd.f32 %v3237, %v3616
        %v3709 = vadd.f32 %v3238, %v3621
        %v3710 = vadd.f32 %v3239, %v3624
        %v3711 = vadd.f32 %v3240, %v3629
        %v3712 = vadd.f32 %v3241, %v3632
        %v3713 = vadd.f32 %v3242, %v3637
        %v3714 = vadd.f32 %v3243, %v3640
        %v3715 = vadd.f32 %v3244, %v3645
        %v3716 = vadd.f32 %v3245, %v3648
        %v3717 = vadd.f32 %v3246, %v3653
        %v3718 = vadd.f32 %v3247, %v3656
        %v3719 = vadd.f32 %v3248, %v3661
        %v3720 = vadd.f32 %v3249, %v3664
        %v3721 = vadd.f32 %v3250, %v3669
        %v3722 = vadd.f32 %v3251, %v3672
        %v3723 = vadd.f32 %v3252, %v3677
        %v3724 = vadd.f32 %v3253, %v3680
        %v3725 = vadd.f32 %v3254, %v3685
        %v3726 = vadd.f32 %v3255, %v3688
        %v3727 = vld [vmem:[#allocation2 + $0x10] sm:$0x8]
        %s3728 = scalar_lea.vmem %s1, 512
        %v3729 = vld [vmem:[%s3728] sm:$0xf]
        %v3730 = vld [vmem:[%s3728 + $0x4] sm:$0xf]
        %v3731 = vld [vmem:[%s3728 + $0x8] sm:$0xf]
        %v3732 = vld [vmem:[%s3728 + $0xc] sm:$0xf]
        %v3733 = vld [vmem:[%s3728 + $0x10] sm:$0xf]
        %v3734 = vld [vmem:[%s3728 + $0x14] sm:$0xf]
        %v3735 = vld [vmem:[%s3728 + $0x18] sm:$0xf]
        %v3736 = vld [vmem:[%s3728 + $0x1c] sm:$0xf]
        %v3737 = vld [vmem:[%s3728 + $0x20] sm:$0xf]
        %v3738 = vld [vmem:[%s3728 + $0x24] sm:$0xf]
        %v3739 = vld [vmem:[%s3728 + $0x28] sm:$0xf]
        %v3740 = vld [vmem:[%s3728 + $0x2c] sm:$0xf]
        %v3741 = vld [vmem:[%s3728 + $0x30] sm:$0xf]
        %v3742 = vld [vmem:[%s3728 + $0x34] sm:$0xf]
        %v3743 = vld [vmem:[%s3728 + $0x38] sm:$0xf]
        %v3744 = vld [vmem:[%s3728 + $0x3c] sm:$0xf]
        %v3746 = vunpack.c.l.b16 %v3727
        %v3747 = vpack.c.b16 %v2885, %v3746
        %vm3748 = vcmask 1044480
        %v3749 = vrot.slane %v3747, 3
        %v3750 = vrot.slane %v2922, 3
        %v3751 = vsel %vm3748, %v3749, %v3750
        %v3752 = vrot.slane %v2923, 3
        %v3753 = vsel %vm3748, %v3750, %v3752
        %v3754 = vrot.slane %v2924, 3
        %v3755 = vsel %vm3748, %v3752, %v3754
        %v3756 = vrot.slane %v2925, 3
        %v3757 = vsel %vm3748, %v3754, %v3756
        %v3758 = vrot.slane %v2926, 3
        %v3759 = vsel %vm3748, %v3756, %v3758
        %v3760 = vrot.slane %v2927, 3
        %v3761 = vsel %vm3748, %v3758, %v3760
        %v3762 = vrot.slane %v2928, 3
        %v3763 = vsel %vm3748, %v3760, %v3762
        %v3764 = vrot.slane %v2929, 3
        %v3765 = vsel %vm3748, %v3762, %v3764
        %v3766 = vrot.slane %v2930, 3
        %v3767 = vsel %vm3748, %v3764, %v3766
        %v3768 = vrot.slane %v2931, 3
        %v3769 = vsel %vm3748, %v3766, %v3768
        %v3770 = vrot.slane %v2932, 3
        %v3771 = vsel %vm3748, %v3768, %v3770
        %v3772 = vrot.slane %v2933, 3
        %v3773 = vsel %vm3748, %v3770, %v3772
        %v3774 = vrot.slane %v2934, 3
        %v3775 = vsel %vm3748, %v3772, %v3774
        %v3776 = vrot.slane %v2935, 3
        %v3777 = vsel %vm3748, %v3774, %v3776
        %v3778 = vrot.slane %v2936, 3
        %v3779 = vsel %vm3748, %v3776, %v3778
        %v3780 = vrot.slane %v2937, 3
        %v3781 = vsel %vm3748, %v3778, %v3780
        %v3782 = vrot.slane %v2938, 3
        %v3783 = vsel %vm3748, %v3780, %v3782
        %v3784 = vrot.slane %v3276, 3
        %v3785 = vsel %vm3748, %v3782, %v3784
        %v3820 = vunpack.c.l.b16 %v3729
        %v3821 = vunpack.c.l.b16 %v3730
        %v3822 = vunpack.c.l.b16 %v3731
        %v3823 = vunpack.c.l.b16 %v3732
        %v3824 = vunpack.c.l.b16 %v3733
        %v3825 = vunpack.c.l.b16 %v3734
        %v3826 = vunpack.c.l.b16 %v3735
        %v3827 = vunpack.c.l.b16 %v3736
        %v3828 = vunpack.c.l.b16 %v3737
        %v3829 = vunpack.c.l.b16 %v3738
        %v3830 = vunpack.c.l.b16 %v3739
        %v3831 = vunpack.c.l.b16 %v3740
        %v3832 = vunpack.c.l.b16 %v3741
        %v3833 = vunpack.c.l.b16 %v3742
        %v3834 = vunpack.c.l.b16 %v3743
        %v3835 = vunpack.c.l.b16 %v3744
        %v3836 = vpack.c.b16 %v3821, %v3820
        %v3837 = vpack.c.b16 %v3823, %v3822
        %v3838 = vpack.c.b16 %v3825, %v3824
        %v3839 = vpack.c.b16 %v3827, %v3826
        %v3840 = vpack.c.b16 %v3829, %v3828
        %v3841 = vpack.c.b16 %v3831, %v3830
        %v3842 = vpack.c.b16 %v3833, %v3832
        %v3843 = vpack.c.b16 %v3835, %v3834
        %3852 = vmatprep.subr.bf16.mxu0 0
        %3853 = vmatpush1.bf16.msra.mxu0 %v3843
        %3854 = vmatprep.subr.bf16.mxu0 0
        %3855 = vmatpush1.bf16.msra.mxu0 %v3842
        %3856 = vmatprep.subr.bf16.mxu0 0
        %3857 = vmatpush1.bf16.msra.mxu0 %v3841
        %3858 = vmatprep.subr.bf16.mxu0 0
        %3859 = vmatpush1.bf16.msra.mxu0 %v3840
        %3860 = vmatprep.subr.bf16.mxu0 0
        %3861 = vmatpush1.bf16.msra.mxu0 %v3839
        %3862 = vmatprep.subr.bf16.mxu0 0
        %3863 = vmatpush1.bf16.msra.mxu0 %v3838
        %3864 = vmatprep.subr.bf16.mxu0 0
        %3865 = vmatpush1.bf16.msra.mxu0 %v3837
        %3866 = vmatprep.subr.bf16.mxu0 0
        %3867 = vmatpush1.bf16.msra.mxu0 %v3836
        %3868 = vmatprep.subr.bf16.mxu0 0
        %3869 = vmatpush2.bf16.msra.mxu0 0
        %3870 = vmatprep.subr.bf16.mxu0 0
        %3871 = vmatpush2.bf16.msra.mxu0 0
        %3872 = vmatprep.subr.bf16.mxu0 0
        %3873 = vmatpush2.bf16.msra.mxu0 0
        %3874 = vmatprep.subr.bf16.mxu0 0
        %3875 = vmatpush2.bf16.msra.mxu0 0
        %3876 = vmatprep.subr.bf16.mxu0 0
        %3877 = vmatpush2.bf16.msra.mxu0 0
        %3878 = vmatprep.subr.bf16.mxu0 0
        %3879 = vmatpush2.bf16.msra.mxu0 0
        %3880 = vmatprep.subr.bf16.mxu0 0
        %3881 = vmatpush2.bf16.msra.mxu0 0
        %3882 = vmatprep.subr.bf16.mxu0 0
        %3883 = vmatpush2.bf16.msra.mxu0 0
        %3884 = vmatprep.mubr.bf16.mxu0 0
        %3885 = vmatmul.mubr.bf16.gmra.mxu0 %v3751
        %v3886 = vpop.f32.mrf.mxu0
        %v3887 = vadd.f32 0.0, %v3886
        %v3888 = vpop.f32.mrf.mxu0
        %v3889 = vpop.f32.mrf.mxu0
        %v3890 = vadd.f32 0.0, %v3889
        %v3891 = vpop.f32.mrf.mxu0
        %3892 = vmatprep.mubr.bf16.mxu0 0
        %3893 = vmatmul.mubr.bf16.gmra.mxu0 %v3753
        %v3894 = vpop.f32.mrf.mxu0
        %v3895 = vadd.f32 0.0, %v3894
        %v3896 = vpop.f32.mrf.mxu0
        %v3897 = vpop.f32.mrf.mxu0
        %v3898 = vadd.f32 0.0, %v3897
        %v3899 = vpop.f32.mrf.mxu0
        %3900 = vmatprep.mubr.bf16.mxu0 0
        %3901 = vmatmul.mubr.bf16.gmra.mxu0 %v3755
        %v3902 = vpop.f32.mrf.mxu0
        %v3903 = vadd.f32 0.0, %v3902
        %v3904 = vpop.f32.mrf.mxu0
        %v3905 = vpop.f32.mrf.mxu0
        %v3906 = vadd.f32 0.0, %v3905
        %v3907 = vpop.f32.mrf.mxu0
        %3908 = vmatprep.mubr.bf16.mxu0 0
        %3909 = vmatmul.mubr.bf16.gmra.mxu0 %v3757
        %v3910 = vpop.f32.mrf.mxu0
        %v3911 = vadd.f32 0.0, %v3910
        %v3912 = vpop.f32.mrf.mxu0
        %v3913 = vpop.f32.mrf.mxu0
        %v3914 = vadd.f32 0.0, %v3913
        %v3915 = vpop.f32.mrf.mxu0
        %3916 = vmatprep.mubr.bf16.mxu0 0
        %3917 = vmatmul.mubr.bf16.gmra.mxu0 %v3759
        %v3918 = vpop.f32.mrf.mxu0
        %v3919 = vadd.f32 0.0, %v3918
        %v3920 = vpop.f32.mrf.mxu0
        %v3921 = vpop.f32.mrf.mxu0
        %v3922 = vadd.f32 0.0, %v3921
        %v3923 = vpop.f32.mrf.mxu0
        %3924 = vmatprep.mubr.bf16.mxu0 0
        %3925 = vmatmul.mubr.bf16.gmra.mxu0 %v3761
        %v3926 = vpop.f32.mrf.mxu0
        %v3927 = vadd.f32 0.0, %v3926
        %v3928 = vpop.f32.mrf.mxu0
        %v3929 = vpop.f32.mrf.mxu0
        %v3930 = vadd.f32 0.0, %v3929
        %v3931 = vpop.f32.mrf.mxu0
        %3932 = vmatprep.mubr.bf16.mxu0 0
        %3933 = vmatmul.mubr.bf16.gmra.mxu0 %v3763
        %v3934 = vpop.f32.mrf.mxu0
        %v3935 = vadd.f32 0.0, %v3934
        %v3936 = vpop.f32.mrf.mxu0
        %v3937 = vpop.f32.mrf.mxu0
        %v3938 = vadd.f32 0.0, %v3937
        %v3939 = vpop.f32.mrf.mxu0
        %3940 = vmatprep.mubr.bf16.mxu0 0
        %3941 = vmatmul.mubr.bf16.gmra.mxu0 %v3765
        %v3942 = vpop.f32.mrf.mxu0
        %v3943 = vadd.f32 0.0, %v3942
        %v3944 = vpop.f32.mrf.mxu0
        %v3945 = vpop.f32.mrf.mxu0
        %v3946 = vadd.f32 0.0, %v3945
        %v3947 = vpop.f32.mrf.mxu0
        %3948 = vmatprep.mubr.bf16.mxu0 0
        %3949 = vmatmul.mubr.bf16.gmra.mxu0 %v3767
        %v3950 = vpop.f32.mrf.mxu0
        %v3951 = vadd.f32 0.0, %v3950
        %v3952 = vpop.f32.mrf.mxu0
        %v3953 = vpop.f32.mrf.mxu0
        %v3954 = vadd.f32 0.0, %v3953
        %v3955 = vpop.f32.mrf.mxu0
        %3956 = vmatprep.mubr.bf16.mxu0 0
        %3957 = vmatmul.mubr.bf16.gmra.mxu0 %v3769
        %v3958 = vpop.f32.mrf.mxu0
        %v3959 = vadd.f32 0.0, %v3958
        %v3960 = vpop.f32.mrf.mxu0
        %v3961 = vpop.f32.mrf.mxu0
        %v3962 = vadd.f32 0.0, %v3961
        %v3963 = vpop.f32.mrf.mxu0
        %3964 = vmatprep.mubr.bf16.mxu0 0
        %3965 = vmatmul.mubr.bf16.gmra.mxu0 %v3771
        %v3966 = vpop.f32.mrf.mxu0
        %v3967 = vadd.f32 0.0, %v3966
        %v3968 = vpop.f32.mrf.mxu0
        %v3969 = vpop.f32.mrf.mxu0
        %v3970 = vadd.f32 0.0, %v3969
        %v3971 = vpop.f32.mrf.mxu0
        %3972 = vmatprep.mubr.bf16.mxu0 0
        %3973 = vmatmul.mubr.bf16.gmra.mxu0 %v3773
        %v3974 = vpop.f32.mrf.mxu0
        %v3975 = vadd.f32 0.0, %v3974
        %v3976 = vpop.f32.mrf.mxu0
        %v3977 = vpop.f32.mrf.mxu0
        %v3978 = vadd.f32 0.0, %v3977
        %v3979 = vpop.f32.mrf.mxu0
        %3980 = vmatprep.mubr.bf16.mxu0 0
        %3981 = vmatmul.mubr.bf16.gmra.mxu0 %v3775
        %v3982 = vpop.f32.mrf.mxu0
        %v3983 = vadd.f32 0.0, %v3982
        %v3984 = vpop.f32.mrf.mxu0
        %v3985 = vpop.f32.mrf.mxu0
        %v3986 = vadd.f32 0.0, %v3985
        %v3987 = vpop.f32.mrf.mxu0
        %3988 = vmatprep.mubr.bf16.mxu0 0
        %3989 = vmatmul.mubr.bf16.gmra.mxu0 %v3777
        %v3990 = vpop.f32.mrf.mxu0
        %v3991 = vadd.f32 0.0, %v3990
        %v3992 = vpop.f32.mrf.mxu0
        %v3993 = vpop.f32.mrf.mxu0
        %v3994 = vadd.f32 0.0, %v3993
        %v3995 = vpop.f32.mrf.mxu0
        %3996 = vmatprep.mubr.bf16.mxu0 0
        %3997 = vmatmul.mubr.bf16.gmra.mxu0 %v3779
        %v3998 = vpop.f32.mrf.mxu0
        %v3999 = vadd.f32 0.0, %v3998
        %v4000 = vpop.f32.mrf.mxu0
        %v4001 = vpop.f32.mrf.mxu0
        %v4002 = vadd.f32 0.0, %v4001
        %v4003 = vpop.f32.mrf.mxu0
        %4004 = vmatprep.mubr.bf16.mxu0 0
        %4005 = vmatmul.mubr.bf16.gmra.mxu0 %v3781
        %v4006 = vpop.f32.mrf.mxu0
        %v4007 = vadd.f32 0.0, %v4006
        %v4008 = vpop.f32.mrf.mxu0
        %v4009 = vpop.f32.mrf.mxu0
        %v4010 = vadd.f32 0.0, %v4009
        %v4011 = vpop.f32.mrf.mxu0
        %4012 = vmatprep.mubr.bf16.mxu0 0
        %4013 = vmatmul.mubr.bf16.gmra.mxu0 %v3783
        %v4014 = vpop.f32.mrf.mxu0
        %v4015 = vadd.f32 0.0, %v4014
        %v4016 = vpop.f32.mrf.mxu0
        %v4017 = vpop.f32.mrf.mxu0
        %v4018 = vadd.f32 0.0, %v4017
        %v4019 = vpop.f32.mrf.mxu0
        %4020 = vmatprep.mubr.bf16.mxu0 0
        %4021 = vmatmul.mubr.bf16.gmra.mxu0 %v3785
        %v4022 = vpop.f32.mrf.mxu0
        %v4023 = vadd.f32 0.0, %v4022
        %v4024 = vpop.f32.mrf.mxu0
        %v4025 = vpop.f32.mrf.mxu0
        %v4026 = vadd.f32 0.0, %v4025
        %v4027 = vpop.f32.mrf.mxu0
        %4028 = vdwg.mxu0
        %v4029 = vadd.f32 %v3691, %v3887
        %v4030 = vadd.f32 %v3692, %v3890
        %v4031 = vadd.f32 %v3693, %v3895
        %v4032 = vadd.f32 %v3694, %v3898
        %v4033 = vadd.f32 %v3695, %v3903
        %v4034 = vadd.f32 %v3696, %v3906
        %v4035 = vadd.f32 %v3697, %v3911
        %v4036 = vadd.f32 %v3698, %v3914
        %v4037 = vadd.f32 %v3699, %v3919
        %v4038 = vadd.f32 %v3700, %v3922
        %v4039 = vadd.f32 %v3701, %v3927
        %v4040 = vadd.f32 %v3702, %v3930
        %v4041 = vadd.f32 %v3703, %v3935
        %v4042 = vadd.f32 %v3704, %v3938
        %v4043 = vadd.f32 %v3705, %v3943
        %v4044 = vadd.f32 %v3706, %v3946
        %v4045 = vadd.f32 %v3707, %v3951
        %v4046 = vadd.f32 %v3708, %v3954
        %v4047 = vadd.f32 %v3709, %v3959
        %v4048 = vadd.f32 %v3710, %v3962
        %v4049 = vadd.f32 %v3711, %v3967
        %v4050 = vadd.f32 %v3712, %v3970
        %v4051 = vadd.f32 %v3713, %v3975
        %v4052 = vadd.f32 %v3714, %v3978
        %v4053 = vadd.f32 %v3715, %v3983
        %v4054 = vadd.f32 %v3716, %v3986
        %v4055 = vadd.f32 %v3717, %v3991
        %v4056 = vadd.f32 %v3718, %v3994
        %v4057 = vadd.f32 %v3719, %v3999
        %v4058 = vadd.f32 %v3720, %v4002
        %v4059 = vadd.f32 %v3721, %v4007
        %v4060 = vadd.f32 %v3722, %v4010
        %v4061 = vadd.f32 %v3723, %v4015
        %v4062 = vadd.f32 %v3724, %v4018
        %v4063 = vadd.f32 %v3725, %v4023
        %v4064 = vadd.f32 %v3726, %v4026
        %v4065 = vld [vmem:[%s2] sm:$0x1]
        %v4067 = vlaneseq
        %v4068 = vshrl.u32 %v4067, 7
        %v4069 = vsub.s32 0, %v4068
        %v4070 = vrot.slane %v4065, %v4069
        %v4072 = vadd.f32 %v4029, %v4070
        %v4073 = vadd.f32 %v4030, %v4070
        %v4074 = vadd.f32 %v4031, %v4070
        %v4075 = vadd.f32 %v4032, %v4070
        %v4076 = vadd.f32 %v4033, %v4070
        %v4077 = vadd.f32 %v4034, %v4070
        %v4078 = vadd.f32 %v4035, %v4070
        %v4079 = vadd.f32 %v4036, %v4070
        %v4080 = vadd.f32 %v4037, %v4070
        %v4081 = vadd.f32 %v4038, %v4070
        %v4082 = vadd.f32 %v4039, %v4070
        %v4083 = vadd.f32 %v4040, %v4070
        %v4084 = vadd.f32 %v4041, %v4070
        %v4085 = vadd.f32 %v4042, %v4070
        %v4086 = vadd.f32 %v4043, %v4070
        %v4087 = vadd.f32 %v4044, %v4070
        %v4088 = vadd.f32 %v4045, %v4070
        %v4089 = vadd.f32 %v4046, %v4070
        %v4090 = vadd.f32 %v4047, %v4070
        %v4091 = vadd.f32 %v4048, %v4070
        %v4092 = vadd.f32 %v4049, %v4070
        %v4093 = vadd.f32 %v4050, %v4070
        %v4094 = vadd.f32 %v4051, %v4070
        %v4095 = vadd.f32 %v4052, %v4070
        %v4096 = vadd.f32 %v4053, %v4070
        %v4097 = vadd.f32 %v4054, %v4070
        %v4098 = vadd.f32 %v4055, %v4070
        %v4099 = vadd.f32 %v4056, %v4070
        %v4100 = vadd.f32 %v4057, %v4070
        %v4101 = vadd.f32 %v4058, %v4070
        %v4102 = vadd.f32 %v4059, %v4070
        %v4103 = vadd.f32 %v4060, %v4070
        %v4104 = vadd.f32 %v4061, %v4070
        %v4105 = vadd.f32 %v4062, %v4070
        %v4106 = vadd.f32 %v4063, %v4070
        %v4107 = vadd.f32 %v4064, %v4070
        %v4108 = vmax.f32 %v4072, 0.0
        %v4109 = vmax.f32 %v4073, 0.0
        %v4110 = vmax.f32 %v4074, 0.0
        %v4111 = vmax.f32 %v4075, 0.0
        %v4112 = vmax.f32 %v4076, 0.0
        %v4113 = vmax.f32 %v4077, 0.0
        %v4114 = vmax.f32 %v4078, 0.0
        %v4115 = vmax.f32 %v4079, 0.0
        %v4116 = vmax.f32 %v4080, 0.0
        %v4117 = vmax.f32 %v4081, 0.0
        %v4118 = vmax.f32 %v4082, 0.0
        %v4119 = vmax.f32 %v4083, 0.0
        %v4120 = vmax.f32 %v4084, 0.0
        %v4121 = vmax.f32 %v4085, 0.0
        %v4122 = vmax.f32 %v4086, 0.0
        %v4123 = vmax.f32 %v4087, 0.0
        %v4124 = vmax.f32 %v4088, 0.0
        %v4125 = vmax.f32 %v4089, 0.0
        %v4126 = vmax.f32 %v4090, 0.0
        %v4127 = vmax.f32 %v4091, 0.0
        %v4128 = vmax.f32 %v4092, 0.0
        %v4129 = vmax.f32 %v4093, 0.0
        %v4130 = vmax.f32 %v4094, 0.0
        %v4131 = vmax.f32 %v4095, 0.0
        %v4132 = vmax.f32 %v4096, 0.0
        %v4133 = vmax.f32 %v4097, 0.0
        %v4134 = vmax.f32 %v4098, 0.0
        %v4135 = vmax.f32 %v4099, 0.0
        %v4136 = vmax.f32 %v4100, 0.0
        %v4137 = vmax.f32 %v4101, 0.0
        %v4138 = vmax.f32 %v4102, 0.0
        %v4139 = vmax.f32 %v4103, 0.0
        %v4140 = vmax.f32 %v4104, 0.0
        %v4141 = vmax.f32 %v4105, 0.0
        %v4142 = vmax.f32 %v4106, 0.0
        %v4143 = vmax.f32 %v4107, 0.0
        %4144 = vst [vmem:[#allocation3] sm:$0xff] %v4108
        %4145 = vst [vmem:[#allocation3 + $0x8] sm:$0xff] %v4109
        %4146 = vst [vmem:[#allocation3 + $0x10] sm:$0xff] %v4110
        %4147 = vst [vmem:[#allocation3 + $0x18] sm:$0xff] %v4111
        %4148 = vst [vmem:[#allocation3 + $0x20] sm:$0xff] %v4112
        %4149 = vst [vmem:[#allocation3 + $0x28] sm:$0xff] %v4113
        %4150 = vst [vmem:[#allocation3 + $0x30] sm:$0xff] %v4114
        %4151 = vst [vmem:[#allocation3 + $0x38] sm:$0xff] %v4115
        %4152 = vst [vmem:[#allocation3 + $0x40] sm:$0xff] %v4116
        %4153 = vst [vmem:[#allocation3 + $0x48] sm:$0xff] %v4117
        %4154 = vst [vmem:[#allocation3 + $0x50] sm:$0xff] %v4118
        %4155 = vst [vmem:[#allocation3 + $0x58] sm:$0xff] %v4119
        %4156 = vst [vmem:[#allocation3 + $0x60] sm:$0xff] %v4120
        %4157 = vst [vmem:[#allocation3 + $0x68] sm:$0xff] %v4121
        %4158 = vst [vmem:[#allocation3 + $0x70] sm:$0xff] %v4122
        %4159 = vst [vmem:[#allocation3 + $0x78] sm:$0xff] %v4123
        %4160 = vst [vmem:[#allocation3 + $0x80] sm:$0xff] %v4124
        %4161 = vst [vmem:[#allocation3 + $0x88] sm:$0xff] %v4125
        %4162 = vst [vmem:[#allocation3 + $0x90] sm:$0xff] %v4126
        %4163 = vst [vmem:[#allocation3 + $0x98] sm:$0xff] %v4127
        %4164 = vst [vmem:[#allocation3 + $0xa0] sm:$0xff] %v4128
        %4165 = vst [vmem:[#allocation3 + $0xa8] sm:$0xff] %v4129
        %4166 = vst [vmem:[#allocation3 + $0xb0] sm:$0xff] %v4130
        %4167 = vst [vmem:[#allocation3 + $0xb8] sm:$0xff] %v4131
        %4168 = vst [vmem:[#allocation3 + $0xc0] sm:$0xff] %v4132
        %4169 = vst [vmem:[#allocation3 + $0xc8] sm:$0xff] %v4133
        %4170 = vst [vmem:[#allocation3 + $0xd0] sm:$0xff] %v4134
        %4171 = vst [vmem:[#allocation3 + $0xd8] sm:$0xff] %v4135
        %4172 = vst [vmem:[#allocation3 + $0xe0] sm:$0xff] %v4136
        %4173 = vst [vmem:[#allocation3 + $0xe8] sm:$0xff] %v4137
        %4174 = vst [vmem:[#allocation3 + $0xf0] sm:$0xff] %v4138
        %4175 = vst [vmem:[#allocation3 + $0xf8] sm:$0xff] %v4139
        %4176 = vst [vmem:[#allocation3 + $0x100] sm:$0xff] %v4140
        %4177 = vst [vmem:[#allocation3 + $0x108] sm:$0xff] %v4141
        %4178 = vst [vmem:[#allocation3 + $0x110] sm:$0xff] %v4142
        %4179 = vst [vmem:[#allocation3 + $0x118] sm:$0xff] %v4143
        %v4180 = vld [vmem:[#allocation3] sm:$0xff]
        %v4181 = vld [vmem:[#allocation3 + $0x8] sm:$0xff]
        %v4182 = vld [vmem:[#allocation3 + $0x10] sm:$0xff]
        %v4183 = vld [vmem:[#allocation3 + $0x18] sm:$0xff]
        %v4184 = vld [vmem:[#allocation3 + $0x20] sm:$0xff]
        %v4185 = vld [vmem:[#allocation3 + $0x28] sm:$0xff]
        %v4186 = vld [vmem:[#allocation3 + $0x30] sm:$0xff]
        %v4187 = vld [vmem:[#allocation3 + $0x38] sm:$0xff]
        %v4188 = vld [vmem:[#allocation3 + $0x40] sm:$0xff]
        %v4189 = vld [vmem:[#allocation3 + $0x48] sm:$0xff]
        %v4190 = vld [vmem:[#allocation3 + $0x50] sm:$0xff]
        %v4191 = vld [vmem:[#allocation3 + $0x58] sm:$0xff]
        %v4192 = vld [vmem:[#allocation3 + $0x60] sm:$0xff]
        %v4193 = vld [vmem:[#allocation3 + $0x68] sm:$0xff]
        %v4194 = vld [vmem:[#allocation3 + $0x70] sm:$0xff]
        %v4195 = vld [vmem:[#allocation3 + $0x78] sm:$0xff]
        %v4196 = vld [vmem:[#allocation3 + $0x80] sm:$0xff]
        %v4197 = vld [vmem:[#allocation3 + $0x88] sm:$0xff]
        %v4198 = vld [vmem:[#allocation3 + $0x90] sm:$0xff]
        %v4199 = vld [vmem:[#allocation3 + $0x98] sm:$0xff]
        %v4200 = vld [vmem:[#allocation3 + $0xa0] sm:$0xff]
        %v4201 = vld [vmem:[#allocation3 + $0xa8] sm:$0xff]
        %v4202 = vld [vmem:[#allocation3 + $0xb0] sm:$0xff]
        %v4203 = vld [vmem:[#allocation3 + $0xb8] sm:$0xff]
        %v4204 = vld [vmem:[#allocation3 + $0xc0] sm:$0xff]
        %v4205 = vld [vmem:[#allocation3 + $0xc8] sm:$0xff]
        %v4206 = vld [vmem:[#allocation3 + $0xd0] sm:$0xff]
        %v4207 = vld [vmem:[#allocation3 + $0xd8] sm:$0xff]
        %v4208 = vld [vmem:[#allocation3 + $0xe0] sm:$0xff]
        %v4209 = vld [vmem:[#allocation3 + $0xe8] sm:$0xff]
        %v4210 = vld [vmem:[#allocation3 + $0xf0] sm:$0xff]
        %v4211 = vld [vmem:[#allocation3 + $0xf8] sm:$0xff]
        %v4212 = vld [vmem:[#allocation3 + $0x100] sm:$0xff]
        %v4213 = vld [vmem:[#allocation3 + $0x108] sm:$0x1f]
        %v4214 = vld [vmem:[#allocation3 + $0x1] sm:$0xff]
        %v4215 = vld [vmem:[#allocation3 + $0x9] sm:$0xff]
        %v4216 = vld [vmem:[#allocation3 + $0x11] sm:$0xff]
        %v4217 = vld [vmem:[#allocation3 + $0x19] sm:$0xff]
        %v4218 = vld [vmem:[#allocation3 + $0x21] sm:$0xff]
        %v4219 = vld [vmem:[#allocation3 + $0x29] sm:$0xff]
        %v4220 = vld [vmem:[#allocation3 + $0x31] sm:$0xff]
        %v4221 = vld [vmem:[#allocation3 + $0x39] sm:$0xff]
        %v4222 = vld [vmem:[#allocation3 + $0x41] sm:$0xff]
        %v4223 = vld [vmem:[#allocation3 + $0x49] sm:$0xff]
        %v4224 = vld [vmem:[#allocation3 + $0x51] sm:$0xff]
        %v4225 = vld [vmem:[#allocation3 + $0x59] sm:$0xff]
        %v4226 = vld [vmem:[#allocation3 + $0x61] sm:$0xff]
        %v4227 = vld [vmem:[#allocation3 + $0x69] sm:$0xff]
        %v4228 = vld [vmem:[#allocation3 + $0x71] sm:$0xff]
        %v4229 = vld [vmem:[#allocation3 + $0x79] sm:$0xff]
        %v4230 = vld [vmem:[#allocation3 + $0x81] sm:$0xff]
        %v4231 = vld [vmem:[#allocation3 + $0x89] sm:$0xff]
        %v4232 = vld [vmem:[#allocation3 + $0x91] sm:$0xff]
        %v4233 = vld [vmem:[#allocation3 + $0x99] sm:$0xff]
        %v4234 = vld [vmem:[#allocation3 + $0xa1] sm:$0xff]
        %v4235 = vld [vmem:[#allocation3 + $0xa9] sm:$0xff]
        %v4236 = vld [vmem:[#allocation3 + $0xb1] sm:$0xff]
        %v4237 = vld [vmem:[#allocation3 + $0xb9] sm:$0xff]
        %v4238 = vld [vmem:[#allocation3 + $0xc1] sm:$0xff]
        %v4239 = vld [vmem:[#allocation3 + $0xc9] sm:$0xff]
        %v4240 = vld [vmem:[#allocation3 + $0xd1] sm:$0xff]
        %v4241 = vld [vmem:[#allocation3 + $0xd9] sm:$0xff]
        %v4242 = vld [vmem:[#allocation3 + $0xe1] sm:$0xff]
        %v4243 = vld [vmem:[#allocation3 + $0xe9] sm:$0xff]
        %v4244 = vld [vmem:[#allocation3 + $0xf1] sm:$0xff]
        %v4245 = vld [vmem:[#allocation3 + $0xf9] sm:$0xff]
        %v4246 = vld [vmem:[#allocation3 + $0x101] sm:$0xff]
        %v4247 = vld [vmem:[#allocation3 + $0x109] sm:$0x1f]
        %v4248 = vmax.f32 %v4180, %v4214
        %v4249 = vmax.f32 %v4181, %v4215
        %v4250 = vmax.f32 %v4182, %v4216
        %v4251 = vmax.f32 %v4183, %v4217
        %v4252 = vmax.f32 %v4184, %v4218
        %v4253 = vmax.f32 %v4185, %v4219
        %v4254 = vmax.f32 %v4186, %v4220
        %v4255 = vmax.f32 %v4187, %v4221
        %v4256 = vmax.f32 %v4188, %v4222
        %v4257 = vmax.f32 %v4189, %v4223
        %v4258 = vmax.f32 %v4190, %v4224
        %v4259 = vmax.f32 %v4191, %v4225
        %v4260 = vmax.f32 %v4192, %v4226
        %v4261 = vmax.f32 %v4193, %v4227
        %v4262 = vmax.f32 %v4194, %v4228
        %v4263 = vmax.f32 %v4195, %v4229
        %v4264 = vmax.f32 %v4196, %v4230
        %v4265 = vmax.f32 %v4197, %v4231
        %v4266 = vmax.f32 %v4198, %v4232
        %v4267 = vmax.f32 %v4199, %v4233
        %v4268 = vmax.f32 %v4200, %v4234
        %v4269 = vmax.f32 %v4201, %v4235
        %v4270 = vmax.f32 %v4202, %v4236
        %v4271 = vmax.f32 %v4203, %v4237
        %v4272 = vmax.f32 %v4204, %v4238
        %v4273 = vmax.f32 %v4205, %v4239
        %v4274 = vmax.f32 %v4206, %v4240
        %v4275 = vmax.f32 %v4207, %v4241
        %v4276 = vmax.f32 %v4208, %v4242
        %v4277 = vmax.f32 %v4209, %v4243
        %v4278 = vmax.f32 %v4210, %v4244
        %v4279 = vmax.f32 %v4211, %v4245
        %v4280 = vmax.f32 %v4212, %v4246
        %v4281 = vmax.f32 %v4213, %v4247
        %v4282 = vld [vmem:[#allocation3 + $0x12] sm:$0xff]
        %v4283 = vld [vmem:[#allocation3 + $0x1a] sm:$0xff]
        %v4284 = vld [vmem:[#allocation3 + $0x22] sm:$0xff]
        %v4285 = vld [vmem:[#allocation3 + $0x2a] sm:$0xff]
        %v4286 = vld [vmem:[#allocation3 + $0x32] sm:$0xff]
        %v4287 = vld [vmem:[#allocation3 + $0x3a] sm:$0xff]
        %v4288 = vld [vmem:[#allocation3 + $0x42] sm:$0xff]
        %v4289 = vld [vmem:[#allocation3 + $0x4a] sm:$0xff]
        %v4290 = vld [vmem:[#allocation3 + $0x52] sm:$0xff]
        %v4291 = vld [vmem:[#allocation3 + $0x5a] sm:$0xff]
        %v4292 = vld [vmem:[#allocation3 + $0x62] sm:$0xff]
        %v4293 = vld [vmem:[#allocation3 + $0x6a] sm:$0xff]
        %v4294 = vld [vmem:[#allocation3 + $0x72] sm:$0xff]
        %v4295 = vld [vmem:[#allocation3 + $0x7a] sm:$0xff]
        %v4296 = vld [vmem:[#allocation3 + $0x82] sm:$0xff]
        %v4297 = vld [vmem:[#allocation3 + $0x8a] sm:$0xff]
        %v4298 = vld [vmem:[#allocation3 + $0x92] sm:$0xff]
        %v4299 = vld [vmem:[#allocation3 + $0x9a] sm:$0xff]
        %v4300 = vld [vmem:[#allocation3 + $0xa2] sm:$0xff]
        %v4301 = vld [vmem:[#allocation3 + $0xaa] sm:$0xff]
        %v4302 = vld [vmem:[#allocation3 + $0xb2] sm:$0xff]
        %v4303 = vld [vmem:[#allocation3 + $0xba] sm:$0xff]
        %v4304 = vld [vmem:[#allocation3 + $0xc2] sm:$0xff]
        %v4305 = vld [vmem:[#allocation3 + $0xca] sm:$0xff]
        %v4306 = vld [vmem:[#allocation3 + $0xd2] sm:$0xff]
        %v4307 = vld [vmem:[#allocation3 + $0xda] sm:$0xff]
        %v4308 = vld [vmem:[#allocation3 + $0xe2] sm:$0xff]
        %v4309 = vld [vmem:[#allocation3 + $0xea] sm:$0xff]
        %v4310 = vld [vmem:[#allocation3 + $0xf2] sm:$0xff]
        %v4311 = vld [vmem:[#allocation3 + $0xfa] sm:$0xff]
        %v4312 = vld [vmem:[#allocation3 + $0x102] sm:$0xff]
        %v4313 = vld [vmem:[#allocation3 + $0x10a] sm:$0xff]
        %v4314 = vld [vmem:[#allocation3 + $0x112] sm:$0xff]
        %v4315 = vld [vmem:[#allocation3 + $0x11a] sm:$0x1f]
        %v4316 = vld [vmem:[#allocation3 + $0x13] sm:$0xff]
        %v4317 = vld [vmem:[#allocation3 + $0x1b] sm:$0xff]
        %v4318 = vld [vmem:[#allocation3 + $0x23] sm:$0xff]
        %v4319 = vld [vmem:[#allocation3 + $0x2b] sm:$0xff]
        %v4320 = vld [vmem:[#allocation3 + $0x33] sm:$0xff]
        %v4321 = vld [vmem:[#allocation3 + $0x3b] sm:$0xff]
        %v4322 = vld [vmem:[#allocation3 + $0x43] sm:$0xff]
        %v4323 = vld [vmem:[#allocation3 + $0x4b] sm:$0xff]
        %v4324 = vld [vmem:[#allocation3 + $0x53] sm:$0xff]
        %v4325 = vld [vmem:[#allocation3 + $0x5b] sm:$0xff]
        %v4326 = vld [vmem:[#allocation3 + $0x63] sm:$0xff]
        %v4327 = vld [vmem:[#allocation3 + $0x6b] sm:$0xff]
        %v4328 = vld [vmem:[#allocation3 + $0x73] sm:$0xff]
        %v4329 = vld [vmem:[#allocation3 + $0x7b] sm:$0xff]
        %v4330 = vld [vmem:[#allocation3 + $0x83] sm:$0xff]
        %v4331 = vld [vmem:[#allocation3 + $0x8b] sm:$0xff]
        %v4332 = vld [vmem:[#allocation3 + $0x93] sm:$0xff]
        %v4333 = vld [vmem:[#allocation3 + $0x9b] sm:$0xff]
        %v4334 = vld [vmem:[#allocation3 + $0xa3] sm:$0xff]
        %v4335 = vld [vmem:[#allocation3 + $0xab] sm:$0xff]
        %v4336 = vld [vmem:[#allocation3 + $0xb3] sm:$0xff]
        %v4337 = vld [vmem:[#allocation3 + $0xbb] sm:$0xff]
        %v4338 = vld [vmem:[#allocation3 + $0xc3] sm:$0xff]
        %v4339 = vld [vmem:[#allocation3 + $0xcb] sm:$0xff]
        %v4340 = vld [vmem:[#allocation3 + $0xd3] sm:$0xff]
        %v4341 = vld [vmem:[#allocation3 + $0xdb] sm:$0xff]
        %v4342 = vld [vmem:[#allocation3 + $0xe3] sm:$0xff]
        %v4343 = vld [vmem:[#allocation3 + $0xeb] sm:$0xff]
        %v4344 = vld [vmem:[#allocation3 + $0xf3] sm:$0xff]
        %v4345 = vld [vmem:[#allocation3 + $0xfb] sm:$0xff]
        %v4346 = vld [vmem:[#allocation3 + $0x103] sm:$0xff]
        %v4347 = vld [vmem:[#allocation3 + $0x10b] sm:$0xff]
        %v4348 = vld [vmem:[#allocation3 + $0x113] sm:$0xff]
        %v4349 = vld [vmem:[#allocation3 + $0x11b] sm:$0x1f]
        %v4350 = vmax.f32 %v4282, %v4316
        %v4351 = vmax.f32 %v4283, %v4317
        %v4352 = vmax.f32 %v4284, %v4318
        %v4353 = vmax.f32 %v4285, %v4319
        %v4354 = vmax.f32 %v4286, %v4320
        %v4355 = vmax.f32 %v4287, %v4321
        %v4356 = vmax.f32 %v4288, %v4322
        %v4357 = vmax.f32 %v4289, %v4323
        %v4358 = vmax.f32 %v4290, %v4324
        %v4359 = vmax.f32 %v4291, %v4325
        %v4360 = vmax.f32 %v4292, %v4326
        %v4361 = vmax.f32 %v4293, %v4327
        %v4362 = vmax.f32 %v4294, %v4328
        %v4363 = vmax.f32 %v4295, %v4329
        %v4364 = vmax.f32 %v4296, %v4330
        %v4365 = vmax.f32 %v4297, %v4331
        %v4366 = vmax.f32 %v4298, %v4332
        %v4367 = vmax.f32 %v4299, %v4333
        %v4368 = vmax.f32 %v4300, %v4334
        %v4369 = vmax.f32 %v4301, %v4335
        %v4370 = vmax.f32 %v4302, %v4336
        %v4371 = vmax.f32 %v4303, %v4337
        %v4372 = vmax.f32 %v4304, %v4338
        %v4373 = vmax.f32 %v4305, %v4339
        %v4374 = vmax.f32 %v4306, %v4340
        %v4375 = vmax.f32 %v4307, %v4341
        %v4376 = vmax.f32 %v4308, %v4342
        %v4377 = vmax.f32 %v4309, %v4343
        %v4378 = vmax.f32 %v4310, %v4344
        %v4379 = vmax.f32 %v4311, %v4345
        %v4380 = vmax.f32 %v4312, %v4346
        %v4381 = vmax.f32 %v4313, %v4347
        %v4382 = vmax.f32 %v4314, %v4348
        %v4383 = vmax.f32 %v4315, %v4349
        %v4384 = vmax.f32 %v4248, %v4350
        %v4385 = vmax.f32 %v4249, %v4351
        %v4386 = vmax.f32 %v4250, %v4352
        %v4387 = vmax.f32 %v4251, %v4353
        %v4388 = vmax.f32 %v4252, %v4354
        %v4389 = vmax.f32 %v4253, %v4355
        %v4390 = vmax.f32 %v4254, %v4356
        %v4391 = vmax.f32 %v4255, %v4357
        %v4392 = vmax.f32 %v4256, %v4358
        %v4393 = vmax.f32 %v4257, %v4359
        %v4394 = vmax.f32 %v4258, %v4360
        %v4395 = vmax.f32 %v4259, %v4361
        %v4396 = vmax.f32 %v4260, %v4362
        %v4397 = vmax.f32 %v4261, %v4363
        %v4398 = vmax.f32 %v4262, %v4364
        %v4399 = vmax.f32 %v4263, %v4365
        %v4400 = vmax.f32 %v4264, %v4366
        %v4401 = vmax.f32 %v4265, %v4367
        %v4402 = vmax.f32 %v4266, %v4368
        %v4403 = vmax.f32 %v4267, %v4369
        %v4404 = vmax.f32 %v4268, %v4370
        %v4405 = vmax.f32 %v4269, %v4371
        %v4406 = vmax.f32 %v4270, %v4372
        %v4407 = vmax.f32 %v4271, %v4373
        %v4408 = vmax.f32 %v4272, %v4374
        %v4409 = vmax.f32 %v4273, %v4375
        %v4410 = vmax.f32 %v4274, %v4376
        %v4411 = vmax.f32 %v4275, %v4377
        %v4412 = vmax.f32 %v4276, %v4378
        %v4413 = vmax.f32 %v4277, %v4379
        %v4414 = vmax.f32 %v4278, %v4380
        %v4415 = vmax.f32 %v4279, %v4381
        %v4416 = vmax.f32 %v4280, %v4382
        %v4417 = vmax.f32 %v4281, %v4383
        %4418 = vst [vmem:[#allocation3] sm:$0xff] %v4384
        %4419 = vst [vmem:[#allocation3 + $0x8] sm:$0xff] %v4385
        %4420 = vst [vmem:[#allocation3 + $0x10] sm:$0xff] %v4386
        %4421 = vst [vmem:[#allocation3 + $0x18] sm:$0xff] %v4387
        %4422 = vst [vmem:[#allocation3 + $0x20] sm:$0xff] %v4388
        %4423 = vst [vmem:[#allocation3 + $0x28] sm:$0xff] %v4389
        %4424 = vst [vmem:[#allocation3 + $0x30] sm:$0xff] %v4390
        %4425 = vst [vmem:[#allocation3 + $0x38] sm:$0xff] %v4391
        %4426 = vst [vmem:[#allocation3 + $0x40] sm:$0xff] %v4392
        %4427 = vst [vmem:[#allocation3 + $0x48] sm:$0xff] %v4393
        %4428 = vst [vmem:[#allocation3 + $0x50] sm:$0xff] %v4394
        %4429 = vst [vmem:[#allocation3 + $0x58] sm:$0xff] %v4395
        %4430 = vst [vmem:[#allocation3 + $0x60] sm:$0xff] %v4396
        %4431 = vst [vmem:[#allocation3 + $0x68] sm:$0xff] %v4397
        %4432 = vst [vmem:[#allocation3 + $0x70] sm:$0xff] %v4398
        %4433 = vst [vmem:[#allocation3 + $0x78] sm:$0xff] %v4399
        %4434 = vst [vmem:[#allocation3 + $0x80] sm:$0xff] %v4400
        %4435 = vst [vmem:[#allocation3 + $0x88] sm:$0xff] %v4401
        %4436 = vst [vmem:[#allocation3 + $0x90] sm:$0xff] %v4402
        %4437 = vst [vmem:[#allocation3 + $0x98] sm:$0xff] %v4403
        %4438 = vst [vmem:[#allocation3 + $0xa0] sm:$0xff] %v4404
        %4439 = vst [vmem:[#allocation3 + $0xa8] sm:$0xff] %v4405
        %4440 = vst [vmem:[#allocation3 + $0xb0] sm:$0xff] %v4406
        %4441 = vst [vmem:[#allocation3 + $0xb8] sm:$0xff] %v4407
        %4442 = vst [vmem:[#allocation3 + $0xc0] sm:$0xff] %v4408
        %4443 = vst [vmem:[#allocation3 + $0xc8] sm:$0xff] %v4409
        %4444 = vst [vmem:[#allocation3 + $0xd0] sm:$0xff] %v4410
        %4445 = vst [vmem:[#allocation3 + $0xd8] sm:$0xff] %v4411
        %4446 = vst [vmem:[#allocation3 + $0xe0] sm:$0xff] %v4412
        %4447 = vst [vmem:[#allocation3 + $0xe8] sm:$0xff] %v4413
        %4448 = vst [vmem:[#allocation3 + $0xf0] sm:$0xff] %v4414
        %4449 = vst [vmem:[#allocation3 + $0xf8] sm:$0xff] %v4415
        %4450 = vst [vmem:[#allocation3 + $0x100] sm:$0xff] %v4416
        %4451 = vst [vmem:[#allocation3 + $0x108] sm:$0x1f] %v4417
        %4452 = vst [vmem:[#allocation2] sm:$0xf] 0
        %4453 = vst [vmem:[#allocation2 + $0x4] sm:$0x3] 0
        %4454 = vst [vmem:[#allocation2 + $0x2c] sm:$0xe] 0
        %4455 = vst [vmem:[#allocation2 + $0x30] sm:$0x7] 0
        %s4456 = scalar_lea.vmem [#allocation3], 1
        %v4457 = vld [vmem:[%s4456] ss:$2 sm:$0xff]
        %v4458 = vpack.c.bf16 %v4457, %v4457
        %v4460 = vunpack.c.l.b16 %v4458
        %v4461 = vpack.c.b16 %v4460, %v4460
        %v4462 = vrot.slane %v4461, 6
        %v4463 = vrot.slane %v4462, 4
        %4466 = vst [vmem:[#allocation2 + $0x4] sm:$0xc] %v4462
        %4467 = vst [vmem:[#allocation2 + $0x8] sm:$0x3] %v4463
        %4468 = vst [vmem:[#allocation2 + $0x8] sm:$0x4] 0
        %s4469 = scalar_lea.vmem [#allocation3], 37
        %v4470 = vld [vmem:[%s4469] ss:$2 sm:$0xff]
        %v4471 = vpack.c.bf16 %v4470, %v4470
        %v4473 = vunpack.c.l.b16 %v4471
        %v4474 = vpack.c.b16 %v4473, %v4473
        %v4475 = vrot.slane %v4474, 5
        %v4476 = vrot.slane %v4475, 4
        %4479 = vst [vmem:[#allocation2 + $0x8] sm:$0x8] %v4475
        %4480 = vst [vmem:[#allocation2 + $0xc] sm:$0x7] %v4476
        %4481 = vst [vmem:[#allocation2 + $0xc] sm:$0x8] 0
        %s4482 = scalar_lea.vmem [#allocation3], 73
        %v4483 = vld [vmem:[%s4482] ss:$2 sm:$0xff]
        %v4484 = vpack.c.bf16 %v4483, %v4483
        %4485 = vst [vmem:[#allocation2 + $0x10] sm:$0xf] %v4484
        %4486 = vst [vmem:[#allocation2 + $0x14] sm:$0x1] 0
        %s4487 = scalar_lea.vmem [#allocation3], 109
        %v4488 = vld [vmem:[%s4487] ss:$2 sm:$0xff]
        %v4489 = vpack.c.bf16 %v4488, %v4488
        %v4491 = vunpack.c.l.b16 %v4489
        %v4492 = vpack.c.b16 %v4491, %v4491
        %v4493 = vrot.slane %v4492, 7
        %v4494 = vrot.slane %v4493, 4
        %4497 = vst [vmem:[#allocation2 + $0x14] sm:$0xe] %v4493
        %4498 = vst [vmem:[#allocation2 + $0x18] sm:$0x1] %v4494
        %4499 = vst [vmem:[#allocation2 + $0x18] sm:$0x2] 0
        %s4500 = scalar_lea.vmem [#allocation3], 145
        %v4501 = vld [vmem:[%s4500] ss:$2 sm:$0xff]
        %v4502 = vpack.c.bf16 %v4501, %v4501
        %v4504 = vunpack.c.l.b16 %v4502
        %v4505 = vpack.c.b16 %v4504, %v4504
        %v4506 = vrot.slane %v4505, 6
        %v4507 = vrot.slane %v4506, 4
        %4510 = vst [vmem:[#allocation2 + $0x18] sm:$0xc] %v4506
        %4511 = vst [vmem:[#allocation2 + $0x1c] sm:$0x3] %v4507
        %4512 = vst [vmem:[#allocation2 + $0x1c] sm:$0x4] 0
        %s4513 = scalar_lea.vmem [#allocation3], 181
        %v4514 = vld [vmem:[%s4513] ss:$2 sm:$0xff]
        %v4515 = vpack.c.bf16 %v4514, %v4514
        %v4517 = vunpack.c.l.b16 %v4515
        %v4518 = vpack.c.b16 %v4517, %v4517
        %v4519 = vrot.slane %v4518, 5
        %v4520 = vrot.slane %v4519, 4
        %4523 = vst [vmem:[#allocation2 + $0x1c] sm:$0x8] %v4519
        %4524 = vst [vmem:[#allocation2 + $0x20] sm:$0x7] %v4520
        %4525 = vst [vmem:[#allocation2 + $0x20] sm:$0x8] 0
        %s4526 = scalar_lea.vmem [#allocation3], 217
        %v4527 = vld [vmem:[%s4526] ss:$2 sm:$0xff]
        %v4528 = vpack.c.bf16 %v4527, %v4527
        %4529 = vst [vmem:[#allocation2 + $0x24] sm:$0xf] %v4528
        %4530 = vst [vmem:[#allocation2 + $0x28] sm:$0x1] 0
        %s4531 = scalar_lea.vmem [#allocation3], 253
        %v4532 = vld [vmem:[%s4531] ss:$2 sm:$0xff]
        %v4533 = vpack.c.bf16 %v4532, %v4532
        %v4535 = vunpack.c.l.b16 %v4533
        %v4536 = vpack.c.b16 %v4535, %v4535
        %v4537 = vrot.slane %v4536, 7
        %v4538 = vrot.slane %v4537, 4
        %4541 = vst [vmem:[#allocation2 + $0x28] sm:$0xe] %v4537
        %4542 = vst [vmem:[#allocation2 + $0x2c] sm:$0x1] %v4538
        %v4543 = vld [vmem:[#allocation2] sm:$0xf]
        %v4544 = vld [vmem:[#allocation2 + $0x4] sm:$0xf]
        %v4545 = vld [vmem:[#allocation2 + $0x8] sm:$0xf]
        %v4546 = vld [vmem:[#allocation2 + $0xc] sm:$0xf]
        %v4547 = vld [vmem:[#allocation2 + $0x10] sm:$0xf]
        %v4548 = vld [vmem:[#allocation2 + $0x14] sm:$0xf]
        %v4549 = vld [vmem:[#allocation2 + $0x18] sm:$0xf]
        %v4550 = vld [vmem:[#allocation2 + $0x1c] sm:$0xf]
        %v4551 = vld [vmem:[#allocation2 + $0x20] sm:$0xf]
        %v4552 = vld [vmem:[#allocation2 + $0x24] sm:$0xf]
        %s4553 = scalar_lea.vmem %s1, 576
        %v4554 = vld [vmem:[%s4553] sm:$0xf]
        %v4555 = vld [vmem:[%s4553 + $0x4] sm:$0xf]
        %v4556 = vld [vmem:[%s4553 + $0x8] sm:$0xf]
        %v4557 = vld [vmem:[%s4553 + $0xc] sm:$0xf]
        %v4558 = vld [vmem:[%s4553 + $0x10] sm:$0xf]
        %v4559 = vld [vmem:[%s4553 + $0x14] sm:$0xf]
        %v4560 = vld [vmem:[%s4553 + $0x18] sm:$0xf]
        %v4561 = vld [vmem:[%s4553 + $0x1c] sm:$0xf]
        %v4562 = vld [vmem:[%s4553 + $0x20] sm:$0xf]
        %v4563 = vld [vmem:[%s4553 + $0x24] sm:$0xf]
        %v4564 = vld [vmem:[%s4553 + $0x28] sm:$0xf]
        %v4565 = vld [vmem:[%s4553 + $0x2c] sm:$0xf]
        %v4566 = vld [vmem:[%s4553 + $0x30] sm:$0xf]
        %v4567 = vld [vmem:[%s4553 + $0x34] sm:$0xf]
        %v4568 = vld [vmem:[%s4553 + $0x38] sm:$0xf]
        %v4569 = vld [vmem:[%s4553 + $0x3c] sm:$0xf]
        %v4570 = vld [vmem:[#allocation2 + $0x28] sm:$0x1]
        %s4571 = scalar_lea.vmem %s1, 640
        %v4572 = vld [vmem:[%s4571] sm:$0xf]
        %v4573 = vld [vmem:[%s4571 + $0x4] sm:$0xf]
        %v4574 = vld [vmem:[%s4571 + $0x8] sm:$0xf]
        %v4575 = vld [vmem:[%s4571 + $0xc] sm:$0xf]
        %v4576 = vld [vmem:[%s4571 + $0x10] sm:$0xf]
        %v4577 = vld [vmem:[%s4571 + $0x14] sm:$0xf]
        %v4578 = vld [vmem:[%s4571 + $0x18] sm:$0xf]
        %v4579 = vld [vmem:[%s4571 + $0x1c] sm:$0xf]
        %v4580 = vld [vmem:[%s4571 + $0x20] sm:$0xf]
        %v4581 = vld [vmem:[%s4571 + $0x24] sm:$0xf]
        %v4582 = vld [vmem:[%s4571 + $0x28] sm:$0xf]
        %v4583 = vld [vmem:[%s4571 + $0x2c] sm:$0xf]
        %v4584 = vld [vmem:[%s4571 + $0x30] sm:$0xf]
        %v4585 = vld [vmem:[%s4571 + $0x34] sm:$0xf]
        %v4586 = vld [vmem:[%s4571 + $0x38] sm:$0xf]
        %v4587 = vld [vmem:[%s4571 + $0x3c] sm:$0xf]
        %v4599 = vunpack.c.l.b16 %v4543
        %v4600 = vunpack.c.l.b16 %v4544
        %v4601 = vunpack.c.l.b16 %v4545
        %v4602 = vunpack.c.l.b16 %v4546
        %v4603 = vunpack.c.l.b16 %v4547
        %v4604 = vunpack.c.l.b16 %v4548
        %v4605 = vunpack.c.l.b16 %v4549
        %v4606 = vunpack.c.l.b16 %v4550
        %v4607 = vunpack.c.l.b16 %v4551
        %v4608 = vunpack.c.l.b16 %v4552
        %v4609 = vunpack.c.l.b16 %v4570
        %v4610 = vpack.c.b16 %v4600, %v4599
        %v4611 = vpack.c.b16 %v4602, %v4601
        %v4612 = vpack.c.b16 %v4604, %v4603
        %v4613 = vpack.c.b16 %v4606, %v4605
        %v4614 = vpack.c.b16 %v4608, %v4607
        %v4615 = vpack.c.b16 %v4609, %v4609
        %v4617 = vshrl.u32 %v4610, 16
        %v4619 = vshll.u32 %v4610, 16
        %v4621 = vrot.slane %v4619, 1
        %v4622 = vor.u32 %v4617, %v4621
        %v4624 = vshll.u32 %v4611, 16
        %v4626 = vrot.slane %v4624, 1
        %v4627 = vsel %vm548, %v4622, %v4626
        %v4628 = vshrl.u32 %v4611, 16
        %v4630 = vor.u32 %v4628, %v4626
        %v4632 = vshll.u32 %v4612, 16
        %v4634 = vrot.slane %v4632, 1
        %v4635 = vsel %vm548, %v4630, %v4634
        %v4636 = vshrl.u32 %v4612, 16
        %v4638 = vor.u32 %v4636, %v4634
        %v4640 = vshll.u32 %v4613, 16
        %v4642 = vrot.slane %v4640, 1
        %v4643 = vsel %vm548, %v4638, %v4642
        %v4644 = vshrl.u32 %v4613, 16
        %v4646 = vor.u32 %v4644, %v4642
        %v4648 = vshll.u32 %v4614, 16
        %v4650 = vrot.slane %v4648, 1
        %v4651 = vsel %vm548, %v4646, %v4650
        %v4652 = vshrl.u32 %v4614, 16
        %v4654 = vor.u32 %v4652, %v4650
        %v4656 = vshll.u32 %v4615, 16
        %v4658 = vrot.slane %v4656, 1
        %v4659 = vsel %vm548, %v4654, %v4658
        %v4681 = vunpack.c.l.b16 %v4572
        %v4682 = vunpack.c.l.b16 %v4573
        %v4683 = vunpack.c.l.b16 %v4574
        %v4684 = vunpack.c.l.b16 %v4575
        %v4685 = vunpack.c.l.b16 %v4576
        %v4686 = vunpack.c.l.b16 %v4577
        %v4687 = vunpack.c.l.b16 %v4578
        %v4688 = vunpack.c.l.b16 %v4579
        %v4689 = vunpack.c.l.b16 %v4580
        %v4690 = vunpack.c.l.b16 %v4581
        %v4691 = vunpack.c.l.b16 %v4582
        %v4692 = vunpack.c.l.b16 %v4583
        %v4693 = vunpack.c.l.b16 %v4584
        %v4694 = vunpack.c.l.b16 %v4585
        %v4695 = vunpack.c.l.b16 %v4586
        %v4696 = vunpack.c.l.b16 %v4587
        %v4697 = vpack.c.b16 %v4682, %v4681
        %v4698 = vpack.c.b16 %v4684, %v4683
        %v4699 = vpack.c.b16 %v4686, %v4685
        %v4700 = vpack.c.b16 %v4688, %v4687
        %v4701 = vpack.c.b16 %v4690, %v4689
        %v4702 = vpack.c.b16 %v4692, %v4691
        %v4703 = vpack.c.b16 %v4694, %v4693
        %v4704 = vpack.c.b16 %v4696, %v4695
        %4713 = vmatprep.subr.bf16.mxu0 0
        %4714 = vmatpush1.bf16.msra.mxu0 %v4704
        %4715 = vmatprep.subr.bf16.mxu0 0
        %4716 = vmatpush1.bf16.msra.mxu0 %v4703
        %4717 = vmatprep.subr.bf16.mxu0 0
        %4718 = vmatpush1.bf16.msra.mxu0 %v4702
        %4719 = vmatprep.subr.bf16.mxu0 0
        %4720 = vmatpush1.bf16.msra.mxu0 %v4701
        %4721 = vmatprep.subr.bf16.mxu0 0
        %4722 = vmatpush1.bf16.msra.mxu0 %v4700
        %4723 = vmatprep.subr.bf16.mxu0 0
        %4724 = vmatpush1.bf16.msra.mxu0 %v4699
        %4725 = vmatprep.subr.bf16.mxu0 0
        %4726 = vmatpush1.bf16.msra.mxu0 %v4698
        %4727 = vmatprep.subr.bf16.mxu0 0
        %4728 = vmatpush1.bf16.msra.mxu0 %v4697
        %4729 = vmatprep.subr.bf16.mxu0 0
        %4730 = vmatpush2.bf16.msra.mxu0 0
        %4731 = vmatprep.subr.bf16.mxu0 0
        %4732 = vmatpush2.bf16.msra.mxu0 0
        %4733 = vmatprep.subr.bf16.mxu0 0
        %4734 = vmatpush2.bf16.msra.mxu0 0
        %4735 = vmatprep.subr.bf16.mxu0 0
        %4736 = vmatpush2.bf16.msra.mxu0 0
        %4737 = vmatprep.subr.bf16.mxu0 0
        %4738 = vmatpush2.bf16.msra.mxu0 0
        %4739 = vmatprep.subr.bf16.mxu0 0
        %4740 = vmatpush2.bf16.msra.mxu0 0
        %4741 = vmatprep.subr.bf16.mxu0 0
        %4742 = vmatpush2.bf16.msra.mxu0 0
        %4743 = vmatprep.subr.bf16.mxu0 0
        %4744 = vmatpush2.bf16.msra.mxu0 0
        %4745 = vmatprep.mubr.bf16.mxu0 0
        %4746 = vmatmul.mubr.bf16.gmra.mxu0 %v4627
        %v4747 = vpop.f32.mrf.mxu0
        %v4748 = vadd.f32 0.0, %v4747
        %v4749 = vpop.f32.mrf.mxu0
        %v4750 = vpop.f32.mrf.mxu0
        %v4751 = vadd.f32 0.0, %v4750
        %v4752 = vpop.f32.mrf.mxu0
        %4753 = vmatprep.mubr.bf16.mxu0 0
        %4754 = vmatmul.mubr.bf16.gmra.mxu0 %v4635
        %v4755 = vpop.f32.mrf.mxu0
        %v4756 = vadd.f32 0.0, %v4755
        %v4757 = vpop.f32.mrf.mxu0
        %v4758 = vpop.f32.mrf.mxu0
        %v4759 = vadd.f32 0.0, %v4758
        %v4760 = vpop.f32.mrf.mxu0
        %4761 = vmatprep.mubr.bf16.mxu0 0
        %4762 = vmatmul.mubr.bf16.gmra.mxu0 %v4643
        %v4763 = vpop.f32.mrf.mxu0
        %v4764 = vadd.f32 0.0, %v4763
        %v4765 = vpop.f32.mrf.mxu0
        %v4766 = vpop.f32.mrf.mxu0
        %v4767 = vadd.f32 0.0, %v4766
        %v4768 = vpop.f32.mrf.mxu0
        %4769 = vmatprep.mubr.bf16.mxu0 0
        %4770 = vmatmul.mubr.bf16.gmra.mxu0 %v4651
        %v4771 = vpop.f32.mrf.mxu0
        %v4772 = vadd.f32 0.0, %v4771
        %v4773 = vpop.f32.mrf.mxu0
        %v4774 = vpop.f32.mrf.mxu0
        %v4775 = vadd.f32 0.0, %v4774
        %v4776 = vpop.f32.mrf.mxu0
        %4777 = vmatprep.mubr.bf16.mxu0 0
        %4778 = vmatmul.mubr.bf16.gmra.mxu0 %v4659
        %v4779 = vpop.f32.mrf.mxu0
        %v4780 = vadd.f32 0.0, %v4779
        %v4781 = vpop.f32.mrf.mxu0
        %v4782 = vpop.f32.mrf.mxu0
        %v4783 = vadd.f32 0.0, %v4782
        %v4784 = vpop.f32.mrf.mxu0
        %4785 = vdwg.mxu0
        %v4807 = vunpack.c.l.b16 %v4554
        %v4808 = vunpack.c.l.b16 %v4555
        %v4809 = vunpack.c.l.b16 %v4556
        %v4810 = vunpack.c.l.b16 %v4557
        %v4811 = vunpack.c.l.b16 %v4558
        %v4812 = vunpack.c.l.b16 %v4559
        %v4813 = vunpack.c.l.b16 %v4560
        %v4814 = vunpack.c.l.b16 %v4561
        %v4815 = vunpack.c.l.b16 %v4562
        %v4816 = vunpack.c.l.b16 %v4563
        %v4817 = vunpack.c.l.b16 %v4564
        %v4818 = vunpack.c.l.b16 %v4565
        %v4819 = vunpack.c.l.b16 %v4566
        %v4820 = vunpack.c.l.b16 %v4567
        %v4821 = vunpack.c.l.b16 %v4568
        %v4822 = vunpack.c.l.b16 %v4569
        %v4823 = vpack.c.b16 %v4808, %v4807
        %v4824 = vpack.c.b16 %v4810, %v4809
        %v4825 = vpack.c.b16 %v4812, %v4811
        %v4826 = vpack.c.b16 %v4814, %v4813
        %v4827 = vpack.c.b16 %v4816, %v4815
        %v4828 = vpack.c.b16 %v4818, %v4817
        %v4829 = vpack.c.b16 %v4820, %v4819
        %v4830 = vpack.c.b16 %v4822, %v4821
        %4839 = vmatprep.subr.bf16.mxu0 0
        %4840 = vmatpush1.bf16.msra.mxu0 %v4830
        %4841 = vmatprep.subr.bf16.mxu0 0
        %4842 = vmatpush1.bf16.msra.mxu0 %v4829
        %4843 = vmatprep.subr.bf16.mxu0 0
        %4844 = vmatpush1.bf16.msra.mxu0 %v4828
        %4845 = vmatprep.subr.bf16.mxu0 0
        %4846 = vmatpush1.bf16.msra.mxu0 %v4827
        %4847 = vmatprep.subr.bf16.mxu0 0
        %4848 = vmatpush1.bf16.msra.mxu0 %v4826
        %4849 = vmatprep.subr.bf16.mxu0 0
        %4850 = vmatpush1.bf16.msra.mxu0 %v4825
        %4851 = vmatprep.subr.bf16.mxu0 0
        %4852 = vmatpush1.bf16.msra.mxu0 %v4824
        %4853 = vmatprep.subr.bf16.mxu0 0
        %4854 = vmatpush1.bf16.msra.mxu0 %v4823
        %4855 = vmatprep.subr.bf16.mxu0 0
        %4856 = vmatpush2.bf16.msra.mxu0 0
        %4857 = vmatprep.subr.bf16.mxu0 0
        %4858 = vmatpush2.bf16.msra.mxu0 0
        %4859 = vmatprep.subr.bf16.mxu0 0
        %4860 = vmatpush2.bf16.msra.mxu0 0
        %4861 = vmatprep.subr.bf16.mxu0 0
        %4862 = vmatpush2.bf16.msra.mxu0 0
        %4863 = vmatprep.subr.bf16.mxu0 0
        %4864 = vmatpush2.bf16.msra.mxu0 0
        %4865 = vmatprep.subr.bf16.mxu0 0
        %4866 = vmatpush2.bf16.msra.mxu0 0
        %4867 = vmatprep.subr.bf16.mxu0 0
        %4868 = vmatpush2.bf16.msra.mxu0 0
        %4869 = vmatprep.subr.bf16.mxu0 0
        %4870 = vmatpush2.bf16.msra.mxu0 0
        %4871 = vmatprep.mubr.bf16.mxu0 0
        %4872 = vmatmul.mubr.bf16.gmra.mxu0 %v4610
        %v4873 = vpop.f32.mrf.mxu0
        %v4874 = vadd.f32 %v4748, %v4873
        %v4875 = vpop.f32.mrf.mxu0
        %v4876 = vpop.f32.mrf.mxu0
        %v4877 = vadd.f32 %v4751, %v4876
        %v4878 = vpop.f32.mrf.mxu0
        %4879 = vmatprep.mubr.bf16.mxu0 0
        %4880 = vmatmul.mubr.bf16.gmra.mxu0 %v4611
        %v4881 = vpop.f32.mrf.mxu0
        %v4882 = vadd.f32 %v4756, %v4881
        %v4883 = vpop.f32.mrf.mxu0
        %v4884 = vpop.f32.mrf.mxu0
        %v4885 = vadd.f32 %v4759, %v4884
        %v4886 = vpop.f32.mrf.mxu0
        %4887 = vmatprep.mubr.bf16.mxu0 0
        %4888 = vmatmul.mubr.bf16.gmra.mxu0 %v4612
        %v4889 = vpop.f32.mrf.mxu0
        %v4890 = vadd.f32 %v4764, %v4889
        %v4891 = vpop.f32.mrf.mxu0
        %v4892 = vpop.f32.mrf.mxu0
        %v4893 = vadd.f32 %v4767, %v4892
        %v4894 = vpop.f32.mrf.mxu0
        %4895 = vmatprep.mubr.bf16.mxu0 0
        %4896 = vmatmul.mubr.bf16.gmra.mxu0 %v4613
        %v4897 = vpop.f32.mrf.mxu0
        %v4898 = vadd.f32 %v4772, %v4897
        %v4899 = vpop.f32.mrf.mxu0
        %v4900 = vpop.f32.mrf.mxu0
        %v4901 = vadd.f32 %v4775, %v4900
        %v4902 = vpop.f32.mrf.mxu0
        %4903 = vmatprep.mubr.bf16.mxu0 0
        %4904 = vmatmul.mubr.bf16.gmra.mxu0 %v4614
        %v4905 = vpop.f32.mrf.mxu0
        %v4906 = vadd.f32 %v4780, %v4905
        %v4907 = vpop.f32.mrf.mxu0
        %v4908 = vpop.f32.mrf.mxu0
        %v4909 = vadd.f32 %v4783, %v4908
        %v4910 = vpop.f32.mrf.mxu0
        %4911 = vdwg.mxu0
        %v4912 = vld [vmem:[#allocation2] sm:$0xe]
        %s4913 = scalar_lea.vmem %s1, 704
        %v4914 = vld [vmem:[%s4913] sm:$0xf]
        %v4915 = vld [vmem:[%s4913 + $0x4] sm:$0xf]
        %v4916 = vld [vmem:[%s4913 + $0x8] sm:$0xf]
        %v4917 = vld [vmem:[%s4913 + $0xc] sm:$0xf]
        %v4918 = vld [vmem:[%s4913 + $0x10] sm:$0xf]
        %v4919 = vld [vmem:[%s4913 + $0x14] sm:$0xf]
        %v4920 = vld [vmem:[%s4913 + $0x18] sm:$0xf]
        %v4921 = vld [vmem:[%s4913 + $0x1c] sm:$0xf]
        %v4922 = vld [vmem:[%s4913 + $0x20] sm:$0xf]
        %v4923 = vld [vmem:[%s4913 + $0x24] sm:$0xf]
        %v4924 = vld [vmem:[%s4913 + $0x28] sm:$0xf]
        %v4925 = vld [vmem:[%s4913 + $0x2c] sm:$0xf]
        %v4926 = vld [vmem:[%s4913 + $0x30] sm:$0xf]
        %v4927 = vld [vmem:[%s4913 + $0x34] sm:$0xf]
        %v4928 = vld [vmem:[%s4913 + $0x38] sm:$0xf]
        %v4929 = vld [vmem:[%s4913 + $0x3c] sm:$0xf]
        %v4931 = vunpack.c.l.b16 %v4912
        %v4932 = vpack.c.b16 %v4600, %v4931
        %v4933 = vrot.slane %v4932, 1
        %v4934 = vrot.slane %v4611, 1
        %v4935 = vsel %vm1204, %v4933, %v4934
        %v4936 = vrot.slane %v4612, 1
        %v4937 = vsel %vm1204, %v4934, %v4936
        %v4938 = vrot.slane %v4613, 1
        %v4939 = vsel %vm1204, %v4936, %v4938
        %v4940 = vrot.slane %v4614, 1
        %v4941 = vsel %vm1204, %v4938, %v4940
        %v4942 = vrot.slane %v4615, 1
        %v4943 = vsel %vm1204, %v4940, %v4942
        %v4965 = vunpack.c.l.b16 %v4914
        %v4966 = vunpack.c.l.b16 %v4915
        %v4967 = vunpack.c.l.b16 %v4916
        %v4968 = vunpack.c.l.b16 %v4917
        %v4969 = vunpack.c.l.b16 %v4918
        %v4970 = vunpack.c.l.b16 %v4919
        %v4971 = vunpack.c.l.b16 %v4920
        %v4972 = vunpack.c.l.b16 %v4921
        %v4973 = vunpack.c.l.b16 %v4922
        %v4974 = vunpack.c.l.b16 %v4923
        %v4975 = vunpack.c.l.b16 %v4924
        %v4976 = vunpack.c.l.b16 %v4925
        %v4977 = vunpack.c.l.b16 %v4926
        %v4978 = vunpack.c.l.b16 %v4927
        %v4979 = vunpack.c.l.b16 %v4928
        %v4980 = vunpack.c.l.b16 %v4929
        %v4981 = vpack.c.b16 %v4966, %v4965
        %v4982 = vpack.c.b16 %v4968, %v4967
        %v4983 = vpack.c.b16 %v4970, %v4969
        %v4984 = vpack.c.b16 %v4972, %v4971
        %v4985 = vpack.c.b16 %v4974, %v4973
        %v4986 = vpack.c.b16 %v4976, %v4975
        %v4987 = vpack.c.b16 %v4978, %v4977
        %v4988 = vpack.c.b16 %v4980, %v4979
        %4997 = vmatprep.subr.bf16.mxu0 0
        %4998 = vmatpush1.bf16.msra.mxu0 %v4988
        %4999 = vmatprep.subr.bf16.mxu0 0
        %5000 = vmatpush1.bf16.msra.mxu0 %v4987
        %5001 = vmatprep.subr.bf16.mxu0 0
        %5002 = vmatpush1.bf16.msra.mxu0 %v4986
        %5003 = vmatprep.subr.bf16.mxu0 0
        %5004 = vmatpush1.bf16.msra.mxu0 %v4985
        %5005 = vmatprep.subr.bf16.mxu0 0
        %5006 = vmatpush1.bf16.msra.mxu0 %v4984
        %5007 = vmatprep.subr.bf16.mxu0 0
        %5008 = vmatpush1.bf16.msra.mxu0 %v4983
        %5009 = vmatprep.subr.bf16.mxu0 0
        %5010 = vmatpush1.bf16.msra.mxu0 %v4982
        %5011 = vmatprep.subr.bf16.mxu0 0
        %5012 = vmatpush1.bf16.msra.mxu0 %v4981
        %5013 = vmatprep.subr.bf16.mxu0 0
        %5014 = vmatpush2.bf16.msra.mxu0 0
        %5015 = vmatprep.subr.bf16.mxu0 0
        %5016 = vmatpush2.bf16.msra.mxu0 0
        %5017 = vmatprep.subr.bf16.mxu0 0
        %5018 = vmatpush2.bf16.msra.mxu0 0
        %5019 = vmatprep.subr.bf16.mxu0 0
        %5020 = vmatpush2.bf16.msra.mxu0 0
        %5021 = vmatprep.subr.bf16.mxu0 0
        %5022 = vmatpush2.bf16.msra.mxu0 0
        %5023 = vmatprep.subr.bf16.mxu0 0
        %5024 = vmatpush2.bf16.msra.mxu0 0
        %5025 = vmatprep.subr.bf16.mxu0 0
        %5026 = vmatpush2.bf16.msra.mxu0 0
        %5027 = vmatprep.subr.bf16.mxu0 0
        %5028 = vmatpush2.bf16.msra.mxu0 0
        %5029 = vmatprep.mubr.bf16.mxu0 0
        %5030 = vmatmul.mubr.bf16.gmra.mxu0 %v4935
        %v5031 = vpop.f32.mrf.mxu0
        %v5032 = vadd.f32 0.0, %v5031
        %v5033 = vpop.f32.mrf.mxu0
        %v5034 = vpop.f32.mrf.mxu0
        %v5035 = vadd.f32 0.0, %v5034
        %v5036 = vpop.f32.mrf.mxu0
        %5037 = vmatprep.mubr.bf16.mxu0 0
        %5038 = vmatmul.mubr.bf16.gmra.mxu0 %v4937
        %v5039 = vpop.f32.mrf.mxu0
        %v5040 = vadd.f32 0.0, %v5039
        %v5041 = vpop.f32.mrf.mxu0
        %v5042 = vpop.f32.mrf.mxu0
        %v5043 = vadd.f32 0.0, %v5042
        %v5044 = vpop.f32.mrf.mxu0
        %5045 = vmatprep.mubr.bf16.mxu0 0
        %5046 = vmatmul.mubr.bf16.gmra.mxu0 %v4939
        %v5047 = vpop.f32.mrf.mxu0
        %v5048 = vadd.f32 0.0, %v5047
        %v5049 = vpop.f32.mrf.mxu0
        %v5050 = vpop.f32.mrf.mxu0
        %v5051 = vadd.f32 0.0, %v5050
        %v5052 = vpop.f32.mrf.mxu0
        %5053 = vmatprep.mubr.bf16.mxu0 0
        %5054 = vmatmul.mubr.bf16.gmra.mxu0 %v4941
        %v5055 = vpop.f32.mrf.mxu0
        %v5056 = vadd.f32 0.0, %v5055
        %v5057 = vpop.f32.mrf.mxu0
        %v5058 = vpop.f32.mrf.mxu0
        %v5059 = vadd.f32 0.0, %v5058
        %v5060 = vpop.f32.mrf.mxu0
        %5061 = vmatprep.mubr.bf16.mxu0 0
        %5062 = vmatmul.mubr.bf16.gmra.mxu0 %v4943
        %v5063 = vpop.f32.mrf.mxu0
        %v5064 = vadd.f32 0.0, %v5063
        %v5065 = vpop.f32.mrf.mxu0
        %v5066 = vpop.f32.mrf.mxu0
        %v5067 = vadd.f32 0.0, %v5066
        %v5068 = vpop.f32.mrf.mxu0
        %5069 = vdwg.mxu0
        %v5070 = vadd.f32 %v4874, %v5032
        %v5071 = vadd.f32 %v4877, %v5035
        %v5072 = vadd.f32 %v4882, %v5040
        %v5073 = vadd.f32 %v4885, %v5043
        %v5074 = vadd.f32 %v4890, %v5048
        %v5075 = vadd.f32 %v4893, %v5051
        %v5076 = vadd.f32 %v4898, %v5056
        %v5077 = vadd.f32 %v4901, %v5059
        %v5078 = vadd.f32 %v4906, %v5064
        %v5079 = vadd.f32 %v4909, %v5067
        %v5080 = vld [vmem:[#allocation2 + $0x4] sm:$0xe]
        %v5081 = vld [vmem:[#allocation2 + $0x8] sm:$0xf]
        %v5082 = vld [vmem:[#allocation2 + $0xc] sm:$0xf]
        %v5083 = vld [vmem:[#allocation2 + $0x10] sm:$0xf]
        %v5084 = vld [vmem:[#allocation2 + $0x14] sm:$0xf]
        %v5085 = vld [vmem:[#allocation2 + $0x18] sm:$0xf]
        %v5086 = vld [vmem:[#allocation2 + $0x1c] sm:$0xf]
        %v5087 = vld [vmem:[#allocation2 + $0x20] sm:$0xf]
        %v5088 = vld [vmem:[#allocation2 + $0x24] sm:$0xf]
        %v5089 = vld [vmem:[#allocation2 + $0x28] sm:$0xf]
        %v5090 = vld [vmem:[#allocation2 + $0x2c] sm:$0x1]
        %s5091 = scalar_lea.vmem %s1, 768
        %v5092 = vld [vmem:[%s5091] sm:$0xf]
        %v5093 = vld [vmem:[%s5091 + $0x4] sm:$0xf]
        %v5094 = vld [vmem:[%s5091 + $0x8] sm:$0xf]
        %v5095 = vld [vmem:[%s5091 + $0xc] sm:$0xf]
        %v5096 = vld [vmem:[%s5091 + $0x10] sm:$0xf]
        %v5097 = vld [vmem:[%s5091 + $0x14] sm:$0xf]
        %v5098 = vld [vmem:[%s5091 + $0x18] sm:$0xf]
        %v5099 = vld [vmem:[%s5091 + $0x1c] sm:$0xf]
        %v5100 = vld [vmem:[%s5091 + $0x20] sm:$0xf]
        %v5101 = vld [vmem:[%s5091 + $0x24] sm:$0xf]
        %v5102 = vld [vmem:[%s5091 + $0x28] sm:$0xf]
        %v5103 = vld [vmem:[%s5091 + $0x2c] sm:$0xf]
        %v5104 = vld [vmem:[%s5091 + $0x30] sm:$0xf]
        %v5105 = vld [vmem:[%s5091 + $0x34] sm:$0xf]
        %v5106 = vld [vmem:[%s5091 + $0x38] sm:$0xf]
        %v5107 = vld [vmem:[%s5091 + $0x3c] sm:$0xf]
        %v5119 = vunpack.c.l.b16 %v5080
        %v5120 = vunpack.c.l.b16 %v5081
        %v5121 = vunpack.c.l.b16 %v5082
        %v5122 = vunpack.c.l.b16 %v5083
        %v5123 = vunpack.c.l.b16 %v5084
        %v5124 = vunpack.c.l.b16 %v5085
        %v5125 = vunpack.c.l.b16 %v5086
        %v5126 = vunpack.c.l.b16 %v5087
        %v5127 = vunpack.c.l.b16 %v5088
        %v5128 = vunpack.c.l.b16 %v5089
        %v5129 = vunpack.c.l.b16 %v5090
        %v5130 = vpack.c.b16 %v5120, %v5119
        %v5131 = vpack.c.b16 %v5122, %v5121
        %v5132 = vpack.c.b16 %v5124, %v5123
        %v5133 = vpack.c.b16 %v5126, %v5125
        %v5134 = vpack.c.b16 %v5128, %v5127
        %v5135 = vpack.c.b16 %v5129, %v5129
        %v5136 = vrot.slane %v5130, 1
        %v5137 = vrot.slane %v5131, 1
        %v5138 = vsel %vm1204, %v5136, %v5137
        %v5139 = vrot.slane %v5132, 1
        %v5140 = vsel %vm1204, %v5137, %v5139
        %v5141 = vrot.slane %v5133, 1
        %v5142 = vsel %vm1204, %v5139, %v5141
        %v5143 = vrot.slane %v5134, 1
        %v5144 = vsel %vm1204, %v5141, %v5143
        %v5145 = vrot.slane %v5135, 1
        %v5146 = vsel %vm1204, %v5143, %v5145
        %v5168 = vunpack.c.l.b16 %v5092
        %v5169 = vunpack.c.l.b16 %v5093
        %v5170 = vunpack.c.l.b16 %v5094
        %v5171 = vunpack.c.l.b16 %v5095
        %v5172 = vunpack.c.l.b16 %v5096
        %v5173 = vunpack.c.l.b16 %v5097
        %v5174 = vunpack.c.l.b16 %v5098
        %v5175 = vunpack.c.l.b16 %v5099
        %v5176 = vunpack.c.l.b16 %v5100
        %v5177 = vunpack.c.l.b16 %v5101
        %v5178 = vunpack.c.l.b16 %v5102
        %v5179 = vunpack.c.l.b16 %v5103
        %v5180 = vunpack.c.l.b16 %v5104
        %v5181 = vunpack.c.l.b16 %v5105
        %v5182 = vunpack.c.l.b16 %v5106
        %v5183 = vunpack.c.l.b16 %v5107
        %v5184 = vpack.c.b16 %v5169, %v5168
        %v5185 = vpack.c.b16 %v5171, %v5170
        %v5186 = vpack.c.b16 %v5173, %v5172
        %v5187 = vpack.c.b16 %v5175, %v5174
        %v5188 = vpack.c.b16 %v5177, %v5176
        %v5189 = vpack.c.b16 %v5179, %v5178
        %v5190 = vpack.c.b16 %v5181, %v5180
        %v5191 = vpack.c.b16 %v5183, %v5182
        %5200 = vmatprep.subr.bf16.mxu0 0
        %5201 = vmatpush1.bf16.msra.mxu0 %v5191
        %5202 = vmatprep.subr.bf16.mxu0 0
        %5203 = vmatpush1.bf16.msra.mxu0 %v5190
        %5204 = vmatprep.subr.bf16.mxu0 0
        %5205 = vmatpush1.bf16.msra.mxu0 %v5189
        %5206 = vmatprep.subr.bf16.mxu0 0
        %5207 = vmatpush1.bf16.msra.mxu0 %v5188
        %5208 = vmatprep.subr.bf16.mxu0 0
        %5209 = vmatpush1.bf16.msra.mxu0 %v5187
        %5210 = vmatprep.subr.bf16.mxu0 0
        %5211 = vmatpush1.bf16.msra.mxu0 %v5186
        %5212 = vmatprep.subr.bf16.mxu0 0
        %5213 = vmatpush1.bf16.msra.mxu0 %v5185
        %5214 = vmatprep.subr.bf16.mxu0 0
        %5215 = vmatpush1.bf16.msra.mxu0 %v5184
        %5216 = vmatprep.subr.bf16.mxu0 0
        %5217 = vmatpush2.bf16.msra.mxu0 0
        %5218 = vmatprep.subr.bf16.mxu0 0
        %5219 = vmatpush2.bf16.msra.mxu0 0
        %5220 = vmatprep.subr.bf16.mxu0 0
        %5221 = vmatpush2.bf16.msra.mxu0 0
        %5222 = vmatprep.subr.bf16.mxu0 0
        %5223 = vmatpush2.bf16.msra.mxu0 0
        %5224 = vmatprep.subr.bf16.mxu0 0
        %5225 = vmatpush2.bf16.msra.mxu0 0
        %5226 = vmatprep.subr.bf16.mxu0 0
        %5227 = vmatpush2.bf16.msra.mxu0 0
        %5228 = vmatprep.subr.bf16.mxu0 0
        %5229 = vmatpush2.bf16.msra.mxu0 0
        %5230 = vmatprep.subr.bf16.mxu0 0
        %5231 = vmatpush2.bf16.msra.mxu0 0
        %5232 = vmatprep.mubr.bf16.mxu0 0
        %5233 = vmatmul.mubr.bf16.gmra.mxu0 %v5138
        %v5234 = vpop.f32.mrf.mxu0
        %v5235 = vadd.f32 0.0, %v5234
        %v5236 = vpop.f32.mrf.mxu0
        %v5237 = vpop.f32.mrf.mxu0
        %v5238 = vadd.f32 0.0, %v5237
        %v5239 = vpop.f32.mrf.mxu0
        %5240 = vmatprep.mubr.bf16.mxu0 0
        %5241 = vmatmul.mubr.bf16.gmra.mxu0 %v5140
        %v5242 = vpop.f32.mrf.mxu0
        %v5243 = vadd.f32 0.0, %v5242
        %v5244 = vpop.f32.mrf.mxu0
        %v5245 = vpop.f32.mrf.mxu0
        %v5246 = vadd.f32 0.0, %v5245
        %v5247 = vpop.f32.mrf.mxu0
        %5248 = vmatprep.mubr.bf16.mxu0 0
        %5249 = vmatmul.mubr.bf16.gmra.mxu0 %v5142
        %v5250 = vpop.f32.mrf.mxu0
        %v5251 = vadd.f32 0.0, %v5250
        %v5252 = vpop.f32.mrf.mxu0
        %v5253 = vpop.f32.mrf.mxu0
        %v5254 = vadd.f32 0.0, %v5253
        %v5255 = vpop.f32.mrf.mxu0
        %5256 = vmatprep.mubr.bf16.mxu0 0
        %5257 = vmatmul.mubr.bf16.gmra.mxu0 %v5144
        %v5258 = vpop.f32.mrf.mxu0
        %v5259 = vadd.f32 0.0, %v5258
        %v5260 = vpop.f32.mrf.mxu0
        %v5261 = vpop.f32.mrf.mxu0
        %v5262 = vadd.f32 0.0, %v5261
        %v5263 = vpop.f32.mrf.mxu0
        %5264 = vmatprep.mubr.bf16.mxu0 0
        %5265 = vmatmul.mubr.bf16.gmra.mxu0 %v5146
        %v5266 = vpop.f32.mrf.mxu0
        %v5267 = vadd.f32 0.0, %v5266
        %v5268 = vpop.f32.mrf.mxu0
        %v5269 = vpop.f32.mrf.mxu0
        %v5270 = vadd.f32 0.0, %v5269
        %v5271 = vpop.f32.mrf.mxu0
        %5272 = vdwg.mxu0
        %v5273 = vadd.f32 %v5070, %v5235
        %v5274 = vadd.f32 %v5071, %v5238
        %v5275 = vadd.f32 %v5072, %v5243
        %v5276 = vadd.f32 %v5073, %v5246
        %v5277 = vadd.f32 %v5074, %v5251
        %v5278 = vadd.f32 %v5075, %v5254
        %v5279 = vadd.f32 %v5076, %v5259
        %v5280 = vadd.f32 %v5077, %v5262
        %v5281 = vadd.f32 %v5078, %v5267
        %v5282 = vadd.f32 %v5079, %v5270
        %v5283 = vld [vmem:[#allocation2 + $0x2c] sm:$0x3]
        %s5284 = scalar_lea.vmem %s1, 832
        %v5285 = vld [vmem:[%s5284] sm:$0xf]
        %v5286 = vld [vmem:[%s5284 + $0x4] sm:$0xf]
        %v5287 = vld [vmem:[%s5284 + $0x8] sm:$0xf]
        %v5288 = vld [vmem:[%s5284 + $0xc] sm:$0xf]
        %v5289 = vld [vmem:[%s5284 + $0x10] sm:$0xf]
        %v5290 = vld [vmem:[%s5284 + $0x14] sm:$0xf]
        %v5291 = vld [vmem:[%s5284 + $0x18] sm:$0xf]
        %v5292 = vld [vmem:[%s5284 + $0x1c] sm:$0xf]
        %v5293 = vld [vmem:[%s5284 + $0x20] sm:$0xf]
        %v5294 = vld [vmem:[%s5284 + $0x24] sm:$0xf]
        %v5295 = vld [vmem:[%s5284 + $0x28] sm:$0xf]
        %v5296 = vld [vmem:[%s5284 + $0x2c] sm:$0xf]
        %v5297 = vld [vmem:[%s5284 + $0x30] sm:$0xf]
        %v5298 = vld [vmem:[%s5284 + $0x34] sm:$0xf]
        %v5299 = vld [vmem:[%s5284 + $0x38] sm:$0xf]
        %v5300 = vld [vmem:[%s5284 + $0x3c] sm:$0xf]
        %v5302 = vunpack.c.l.b16 %v5283
        %v5303 = vpack.c.b16 %v5302, %v5302
        %v5305 = vshrl.u32 %v5130, 16
        %v5307 = vrot.slane %v5305, 1
        %v5308 = vshll.u32 %v5130, 16
        %v5310 = vrot.slane %v5308, 2
        %v5311 = vor.u32 %v5307, %v5310
        %v5313 = vshrl.u32 %v5131, 16
        %v5315 = vrot.slane %v5313, 1
        %v5316 = vshll.u32 %v5131, 16
        %v5318 = vrot.slane %v5316, 2
        %v5319 = vor.u32 %v5315, %v5318
        %v5320 = vsel %vm2005, %v5311, %v5319
        %v5322 = vshrl.u32 %v5132, 16
        %v5324 = vrot.slane %v5322, 1
        %v5325 = vshll.u32 %v5132, 16
        %v5327 = vrot.slane %v5325, 2
        %v5328 = vor.u32 %v5324, %v5327
        %v5329 = vsel %vm2005, %v5319, %v5328
        %v5331 = vshrl.u32 %v5133, 16
        %v5333 = vrot.slane %v5331, 1
        %v5334 = vshll.u32 %v5133, 16
        %v5336 = vrot.slane %v5334, 2
        %v5337 = vor.u32 %v5333, %v5336
        %v5338 = vsel %vm2005, %v5328, %v5337
        %v5340 = vshrl.u32 %v5134, 16
        %v5342 = vrot.slane %v5340, 1
        %v5343 = vshll.u32 %v5134, 16
        %v5345 = vrot.slane %v5343, 2
        %v5346 = vor.u32 %v5342, %v5345
        %v5347 = vsel %vm2005, %v5337, %v5346
        %v5349 = vshrl.u32 %v5303, 16
        %v5351 = vrot.slane %v5349, 1
        %v5352 = vshll.u32 %v5303, 16
        %v5354 = vrot.slane %v5352, 2
        %v5355 = vor.u32 %v5351, %v5354
        %v5356 = vsel %vm2005, %v5346, %v5355
        %v5378 = vunpack.c.l.b16 %v5285
        %v5379 = vunpack.c.l.b16 %v5286
        %v5380 = vunpack.c.l.b16 %v5287
        %v5381 = vunpack.c.l.b16 %v5288
        %v5382 = vunpack.c.l.b16 %v5289
        %v5383 = vunpack.c.l.b16 %v5290
        %v5384 = vunpack.c.l.b16 %v5291
        %v5385 = vunpack.c.l.b16 %v5292
        %v5386 = vunpack.c.l.b16 %v5293
        %v5387 = vunpack.c.l.b16 %v5294
        %v5388 = vunpack.c.l.b16 %v5295
        %v5389 = vunpack.c.l.b16 %v5296
        %v5390 = vunpack.c.l.b16 %v5297
        %v5391 = vunpack.c.l.b16 %v5298
        %v5392 = vunpack.c.l.b16 %v5299
        %v5393 = vunpack.c.l.b16 %v5300
        %v5394 = vpack.c.b16 %v5379, %v5378
        %v5395 = vpack.c.b16 %v5381, %v5380
        %v5396 = vpack.c.b16 %v5383, %v5382
        %v5397 = vpack.c.b16 %v5385, %v5384
        %v5398 = vpack.c.b16 %v5387, %v5386
        %v5399 = vpack.c.b16 %v5389, %v5388
        %v5400 = vpack.c.b16 %v5391, %v5390
        %v5401 = vpack.c.b16 %v5393, %v5392
        %5410 = vmatprep.subr.bf16.mxu0 0
        %5411 = vmatpush1.bf16.msra.mxu0 %v5401
        %5412 = vmatprep.subr.bf16.mxu0 0
        %5413 = vmatpush1.bf16.msra.mxu0 %v5400
        %5414 = vmatprep.subr.bf16.mxu0 0
        %5415 = vmatpush1.bf16.msra.mxu0 %v5399
        %5416 = vmatprep.subr.bf16.mxu0 0
        %5417 = vmatpush1.bf16.msra.mxu0 %v5398
        %5418 = vmatprep.subr.bf16.mxu0 0
        %5419 = vmatpush1.bf16.msra.mxu0 %v5397
        %5420 = vmatprep.subr.bf16.mxu0 0
        %5421 = vmatpush1.bf16.msra.mxu0 %v5396
        %5422 = vmatprep.subr.bf16.mxu0 0
        %5423 = vmatpush1.bf16.msra.mxu0 %v5395
        %5424 = vmatprep.subr.bf16.mxu0 0
        %5425 = vmatpush1.bf16.msra.mxu0 %v5394
        %5426 = vmatprep.subr.bf16.mxu0 0
        %5427 = vmatpush2.bf16.msra.mxu0 0
        %5428 = vmatprep.subr.bf16.mxu0 0
        %5429 = vmatpush2.bf16.msra.mxu0 0
        %5430 = vmatprep.subr.bf16.mxu0 0
        %5431 = vmatpush2.bf16.msra.mxu0 0
        %5432 = vmatprep.subr.bf16.mxu0 0
        %5433 = vmatpush2.bf16.msra.mxu0 0
        %5434 = vmatprep.subr.bf16.mxu0 0
        %5435 = vmatpush2.bf16.msra.mxu0 0
        %5436 = vmatprep.subr.bf16.mxu0 0
        %5437 = vmatpush2.bf16.msra.mxu0 0
        %5438 = vmatprep.subr.bf16.mxu0 0
        %5439 = vmatpush2.bf16.msra.mxu0 0
        %5440 = vmatprep.subr.bf16.mxu0 0
        %5441 = vmatpush2.bf16.msra.mxu0 0
        %5442 = vmatprep.mubr.bf16.mxu0 0
        %5443 = vmatmul.mubr.bf16.gmra.mxu0 %v5320
        %v5444 = vpop.f32.mrf.mxu0
        %v5445 = vadd.f32 0.0, %v5444
        %v5446 = vpop.f32.mrf.mxu0
        %v5447 = vpop.f32.mrf.mxu0
        %v5448 = vadd.f32 0.0, %v5447
        %v5449 = vpop.f32.mrf.mxu0
        %5450 = vmatprep.mubr.bf16.mxu0 0
        %5451 = vmatmul.mubr.bf16.gmra.mxu0 %v5329
        %v5452 = vpop.f32.mrf.mxu0
        %v5453 = vadd.f32 0.0, %v5452
        %v5454 = vpop.f32.mrf.mxu0
        %v5455 = vpop.f32.mrf.mxu0
        %v5456 = vadd.f32 0.0, %v5455
        %v5457 = vpop.f32.mrf.mxu0
        %5458 = vmatprep.mubr.bf16.mxu0 0
        %5459 = vmatmul.mubr.bf16.gmra.mxu0 %v5338
        %v5460 = vpop.f32.mrf.mxu0
        %v5461 = vadd.f32 0.0, %v5460
        %v5462 = vpop.f32.mrf.mxu0
        %v5463 = vpop.f32.mrf.mxu0
        %v5464 = vadd.f32 0.0, %v5463
        %v5465 = vpop.f32.mrf.mxu0
        %5466 = vmatprep.mubr.bf16.mxu0 0
        %5467 = vmatmul.mubr.bf16.gmra.mxu0 %v5347
        %v5468 = vpop.f32.mrf.mxu0
        %v5469 = vadd.f32 0.0, %v5468
        %v5470 = vpop.f32.mrf.mxu0
        %v5471 = vpop.f32.mrf.mxu0
        %v5472 = vadd.f32 0.0, %v5471
        %v5473 = vpop.f32.mrf.mxu0
        %5474 = vmatprep.mubr.bf16.mxu0 0
        %5475 = vmatmul.mubr.bf16.gmra.mxu0 %v5356
        %v5476 = vpop.f32.mrf.mxu0
        %v5477 = vadd.f32 0.0, %v5476
        %v5478 = vpop.f32.mrf.mxu0
        %v5479 = vpop.f32.mrf.mxu0
        %v5480 = vadd.f32 0.0, %v5479
        %v5481 = vpop.f32.mrf.mxu0
        %5482 = vdwg.mxu0
        %v5483 = vadd.f32 %v5273, %v5445
        %v5484 = vadd.f32 %v5274, %v5448
        %v5485 = vadd.f32 %v5275, %v5453
        %v5486 = vadd.f32 %v5276, %v5456
        %v5487 = vadd.f32 %v5277, %v5461
        %v5488 = vadd.f32 %v5278, %v5464
        %v5489 = vadd.f32 %v5279, %v5469
        %v5490 = vadd.f32 %v5280, %v5472
        %v5491 = vadd.f32 %v5281, %v5477
        %v5492 = vadd.f32 %v5282, %v5480
        %v5493 = vld [vmem:[#allocation2 + $0x4] sm:$0xc]
        %s5494 = scalar_lea.vmem %s1, 896
        %v5495 = vld [vmem:[%s5494] sm:$0xf]
        %v5496 = vld [vmem:[%s5494 + $0x4] sm:$0xf]
        %v5497 = vld [vmem:[%s5494 + $0x8] sm:$0xf]
        %v5498 = vld [vmem:[%s5494 + $0xc] sm:$0xf]
        %v5499 = vld [vmem:[%s5494 + $0x10] sm:$0xf]
        %v5500 = vld [vmem:[%s5494 + $0x14] sm:$0xf]
        %v5501 = vld [vmem:[%s5494 + $0x18] sm:$0xf]
        %v5502 = vld [vmem:[%s5494 + $0x1c] sm:$0xf]
        %v5503 = vld [vmem:[%s5494 + $0x20] sm:$0xf]
        %v5504 = vld [vmem:[%s5494 + $0x24] sm:$0xf]
        %v5505 = vld [vmem:[%s5494 + $0x28] sm:$0xf]
        %v5506 = vld [vmem:[%s5494 + $0x2c] sm:$0xf]
        %v5507 = vld [vmem:[%s5494 + $0x30] sm:$0xf]
        %v5508 = vld [vmem:[%s5494 + $0x34] sm:$0xf]
        %v5509 = vld [vmem:[%s5494 + $0x38] sm:$0xf]
        %v5510 = vld [vmem:[%s5494 + $0x3c] sm:$0xf]
        %v5512 = vunpack.c.l.b16 %v5493
        %v5513 = vpack.c.b16 %v5120, %v5512
        %v5514 = vrot.slane %v5513, 2
        %v5515 = vrot.slane %v5131, 2
        %v5516 = vsel %vm2476, %v5514, %v5515
        %v5517 = vrot.slane %v5132, 2
        %v5518 = vsel %vm2476, %v5515, %v5517
        %v5519 = vrot.slane %v5133, 2
        %v5520 = vsel %vm2476, %v5517, %v5519
        %v5521 = vrot.slane %v5134, 2
        %v5522 = vsel %vm2476, %v5519, %v5521
        %v5523 = vrot.slane %v5303, 2
        %v5524 = vsel %vm2476, %v5521, %v5523
        %v5546 = vunpack.c.l.b16 %v5495
        %v5547 = vunpack.c.l.b16 %v5496
        %v5548 = vunpack.c.l.b16 %v5497
        %v5549 = vunpack.c.l.b16 %v5498
        %v5550 = vunpack.c.l.b16 %v5499
        %v5551 = vunpack.c.l.b16 %v5500
        %v5552 = vunpack.c.l.b16 %v5501
        %v5553 = vunpack.c.l.b16 %v5502
        %v5554 = vunpack.c.l.b16 %v5503
        %v5555 = vunpack.c.l.b16 %v5504
        %v5556 = vunpack.c.l.b16 %v5505
        %v5557 = vunpack.c.l.b16 %v5506
        %v5558 = vunpack.c.l.b16 %v5507
        %v5559 = vunpack.c.l.b16 %v5508
        %v5560 = vunpack.c.l.b16 %v5509
        %v5561 = vunpack.c.l.b16 %v5510
        %v5562 = vpack.c.b16 %v5547, %v5546
        %v5563 = vpack.c.b16 %v5549, %v5548
        %v5564 = vpack.c.b16 %v5551, %v5550
        %v5565 = vpack.c.b16 %v5553, %v5552
        %v5566 = vpack.c.b16 %v5555, %v5554
        %v5567 = vpack.c.b16 %v5557, %v5556
        %v5568 = vpack.c.b16 %v5559, %v5558
        %v5569 = vpack.c.b16 %v5561, %v5560
        %5578 = vmatprep.subr.bf16.mxu0 0
        %5579 = vmatpush1.bf16.msra.mxu0 %v5569
        %5580 = vmatprep.subr.bf16.mxu0 0
        %5581 = vmatpush1.bf16.msra.mxu0 %v5568
        %5582 = vmatprep.subr.bf16.mxu0 0
        %5583 = vmatpush1.bf16.msra.mxu0 %v5567
        %5584 = vmatprep.subr.bf16.mxu0 0
        %5585 = vmatpush1.bf16.msra.mxu0 %v5566
        %5586 = vmatprep.subr.bf16.mxu0 0
        %5587 = vmatpush1.bf16.msra.mxu0 %v5565
        %5588 = vmatprep.subr.bf16.mxu0 0
        %5589 = vmatpush1.bf16.msra.mxu0 %v5564
        %5590 = vmatprep.subr.bf16.mxu0 0
        %5591 = vmatpush1.bf16.msra.mxu0 %v5563
        %5592 = vmatprep.subr.bf16.mxu0 0
        %5593 = vmatpush1.bf16.msra.mxu0 %v5562
        %5594 = vmatprep.subr.bf16.mxu0 0
        %5595 = vmatpush2.bf16.msra.mxu0 0
        %5596 = vmatprep.subr.bf16.mxu0 0
        %5597 = vmatpush2.bf16.msra.mxu0 0
        %5598 = vmatprep.subr.bf16.mxu0 0
        %5599 = vmatpush2.bf16.msra.mxu0 0
        %5600 = vmatprep.subr.bf16.mxu0 0
        %5601 = vmatpush2.bf16.msra.mxu0 0
        %5602 = vmatprep.subr.bf16.mxu0 0
        %5603 = vmatpush2.bf16.msra.mxu0 0
        %5604 = vmatprep.subr.bf16.mxu0 0
        %5605 = vmatpush2.bf16.msra.mxu0 0
        %5606 = vmatprep.subr.bf16.mxu0 0
        %5607 = vmatpush2.bf16.msra.mxu0 0
        %5608 = vmatprep.subr.bf16.mxu0 0
        %5609 = vmatpush2.bf16.msra.mxu0 0
        %5610 = vmatprep.mubr.bf16.mxu0 0
        %5611 = vmatmul.mubr.bf16.gmra.mxu0 %v5516
        %v5612 = vpop.f32.mrf.mxu0
        %v5613 = vadd.f32 0.0, %v5612
        %v5614 = vpop.f32.mrf.mxu0
        %v5615 = vpop.f32.mrf.mxu0
        %v5616 = vadd.f32 0.0, %v5615
        %v5617 = vpop.f32.mrf.mxu0
        %5618 = vmatprep.mubr.bf16.mxu0 0
        %5619 = vmatmul.mubr.bf16.gmra.mxu0 %v5518
        %v5620 = vpop.f32.mrf.mxu0
        %v5621 = vadd.f32 0.0, %v5620
        %v5622 = vpop.f32.mrf.mxu0
        %v5623 = vpop.f32.mrf.mxu0
        %v5624 = vadd.f32 0.0, %v5623
        %v5625 = vpop.f32.mrf.mxu0
        %5626 = vmatprep.mubr.bf16.mxu0 0
        %5627 = vmatmul.mubr.bf16.gmra.mxu0 %v5520
        %v5628 = vpop.f32.mrf.mxu0
        %v5629 = vadd.f32 0.0, %v5628
        %v5630 = vpop.f32.mrf.mxu0
        %v5631 = vpop.f32.mrf.mxu0
        %v5632 = vadd.f32 0.0, %v5631
        %v5633 = vpop.f32.mrf.mxu0
        %5634 = vmatprep.mubr.bf16.mxu0 0
        %5635 = vmatmul.mubr.bf16.gmra.mxu0 %v5522
        %v5636 = vpop.f32.mrf.mxu0
        %v5637 = vadd.f32 0.0, %v5636
        %v5638 = vpop.f32.mrf.mxu0
        %v5639 = vpop.f32.mrf.mxu0
        %v5640 = vadd.f32 0.0, %v5639
        %v5641 = vpop.f32.mrf.mxu0
        %5642 = vmatprep.mubr.bf16.mxu0 0
        %5643 = vmatmul.mubr.bf16.gmra.mxu0 %v5524
        %v5644 = vpop.f32.mrf.mxu0
        %v5645 = vadd.f32 0.0, %v5644
        %v5646 = vpop.f32.mrf.mxu0
        %v5647 = vpop.f32.mrf.mxu0
        %v5648 = vadd.f32 0.0, %v5647
        %v5649 = vpop.f32.mrf.mxu0
        %5650 = vdwg.mxu0
        %v5651 = vadd.f32 %v5483, %v5613
        %v5652 = vadd.f32 %v5484, %v5616
        %v5653 = vadd.f32 %v5485, %v5621
        %v5654 = vadd.f32 %v5486, %v5624
        %v5655 = vadd.f32 %v5487, %v5629
        %v5656 = vadd.f32 %v5488, %v5632
        %v5657 = vadd.f32 %v5489, %v5637
        %v5658 = vadd.f32 %v5490, %v5640
        %v5659 = vadd.f32 %v5491, %v5645
        %v5660 = vadd.f32 %v5492, %v5648
        %v5661 = vld [vmem:[#allocation2 + $0x8] sm:$0xc]
        %v5662 = vld [vmem:[#allocation2 + $0xc] sm:$0xf]
        %v5663 = vld [vmem:[#allocation2 + $0x10] sm:$0xf]
        %v5664 = vld [vmem:[#allocation2 + $0x14] sm:$0xf]
        %v5665 = vld [vmem:[#allocation2 + $0x18] sm:$0xf]
        %v5666 = vld [vmem:[#allocation2 + $0x1c] sm:$0xf]
        %v5667 = vld [vmem:[#allocation2 + $0x20] sm:$0xf]
        %v5668 = vld [vmem:[#allocation2 + $0x24] sm:$0xf]
        %v5669 = vld [vmem:[#allocation2 + $0x28] sm:$0xf]
        %v5670 = vld [vmem:[#allocation2 + $0x2c] sm:$0xf]
        %v5671 = vld [vmem:[#allocation2 + $0x30] sm:$0x3]
        %s5672 = scalar_lea.vmem %s1, 960
        %v5673 = vld [vmem:[%s5672] sm:$0xf]
        %v5674 = vld [vmem:[%s5672 + $0x4] sm:$0xf]
        %v5675 = vld [vmem:[%s5672 + $0x8] sm:$0xf]
        %v5676 = vld [vmem:[%s5672 + $0xc] sm:$0xf]
        %v5677 = vld [vmem:[%s5672 + $0x10] sm:$0xf]
        %v5678 = vld [vmem:[%s5672 + $0x14] sm:$0xf]
        %v5679 = vld [vmem:[%s5672 + $0x18] sm:$0xf]
        %v5680 = vld [vmem:[%s5672 + $0x1c] sm:$0xf]
        %v5681 = vld [vmem:[%s5672 + $0x20] sm:$0xf]
        %v5682 = vld [vmem:[%s5672 + $0x24] sm:$0xf]
        %v5683 = vld [vmem:[%s5672 + $0x28] sm:$0xf]
        %v5684 = vld [vmem:[%s5672 + $0x2c] sm:$0xf]
        %v5685 = vld [vmem:[%s5672 + $0x30] sm:$0xf]
        %v5686 = vld [vmem:[%s5672 + $0x34] sm:$0xf]
        %v5687 = vld [vmem:[%s5672 + $0x38] sm:$0xf]
        %v5688 = vld [vmem:[%s5672 + $0x3c] sm:$0xf]
        %v5700 = vunpack.c.l.b16 %v5661
        %v5701 = vunpack.c.l.b16 %v5662
        %v5702 = vunpack.c.l.b16 %v5663
        %v5703 = vunpack.c.l.b16 %v5664
        %v5704 = vunpack.c.l.b16 %v5665
        %v5705 = vunpack.c.l.b16 %v5666
        %v5706 = vunpack.c.l.b16 %v5667
        %v5707 = vunpack.c.l.b16 %v5668
        %v5708 = vunpack.c.l.b16 %v5669
        %v5709 = vunpack.c.l.b16 %v5670
        %v5710 = vunpack.c.l.b16 %v5671
        %v5711 = vpack.c.b16 %v5701, %v5700
        %v5712 = vpack.c.b16 %v5703, %v5702
        %v5713 = vpack.c.b16 %v5705, %v5704
        %v5714 = vpack.c.b16 %v5707, %v5706
        %v5715 = vpack.c.b16 %v5709, %v5708
        %v5716 = vpack.c.b16 %v5710, %v5710
        %v5717 = vrot.slane %v5711, 2
        %v5718 = vrot.slane %v5712, 2
        %v5719 = vsel %vm2476, %v5717, %v5718
        %v5720 = vrot.slane %v5713, 2
        %v5721 = vsel %vm2476, %v5718, %v5720
        %v5722 = vrot.slane %v5714, 2
        %v5723 = vsel %vm2476, %v5720, %v5722
        %v5724 = vrot.slane %v5715, 2
        %v5725 = vsel %vm2476, %v5722, %v5724
        %v5726 = vrot.slane %v5716, 2
        %v5727 = vsel %vm2476, %v5724, %v5726
        %v5749 = vunpack.c.l.b16 %v5673
        %v5750 = vunpack.c.l.b16 %v5674
        %v5751 = vunpack.c.l.b16 %v5675
        %v5752 = vunpack.c.l.b16 %v5676
        %v5753 = vunpack.c.l.b16 %v5677
        %v5754 = vunpack.c.l.b16 %v5678
        %v5755 = vunpack.c.l.b16 %v5679
        %v5756 = vunpack.c.l.b16 %v5680
        %v5757 = vunpack.c.l.b16 %v5681
        %v5758 = vunpack.c.l.b16 %v5682
        %v5759 = vunpack.c.l.b16 %v5683
        %v5760 = vunpack.c.l.b16 %v5684
        %v5761 = vunpack.c.l.b16 %v5685
        %v5762 = vunpack.c.l.b16 %v5686
        %v5763 = vunpack.c.l.b16 %v5687
        %v5764 = vunpack.c.l.b16 %v5688
        %v5765 = vpack.c.b16 %v5750, %v5749
        %v5766 = vpack.c.b16 %v5752, %v5751
        %v5767 = vpack.c.b16 %v5754, %v5753
        %v5768 = vpack.c.b16 %v5756, %v5755
        %v5769 = vpack.c.b16 %v5758, %v5757
        %v5770 = vpack.c.b16 %v5760, %v5759
        %v5771 = vpack.c.b16 %v5762, %v5761
        %v5772 = vpack.c.b16 %v5764, %v5763
        %5781 = vmatprep.subr.bf16.mxu0 0
        %5782 = vmatpush1.bf16.msra.mxu0 %v5772
        %5783 = vmatprep.subr.bf16.mxu0 0
        %5784 = vmatpush1.bf16.msra.mxu0 %v5771
        %5785 = vmatprep.subr.bf16.mxu0 0
        %5786 = vmatpush1.bf16.msra.mxu0 %v5770
        %5787 = vmatprep.subr.bf16.mxu0 0
        %5788 = vmatpush1.bf16.msra.mxu0 %v5769
        %5789 = vmatprep.subr.bf16.mxu0 0
        %5790 = vmatpush1.bf16.msra.mxu0 %v5768
        %5791 = vmatprep.subr.bf16.mxu0 0
        %5792 = vmatpush1.bf16.msra.mxu0 %v5767
        %5793 = vmatprep.subr.bf16.mxu0 0
        %5794 = vmatpush1.bf16.msra.mxu0 %v5766
        %5795 = vmatprep.subr.bf16.mxu0 0
        %5796 = vmatpush1.bf16.msra.mxu0 %v5765
        %5797 = vmatprep.subr.bf16.mxu0 0
        %5798 = vmatpush2.bf16.msra.mxu0 0
        %5799 = vmatprep.subr.bf16.mxu0 0
        %5800 = vmatpush2.bf16.msra.mxu0 0
        %5801 = vmatprep.subr.bf16.mxu0 0
        %5802 = vmatpush2.bf16.msra.mxu0 0
        %5803 = vmatprep.subr.bf16.mxu0 0
        %5804 = vmatpush2.bf16.msra.mxu0 0
        %5805 = vmatprep.subr.bf16.mxu0 0
        %5806 = vmatpush2.bf16.msra.mxu0 0
        %5807 = vmatprep.subr.bf16.mxu0 0
        %5808 = vmatpush2.bf16.msra.mxu0 0
        %5809 = vmatprep.subr.bf16.mxu0 0
        %5810 = vmatpush2.bf16.msra.mxu0 0
        %5811 = vmatprep.subr.bf16.mxu0 0
        %5812 = vmatpush2.bf16.msra.mxu0 0
        %5813 = vmatprep.mubr.bf16.mxu0 0
        %5814 = vmatmul.mubr.bf16.gmra.mxu0 %v5719
        %v5815 = vpop.f32.mrf.mxu0
        %v5816 = vadd.f32 0.0, %v5815
        %v5817 = vpop.f32.mrf.mxu0
        %v5818 = vpop.f32.mrf.mxu0
        %v5819 = vadd.f32 0.0, %v5818
        %v5820 = vpop.f32.mrf.mxu0
        %5821 = vmatprep.mubr.bf16.mxu0 0
        %5822 = vmatmul.mubr.bf16.gmra.mxu0 %v5721
        %v5823 = vpop.f32.mrf.mxu0
        %v5824 = vadd.f32 0.0, %v5823
        %v5825 = vpop.f32.mrf.mxu0
        %v5826 = vpop.f32.mrf.mxu0
        %v5827 = vadd.f32 0.0, %v5826
        %v5828 = vpop.f32.mrf.mxu0
        %5829 = vmatprep.mubr.bf16.mxu0 0
        %5830 = vmatmul.mubr.bf16.gmra.mxu0 %v5723
        %v5831 = vpop.f32.mrf.mxu0
        %v5832 = vadd.f32 0.0, %v5831
        %v5833 = vpop.f32.mrf.mxu0
        %v5834 = vpop.f32.mrf.mxu0
        %v5835 = vadd.f32 0.0, %v5834
        %v5836 = vpop.f32.mrf.mxu0
        %5837 = vmatprep.mubr.bf16.mxu0 0
        %5838 = vmatmul.mubr.bf16.gmra.mxu0 %v5725
        %v5839 = vpop.f32.mrf.mxu0
        %v5840 = vadd.f32 0.0, %v5839
        %v5841 = vpop.f32.mrf.mxu0
        %v5842 = vpop.f32.mrf.mxu0
        %v5843 = vadd.f32 0.0, %v5842
        %v5844 = vpop.f32.mrf.mxu0
        %5845 = vmatprep.mubr.bf16.mxu0 0
        %5846 = vmatmul.mubr.bf16.gmra.mxu0 %v5727
        %v5847 = vpop.f32.mrf.mxu0
        %v5848 = vadd.f32 0.0, %v5847
        %v5849 = vpop.f32.mrf.mxu0
        %v5850 = vpop.f32.mrf.mxu0
        %v5851 = vadd.f32 0.0, %v5850
        %v5852 = vpop.f32.mrf.mxu0
        %5853 = vdwg.mxu0
        %v5854 = vadd.f32 %v5651, %v5816
        %v5855 = vadd.f32 %v5652, %v5819
        %v5856 = vadd.f32 %v5653, %v5824
        %v5857 = vadd.f32 %v5654, %v5827
        %v5858 = vadd.f32 %v5655, %v5832
        %v5859 = vadd.f32 %v5656, %v5835
        %v5860 = vadd.f32 %v5657, %v5840
        %v5861 = vadd.f32 %v5658, %v5843
        %v5862 = vadd.f32 %v5659, %v5848
        %v5863 = vadd.f32 %v5660, %v5851
        %v5864 = vld [vmem:[#allocation2 + $0x30] sm:$0x7]
        %s5865 = scalar_lea.vmem %s1, 1024
        %v5866 = vld [vmem:[%s5865] sm:$0xf]
        %v5867 = vld [vmem:[%s5865 + $0x4] sm:$0xf]
        %v5868 = vld [vmem:[%s5865 + $0x8] sm:$0xf]
        %v5869 = vld [vmem:[%s5865 + $0xc] sm:$0xf]
        %v5870 = vld [vmem:[%s5865 + $0x10] sm:$0xf]
        %v5871 = vld [vmem:[%s5865 + $0x14] sm:$0xf]
        %v5872 = vld [vmem:[%s5865 + $0x18] sm:$0xf]
        %v5873 = vld [vmem:[%s5865 + $0x1c] sm:$0xf]
        %v5874 = vld [vmem:[%s5865 + $0x20] sm:$0xf]
        %v5875 = vld [vmem:[%s5865 + $0x24] sm:$0xf]
        %v5876 = vld [vmem:[%s5865 + $0x28] sm:$0xf]
        %v5877 = vld [vmem:[%s5865 + $0x2c] sm:$0xf]
        %v5878 = vld [vmem:[%s5865 + $0x30] sm:$0xf]
        %v5879 = vld [vmem:[%s5865 + $0x34] sm:$0xf]
        %v5880 = vld [vmem:[%s5865 + $0x38] sm:$0xf]
        %v5881 = vld [vmem:[%s5865 + $0x3c] sm:$0xf]
        %v5883 = vunpack.c.l.b16 %v5864
        %v5884 = vpack.c.b16 %v5883, %v5883
        %v5886 = vshrl.u32 %v5711, 16
        %v5888 = vrot.slane %v5886, 2
        %v5889 = vshll.u32 %v5711, 16
        %v5891 = vrot.slane %v5889, 3
        %v5892 = vor.u32 %v5888, %v5891
        %v5894 = vshrl.u32 %v5712, 16
        %v5896 = vrot.slane %v5894, 2
        %v5897 = vshll.u32 %v5712, 16
        %v5899 = vrot.slane %v5897, 3
        %v5900 = vor.u32 %v5896, %v5899
        %v5901 = vsel %vm3277, %v5892, %v5900
        %v5903 = vshrl.u32 %v5713, 16
        %v5905 = vrot.slane %v5903, 2
        %v5906 = vshll.u32 %v5713, 16
        %v5908 = vrot.slane %v5906, 3
        %v5909 = vor.u32 %v5905, %v5908
        %v5910 = vsel %vm3277, %v5900, %v5909
        %v5912 = vshrl.u32 %v5714, 16
        %v5914 = vrot.slane %v5912, 2
        %v5915 = vshll.u32 %v5714, 16
        %v5917 = vrot.slane %v5915, 3
        %v5918 = vor.u32 %v5914, %v5917
        %v5919 = vsel %vm3277, %v5909, %v5918
        %v5921 = vshrl.u32 %v5715, 16
        %v5923 = vrot.slane %v5921, 2
        %v5924 = vshll.u32 %v5715, 16
        %v5926 = vrot.slane %v5924, 3
        %v5927 = vor.u32 %v5923, %v5926
        %v5928 = vsel %vm3277, %v5918, %v5927
        %v5930 = vshrl.u32 %v5884, 16
        %v5932 = vrot.slane %v5930, 2
        %v5933 = vshll.u32 %v5884, 16
        %v5935 = vrot.slane %v5933, 3
        %v5936 = vor.u32 %v5932, %v5935
        %v5937 = vsel %vm3277, %v5927, %v5936
        %v5959 = vunpack.c.l.b16 %v5866
        %v5960 = vunpack.c.l.b16 %v5867
        %v5961 = vunpack.c.l.b16 %v5868
        %v5962 = vunpack.c.l.b16 %v5869
        %v5963 = vunpack.c.l.b16 %v5870
        %v5964 = vunpack.c.l.b16 %v5871
        %v5965 = vunpack.c.l.b16 %v5872
        %v5966 = vunpack.c.l.b16 %v5873
        %v5967 = vunpack.c.l.b16 %v5874
        %v5968 = vunpack.c.l.b16 %v5875
        %v5969 = vunpack.c.l.b16 %v5876
        %v5970 = vunpack.c.l.b16 %v5877
        %v5971 = vunpack.c.l.b16 %v5878
        %v5972 = vunpack.c.l.b16 %v5879
        %v5973 = vunpack.c.l.b16 %v5880
        %v5974 = vunpack.c.l.b16 %v5881
        %v5975 = vpack.c.b16 %v5960, %v5959
        %v5976 = vpack.c.b16 %v5962, %v5961
        %v5977 = vpack.c.b16 %v5964, %v5963
        %v5978 = vpack.c.b16 %v5966, %v5965
        %v5979 = vpack.c.b16 %v5968, %v5967
        %v5980 = vpack.c.b16 %v5970, %v5969
        %v5981 = vpack.c.b16 %v5972, %v5971
        %v5982 = vpack.c.b16 %v5974, %v5973
        %5991 = vmatprep.subr.bf16.mxu0 0
        %5992 = vmatpush1.bf16.msra.mxu0 %v5982
        %5993 = vmatprep.subr.bf16.mxu0 0
        %5994 = vmatpush1.bf16.msra.mxu0 %v5981
        %5995 = vmatprep.subr.bf16.mxu0 0
        %5996 = vmatpush1.bf16.msra.mxu0 %v5980
        %5997 = vmatprep.subr.bf16.mxu0 0
        %5998 = vmatpush1.bf16.msra.mxu0 %v5979
        %5999 = vmatprep.subr.bf16.mxu0 0
        %6000 = vmatpush1.bf16.msra.mxu0 %v5978
        %6001 = vmatprep.subr.bf16.mxu0 0
        %6002 = vmatpush1.bf16.msra.mxu0 %v5977
        %6003 = vmatprep.subr.bf16.mxu0 0
        %6004 = vmatpush1.bf16.msra.mxu0 %v5976
        %6005 = vmatprep.subr.bf16.mxu0 0
        %6006 = vmatpush1.bf16.msra.mxu0 %v5975
        %6007 = vmatprep.subr.bf16.mxu0 0
        %6008 = vmatpush2.bf16.msra.mxu0 0
        %6009 = vmatprep.subr.bf16.mxu0 0
        %6010 = vmatpush2.bf16.msra.mxu0 0
        %6011 = vmatprep.subr.bf16.mxu0 0
        %6012 = vmatpush2.bf16.msra.mxu0 0
        %6013 = vmatprep.subr.bf16.mxu0 0
        %6014 = vmatpush2.bf16.msra.mxu0 0
        %6015 = vmatprep.subr.bf16.mxu0 0
        %6016 = vmatpush2.bf16.msra.mxu0 0
        %6017 = vmatprep.subr.bf16.mxu0 0
        %6018 = vmatpush2.bf16.msra.mxu0 0
        %6019 = vmatprep.subr.bf16.mxu0 0
        %6020 = vmatpush2.bf16.msra.mxu0 0
        %6021 = vmatprep.subr.bf16.mxu0 0
        %6022 = vmatpush2.bf16.msra.mxu0 0
        %6023 = vmatprep.mubr.bf16.mxu0 0
        %6024 = vmatmul.mubr.bf16.gmra.mxu0 %v5901
        %v6025 = vpop.f32.mrf.mxu0
        %v6026 = vadd.f32 0.0, %v6025
        %v6027 = vpop.f32.mrf.mxu0
        %v6028 = vpop.f32.mrf.mxu0
        %v6029 = vadd.f32 0.0, %v6028
        %v6030 = vpop.f32.mrf.mxu0
        %6031 = vmatprep.mubr.bf16.mxu0 0
        %6032 = vmatmul.mubr.bf16.gmra.mxu0 %v5910
        %v6033 = vpop.f32.mrf.mxu0
        %v6034 = vadd.f32 0.0, %v6033
        %v6035 = vpop.f32.mrf.mxu0
        %v6036 = vpop.f32.mrf.mxu0
        %v6037 = vadd.f32 0.0, %v6036
        %v6038 = vpop.f32.mrf.mxu0
        %6039 = vmatprep.mubr.bf16.mxu0 0
        %6040 = vmatmul.mubr.bf16.gmra.mxu0 %v5919
        %v6041 = vpop.f32.mrf.mxu0
        %v6042 = vadd.f32 0.0, %v6041
        %v6043 = vpop.f32.mrf.mxu0
        %v6044 = vpop.f32.mrf.mxu0
        %v6045 = vadd.f32 0.0, %v6044
        %v6046 = vpop.f32.mrf.mxu0
        %6047 = vmatprep.mubr.bf16.mxu0 0
        %6048 = vmatmul.mubr.bf16.gmra.mxu0 %v5928
        %v6049 = vpop.f32.mrf.mxu0
        %v6050 = vadd.f32 0.0, %v6049
        %v6051 = vpop.f32.mrf.mxu0
        %v6052 = vpop.f32.mrf.mxu0
        %v6053 = vadd.f32 0.0, %v6052
        %v6054 = vpop.f32.mrf.mxu0
        %6055 = vmatprep.mubr.bf16.mxu0 0
        %6056 = vmatmul.mubr.bf16.gmra.mxu0 %v5937
        %v6057 = vpop.f32.mrf.mxu0
        %v6058 = vadd.f32 0.0, %v6057
        %v6059 = vpop.f32.mrf.mxu0
        %v6060 = vpop.f32.mrf.mxu0
        %v6061 = vadd.f32 0.0, %v6060
        %v6062 = vpop.f32.mrf.mxu0
        %6063 = vdwg.mxu0
        %v6064 = vadd.f32 %v5854, %v6026
        %v6065 = vadd.f32 %v5855, %v6029
        %v6066 = vadd.f32 %v5856, %v6034
        %v6067 = vadd.f32 %v5857, %v6037
        %v6068 = vadd.f32 %v5858, %v6042
        %v6069 = vadd.f32 %v5859, %v6045
        %v6070 = vadd.f32 %v5860, %v6050
        %v6071 = vadd.f32 %v5861, %v6053
        %v6072 = vadd.f32 %v5862, %v6058
        %v6073 = vadd.f32 %v5863, %v6061
        %v6074 = vld [vmem:[#allocation2 + $0x8] sm:$0x8]
        %s6075 = scalar_lea.vmem %s1, 1088
        %v6076 = vld [vmem:[%s6075] sm:$0xf]
        %v6077 = vld [vmem:[%s6075 + $0x4] sm:$0xf]
        %v6078 = vld [vmem:[%s6075 + $0x8] sm:$0xf]
        %v6079 = vld [vmem:[%s6075 + $0xc] sm:$0xf]
        %v6080 = vld [vmem:[%s6075 + $0x10] sm:$0xf]
        %v6081 = vld [vmem:[%s6075 + $0x14] sm:$0xf]
        %v6082 = vld [vmem:[%s6075 + $0x18] sm:$0xf]
        %v6083 = vld [vmem:[%s6075 + $0x1c] sm:$0xf]
        %v6084 = vld [vmem:[%s6075 + $0x20] sm:$0xf]
        %v6085 = vld [vmem:[%s6075 + $0x24] sm:$0xf]
        %v6086 = vld [vmem:[%s6075 + $0x28] sm:$0xf]
        %v6087 = vld [vmem:[%s6075 + $0x2c] sm:$0xf]
        %v6088 = vld [vmem:[%s6075 + $0x30] sm:$0xf]
        %v6089 = vld [vmem:[%s6075 + $0x34] sm:$0xf]
        %v6090 = vld [vmem:[%s6075 + $0x38] sm:$0xf]
        %v6091 = vld [vmem:[%s6075 + $0x3c] sm:$0xf]
        %v6093 = vunpack.c.l.b16 %v6074
        %v6094 = vpack.c.b16 %v5701, %v6093
        %v6095 = vrot.slane %v6094, 3
        %v6096 = vrot.slane %v5712, 3
        %v6097 = vsel %vm3748, %v6095, %v6096
        %v6098 = vrot.slane %v5713, 3
        %v6099 = vsel %vm3748, %v6096, %v6098
        %v6100 = vrot.slane %v5714, 3
        %v6101 = vsel %vm3748, %v6098, %v6100
        %v6102 = vrot.slane %v5715, 3
        %v6103 = vsel %vm3748, %v6100, %v6102
        %v6104 = vrot.slane %v5884, 3
        %v6105 = vsel %vm3748, %v6102, %v6104
        %v6127 = vunpack.c.l.b16 %v6076
        %v6128 = vunpack.c.l.b16 %v6077
        %v6129 = vunpack.c.l.b16 %v6078
        %v6130 = vunpack.c.l.b16 %v6079
        %v6131 = vunpack.c.l.b16 %v6080
        %v6132 = vunpack.c.l.b16 %v6081
        %v6133 = vunpack.c.l.b16 %v6082
        %v6134 = vunpack.c.l.b16 %v6083
        %v6135 = vunpack.c.l.b16 %v6084
        %v6136 = vunpack.c.l.b16 %v6085
        %v6137 = vunpack.c.l.b16 %v6086
        %v6138 = vunpack.c.l.b16 %v6087
        %v6139 = vunpack.c.l.b16 %v6088
        %v6140 = vunpack.c.l.b16 %v6089
        %v6141 = vunpack.c.l.b16 %v6090
        %v6142 = vunpack.c.l.b16 %v6091
        %v6143 = vpack.c.b16 %v6128, %v6127
        %v6144 = vpack.c.b16 %v6130, %v6129
        %v6145 = vpack.c.b16 %v6132, %v6131
        %v6146 = vpack.c.b16 %v6134, %v6133
        %v6147 = vpack.c.b16 %v6136, %v6135
        %v6148 = vpack.c.b16 %v6138, %v6137
        %v6149 = vpack.c.b16 %v6140, %v6139
        %v6150 = vpack.c.b16 %v6142, %v6141
        %6159 = vmatprep.subr.bf16.mxu0 0
        %6160 = vmatpush1.bf16.msra.mxu0 %v6150
        %6161 = vmatprep.subr.bf16.mxu0 0
        %6162 = vmatpush1.bf16.msra.mxu0 %v6149
        %6163 = vmatprep.subr.bf16.mxu0 0
        %6164 = vmatpush1.bf16.msra.mxu0 %v6148
        %6165 = vmatprep.subr.bf16.mxu0 0
        %6166 = vmatpush1.bf16.msra.mxu0 %v6147
        %6167 = vmatprep.subr.bf16.mxu0 0
        %6168 = vmatpush1.bf16.msra.mxu0 %v6146
        %6169 = vmatprep.subr.bf16.mxu0 0
        %6170 = vmatpush1.bf16.msra.mxu0 %v6145
        %6171 = vmatprep.subr.bf16.mxu0 0
        %6172 = vmatpush1.bf16.msra.mxu0 %v6144
        %6173 = vmatprep.subr.bf16.mxu0 0
        %6174 = vmatpush1.bf16.msra.mxu0 %v6143
        %6175 = vmatprep.subr.bf16.mxu0 0
        %6176 = vmatpush2.bf16.msra.mxu0 0
        %6177 = vmatprep.subr.bf16.mxu0 0
        %6178 = vmatpush2.bf16.msra.mxu0 0
        %6179 = vmatprep.subr.bf16.mxu0 0
        %6180 = vmatpush2.bf16.msra.mxu0 0
        %6181 = vmatprep.subr.bf16.mxu0 0
        %6182 = vmatpush2.bf16.msra.mxu0 0
        %6183 = vmatprep.subr.bf16.mxu0 0
        %6184 = vmatpush2.bf16.msra.mxu0 0
        %6185 = vmatprep.subr.bf16.mxu0 0
        %6186 = vmatpush2.bf16.msra.mxu0 0
        %6187 = vmatprep.subr.bf16.mxu0 0
        %6188 = vmatpush2.bf16.msra.mxu0 0
        %6189 = vmatprep.subr.bf16.mxu0 0
        %6190 = vmatpush2.bf16.msra.mxu0 0
        %6191 = vmatprep.mubr.bf16.mxu0 0
        %6192 = vmatmul.mubr.bf16.gmra.mxu0 %v6097
        %v6193 = vpop.f32.mrf.mxu0
        %v6194 = vadd.f32 0.0, %v6193
        %v6195 = vpop.f32.mrf.mxu0
        %v6196 = vpop.f32.mrf.mxu0
        %v6197 = vadd.f32 0.0, %v6196
        %v6198 = vpop.f32.mrf.mxu0
        %6199 = vmatprep.mubr.bf16.mxu0 0
        %6200 = vmatmul.mubr.bf16.gmra.mxu0 %v6099
        %v6201 = vpop.f32.mrf.mxu0
        %v6202 = vadd.f32 0.0, %v6201
        %v6203 = vpop.f32.mrf.mxu0
        %v6204 = vpop.f32.mrf.mxu0
        %v6205 = vadd.f32 0.0, %v6204
        %v6206 = vpop.f32.mrf.mxu0
        %6207 = vmatprep.mubr.bf16.mxu0 0
        %6208 = vmatmul.mubr.bf16.gmra.mxu0 %v6101
        %v6209 = vpop.f32.mrf.mxu0
        %v6210 = vadd.f32 0.0, %v6209
        %v6211 = vpop.f32.mrf.mxu0
        %v6212 = vpop.f32.mrf.mxu0
        %v6213 = vadd.f32 0.0, %v6212
        %v6214 = vpop.f32.mrf.mxu0
        %6215 = vmatprep.mubr.bf16.mxu0 0
        %6216 = vmatmul.mubr.bf16.gmra.mxu0 %v6103
        %v6217 = vpop.f32.mrf.mxu0
        %v6218 = vadd.f32 0.0, %v6217
        %v6219 = vpop.f32.mrf.mxu0
        %v6220 = vpop.f32.mrf.mxu0
        %v6221 = vadd.f32 0.0, %v6220
        %v6222 = vpop.f32.mrf.mxu0
        %6223 = vmatprep.mubr.bf16.mxu0 0
        %6224 = vmatmul.mubr.bf16.gmra.mxu0 %v6105
        %v6225 = vpop.f32.mrf.mxu0
        %v6226 = vadd.f32 0.0, %v6225
        %v6227 = vpop.f32.mrf.mxu0
        %v6228 = vpop.f32.mrf.mxu0
        %v6229 = vadd.f32 0.0, %v6228
        %v6230 = vpop.f32.mrf.mxu0
        %6231 = vdwg.mxu0
        %v6232 = vadd.f32 %v6064, %v6194
        %v6233 = vadd.f32 %v6065, %v6197
        %v6234 = vadd.f32 %v6066, %v6202
        %v6235 = vadd.f32 %v6067, %v6205
        %v6236 = vadd.f32 %v6068, %v6210
        %v6237 = vadd.f32 %v6069, %v6213
        %v6238 = vadd.f32 %v6070, %v6218
        %v6239 = vadd.f32 %v6071, %v6221
        %v6240 = vadd.f32 %v6072, %v6226
        %v6241 = vadd.f32 %v6073, %v6229
        %s6242 = scalar_lea.vmem %s2, 1
        %v6243 = vld [vmem:[%s6242] sm:$0x1]
        %v6245 = vlaneseq
        %v6246 = vshrl.u32 %v6245, 7
        %v6247 = vsub.s32 0, %v6246
        %v6248 = vrot.slane %v6243, %v6247
        %v6250 = vadd.f32 %v6232, %v6248
        %v6251 = vadd.f32 %v6233, %v6248
        %v6252 = vadd.f32 %v6234, %v6248
        %v6253 = vadd.f32 %v6235, %v6248
        %v6254 = vadd.f32 %v6236, %v6248
        %v6255 = vadd.f32 %v6237, %v6248
        %v6256 = vadd.f32 %v6238, %v6248
        %v6257 = vadd.f32 %v6239, %v6248
        %v6258 = vadd.f32 %v6240, %v6248
        %v6259 = vadd.f32 %v6241, %v6248
        %v6260 = vmax.f32 %v6250, 0.0
        %v6261 = vmax.f32 %v6251, 0.0
        %v6262 = vmax.f32 %v6252, 0.0
        %v6263 = vmax.f32 %v6253, 0.0
        %v6264 = vmax.f32 %v6254, 0.0
        %v6265 = vmax.f32 %v6255, 0.0
        %v6266 = vmax.f32 %v6256, 0.0
        %v6267 = vmax.f32 %v6257, 0.0
        %v6268 = vmax.f32 %v6258, 0.0
        %v6269 = vmax.f32 %v6259, 0.0
        %6270 = vst [vmem:[#allocation3] sm:$0xff] %v6260
        %6271 = vst [vmem:[#allocation3 + $0x8] sm:$0xff] %v6261
        %6272 = vst [vmem:[#allocation3 + $0x10] sm:$0xff] %v6262
        %6273 = vst [vmem:[#allocation3 + $0x18] sm:$0xff] %v6263
        %6274 = vst [vmem:[#allocation3 + $0x20] sm:$0xff] %v6264
        %6275 = vst [vmem:[#allocation3 + $0x28] sm:$0xff] %v6265
        %6276 = vst [vmem:[#allocation3 + $0x30] sm:$0xff] %v6266
        %6277 = vst [vmem:[#allocation3 + $0x38] sm:$0xff] %v6267
        %6278 = vst [vmem:[#allocation3 + $0x40] sm:$0xff] %v6268
        %6279 = vst [vmem:[#allocation3 + $0x48] sm:$0xff] %v6269
        %v6280 = vld [vmem:[#allocation3] sm:$0xff]
        %v6281 = vld [vmem:[#allocation3 + $0x8] sm:$0xff]
        %v6282 = vld [vmem:[#allocation3 + $0x10] sm:$0xff]
        %v6283 = vld [vmem:[#allocation3 + $0x18] sm:$0xff]
        %v6284 = vld [vmem:[#allocation3 + $0x20] sm:$0xff]
        %v6285 = vld [vmem:[#allocation3 + $0x28] sm:$0xff]
        %v6286 = vld [vmem:[#allocation3 + $0x30] sm:$0xff]
        %v6287 = vld [vmem:[#allocation3 + $0x38] sm:$0xff]
        %v6288 = vld [vmem:[#allocation3 + $0x40] sm:$0x1f]
        %v6289 = vld [vmem:[#allocation3 + $0x1] sm:$0xff]
        %v6290 = vld [vmem:[#allocation3 + $0x9] sm:$0xff]
        %v6291 = vld [vmem:[#allocation3 + $0x11] sm:$0xff]
        %v6292 = vld [vmem:[#allocation3 + $0x19] sm:$0xff]
        %v6293 = vld [vmem:[#allocation3 + $0x21] sm:$0xff]
        %v6294 = vld [vmem:[#allocation3 + $0x29] sm:$0xff]
        %v6295 = vld [vmem:[#allocation3 + $0x31] sm:$0xff]
        %v6296 = vld [vmem:[#allocation3 + $0x39] sm:$0xff]
        %v6297 = vld [vmem:[#allocation3 + $0x41] sm:$0x1f]
        %v6298 = vmax.f32 %v6280, %v6289
        %v6299 = vmax.f32 %v6281, %v6290
        %v6300 = vmax.f32 %v6282, %v6291
        %v6301 = vmax.f32 %v6283, %v6292
        %v6302 = vmax.f32 %v6284, %v6293
        %v6303 = vmax.f32 %v6285, %v6294
        %v6304 = vmax.f32 %v6286, %v6295
        %v6305 = vmax.f32 %v6287, %v6296
        %v6306 = vmax.f32 %v6288, %v6297
        %v6307 = vld [vmem:[#allocation3 + $0xa] sm:$0xff]
        %v6308 = vld [vmem:[#allocation3 + $0x12] sm:$0xff]
        %v6309 = vld [vmem:[#allocation3 + $0x1a] sm:$0xff]
        %v6310 = vld [vmem:[#allocation3 + $0x22] sm:$0xff]
        %v6311 = vld [vmem:[#allocation3 + $0x2a] sm:$0xff]
        %v6312 = vld [vmem:[#allocation3 + $0x32] sm:$0xff]
        %v6313 = vld [vmem:[#allocation3 + $0x3a] sm:$0xff]
        %v6314 = vld [vmem:[#allocation3 + $0x42] sm:$0xff]
        %v6315 = vld [vmem:[#allocation3 + $0x4a] sm:$0x1f]
        %v6316 = vld [vmem:[#allocation3 + $0xb] sm:$0xff]
        %v6317 = vld [vmem:[#allocation3 + $0x13] sm:$0xff]
        %v6318 = vld [vmem:[#allocation3 + $0x1b] sm:$0xff]
        %v6319 = vld [vmem:[#allocation3 + $0x23] sm:$0xff]
        %v6320 = vld [vmem:[#allocation3 + $0x2b] sm:$0xff]
        %v6321 = vld [vmem:[#allocation3 + $0x33] sm:$0xff]
        %v6322 = vld [vmem:[#allocation3 + $0x3b] sm:$0xff]
        %v6323 = vld [vmem:[#allocation3 + $0x43] sm:$0xff]
        %v6324 = vld [vmem:[#allocation3 + $0x4b] sm:$0x1f]
        %v6325 = vmax.f32 %v6307, %v6316
        %v6326 = vmax.f32 %v6308, %v6317
        %v6327 = vmax.f32 %v6309, %v6318
        %v6328 = vmax.f32 %v6310, %v6319
        %v6329 = vmax.f32 %v6311, %v6320
        %v6330 = vmax.f32 %v6312, %v6321
        %v6331 = vmax.f32 %v6313, %v6322
        %v6332 = vmax.f32 %v6314, %v6323
        %v6333 = vmax.f32 %v6315, %v6324
        %v6334 = vmax.f32 %v6298, %v6325
        %v6335 = vmax.f32 %v6299, %v6326
        %v6336 = vmax.f32 %v6300, %v6327
        %v6337 = vmax.f32 %v6301, %v6328
        %v6338 = vmax.f32 %v6302, %v6329
        %v6339 = vmax.f32 %v6303, %v6330
        %v6340 = vmax.f32 %v6304, %v6331
        %v6341 = vmax.f32 %v6305, %v6332
        %v6342 = vmax.f32 %v6306, %v6333
        %6343 = vst [vmem:[#allocation3] sm:$0xff] %v6334
        %6344 = vst [vmem:[#allocation3 + $0x8] sm:$0xff] %v6335
        %6345 = vst [vmem:[#allocation3 + $0x10] sm:$0xff] %v6336
        %6346 = vst [vmem:[#allocation3 + $0x18] sm:$0xff] %v6337
        %6347 = vst [vmem:[#allocation3 + $0x20] sm:$0xff] %v6338
        %6348 = vst [vmem:[#allocation3 + $0x28] sm:$0xff] %v6339
        %6349 = vst [vmem:[#allocation3 + $0x30] sm:$0xff] %v6340
        %6350 = vst [vmem:[#allocation3 + $0x38] sm:$0xff] %v6341
        %6351 = vst [vmem:[#allocation3 + $0x40] sm:$0x1f] %v6342
        %6352 = vst [vmem:[#allocation2] sm:$0xf] 0
        %6353 = vst [vmem:[#allocation2 + $0xc] sm:$0x8] 0
        %6354 = vst [vmem:[#allocation2 + $0x10] sm:$0x7] 0
        %v6355 = vld [vmem:[%s4456] ss:$2 sm:$0xf]
        %v6356 = vpack.c.bf16 %v6355, %v6355
        %6357 = vst [vmem:[#allocation2 + $0x4] sm:$0x3] %v6356
        %6358 = vst [vmem:[#allocation2 + $0x4] sm:$0x4] 0
        %s6359 = scalar_lea.vmem [#allocation3], 21
        %v6360 = vld [vmem:[%s6359] ss:$2 sm:$0xf]
        %v6361 = vpack.c.bf16 %v6360, %v6360
        %v6363 = vunpack.c.l.b16 %v6361
        %v6364 = vpack.c.b16 %v6363, %v6363
        %v6365 = vrot.slane %v6364, 5
        %v6366 = vrot.slane %v6365, 4
        %6369 = vst [vmem:[#allocation2 + $0x4] sm:$0x8] %v6365
        %6370 = vst [vmem:[#allocation2 + $0x8] sm:$0x1] %v6366
        %6371 = vst [vmem:[#allocation2 + $0x8] sm:$0x2] 0
        %s6372 = scalar_lea.vmem [#allocation3], 41
        %v6373 = vld [vmem:[%s6372] ss:$2 sm:$0xf]
        %v6374 = vpack.c.bf16 %v6373, %v6373
        %v6376 = vunpack.c.l.b16 %v6374
        %v6377 = vpack.c.b16 %v6376, %v6376
        %v6378 = vrot.slane %v6377, 6
        %6380 = vst [vmem:[#allocation2 + $0x8] sm:$0xc] %v6378
        %6381 = vst [vmem:[#allocation2 + $0xc] sm:$0x1] 0
        %s6382 = scalar_lea.vmem [#allocation3], 61
        %v6383 = vld [vmem:[%s6382] ss:$2 sm:$0xf]
        %v6384 = vpack.c.bf16 %v6383, %v6383
        %v6386 = vunpack.c.l.b16 %v6384
        %v6387 = vpack.c.b16 %v6386, %v6386
        %v6388 = vrot.slane %v6387, 7
        %6390 = vst [vmem:[#allocation2 + $0xc] sm:$0x6] %v6388
        %v6391 = vld [vmem:[#allocation2] sm:$0xf]
        %v6392 = vld [vmem:[#allocation2 + $0x4] sm:$0xf]
        %v6393 = vld [vmem:[#allocation2 + $0x8] sm:$0xf]
        %s6394 = scalar_lea.vmem %s1, 1152
        %v6395 = vld [vmem:[%s6394] sm:$0xf]
        %v6396 = vld [vmem:[%s6394 + $0x4] sm:$0xf]
        %v6397 = vld [vmem:[%s6394 + $0x8] sm:$0xf]
        %v6398 = vld [vmem:[%s6394 + $0xc] sm:$0xf]
        %v6399 = vld [vmem:[%s6394 + $0x10] sm:$0xf]
        %v6400 = vld [vmem:[%s6394 + $0x14] sm:$0xf]
        %v6401 = vld [vmem:[%s6394 + $0x18] sm:$0xf]
        %v6402 = vld [vmem:[%s6394 + $0x1c] sm:$0xf]
        %v6403 = vld [vmem:[%s6394 + $0x20] sm:$0xf]
        %v6404 = vld [vmem:[%s6394 + $0x24] sm:$0xf]
        %v6405 = vld [vmem:[%s6394 + $0x28] sm:$0xf]
        %v6406 = vld [vmem:[%s6394 + $0x2c] sm:$0xf]
        %v6407 = vld [vmem:[%s6394 + $0x30] sm:$0xf]
        %v6408 = vld [vmem:[%s6394 + $0x34] sm:$0xf]
        %v6409 = vld [vmem:[%s6394 + $0x38] sm:$0xf]
        %v6410 = vld [vmem:[%s6394 + $0x3c] sm:$0xf]
        %v6411 = vld [vmem:[#allocation2 + $0xc] sm:$0x1]
        %s6412 = scalar_lea.vmem %s1, 1216
        %v6413 = vld [vmem:[%s6412] sm:$0xf]
        %v6414 = vld [vmem:[%s6412 + $0x4] sm:$0xf]
        %v6415 = vld [vmem:[%s6412 + $0x8] sm:$0xf]
        %v6416 = vld [vmem:[%s6412 + $0xc] sm:$0xf]
        %v6417 = vld [vmem:[%s6412 + $0x10] sm:$0xf]
        %v6418 = vld [vmem:[%s6412 + $0x14] sm:$0xf]
        %v6419 = vld [vmem:[%s6412 + $0x18] sm:$0xf]
        %v6420 = vld [vmem:[%s6412 + $0x1c] sm:$0xf]
        %v6421 = vld [vmem:[%s6412 + $0x20] sm:$0xf]
        %v6422 = vld [vmem:[%s6412 + $0x24] sm:$0xf]
        %v6423 = vld [vmem:[%s6412 + $0x28] sm:$0xf]
        %v6424 = vld [vmem:[%s6412 + $0x2c] sm:$0xf]
        %v6425 = vld [vmem:[%s6412 + $0x30] sm:$0xf]
        %v6426 = vld [vmem:[%s6412 + $0x34] sm:$0xf]
        %v6427 = vld [vmem:[%s6412 + $0x38] sm:$0xf]
        %v6428 = vld [vmem:[%s6412 + $0x3c] sm:$0xf]
        %v6433 = vunpack.c.l.b16 %v6391
        %v6434 = vunpack.c.l.b16 %v6392
        %v6435 = vunpack.c.l.b16 %v6393
        %v6436 = vunpack.c.l.b16 %v6411
        %v6437 = vpack.c.b16 %v6434, %v6433
        %v6438 = vpack.c.b16 %v6436, %v6435
        %v6440 = vshrl.u32 %v6437, 16
        %v6442 = vshll.u32 %v6437, 16
        %v6444 = vrot.slane %v6442, 1
        %v6445 = vor.u32 %v6440, %v6444
        %v6447 = vshll.u32 %v6438, 16
        %v6449 = vrot.slane %v6447, 1
        %v6450 = vsel %vm548, %v6445, %v6449
        %v6451 = vshrl.u32 %v6438, 16
        %v6453 = vor.u32 %v6451, %v6449
        %v6472 = vunpack.c.l.b16 %v6413
        %v6473 = vunpack.c.l.b16 %v6414
        %v6474 = vunpack.c.l.b16 %v6415
        %v6475 = vunpack.c.l.b16 %v6416
        %v6476 = vunpack.c.l.b16 %v6417
        %v6477 = vunpack.c.l.b16 %v6418
        %v6478 = vunpack.c.l.b16 %v6419
        %v6479 = vunpack.c.l.b16 %v6420
        %v6480 = vunpack.c.l.b16 %v6421
        %v6481 = vunpack.c.l.b16 %v6422
        %v6482 = vunpack.c.l.b16 %v6423
        %v6483 = vunpack.c.l.b16 %v6424
        %v6484 = vunpack.c.l.b16 %v6425
        %v6485 = vunpack.c.l.b16 %v6426
        %v6486 = vunpack.c.l.b16 %v6427
        %v6487 = vunpack.c.l.b16 %v6428
        %v6488 = vpack.c.b16 %v6473, %v6472
        %v6489 = vpack.c.b16 %v6475, %v6474
        %v6490 = vpack.c.b16 %v6477, %v6476
        %v6491 = vpack.c.b16 %v6479, %v6478
        %v6492 = vpack.c.b16 %v6481, %v6480
        %v6493 = vpack.c.b16 %v6483, %v6482
        %v6494 = vpack.c.b16 %v6485, %v6484
        %v6495 = vpack.c.b16 %v6487, %v6486
        %6504 = vmatprep.subr.bf16.mxu0 0
        %6505 = vmatpush1.bf16.msra.mxu0 %v6495
        %6506 = vmatprep.subr.bf16.mxu0 0
        %6507 = vmatpush1.bf16.msra.mxu0 %v6494
        %6508 = vmatprep.subr.bf16.mxu0 0
        %6509 = vmatpush1.bf16.msra.mxu0 %v6493
        %6510 = vmatprep.subr.bf16.mxu0 0
        %6511 = vmatpush1.bf16.msra.mxu0 %v6492
        %6512 = vmatprep.subr.bf16.mxu0 0
        %6513 = vmatpush1.bf16.msra.mxu0 %v6491
        %6514 = vmatprep.subr.bf16.mxu0 0
        %6515 = vmatpush1.bf16.msra.mxu0 %v6490
        %6516 = vmatprep.subr.bf16.mxu0 0
        %6517 = vmatpush1.bf16.msra.mxu0 %v6489
        %6518 = vmatprep.subr.bf16.mxu0 0
        %6519 = vmatpush1.bf16.msra.mxu0 %v6488
        %6520 = vmatprep.subr.bf16.mxu0 0
        %6521 = vmatpush2.bf16.msra.mxu0 0
        %6522 = vmatprep.subr.bf16.mxu0 0
        %6523 = vmatpush2.bf16.msra.mxu0 0
        %6524 = vmatprep.subr.bf16.mxu0 0
        %6525 = vmatpush2.bf16.msra.mxu0 0
        %6526 = vmatprep.subr.bf16.mxu0 0
        %6527 = vmatpush2.bf16.msra.mxu0 0
        %6528 = vmatprep.subr.bf16.mxu0 0
        %6529 = vmatpush2.bf16.msra.mxu0 0
        %6530 = vmatprep.subr.bf16.mxu0 0
        %6531 = vmatpush2.bf16.msra.mxu0 0
        %6532 = vmatprep.subr.bf16.mxu0 0
        %6533 = vmatpush2.bf16.msra.mxu0 0
        %6534 = vmatprep.subr.bf16.mxu0 0
        %6535 = vmatpush2.bf16.msra.mxu0 0
        %6536 = vmatprep.mubr.bf16.mxu0 0
        %6537 = vmatmul.mubr.bf16.gmra.mxu0 %v6450
        %v6538 = vpop.f32.mrf.mxu0
        %v6539 = vadd.f32 0.0, %v6538
        %v6540 = vpop.f32.mrf.mxu0
        %v6541 = vpop.f32.mrf.mxu0
        %v6542 = vadd.f32 0.0, %v6541
        %v6543 = vpop.f32.mrf.mxu0
        %6544 = vmatprep.mubr.bf16.mxu0 0
        %6545 = vmatmul.mubr.bf16.gmra.mxu0 %v6453
        %v6546 = vpop.f32.mrf.mxu0
        %v6547 = vadd.f32 0.0, %v6546
        %v6548 = vpop.f32.mrf.mxu0
        %v6549 = vpop.f32.mrf.mxu0
        %v6550 = vpop.f32.mrf.mxu0
        %6551 = vdwg.mxu0
        %v6552 = vpack.c.b16 %v6435, %v6435
        %v6571 = vunpack.c.l.b16 %v6395
        %v6572 = vunpack.c.l.b16 %v6396
        %v6573 = vunpack.c.l.b16 %v6397
        %v6574 = vunpack.c.l.b16 %v6398
        %v6575 = vunpack.c.l.b16 %v6399
        %v6576 = vunpack.c.l.b16 %v6400
        %v6577 = vunpack.c.l.b16 %v6401
        %v6578 = vunpack.c.l.b16 %v6402
        %v6579 = vunpack.c.l.b16 %v6403
        %v6580 = vunpack.c.l.b16 %v6404
        %v6581 = vunpack.c.l.b16 %v6405
        %v6582 = vunpack.c.l.b16 %v6406
        %v6583 = vunpack.c.l.b16 %v6407
        %v6584 = vunpack.c.l.b16 %v6408
        %v6585 = vunpack.c.l.b16 %v6409
        %v6586 = vunpack.c.l.b16 %v6410
        %v6587 = vpack.c.b16 %v6572, %v6571
        %v6588 = vpack.c.b16 %v6574, %v6573
        %v6589 = vpack.c.b16 %v6576, %v6575
        %v6590 = vpack.c.b16 %v6578, %v6577
        %v6591 = vpack.c.b16 %v6580, %v6579
        %v6592 = vpack.c.b16 %v6582, %v6581
        %v6593 = vpack.c.b16 %v6584, %v6583
        %v6594 = vpack.c.b16 %v6586, %v6585
        %6603 = vmatprep.subr.bf16.mxu0 0
        %6604 = vmatpush1.bf16.msra.mxu0 %v6594
        %6605 = vmatprep.subr.bf16.mxu0 0
        %6606 = vmatpush1.bf16.msra.mxu0 %v6593
        %6607 = vmatprep.subr.bf16.mxu0 0
        %6608 = vmatpush1.bf16.msra.mxu0 %v6592
        %6609 = vmatprep.subr.bf16.mxu0 0
        %6610 = vmatpush1.bf16.msra.mxu0 %v6591
        %6611 = vmatprep.subr.bf16.mxu0 0
        %6612 = vmatpush1.bf16.msra.mxu0 %v6590
        %6613 = vmatprep.subr.bf16.mxu0 0
        %6614 = vmatpush1.bf16.msra.mxu0 %v6589
        %6615 = vmatprep.subr.bf16.mxu0 0
        %6616 = vmatpush1.bf16.msra.mxu0 %v6588
        %6617 = vmatprep.subr.bf16.mxu0 0
        %6618 = vmatpush1.bf16.msra.mxu0 %v6587
        %6619 = vmatprep.subr.bf16.mxu0 0
        %6620 = vmatpush2.bf16.msra.mxu0 0
        %6621 = vmatprep.subr.bf16.mxu0 0
        %6622 = vmatpush2.bf16.msra.mxu0 0
        %6623 = vmatprep.subr.bf16.mxu0 0
        %6624 = vmatpush2.bf16.msra.mxu0 0
        %6625 = vmatprep.subr.bf16.mxu0 0
        %6626 = vmatpush2.bf16.msra.mxu0 0
        %6627 = vmatprep.subr.bf16.mxu0 0
        %6628 = vmatpush2.bf16.msra.mxu0 0
        %6629 = vmatprep.subr.bf16.mxu0 0
        %6630 = vmatpush2.bf16.msra.mxu0 0
        %6631 = vmatprep.subr.bf16.mxu0 0
        %6632 = vmatpush2.bf16.msra.mxu0 0
        %6633 = vmatprep.subr.bf16.mxu0 0
        %6634 = vmatpush2.bf16.msra.mxu0 0
        %6635 = vmatprep.mubr.bf16.mxu0 0
        %6636 = vmatmul.mubr.bf16.gmra.mxu0 %v6437
        %v6637 = vpop.f32.mrf.mxu0
        %v6638 = vadd.f32 %v6539, %v6637
        %v6639 = vpop.f32.mrf.mxu0
        %v6640 = vpop.f32.mrf.mxu0
        %v6641 = vadd.f32 %v6542, %v6640
        %v6642 = vpop.f32.mrf.mxu0
        %6643 = vmatprep.mubr.bf16.mxu0 0
        %6644 = vmatmul.mubr.bf16.gmra.mxu0 %v6552
        %v6645 = vpop.f32.mrf.mxu0
        %v6646 = vadd.f32 %v6547, %v6645
        %v6647 = vpop.f32.mrf.mxu0
        %v6648 = vpop.f32.mrf.mxu0
        %v6649 = vpop.f32.mrf.mxu0
        %6650 = vdwg.mxu0
        %v6651 = vld [vmem:[#allocation2] sm:$0xe]
        %s6652 = scalar_lea.vmem %s1, 1280
        %v6653 = vld [vmem:[%s6652] sm:$0xf]
        %v6654 = vld [vmem:[%s6652 + $0x4] sm:$0xf]
        %v6655 = vld [vmem:[%s6652 + $0x8] sm:$0xf]
        %v6656 = vld [vmem:[%s6652 + $0xc] sm:$0xf]
        %v6657 = vld [vmem:[%s6652 + $0x10] sm:$0xf]
        %v6658 = vld [vmem:[%s6652 + $0x14] sm:$0xf]
        %v6659 = vld [vmem:[%s6652 + $0x18] sm:$0xf]
        %v6660 = vld [vmem:[%s6652 + $0x1c] sm:$0xf]
        %v6661 = vld [vmem:[%s6652 + $0x20] sm:$0xf]
        %v6662 = vld [vmem:[%s6652 + $0x24] sm:$0xf]
        %v6663 = vld [vmem:[%s6652 + $0x28] sm:$0xf]
        %v6664 = vld [vmem:[%s6652 + $0x2c] sm:$0xf]
        %v6665 = vld [vmem:[%s6652 + $0x30] sm:$0xf]
        %v6666 = vld [vmem:[%s6652 + $0x34] sm:$0xf]
        %v6667 = vld [vmem:[%s6652 + $0x38] sm:$0xf]
        %v6668 = vld [vmem:[%s6652 + $0x3c] sm:$0xf]
        %v6670 = vunpack.c.l.b16 %v6651
        %v6671 = vpack.c.b16 %v6434, %v6670
        %v6672 = vrot.slane %v6671, 1
        %v6673 = vrot.slane %v6438, 1
        %v6674 = vsel %vm1204, %v6672, %v6673
        %v6693 = vunpack.c.l.b16 %v6653
        %v6694 = vunpack.c.l.b16 %v6654
        %v6695 = vunpack.c.l.b16 %v6655
        %v6696 = vunpack.c.l.b16 %v6656
        %v6697 = vunpack.c.l.b16 %v6657
        %v6698 = vunpack.c.l.b16 %v6658
        %v6699 = vunpack.c.l.b16 %v6659
        %v6700 = vunpack.c.l.b16 %v6660
        %v6701 = vunpack.c.l.b16 %v6661
        %v6702 = vunpack.c.l.b16 %v6662
        %v6703 = vunpack.c.l.b16 %v6663
        %v6704 = vunpack.c.l.b16 %v6664
        %v6705 = vunpack.c.l.b16 %v6665
        %v6706 = vunpack.c.l.b16 %v6666
        %v6707 = vunpack.c.l.b16 %v6667
        %v6708 = vunpack.c.l.b16 %v6668
        %v6709 = vpack.c.b16 %v6694, %v6693
        %v6710 = vpack.c.b16 %v6696, %v6695
        %v6711 = vpack.c.b16 %v6698, %v6697
        %v6712 = vpack.c.b16 %v6700, %v6699
        %v6713 = vpack.c.b16 %v6702, %v6701
        %v6714 = vpack.c.b16 %v6704, %v6703
        %v6715 = vpack.c.b16 %v6706, %v6705
        %v6716 = vpack.c.b16 %v6708, %v6707
        %6725 = vmatprep.subr.bf16.mxu0 0
        %6726 = vmatpush1.bf16.msra.mxu0 %v6716
        %6727 = vmatprep.subr.bf16.mxu0 0
        %6728 = vmatpush1.bf16.msra.mxu0 %v6715
        %6729 = vmatprep.subr.bf16.mxu0 0
        %6730 = vmatpush1.bf16.msra.mxu0 %v6714
        %6731 = vmatprep.subr.bf16.mxu0 0
        %6732 = vmatpush1.bf16.msra.mxu0 %v6713
        %6733 = vmatprep.subr.bf16.mxu0 0
        %6734 = vmatpush1.bf16.msra.mxu0 %v6712
        %6735 = vmatprep.subr.bf16.mxu0 0
        %6736 = vmatpush1.bf16.msra.mxu0 %v6711
        %6737 = vmatprep.subr.bf16.mxu0 0
        %6738 = vmatpush1.bf16.msra.mxu0 %v6710
        %6739 = vmatprep.subr.bf16.mxu0 0
        %6740 = vmatpush1.bf16.msra.mxu0 %v6709
        %6741 = vmatprep.subr.bf16.mxu0 0
        %6742 = vmatpush2.bf16.msra.mxu0 0
        %6743 = vmatprep.subr.bf16.mxu0 0
        %6744 = vmatpush2.bf16.msra.mxu0 0
        %6745 = vmatprep.subr.bf16.mxu0 0
        %6746 = vmatpush2.bf16.msra.mxu0 0
        %6747 = vmatprep.subr.bf16.mxu0 0
        %6748 = vmatpush2.bf16.msra.mxu0 0
        %6749 = vmatprep.subr.bf16.mxu0 0
        %6750 = vmatpush2.bf16.msra.mxu0 0
        %6751 = vmatprep.subr.bf16.mxu0 0
        %6752 = vmatpush2.bf16.msra.mxu0 0
        %6753 = vmatprep.subr.bf16.mxu0 0
        %6754 = vmatpush2.bf16.msra.mxu0 0
        %6755 = vmatprep.subr.bf16.mxu0 0
        %6756 = vmatpush2.bf16.msra.mxu0 0
        %6757 = vmatprep.mubr.bf16.mxu0 0
        %6758 = vmatmul.mubr.bf16.gmra.mxu0 %v6674
        %v6759 = vpop.f32.mrf.mxu0
        %v6760 = vadd.f32 0.0, %v6759
        %v6761 = vpop.f32.mrf.mxu0
        %v6762 = vpop.f32.mrf.mxu0
        %v6763 = vadd.f32 0.0, %v6762
        %v6764 = vpop.f32.mrf.mxu0
        %6765 = vmatprep.mubr.bf16.mxu0 0
        %6766 = vmatmul.mubr.bf16.gmra.mxu0 %v6673
        %v6767 = vpop.f32.mrf.mxu0
        %v6768 = vadd.f32 0.0, %v6767
        %v6769 = vpop.f32.mrf.mxu0
        %v6770 = vpop.f32.mrf.mxu0
        %v6771 = vpop.f32.mrf.mxu0
        %6772 = vdwg.mxu0
        %v6773 = vadd.f32 %v6638, %v6760
        %v6774 = vadd.f32 %v6641, %v6763
        %v6775 = vadd.f32 %v6646, %v6768
        %v6776 = vld [vmem:[#allocation2] sm:$0x8]
        %v6777 = vld [vmem:[#allocation2 + $0xc] sm:$0x7]
        %s6778 = scalar_lea.vmem %s1, 1344
        %v6779 = vld [vmem:[%s6778] sm:$0xf]
        %v6780 = vld [vmem:[%s6778 + $0x4] sm:$0xf]
        %v6781 = vld [vmem:[%s6778 + $0x8] sm:$0xf]
        %v6782 = vld [vmem:[%s6778 + $0xc] sm:$0xf]
        %v6783 = vld [vmem:[%s6778 + $0x10] sm:$0xf]
        %v6784 = vld [vmem:[%s6778 + $0x14] sm:$0xf]
        %v6785 = vld [vmem:[%s6778 + $0x18] sm:$0xf]
        %v6786 = vld [vmem:[%s6778 + $0x1c] sm:$0xf]
        %v6787 = vld [vmem:[%s6778 + $0x20] sm:$0xf]
        %v6788 = vld [vmem:[%s6778 + $0x24] sm:$0xf]
        %v6789 = vld [vmem:[%s6778 + $0x28] sm:$0xf]
        %v6790 = vld [vmem:[%s6778 + $0x2c] sm:$0xf]
        %v6791 = vld [vmem:[%s6778 + $0x30] sm:$0xf]
        %v6792 = vld [vmem:[%s6778 + $0x34] sm:$0xf]
        %v6793 = vld [vmem:[%s6778 + $0x38] sm:$0xf]
        %v6794 = vld [vmem:[%s6778 + $0x3c] sm:$0xf]
        %v6797 = vunpack.c.l.b16 %v6776
        %v6798 = vunpack.c.l.b16 %v6777
        %v6799 = vpack.c.b16 %v6434, %v6797
        %v6800 = vpack.c.b16 %v6798, %v6435
        %v6801 = vrot.slane %v6799, 3
        %v6802 = vrot.slane %v6800, 3
        %v6803 = vsel %vm3748, %v6801, %v6802
        %v6822 = vunpack.c.l.b16 %v6779
        %v6823 = vunpack.c.l.b16 %v6780
        %v6824 = vunpack.c.l.b16 %v6781
        %v6825 = vunpack.c.l.b16 %v6782
        %v6826 = vunpack.c.l.b16 %v6783
        %v6827 = vunpack.c.l.b16 %v6784
        %v6828 = vunpack.c.l.b16 %v6785
        %v6829 = vunpack.c.l.b16 %v6786
        %v6830 = vunpack.c.l.b16 %v6787
        %v6831 = vunpack.c.l.b16 %v6788
        %v6832 = vunpack.c.l.b16 %v6789
        %v6833 = vunpack.c.l.b16 %v6790
        %v6834 = vunpack.c.l.b16 %v6791
        %v6835 = vunpack.c.l.b16 %v6792
        %v6836 = vunpack.c.l.b16 %v6793
        %v6837 = vunpack.c.l.b16 %v6794
        %v6838 = vpack.c.b16 %v6823, %v6822
        %v6839 = vpack.c.b16 %v6825, %v6824
        %v6840 = vpack.c.b16 %v6827, %v6826
        %v6841 = vpack.c.b16 %v6829, %v6828
        %v6842 = vpack.c.b16 %v6831, %v6830
        %v6843 = vpack.c.b16 %v6833, %v6832
        %v6844 = vpack.c.b16 %v6835, %v6834
        %v6845 = vpack.c.b16 %v6837, %v6836
        %6854 = vmatprep.subr.bf16.mxu0 0
        %6855 = vmatpush1.bf16.msra.mxu0 %v6845
        %6856 = vmatprep.subr.bf16.mxu0 0
        %6857 = vmatpush1.bf16.msra.mxu0 %v6844
        %6858 = vmatprep.subr.bf16.mxu0 0
        %6859 = vmatpush1.bf16.msra.mxu0 %v6843
        %6860 = vmatprep.subr.bf16.mxu0 0
        %6861 = vmatpush1.bf16.msra.mxu0 %v6842
        %6862 = vmatprep.subr.bf16.mxu0 0
        %6863 = vmatpush1.bf16.msra.mxu0 %v6841
        %6864 = vmatprep.subr.bf16.mxu0 0
        %6865 = vmatpush1.bf16.msra.mxu0 %v6840
        %6866 = vmatprep.subr.bf16.mxu0 0
        %6867 = vmatpush1.bf16.msra.mxu0 %v6839
        %6868 = vmatprep.subr.bf16.mxu0 0
        %6869 = vmatpush1.bf16.msra.mxu0 %v6838
        %6870 = vmatprep.subr.bf16.mxu0 0
        %6871 = vmatpush2.bf16.msra.mxu0 0
        %6872 = vmatprep.subr.bf16.mxu0 0
        %6873 = vmatpush2.bf16.msra.mxu0 0
        %6874 = vmatprep.subr.bf16.mxu0 0
        %6875 = vmatpush2.bf16.msra.mxu0 0
        %6876 = vmatprep.subr.bf16.mxu0 0
        %6877 = vmatpush2.bf16.msra.mxu0 0
        %6878 = vmatprep.subr.bf16.mxu0 0
        %6879 = vmatpush2.bf16.msra.mxu0 0
        %6880 = vmatprep.subr.bf16.mxu0 0
        %6881 = vmatpush2.bf16.msra.mxu0 0
        %6882 = vmatprep.subr.bf16.mxu0 0
        %6883 = vmatpush2.bf16.msra.mxu0 0
        %6884 = vmatprep.subr.bf16.mxu0 0
        %6885 = vmatpush2.bf16.msra.mxu0 0
        %6886 = vmatprep.mubr.bf16.mxu0 0
        %6887 = vmatmul.mubr.bf16.gmra.mxu0 %v6803
        %v6888 = vpop.f32.mrf.mxu0
        %v6889 = vadd.f32 0.0, %v6888
        %v6890 = vpop.f32.mrf.mxu0
        %v6891 = vpop.f32.mrf.mxu0
        %v6892 = vadd.f32 0.0, %v6891
        %v6893 = vpop.f32.mrf.mxu0
        %6894 = vmatprep.mubr.bf16.mxu0 0
        %6895 = vmatmul.mubr.bf16.gmra.mxu0 %v6802
        %v6896 = vpop.f32.mrf.mxu0
        %v6897 = vadd.f32 0.0, %v6896
        %v6898 = vpop.f32.mrf.mxu0
        %v6899 = vpop.f32.mrf.mxu0
        %v6900 = vpop.f32.mrf.mxu0
        %6901 = vdwg.mxu0
        %v6902 = vadd.f32 %v6773, %v6889
        %v6903 = vadd.f32 %v6774, %v6892
        %v6904 = vadd.f32 %v6775, %v6897
        %v6905 = vld [vmem:[#allocation2 + $0xc] sm:$0xf]
        %s6906 = scalar_lea.vmem %s1, 1408
        %v6907 = vld [vmem:[%s6906] sm:$0xf]
        %v6908 = vld [vmem:[%s6906 + $0x4] sm:$0xf]
        %v6909 = vld [vmem:[%s6906 + $0x8] sm:$0xf]
        %v6910 = vld [vmem:[%s6906 + $0xc] sm:$0xf]
        %v6911 = vld [vmem:[%s6906 + $0x10] sm:$0xf]
        %v6912 = vld [vmem:[%s6906 + $0x14] sm:$0xf]
        %v6913 = vld [vmem:[%s6906 + $0x18] sm:$0xf]
        %v6914 = vld [vmem:[%s6906 + $0x1c] sm:$0xf]
        %v6915 = vld [vmem:[%s6906 + $0x20] sm:$0xf]
        %v6916 = vld [vmem:[%s6906 + $0x24] sm:$0xf]
        %v6917 = vld [vmem:[%s6906 + $0x28] sm:$0xf]
        %v6918 = vld [vmem:[%s6906 + $0x2c] sm:$0xf]
        %v6919 = vld [vmem:[%s6906 + $0x30] sm:$0xf]
        %v6920 = vld [vmem:[%s6906 + $0x34] sm:$0xf]
        %v6921 = vld [vmem:[%s6906 + $0x38] sm:$0xf]
        %v6922 = vld [vmem:[%s6906 + $0x3c] sm:$0xf]
        %v6924 = vunpack.c.l.b16 %v6905
        %v6925 = vpack.c.b16 %v6924, %v6435
        %vm6926 = vsmask.f32 4352
        %v6928 = vshrl.u32 %v6799, 16
        %v6930 = vrot.slane %v6928, 3
        %v6931 = vshll.u32 %v6799, 16
        %v6933 = vrot.slane %v6931, 4
        %v6934 = vor.u32 %v6930, %v6933
        %v6936 = vshrl.u32 %v6925, 16
        %v6938 = vrot.slane %v6936, 3
        %v6939 = vshll.u32 %v6925, 16
        %v6941 = vrot.slane %v6939, 4
        %v6942 = vor.u32 %v6938, %v6941
        %v6943 = vsel %vm6926, %v6934, %v6942
        %v6962 = vunpack.c.l.b16 %v6907
        %v6963 = vunpack.c.l.b16 %v6908
        %v6964 = vunpack.c.l.b16 %v6909
        %v6965 = vunpack.c.l.b16 %v6910
        %v6966 = vunpack.c.l.b16 %v6911
        %v6967 = vunpack.c.l.b16 %v6912
        %v6968 = vunpack.c.l.b16 %v6913
        %v6969 = vunpack.c.l.b16 %v6914
        %v6970 = vunpack.c.l.b16 %v6915
        %v6971 = vunpack.c.l.b16 %v6916
        %v6972 = vunpack.c.l.b16 %v6917
        %v6973 = vunpack.c.l.b16 %v6918
        %v6974 = vunpack.c.l.b16 %v6919
        %v6975 = vunpack.c.l.b16 %v6920
        %v6976 = vunpack.c.l.b16 %v6921
        %v6977 = vunpack.c.l.b16 %v6922
        %v6978 = vpack.c.b16 %v6963, %v6962
        %v6979 = vpack.c.b16 %v6965, %v6964
        %v6980 = vpack.c.b16 %v6967, %v6966
        %v6981 = vpack.c.b16 %v6969, %v6968
        %v6982 = vpack.c.b16 %v6971, %v6970
        %v6983 = vpack.c.b16 %v6973, %v6972
        %v6984 = vpack.c.b16 %v6975, %v6974
        %v6985 = vpack.c.b16 %v6977, %v6976
        %6994 = vmatprep.subr.bf16.mxu0 0
        %6995 = vmatpush1.bf16.msra.mxu0 %v6985
        %6996 = vmatprep.subr.bf16.mxu0 0
        %6997 = vmatpush1.bf16.msra.mxu0 %v6984
        %6998 = vmatprep.subr.bf16.mxu0 0
        %6999 = vmatpush1.bf16.msra.mxu0 %v6983
        %7000 = vmatprep.subr.bf16.mxu0 0
        %7001 = vmatpush1.bf16.msra.mxu0 %v6982
        %7002 = vmatprep.subr.bf16.mxu0 0
        %7003 = vmatpush1.bf16.msra.mxu0 %v6981
        %7004 = vmatprep.subr.bf16.mxu0 0
        %7005 = vmatpush1.bf16.msra.mxu0 %v6980
        %7006 = vmatprep.subr.bf16.mxu0 0
        %7007 = vmatpush1.bf16.msra.mxu0 %v6979
        %7008 = vmatprep.subr.bf16.mxu0 0
        %7009 = vmatpush1.bf16.msra.mxu0 %v6978
        %7010 = vmatprep.subr.bf16.mxu0 0
        %7011 = vmatpush2.bf16.msra.mxu0 0
        %7012 = vmatprep.subr.bf16.mxu0 0
        %7013 = vmatpush2.bf16.msra.mxu0 0
        %7014 = vmatprep.subr.bf16.mxu0 0
        %7015 = vmatpush2.bf16.msra.mxu0 0
        %7016 = vmatprep.subr.bf16.mxu0 0
        %7017 = vmatpush2.bf16.msra.mxu0 0
        %7018 = vmatprep.subr.bf16.mxu0 0
        %7019 = vmatpush2.bf16.msra.mxu0 0
        %7020 = vmatprep.subr.bf16.mxu0 0
        %7021 = vmatpush2.bf16.msra.mxu0 0
        %7022 = vmatprep.subr.bf16.mxu0 0
        %7023 = vmatpush2.bf16.msra.mxu0 0
        %7024 = vmatprep.subr.bf16.mxu0 0
        %7025 = vmatpush2.bf16.msra.mxu0 0
        %7026 = vmatprep.mubr.bf16.mxu0 0
        %7027 = vmatmul.mubr.bf16.gmra.mxu0 %v6943
        %v7028 = vpop.f32.mrf.mxu0
        %v7029 = vadd.f32 0.0, %v7028
        %v7030 = vpop.f32.mrf.mxu0
        %v7031 = vpop.f32.mrf.mxu0
        %v7032 = vadd.f32 0.0, %v7031
        %v7033 = vpop.f32.mrf.mxu0
        %7034 = vmatprep.mubr.bf16.mxu0 0
        %7035 = vmatmul.mubr.bf16.gmra.mxu0 %v6942
        %v7036 = vpop.f32.mrf.mxu0
        %v7037 = vadd.f32 0.0, %v7036
        %v7038 = vpop.f32.mrf.mxu0
        %v7039 = vpop.f32.mrf.mxu0
        %v7040 = vpop.f32.mrf.mxu0
        %7041 = vdwg.mxu0
        %v7042 = vadd.f32 %v6902, %v7029
        %v7043 = vadd.f32 %v6903, %v7032
        %v7044 = vadd.f32 %v6904, %v7037
        %s7045 = scalar_lea.vmem %s1, 1472
        %v7046 = vld [vmem:[%s7045] sm:$0xf]
        %v7047 = vld [vmem:[%s7045 + $0x4] sm:$0xf]
        %v7048 = vld [vmem:[%s7045 + $0x8] sm:$0xf]
        %v7049 = vld [vmem:[%s7045 + $0xc] sm:$0xf]
        %v7050 = vld [vmem:[%s7045 + $0x10] sm:$0xf]
        %v7051 = vld [vmem:[%s7045 + $0x14] sm:$0xf]
        %v7052 = vld [vmem:[%s7045 + $0x18] sm:$0xf]
        %v7053 = vld [vmem:[%s7045 + $0x1c] sm:$0xf]
        %v7054 = vld [vmem:[%s7045 + $0x20] sm:$0xf]
        %v7055 = vld [vmem:[%s7045 + $0x24] sm:$0xf]
        %v7056 = vld [vmem:[%s7045 + $0x28] sm:$0xf]
        %v7057 = vld [vmem:[%s7045 + $0x2c] sm:$0xf]
        %v7058 = vld [vmem:[%s7045 + $0x30] sm:$0xf]
        %v7059 = vld [vmem:[%s7045 + $0x34] sm:$0xf]
        %v7060 = vld [vmem:[%s7045 + $0x38] sm:$0xf]
        %v7061 = vld [vmem:[%s7045 + $0x3c] sm:$0xf]
        %v7062 = vpack.c.b16 %v6435, %v6434
        %v7063 = vpack.c.b16 %v6924, %v6924
        %v7082 = vunpack.c.l.b16 %v7046
        %v7083 = vunpack.c.l.b16 %v7047
        %v7084 = vunpack.c.l.b16 %v7048
        %v7085 = vunpack.c.l.b16 %v7049
        %v7086 = vunpack.c.l.b16 %v7050
        %v7087 = vunpack.c.l.b16 %v7051
        %v7088 = vunpack.c.l.b16 %v7052
        %v7089 = vunpack.c.l.b16 %v7053
        %v7090 = vunpack.c.l.b16 %v7054
        %v7091 = vunpack.c.l.b16 %v7055
        %v7092 = vunpack.c.l.b16 %v7056
        %v7093 = vunpack.c.l.b16 %v7057
        %v7094 = vunpack.c.l.b16 %v7058
        %v7095 = vunpack.c.l.b16 %v7059
        %v7096 = vunpack.c.l.b16 %v7060
        %v7097 = vunpack.c.l.b16 %v7061
        %v7098 = vpack.c.b16 %v7083, %v7082
        %v7099 = vpack.c.b16 %v7085, %v7084
        %v7100 = vpack.c.b16 %v7087, %v7086
        %v7101 = vpack.c.b16 %v7089, %v7088
        %v7102 = vpack.c.b16 %v7091, %v7090
        %v7103 = vpack.c.b16 %v7093, %v7092
        %v7104 = vpack.c.b16 %v7095, %v7094
        %v7105 = vpack.c.b16 %v7097, %v7096
        %7114 = vmatprep.subr.bf16.mxu0 0
        %7115 = vmatpush1.bf16.msra.mxu0 %v7105
        %7116 = vmatprep.subr.bf16.mxu0 0
        %7117 = vmatpush1.bf16.msra.mxu0 %v7104
        %7118 = vmatprep.subr.bf16.mxu0 0
        %7119 = vmatpush1.bf16.msra.mxu0 %v7103
        %7120 = vmatprep.subr.bf16.mxu0 0
        %7121 = vmatpush1.bf16.msra.mxu0 %v7102
        %7122 = vmatprep.subr.bf16.mxu0 0
        %7123 = vmatpush1.bf16.msra.mxu0 %v7101
        %7124 = vmatprep.subr.bf16.mxu0 0
        %7125 = vmatpush1.bf16.msra.mxu0 %v7100
        %7126 = vmatprep.subr.bf16.mxu0 0
        %7127 = vmatpush1.bf16.msra.mxu0 %v7099
        %7128 = vmatprep.subr.bf16.mxu0 0
        %7129 = vmatpush1.bf16.msra.mxu0 %v7098
        %7130 = vmatprep.subr.bf16.mxu0 0
        %7131 = vmatpush2.bf16.msra.mxu0 0
        %7132 = vmatprep.subr.bf16.mxu0 0
        %7133 = vmatpush2.bf16.msra.mxu0 0
        %7134 = vmatprep.subr.bf16.mxu0 0
        %7135 = vmatpush2.bf16.msra.mxu0 0
        %7136 = vmatprep.subr.bf16.mxu0 0
        %7137 = vmatpush2.bf16.msra.mxu0 0
        %7138 = vmatprep.subr.bf16.mxu0 0
        %7139 = vmatpush2.bf16.msra.mxu0 0
        %7140 = vmatprep.subr.bf16.mxu0 0
        %7141 = vmatpush2.bf16.msra.mxu0 0
        %7142 = vmatprep.subr.bf16.mxu0 0
        %7143 = vmatpush2.bf16.msra.mxu0 0
        %7144 = vmatprep.subr.bf16.mxu0 0
        %7145 = vmatpush2.bf16.msra.mxu0 0
        %7146 = vmatprep.mubr.bf16.mxu0 0
        %7147 = vmatmul.mubr.bf16.gmra.mxu0 %v7062
        %v7148 = vpop.f32.mrf.mxu0
        %v7149 = vadd.f32 0.0, %v7148
        %v7150 = vpop.f32.mrf.mxu0
        %v7151 = vpop.f32.mrf.mxu0
        %v7152 = vadd.f32 0.0, %v7151
        %v7153 = vpop.f32.mrf.mxu0
        %7154 = vmatprep.mubr.bf16.mxu0 0
        %7155 = vmatmul.mubr.bf16.gmra.mxu0 %v7063
        %v7156 = vpop.f32.mrf.mxu0
        %v7157 = vadd.f32 0.0, %v7156
        %v7158 = vpop.f32.mrf.mxu0
        %v7159 = vpop.f32.mrf.mxu0
        %v7160 = vpop.f32.mrf.mxu0
        %7161 = vdwg.mxu0
        %v7162 = vadd.f32 %v7042, %v7149
        %v7163 = vadd.f32 %v7043, %v7152
        %v7164 = vadd.f32 %v7044, %v7157
        %v7165 = vld [vmem:[#allocation2 + $0x4] sm:$0xc]
        %v7166 = vld [vmem:[#allocation2 + $0x8] sm:$0xf]
        %v7167 = vld [vmem:[#allocation2 + $0xc] sm:$0xf]
        %v7168 = vld [vmem:[#allocation2 + $0x10] sm:$0x3]
        %s7169 = scalar_lea.vmem %s1, 1536
        %v7170 = vld [vmem:[%s7169] sm:$0xf]
        %v7171 = vld [vmem:[%s7169 + $0x4] sm:$0xf]
        %v7172 = vld [vmem:[%s7169 + $0x8] sm:$0xf]
        %v7173 = vld [vmem:[%s7169 + $0xc] sm:$0xf]
        %v7174 = vld [vmem:[%s7169 + $0x10] sm:$0xf]
        %v7175 = vld [vmem:[%s7169 + $0x14] sm:$0xf]
        %v7176 = vld [vmem:[%s7169 + $0x18] sm:$0xf]
        %v7177 = vld [vmem:[%s7169 + $0x1c] sm:$0xf]
        %v7178 = vld [vmem:[%s7169 + $0x20] sm:$0xf]
        %v7179 = vld [vmem:[%s7169 + $0x24] sm:$0xf]
        %v7180 = vld [vmem:[%s7169 + $0x28] sm:$0xf]
        %v7181 = vld [vmem:[%s7169 + $0x2c] sm:$0xf]
        %v7182 = vld [vmem:[%s7169 + $0x30] sm:$0xf]
        %v7183 = vld [vmem:[%s7169 + $0x34] sm:$0xf]
        %v7184 = vld [vmem:[%s7169 + $0x38] sm:$0xf]
        %v7185 = vld [vmem:[%s7169 + $0x3c] sm:$0xf]
        %v7190 = vunpack.c.l.b16 %v7165
        %v7191 = vunpack.c.l.b16 %v7166
        %v7192 = vunpack.c.l.b16 %v7167
        %v7193 = vunpack.c.l.b16 %v7168
        %v7194 = vpack.c.b16 %v7191, %v7190
        %v7195 = vpack.c.b16 %v7193, %v7192
        %v7196 = vrot.slane %v7194, 2
        %v7197 = vrot.slane %v7195, 2
        %v7198 = vsel %vm2476, %v7196, %v7197
        %v7217 = vunpack.c.l.b16 %v7170
        %v7218 = vunpack.c.l.b16 %v7171
        %v7219 = vunpack.c.l.b16 %v7172
        %v7220 = vunpack.c.l.b16 %v7173
        %v7221 = vunpack.c.l.b16 %v7174
        %v7222 = vunpack.c.l.b16 %v7175
        %v7223 = vunpack.c.l.b16 %v7176
        %v7224 = vunpack.c.l.b16 %v7177
        %v7225 = vunpack.c.l.b16 %v7178
        %v7226 = vunpack.c.l.b16 %v7179
        %v7227 = vunpack.c.l.b16 %v7180
        %v7228 = vunpack.c.l.b16 %v7181
        %v7229 = vunpack.c.l.b16 %v7182
        %v7230 = vunpack.c.l.b16 %v7183
        %v7231 = vunpack.c.l.b16 %v7184
        %v7232 = vunpack.c.l.b16 %v7185
        %v7233 = vpack.c.b16 %v7218, %v7217
        %v7234 = vpack.c.b16 %v7220, %v7219
        %v7235 = vpack.c.b16 %v7222, %v7221
        %v7236 = vpack.c.b16 %v7224, %v7223
        %v7237 = vpack.c.b16 %v7226, %v7225
        %v7238 = vpack.c.b16 %v7228, %v7227
        %v7239 = vpack.c.b16 %v7230, %v7229
        %v7240 = vpack.c.b16 %v7232, %v7231
        %7249 = vmatprep.subr.bf16.mxu0 0
        %7250 = vmatpush1.bf16.msra.mxu0 %v7240
        %7251 = vmatprep.subr.bf16.mxu0 0
        %7252 = vmatpush1.bf16.msra.mxu0 %v7239
        %7253 = vmatprep.subr.bf16.mxu0 0
        %7254 = vmatpush1.bf16.msra.mxu0 %v7238
        %7255 = vmatprep.subr.bf16.mxu0 0
        %7256 = vmatpush1.bf16.msra.mxu0 %v7237
        %7257 = vmatprep.subr.bf16.mxu0 0
        %7258 = vmatpush1.bf16.msra.mxu0 %v7236
        %7259 = vmatprep.subr.bf16.mxu0 0
        %7260 = vmatpush1.bf16.msra.mxu0 %v7235
        %7261 = vmatprep.subr.bf16.mxu0 0
        %7262 = vmatpush1.bf16.msra.mxu0 %v7234
        %7263 = vmatprep.subr.bf16.mxu0 0
        %7264 = vmatpush1.bf16.msra.mxu0 %v7233
        %7265 = vmatprep.subr.bf16.mxu0 0
        %7266 = vmatpush2.bf16.msra.mxu0 0
        %7267 = vmatprep.subr.bf16.mxu0 0
        %7268 = vmatpush2.bf16.msra.mxu0 0
        %7269 = vmatprep.subr.bf16.mxu0 0
        %7270 = vmatpush2.bf16.msra.mxu0 0
        %7271 = vmatprep.subr.bf16.mxu0 0
        %7272 = vmatpush2.bf16.msra.mxu0 0
        %7273 = vmatprep.subr.bf16.mxu0 0
        %7274 = vmatpush2.bf16.msra.mxu0 0
        %7275 = vmatprep.subr.bf16.mxu0 0
        %7276 = vmatpush2.bf16.msra.mxu0 0
        %7277 = vmatprep.subr.bf16.mxu0 0
        %7278 = vmatpush2.bf16.msra.mxu0 0
        %7279 = vmatprep.subr.bf16.mxu0 0
        %7280 = vmatpush2.bf16.msra.mxu0 0
        %7281 = vmatprep.mubr.bf16.mxu0 0
        %7282 = vmatmul.mubr.bf16.gmra.mxu0 %v7198
        %v7283 = vpop.f32.mrf.mxu0
        %v7284 = vadd.f32 0.0, %v7283
        %v7285 = vpop.f32.mrf.mxu0
        %v7286 = vpop.f32.mrf.mxu0
        %v7287 = vadd.f32 0.0, %v7286
        %v7288 = vpop.f32.mrf.mxu0
        %7289 = vmatprep.mubr.bf16.mxu0 0
        %7290 = vmatmul.mubr.bf16.gmra.mxu0 %v7197
        %v7291 = vpop.f32.mrf.mxu0
        %v7292 = vadd.f32 0.0, %v7291
        %v7293 = vpop.f32.mrf.mxu0
        %v7294 = vpop.f32.mrf.mxu0
        %v7295 = vpop.f32.mrf.mxu0
        %7296 = vdwg.mxu0
        %v7297 = vadd.f32 %v7162, %v7284
        %v7298 = vadd.f32 %v7163, %v7287
        %v7299 = vadd.f32 %v7164, %v7292
        %v7300 = vld [vmem:[#allocation2 + $0x10] sm:$0x7]
        %s7301 = scalar_lea.vmem %s1, 1600
        %v7302 = vld [vmem:[%s7301] sm:$0xf]
        %v7303 = vld [vmem:[%s7301 + $0x4] sm:$0xf]
        %v7304 = vld [vmem:[%s7301 + $0x8] sm:$0xf]
        %v7305 = vld [vmem:[%s7301 + $0xc] sm:$0xf]
        %v7306 = vld [vmem:[%s7301 + $0x10] sm:$0xf]
        %v7307 = vld [vmem:[%s7301 + $0x14] sm:$0xf]
        %v7308 = vld [vmem:[%s7301 + $0x18] sm:$0xf]
        %v7309 = vld [vmem:[%s7301 + $0x1c] sm:$0xf]
        %v7310 = vld [vmem:[%s7301 + $0x20] sm:$0xf]
        %v7311 = vld [vmem:[%s7301 + $0x24] sm:$0xf]
        %v7312 = vld [vmem:[%s7301 + $0x28] sm:$0xf]
        %v7313 = vld [vmem:[%s7301 + $0x2c] sm:$0xf]
        %v7314 = vld [vmem:[%s7301 + $0x30] sm:$0xf]
        %v7315 = vld [vmem:[%s7301 + $0x34] sm:$0xf]
        %v7316 = vld [vmem:[%s7301 + $0x38] sm:$0xf]
        %v7317 = vld [vmem:[%s7301 + $0x3c] sm:$0xf]
        %v7319 = vunpack.c.l.b16 %v7300
        %v7320 = vpack.c.b16 %v7319, %v7192
        %v7322 = vshrl.u32 %v7194, 16
        %v7324 = vrot.slane %v7322, 2
        %v7325 = vshll.u32 %v7194, 16
        %v7327 = vrot.slane %v7325, 3
        %v7328 = vor.u32 %v7324, %v7327
        %v7330 = vshrl.u32 %v7320, 16
        %v7332 = vrot.slane %v7330, 2
        %v7333 = vshll.u32 %v7320, 16
        %v7335 = vrot.slane %v7333, 3
        %v7336 = vor.u32 %v7332, %v7335
        %v7337 = vsel %vm3277, %v7328, %v7336
        %v7356 = vunpack.c.l.b16 %v7302
        %v7357 = vunpack.c.l.b16 %v7303
        %v7358 = vunpack.c.l.b16 %v7304
        %v7359 = vunpack.c.l.b16 %v7305
        %v7360 = vunpack.c.l.b16 %v7306
        %v7361 = vunpack.c.l.b16 %v7307
        %v7362 = vunpack.c.l.b16 %v7308
        %v7363 = vunpack.c.l.b16 %v7309
        %v7364 = vunpack.c.l.b16 %v7310
        %v7365 = vunpack.c.l.b16 %v7311
        %v7366 = vunpack.c.l.b16 %v7312
        %v7367 = vunpack.c.l.b16 %v7313
        %v7368 = vunpack.c.l.b16 %v7314
        %v7369 = vunpack.c.l.b16 %v7315
        %v7370 = vunpack.c.l.b16 %v7316
        %v7371 = vunpack.c.l.b16 %v7317
        %v7372 = vpack.c.b16 %v7357, %v7356
        %v7373 = vpack.c.b16 %v7359, %v7358
        %v7374 = vpack.c.b16 %v7361, %v7360
        %v7375 = vpack.c.b16 %v7363, %v7362
        %v7376 = vpack.c.b16 %v7365, %v7364
        %v7377 = vpack.c.b16 %v7367, %v7366
        %v7378 = vpack.c.b16 %v7369, %v7368
        %v7379 = vpack.c.b16 %v7371, %v7370
        %7388 = vmatprep.subr.bf16.mxu0 0
        %7389 = vmatpush1.bf16.msra.mxu0 %v7379
        %7390 = vmatprep.subr.bf16.mxu0 0
        %7391 = vmatpush1.bf16.msra.mxu0 %v7378
        %7392 = vmatprep.subr.bf16.mxu0 0
        %7393 = vmatpush1.bf16.msra.mxu0 %v7377
        %7394 = vmatprep.subr.bf16.mxu0 0
        %7395 = vmatpush1.bf16.msra.mxu0 %v7376
        %7396 = vmatprep.subr.bf16.mxu0 0
        %7397 = vmatpush1.bf16.msra.mxu0 %v7375
        %7398 = vmatprep.subr.bf16.mxu0 0
        %7399 = vmatpush1.bf16.msra.mxu0 %v7374
        %7400 = vmatprep.subr.bf16.mxu0 0
        %7401 = vmatpush1.bf16.msra.mxu0 %v7373
        %7402 = vmatprep.subr.bf16.mxu0 0
        %7403 = vmatpush1.bf16.msra.mxu0 %v7372
        %7404 = vmatprep.subr.bf16.mxu0 0
        %7405 = vmatpush2.bf16.msra.mxu0 0
        %7406 = vmatprep.subr.bf16.mxu0 0
        %7407 = vmatpush2.bf16.msra.mxu0 0
        %7408 = vmatprep.subr.bf16.mxu0 0
        %7409 = vmatpush2.bf16.msra.mxu0 0
        %7410 = vmatprep.subr.bf16.mxu0 0
        %7411 = vmatpush2.bf16.msra.mxu0 0
        %7412 = vmatprep.subr.bf16.mxu0 0
        %7413 = vmatpush2.bf16.msra.mxu0 0
        %7414 = vmatprep.subr.bf16.mxu0 0
        %7415 = vmatpush2.bf16.msra.mxu0 0
        %7416 = vmatprep.subr.bf16.mxu0 0
        %7417 = vmatpush2.bf16.msra.mxu0 0
        %7418 = vmatprep.subr.bf16.mxu0 0
        %7419 = vmatpush2.bf16.msra.mxu0 0
        %7420 = vmatprep.mubr.bf16.mxu0 0
        %7421 = vmatmul.mubr.bf16.gmra.mxu0 %v7337
        %v7422 = vpop.f32.mrf.mxu0
        %v7423 = vadd.f32 0.0, %v7422
        %v7424 = vpop.f32.mrf.mxu0
        %v7425 = vpop.f32.mrf.mxu0
        %v7426 = vadd.f32 0.0, %v7425
        %v7427 = vpop.f32.mrf.mxu0
        %7428 = vmatprep.mubr.bf16.mxu0 0
        %7429 = vmatmul.mubr.bf16.gmra.mxu0 %v7336
        %v7430 = vpop.f32.mrf.mxu0
        %v7431 = vadd.f32 0.0, %v7430
        %v7432 = vpop.f32.mrf.mxu0
        %v7433 = vpop.f32.mrf.mxu0
        %v7434 = vpop.f32.mrf.mxu0
        %7435 = vdwg.mxu0
        %v7436 = vadd.f32 %v7297, %v7423
        %v7437 = vadd.f32 %v7298, %v7426
        %v7438 = vadd.f32 %v7299, %v7431
        %v7439 = vld [vmem:[#allocation2 + $0x4] sm:$0x8]
        %s7440 = scalar_lea.vmem %s1, 1664
        %v7441 = vld [vmem:[%s7440] sm:$0xf]
        %v7442 = vld [vmem:[%s7440 + $0x4] sm:$0xf]
        %v7443 = vld [vmem:[%s7440 + $0x8] sm:$0xf]
        %v7444 = vld [vmem:[%s7440 + $0xc] sm:$0xf]
        %v7445 = vld [vmem:[%s7440 + $0x10] sm:$0xf]
        %v7446 = vld [vmem:[%s7440 + $0x14] sm:$0xf]
        %v7447 = vld [vmem:[%s7440 + $0x18] sm:$0xf]
        %v7448 = vld [vmem:[%s7440 + $0x1c] sm:$0xf]
        %v7449 = vld [vmem:[%s7440 + $0x20] sm:$0xf]
        %v7450 = vld [vmem:[%s7440 + $0x24] sm:$0xf]
        %v7451 = vld [vmem:[%s7440 + $0x28] sm:$0xf]
        %v7452 = vld [vmem:[%s7440 + $0x2c] sm:$0xf]
        %v7453 = vld [vmem:[%s7440 + $0x30] sm:$0xf]
        %v7454 = vld [vmem:[%s7440 + $0x34] sm:$0xf]
        %v7455 = vld [vmem:[%s7440 + $0x38] sm:$0xf]
        %v7456 = vld [vmem:[%s7440 + $0x3c] sm:$0xf]
        %v7458 = vunpack.c.l.b16 %v7439
        %v7459 = vpack.c.b16 %v7191, %v7458
        %v7460 = vrot.slane %v7459, 3
        %v7461 = vrot.slane %v7320, 3
        %v7462 = vsel %vm3748, %v7460, %v7461
        %v7481 = vunpack.c.l.b16 %v7441
        %v7482 = vunpack.c.l.b16 %v7442
        %v7483 = vunpack.c.l.b16 %v7443
        %v7484 = vunpack.c.l.b16 %v7444
        %v7485 = vunpack.c.l.b16 %v7445
        %v7486 = vunpack.c.l.b16 %v7446
        %v7487 = vunpack.c.l.b16 %v7447
        %v7488 = vunpack.c.l.b16 %v7448
        %v7489 = vunpack.c.l.b16 %v7449
        %v7490 = vunpack.c.l.b16 %v7450
        %v7491 = vunpack.c.l.b16 %v7451
        %v7492 = vunpack.c.l.b16 %v7452
        %v7493 = vunpack.c.l.b16 %v7453
        %v7494 = vunpack.c.l.b16 %v7454
        %v7495 = vunpack.c.l.b16 %v7455
        %v7496 = vunpack.c.l.b16 %v7456
        %v7497 = vpack.c.b16 %v7482, %v7481
        %v7498 = vpack.c.b16 %v7484, %v7483
        %v7499 = vpack.c.b16 %v7486, %v7485
        %v7500 = vpack.c.b16 %v7488, %v7487
        %v7501 = vpack.c.b16 %v7490, %v7489
        %v7502 = vpack.c.b16 %v7492, %v7491
        %v7503 = vpack.c.b16 %v7494, %v7493
        %v7504 = vpack.c.b16 %v7496, %v7495
        %7513 = vmatprep.subr.bf16.mxu0 0
        %7514 = vmatpush1.bf16.msra.mxu0 %v7504
        %7515 = vmatprep.subr.bf16.mxu0 0
        %7516 = vmatpush1.bf16.msra.mxu0 %v7503
        %7517 = vmatprep.subr.bf16.mxu0 0
        %7518 = vmatpush1.bf16.msra.mxu0 %v7502
        %7519 = vmatprep.subr.bf16.mxu0 0
        %7520 = vmatpush1.bf16.msra.mxu0 %v7501
        %7521 = vmatprep.subr.bf16.mxu0 0
        %7522 = vmatpush1.bf16.msra.mxu0 %v7500
        %7523 = vmatprep.subr.bf16.mxu0 0
        %7524 = vmatpush1.bf16.msra.mxu0 %v7499
        %7525 = vmatprep.subr.bf16.mxu0 0
        %7526 = vmatpush1.bf16.msra.mxu0 %v7498
        %7527 = vmatprep.subr.bf16.mxu0 0
        %7528 = vmatpush1.bf16.msra.mxu0 %v7497
        %7529 = vmatprep.subr.bf16.mxu0 0
        %7530 = vmatpush2.bf16.msra.mxu0 0
        %7531 = vmatprep.subr.bf16.mxu0 0
        %7532 = vmatpush2.bf16.msra.mxu0 0
        %7533 = vmatprep.subr.bf16.mxu0 0
        %7534 = vmatpush2.bf16.msra.mxu0 0
        %7535 = vmatprep.subr.bf16.mxu0 0
        %7536 = vmatpush2.bf16.msra.mxu0 0
        %7537 = vmatprep.subr.bf16.mxu0 0
        %7538 = vmatpush2.bf16.msra.mxu0 0
        %7539 = vmatprep.subr.bf16.mxu0 0
        %7540 = vmatpush2.bf16.msra.mxu0 0
        %7541 = vmatprep.subr.bf16.mxu0 0
        %7542 = vmatpush2.bf16.msra.mxu0 0
        %7543 = vmatprep.subr.bf16.mxu0 0
        %7544 = vmatpush2.bf16.msra.mxu0 0
        %7545 = vmatprep.mubr.bf16.mxu0 0
        %7546 = vmatmul.mubr.bf16.gmra.mxu0 %v7462
        %v7547 = vpop.f32.mrf.mxu0
        %v7548 = vadd.f32 0.0, %v7547
        %v7549 = vpop.f32.mrf.mxu0
        %v7550 = vpop.f32.mrf.mxu0
        %v7551 = vadd.f32 0.0, %v7550
        %v7552 = vpop.f32.mrf.mxu0
        %7553 = vmatprep.mubr.bf16.mxu0 0
        %7554 = vmatmul.mubr.bf16.gmra.mxu0 %v7461
        %v7555 = vpop.f32.mrf.mxu0
        %v7556 = vadd.f32 0.0, %v7555
        %v7557 = vpop.f32.mrf.mxu0
        %v7558 = vpop.f32.mrf.mxu0
        %v7559 = vpop.f32.mrf.mxu0
        %7560 = vdwg.mxu0
        %v7561 = vadd.f32 %v7436, %v7548
        %v7562 = vadd.f32 %v7437, %v7551
        %v7563 = vadd.f32 %v7438, %v7556
        %s7564 = scalar_lea.vmem %s2, 2
        %v7565 = vld [vmem:[%s7564] sm:$0x1]
        %v7567 = vlaneseq
        %v7568 = vshrl.u32 %v7567, 7
        %v7569 = vsub.s32 0, %v7568
        %v7570 = vrot.slane %v7565, %v7569
        %v7572 = vadd.f32 %v7561, %v7570
        %v7573 = vadd.f32 %v7562, %v7570
        %v7574 = vadd.f32 %v7563, %v7570
        %v7575 = vmax.f32 %v7572, 0.0
        %v7576 = vmax.f32 %v7573, 0.0
        %v7577 = vmax.f32 %v7574, 0.0
        %7578 = vst [vmem:[#allocation3] sm:$0xff] %v7575
        %7579 = vst [vmem:[#allocation3 + $0x8] sm:$0xff] %v7576
        %7580 = vst [vmem:[#allocation3 + $0x10] sm:$0xff] %v7577
        %v7581 = vld [vmem:[#allocation3] sm:$0xff]
        %v7582 = vld [vmem:[#allocation3 + $0x8] sm:$0xff]
        %v7583 = vld [vmem:[#allocation3 + $0x10] sm:$0x1]
        %v7584 = vld [vmem:[#allocation3 + $0x1] sm:$0xff]
        %v7585 = vld [vmem:[#allocation3 + $0x9] sm:$0xff]
        %v7586 = vld [vmem:[#allocation3 + $0x11] sm:$0x1]
        %v7587 = vmax.f32 %v7581, %v7584
        %v7588 = vmax.f32 %v7582, %v7585
        %v7589 = vmax.f32 %v7583, %v7586
        %v7590 = vld [vmem:[#allocation3 + $0x6] sm:$0xff]
        %v7591 = vld [vmem:[#allocation3 + $0xe] sm:$0xff]
        %v7592 = vld [vmem:[#allocation3 + $0x16] sm:$0x1]
        %v7593 = vld [vmem:[#allocation3 + $0x7] sm:$0xff]
        %v7594 = vld [vmem:[#allocation3 + $0xf] sm:$0xff]
        %v7595 = vld [vmem:[#allocation3 + $0x17] sm:$0x1]
        %v7596 = vmax.f32 %v7590, %v7593
        %v7597 = vmax.f32 %v7591, %v7594
        %v7598 = vmax.f32 %v7592, %v7595
        %v7599 = vmax.f32 %v7587, %v7596
        %v7600 = vmax.f32 %v7588, %v7597
        %v7601 = vmax.f32 %v7589, %v7598
        %7602 = vst [vmem:[#allocation3] sm:$0xff] %v7599
        %7603 = vst [vmem:[#allocation3 + $0x8] sm:$0xff] %v7600
        %7604 = vst [vmem:[#allocation3 + $0x10] sm:$0x1] %v7601
        %7605 = vst [vmem:[#allocation2] sm:$0x7] 0
        %7606 = vst [vmem:[#allocation2 + $0x4] sm:$0xc] 0
        %7607 = vst [vmem:[#allocation2 + $0x8] sm:$0x1] 0
        %v7608 = vld [vmem:[%s4456] ss:$2 sm:$0x3]
        %v7609 = vpack.c.bf16 %v7608, %v7608
        %v7611 = vunpack.c.l.b16 %v7609
        %v7612 = vpack.c.b16 %v7611, %v7611
        %v7613 = vrot.slane %v7612, 5
        %7615 = vst [vmem:[#allocation2] sm:$0x8] %v7613
        %7616 = vst [vmem:[#allocation2 + $0x4] sm:$0x1] 0
        %s7617 = scalar_lea.vmem [#allocation3], 13
        %v7618 = vld [vmem:[%s7617] ss:$2 sm:$0x3]
        %v7619 = vpack.c.bf16 %v7618, %v7618
        %v7621 = vunpack.c.l.b16 %v7619
        %v7622 = vpack.c.b16 %v7621, %v7621
        %v7623 = vrot.slane %v7622, 7
        %7625 = vst [vmem:[#allocation2 + $0x4] sm:$0x2] %v7623
        %v7626 = vld [vmem:[#allocation2] sm:$0xf]
        %s7627 = scalar_lea.vmem %s1, 1728
        %v7628 = vld [vmem:[%s7627] sm:$0xf]
        %v7629 = vld [vmem:[%s7627 + $0x4] sm:$0xf]
        %v7630 = vld [vmem:[%s7627 + $0x8] sm:$0xf]
        %v7631 = vld [vmem:[%s7627 + $0xc] sm:$0xf]
        %v7632 = vld [vmem:[%s7627 + $0x10] sm:$0xf]
        %v7633 = vld [vmem:[%s7627 + $0x14] sm:$0xf]
        %v7634 = vld [vmem:[%s7627 + $0x18] sm:$0xf]
        %v7635 = vld [vmem:[%s7627 + $0x1c] sm:$0xf]
        %v7636 = vld [vmem:[%s7627 + $0x20] sm:$0xf]
        %v7637 = vld [vmem:[%s7627 + $0x24] sm:$0xf]
        %v7638 = vld [vmem:[%s7627 + $0x28] sm:$0xf]
        %v7639 = vld [vmem:[%s7627 + $0x2c] sm:$0xf]
        %v7640 = vld [vmem:[%s7627 + $0x30] sm:$0xf]
        %v7641 = vld [vmem:[%s7627 + $0x34] sm:$0xf]
        %v7642 = vld [vmem:[%s7627 + $0x38] sm:$0xf]
        %v7643 = vld [vmem:[%s7627 + $0x3c] sm:$0xf]
        %v7644 = vld [vmem:[#allocation2 + $0x4] sm:$0x1]
        %s7645 = scalar_lea.vmem %s1, 1792
        %v7646 = vld [vmem:[%s7645] sm:$0xf]
        %v7647 = vld [vmem:[%s7645 + $0x4] sm:$0xf]
        %v7648 = vld [vmem:[%s7645 + $0x8] sm:$0xf]
        %v7649 = vld [vmem:[%s7645 + $0xc] sm:$0xf]
        %v7650 = vld [vmem:[%s7645 + $0x10] sm:$0xf]
        %v7651 = vld [vmem:[%s7645 + $0x14] sm:$0xf]
        %v7652 = vld [vmem:[%s7645 + $0x18] sm:$0xf]
        %v7653 = vld [vmem:[%s7645 + $0x1c] sm:$0xf]
        %v7654 = vld [vmem:[%s7645 + $0x20] sm:$0xf]
        %v7655 = vld [vmem:[%s7645 + $0x24] sm:$0xf]
        %v7656 = vld [vmem:[%s7645 + $0x28] sm:$0xf]
        %v7657 = vld [vmem:[%s7645 + $0x2c] sm:$0xf]
        %v7658 = vld [vmem:[%s7645 + $0x30] sm:$0xf]
        %v7659 = vld [vmem:[%s7645 + $0x34] sm:$0xf]
        %v7660 = vld [vmem:[%s7645 + $0x38] sm:$0xf]
        %v7661 = vld [vmem:[%s7645 + $0x3c] sm:$0xf]
        %v7664 = vunpack.c.l.b16 %v7626
        %v7665 = vunpack.c.l.b16 %v7644
        %v7666 = vpack.c.b16 %v7665, %v7664
        %v7668 = vshrl.u32 %v7666, 16
        %v7670 = vshll.u32 %v7666, 16
        %v7672 = vrot.slane %v7670, 1
        %v7673 = vor.u32 %v7668, %v7672
        %v7691 = vunpack.c.l.b16 %v7646
        %v7692 = vunpack.c.l.b16 %v7647
        %v7693 = vunpack.c.l.b16 %v7648
        %v7694 = vunpack.c.l.b16 %v7649
        %v7695 = vunpack.c.l.b16 %v7650
        %v7696 = vunpack.c.l.b16 %v7651
        %v7697 = vunpack.c.l.b16 %v7652
        %v7698 = vunpack.c.l.b16 %v7653
        %v7699 = vunpack.c.l.b16 %v7654
        %v7700 = vunpack.c.l.b16 %v7655
        %v7701 = vunpack.c.l.b16 %v7656
        %v7702 = vunpack.c.l.b16 %v7657
        %v7703 = vunpack.c.l.b16 %v7658
        %v7704 = vunpack.c.l.b16 %v7659
        %v7705 = vunpack.c.l.b16 %v7660
        %v7706 = vunpack.c.l.b16 %v7661
        %v7707 = vpack.c.b16 %v7692, %v7691
        %v7708 = vpack.c.b16 %v7694, %v7693
        %v7709 = vpack.c.b16 %v7696, %v7695
        %v7710 = vpack.c.b16 %v7698, %v7697
        %v7711 = vpack.c.b16 %v7700, %v7699
        %v7712 = vpack.c.b16 %v7702, %v7701
        %v7713 = vpack.c.b16 %v7704, %v7703
        %v7714 = vpack.c.b16 %v7706, %v7705
        %7723 = vmatprep.subr.bf16.mxu0 0
        %7724 = vmatpush1.bf16.msra.mxu0 %v7714
        %7725 = vmatprep.subr.bf16.mxu0 0
        %7726 = vmatpush1.bf16.msra.mxu0 %v7713
        %7727 = vmatprep.subr.bf16.mxu0 0
        %7728 = vmatpush1.bf16.msra.mxu0 %v7712
        %7729 = vmatprep.subr.bf16.mxu0 0
        %7730 = vmatpush1.bf16.msra.mxu0 %v7711
        %7731 = vmatprep.subr.bf16.mxu0 0
        %7732 = vmatpush1.bf16.msra.mxu0 %v7710
        %7733 = vmatprep.subr.bf16.mxu0 0
        %7734 = vmatpush1.bf16.msra.mxu0 %v7709
        %7735 = vmatprep.subr.bf16.mxu0 0
        %7736 = vmatpush1.bf16.msra.mxu0 %v7708
        %7737 = vmatprep.subr.bf16.mxu0 0
        %7738 = vmatpush1.bf16.msra.mxu0 %v7707
        %7739 = vmatprep.subr.bf16.mxu0 0
        %7740 = vmatpush2.bf16.msra.mxu0 0
        %7741 = vmatprep.subr.bf16.mxu0 0
        %7742 = vmatpush2.bf16.msra.mxu0 0
        %7743 = vmatprep.subr.bf16.mxu0 0
        %7744 = vmatpush2.bf16.msra.mxu0 0
        %7745 = vmatprep.subr.bf16.mxu0 0
        %7746 = vmatpush2.bf16.msra.mxu0 0
        %7747 = vmatprep.subr.bf16.mxu0 0
        %7748 = vmatpush2.bf16.msra.mxu0 0
        %7749 = vmatprep.subr.bf16.mxu0 0
        %7750 = vmatpush2.bf16.msra.mxu0 0
        %7751 = vmatprep.subr.bf16.mxu0 0
        %7752 = vmatpush2.bf16.msra.mxu0 0
        %7753 = vmatprep.subr.bf16.mxu0 0
        %7754 = vmatpush2.bf16.msra.mxu0 0
        %7755 = vmatprep.mubr.bf16.mxu0 0
        %7756 = vmatmul.mubr.bf16.gmra.mxu0 %v7673
        %v7757 = vpop.f32.mrf.mxu0
        %v7758 = vadd.f32 0.0, %v7757
        %v7759 = vpop.f32.mrf.mxu0
        %v7760 = vpop.f32.mrf.mxu0
        %v7761 = vpop.f32.mrf.mxu0
        %7762 = vdwg.mxu0
        %v7779 = vunpack.c.l.b16 %v7628
        %v7780 = vunpack.c.l.b16 %v7629
        %v7781 = vunpack.c.l.b16 %v7630
        %v7782 = vunpack.c.l.b16 %v7631
        %v7783 = vunpack.c.l.b16 %v7632
        %v7784 = vunpack.c.l.b16 %v7633
        %v7785 = vunpack.c.l.b16 %v7634
        %v7786 = vunpack.c.l.b16 %v7635
        %v7787 = vunpack.c.l.b16 %v7636
        %v7788 = vunpack.c.l.b16 %v7637
        %v7789 = vunpack.c.l.b16 %v7638
        %v7790 = vunpack.c.l.b16 %v7639
        %v7791 = vunpack.c.l.b16 %v7640
        %v7792 = vunpack.c.l.b16 %v7641
        %v7793 = vunpack.c.l.b16 %v7642
        %v7794 = vunpack.c.l.b16 %v7643
        %v7795 = vpack.c.b16 %v7780, %v7779
        %v7796 = vpack.c.b16 %v7782, %v7781
        %v7797 = vpack.c.b16 %v7784, %v7783
        %v7798 = vpack.c.b16 %v7786, %v7785
        %v7799 = vpack.c.b16 %v7788, %v7787
        %v7800 = vpack.c.b16 %v7790, %v7789
        %v7801 = vpack.c.b16 %v7792, %v7791
        %v7802 = vpack.c.b16 %v7794, %v7793
        %7811 = vmatprep.subr.bf16.mxu0 0
        %7812 = vmatpush1.bf16.msra.mxu0 %v7802
        %7813 = vmatprep.subr.bf16.mxu0 0
        %7814 = vmatpush1.bf16.msra.mxu0 %v7801
        %7815 = vmatprep.subr.bf16.mxu0 0
        %7816 = vmatpush1.bf16.msra.mxu0 %v7800
        %7817 = vmatprep.subr.bf16.mxu0 0
        %7818 = vmatpush1.bf16.msra.mxu0 %v7799
        %7819 = vmatprep.subr.bf16.mxu0 0
        %7820 = vmatpush1.bf16.msra.mxu0 %v7798
        %7821 = vmatprep.subr.bf16.mxu0 0
        %7822 = vmatpush1.bf16.msra.mxu0 %v7797
        %7823 = vmatprep.subr.bf16.mxu0 0
        %7824 = vmatpush1.bf16.msra.mxu0 %v7796
        %7825 = vmatprep.subr.bf16.mxu0 0
        %7826 = vmatpush1.bf16.msra.mxu0 %v7795
        %7827 = vmatprep.subr.bf16.mxu0 0
        %7828 = vmatpush2.bf16.msra.mxu0 0
        %7829 = vmatprep.subr.bf16.mxu0 0
        %7830 = vmatpush2.bf16.msra.mxu0 0
        %7831 = vmatprep.subr.bf16.mxu0 0
        %7832 = vmatpush2.bf16.msra.mxu0 0
        %7833 = vmatprep.subr.bf16.mxu0 0
        %7834 = vmatpush2.bf16.msra.mxu0 0
        %7835 = vmatprep.subr.bf16.mxu0 0
        %7836 = vmatpush2.bf16.msra.mxu0 0
        %7837 = vmatprep.subr.bf16.mxu0 0
        %7838 = vmatpush2.bf16.msra.mxu0 0
        %7839 = vmatprep.subr.bf16.mxu0 0
        %7840 = vmatpush2.bf16.msra.mxu0 0
        %7841 = vmatprep.subr.bf16.mxu0 0
        %7842 = vmatpush2.bf16.msra.mxu0 0
        %7843 = vmatprep.mubr.bf16.mxu0 0
        %7844 = vmatmul.mubr.bf16.gmra.mxu0 %v7626
        %v7845 = vpop.f32.mrf.mxu0
        %v7846 = vadd.f32 %v7758, %v7845
        %v7847 = vpop.f32.mrf.mxu0
        %v7848 = vpop.f32.mrf.mxu0
        %v7849 = vpop.f32.mrf.mxu0
        %7850 = vdwg.mxu0
        %v7851 = vld [vmem:[#allocation2] sm:$0xe]
        %s7852 = scalar_lea.vmem %s1, 1856
        %v7853 = vld [vmem:[%s7852] sm:$0xf]
        %v7854 = vld [vmem:[%s7852 + $0x4] sm:$0xf]
        %v7855 = vld [vmem:[%s7852 + $0x8] sm:$0xf]
        %v7856 = vld [vmem:[%s7852 + $0xc] sm:$0xf]
        %v7857 = vld [vmem:[%s7852 + $0x10] sm:$0xf]
        %v7858 = vld [vmem:[%s7852 + $0x14] sm:$0xf]
        %v7859 = vld [vmem:[%s7852 + $0x18] sm:$0xf]
        %v7860 = vld [vmem:[%s7852 + $0x1c] sm:$0xf]
        %v7861 = vld [vmem:[%s7852 + $0x20] sm:$0xf]
        %v7862 = vld [vmem:[%s7852 + $0x24] sm:$0xf]
        %v7863 = vld [vmem:[%s7852 + $0x28] sm:$0xf]
        %v7864 = vld [vmem:[%s7852 + $0x2c] sm:$0xf]
        %v7865 = vld [vmem:[%s7852 + $0x30] sm:$0xf]
        %v7866 = vld [vmem:[%s7852 + $0x34] sm:$0xf]
        %v7867 = vld [vmem:[%s7852 + $0x38] sm:$0xf]
        %v7868 = vld [vmem:[%s7852 + $0x3c] sm:$0xf]
        %v7870 = vunpack.c.l.b16 %v7851
        %v7871 = vpack.c.b16 %v7665, %v7870
        %v7872 = vrot.slane %v7871, 1
        %v7890 = vunpack.c.l.b16 %v7853
        %v7891 = vunpack.c.l.b16 %v7854
        %v7892 = vunpack.c.l.b16 %v7855
        %v7893 = vunpack.c.l.b16 %v7856
        %v7894 = vunpack.c.l.b16 %v7857
        %v7895 = vunpack.c.l.b16 %v7858
        %v7896 = vunpack.c.l.b16 %v7859
        %v7897 = vunpack.c.l.b16 %v7860
        %v7898 = vunpack.c.l.b16 %v7861
        %v7899 = vunpack.c.l.b16 %v7862
        %v7900 = vunpack.c.l.b16 %v7863
        %v7901 = vunpack.c.l.b16 %v7864
        %v7902 = vunpack.c.l.b16 %v7865
        %v7903 = vunpack.c.l.b16 %v7866
        %v7904 = vunpack.c.l.b16 %v7867
        %v7905 = vunpack.c.l.b16 %v7868
        %v7906 = vpack.c.b16 %v7891, %v7890
        %v7907 = vpack.c.b16 %v7893, %v7892
        %v7908 = vpack.c.b16 %v7895, %v7894
        %v7909 = vpack.c.b16 %v7897, %v7896
        %v7910 = vpack.c.b16 %v7899, %v7898
        %v7911 = vpack.c.b16 %v7901, %v7900
        %v7912 = vpack.c.b16 %v7903, %v7902
        %v7913 = vpack.c.b16 %v7905, %v7904
        %7922 = vmatprep.subr.bf16.mxu0 0
        %7923 = vmatpush1.bf16.msra.mxu0 %v7913
        %7924 = vmatprep.subr.bf16.mxu0 0
        %7925 = vmatpush1.bf16.msra.mxu0 %v7912
        %7926 = vmatprep.subr.bf16.mxu0 0
        %7927 = vmatpush1.bf16.msra.mxu0 %v7911
        %7928 = vmatprep.subr.bf16.mxu0 0
        %7929 = vmatpush1.bf16.msra.mxu0 %v7910
        %7930 = vmatprep.subr.bf16.mxu0 0
        %7931 = vmatpush1.bf16.msra.mxu0 %v7909
        %7932 = vmatprep.subr.bf16.mxu0 0
        %7933 = vmatpush1.bf16.msra.mxu0 %v7908
        %7934 = vmatprep.subr.bf16.mxu0 0
        %7935 = vmatpush1.bf16.msra.mxu0 %v7907
        %7936 = vmatprep.subr.bf16.mxu0 0
        %7937 = vmatpush1.bf16.msra.mxu0 %v7906
        %7938 = vmatprep.subr.bf16.mxu0 0
        %7939 = vmatpush2.bf16.msra.mxu0 0
        %7940 = vmatprep.subr.bf16.mxu0 0
        %7941 = vmatpush2.bf16.msra.mxu0 0
        %7942 = vmatprep.subr.bf16.mxu0 0
        %7943 = vmatpush2.bf16.msra.mxu0 0
        %7944 = vmatprep.subr.bf16.mxu0 0
        %7945 = vmatpush2.bf16.msra.mxu0 0
        %7946 = vmatprep.subr.bf16.mxu0 0
        %7947 = vmatpush2.bf16.msra.mxu0 0
        %7948 = vmatprep.subr.bf16.mxu0 0
        %7949 = vmatpush2.bf16.msra.mxu0 0
        %7950 = vmatprep.subr.bf16.mxu0 0
        %7951 = vmatpush2.bf16.msra.mxu0 0
        %7952 = vmatprep.subr.bf16.mxu0 0
        %7953 = vmatpush2.bf16.msra.mxu0 0
        %7954 = vmatprep.mubr.bf16.mxu0 0
        %7955 = vmatmul.mubr.bf16.gmra.mxu0 %v7872
        %v7956 = vpop.f32.mrf.mxu0
        %v7957 = vadd.f32 0.0, %v7956
        %v7958 = vpop.f32.mrf.mxu0
        %v7959 = vpop.f32.mrf.mxu0
        %v7960 = vpop.f32.mrf.mxu0
        %7961 = vdwg.mxu0
        %v7962 = vadd.f32 %v7846, %v7957
        %v7963 = vld [vmem:[#allocation2] sm:$0xc]
        %v7964 = vld [vmem:[#allocation2 + $0x4] sm:$0x3]
        %s7965 = scalar_lea.vmem %s1, 1920
        %v7966 = vld [vmem:[%s7965] sm:$0xf]
        %v7967 = vld [vmem:[%s7965 + $0x4] sm:$0xf]
        %v7968 = vld [vmem:[%s7965 + $0x8] sm:$0xf]
        %v7969 = vld [vmem:[%s7965 + $0xc] sm:$0xf]
        %v7970 = vld [vmem:[%s7965 + $0x10] sm:$0xf]
        %v7971 = vld [vmem:[%s7965 + $0x14] sm:$0xf]
        %v7972 = vld [vmem:[%s7965 + $0x18] sm:$0xf]
        %v7973 = vld [vmem:[%s7965 + $0x1c] sm:$0xf]
        %v7974 = vld [vmem:[%s7965 + $0x20] sm:$0xf]
        %v7975 = vld [vmem:[%s7965 + $0x24] sm:$0xf]
        %v7976 = vld [vmem:[%s7965 + $0x28] sm:$0xf]
        %v7977 = vld [vmem:[%s7965 + $0x2c] sm:$0xf]
        %v7978 = vld [vmem:[%s7965 + $0x30] sm:$0xf]
        %v7979 = vld [vmem:[%s7965 + $0x34] sm:$0xf]
        %v7980 = vld [vmem:[%s7965 + $0x38] sm:$0xf]
        %v7981 = vld [vmem:[%s7965 + $0x3c] sm:$0xf]
        %v7984 = vunpack.c.l.b16 %v7963
        %v7985 = vunpack.c.l.b16 %v7964
        %v7986 = vpack.c.b16 %v7985, %v7984
        %v7987 = vrot.slane %v7986, 2
        %v8005 = vunpack.c.l.b16 %v7966
        %v8006 = vunpack.c.l.b16 %v7967
        %v8007 = vunpack.c.l.b16 %v7968
        %v8008 = vunpack.c.l.b16 %v7969
        %v8009 = vunpack.c.l.b16 %v7970
        %v8010 = vunpack.c.l.b16 %v7971
        %v8011 = vunpack.c.l.b16 %v7972
        %v8012 = vunpack.c.l.b16 %v7973
        %v8013 = vunpack.c.l.b16 %v7974
        %v8014 = vunpack.c.l.b16 %v7975
        %v8015 = vunpack.c.l.b16 %v7976
        %v8016 = vunpack.c.l.b16 %v7977
        %v8017 = vunpack.c.l.b16 %v7978
        %v8018 = vunpack.c.l.b16 %v7979
        %v8019 = vunpack.c.l.b16 %v7980
        %v8020 = vunpack.c.l.b16 %v7981
        %v8021 = vpack.c.b16 %v8006, %v8005
        %v8022 = vpack.c.b16 %v8008, %v8007
        %v8023 = vpack.c.b16 %v8010, %v8009
        %v8024 = vpack.c.b16 %v8012, %v8011
        %v8025 = vpack.c.b16 %v8014, %v8013
        %v8026 = vpack.c.b16 %v8016, %v8015
        %v8027 = vpack.c.b16 %v8018, %v8017
        %v8028 = vpack.c.b16 %v8020, %v8019
        %8037 = vmatprep.subr.bf16.mxu0 0
        %8038 = vmatpush1.bf16.msra.mxu0 %v8028
        %8039 = vmatprep.subr.bf16.mxu0 0
        %8040 = vmatpush1.bf16.msra.mxu0 %v8027
        %8041 = vmatprep.subr.bf16.mxu0 0
        %8042 = vmatpush1.bf16.msra.mxu0 %v8026
        %8043 = vmatprep.subr.bf16.mxu0 0
        %8044 = vmatpush1.bf16.msra.mxu0 %v8025
        %8045 = vmatprep.subr.bf16.mxu0 0
        %8046 = vmatpush1.bf16.msra.mxu0 %v8024
        %8047 = vmatprep.subr.bf16.mxu0 0
        %8048 = vmatpush1.bf16.msra.mxu0 %v8023
        %8049 = vmatprep.subr.bf16.mxu0 0
        %8050 = vmatpush1.bf16.msra.mxu0 %v8022
        %8051 = vmatprep.subr.bf16.mxu0 0
        %8052 = vmatpush1.bf16.msra.mxu0 %v8021
        %8053 = vmatprep.subr.bf16.mxu0 0
        %8054 = vmatpush2.bf16.msra.mxu0 0
        %8055 = vmatprep.subr.bf16.mxu0 0
        %8056 = vmatpush2.bf16.msra.mxu0 0
        %8057 = vmatprep.subr.bf16.mxu0 0
        %8058 = vmatpush2.bf16.msra.mxu0 0
        %8059 = vmatprep.subr.bf16.mxu0 0
        %8060 = vmatpush2.bf16.msra.mxu0 0
        %8061 = vmatprep.subr.bf16.mxu0 0
        %8062 = vmatpush2.bf16.msra.mxu0 0
        %8063 = vmatprep.subr.bf16.mxu0 0
        %8064 = vmatpush2.bf16.msra.mxu0 0
        %8065 = vmatprep.subr.bf16.mxu0 0
        %8066 = vmatpush2.bf16.msra.mxu0 0
        %8067 = vmatprep.subr.bf16.mxu0 0
        %8068 = vmatpush2.bf16.msra.mxu0 0
        %8069 = vmatprep.mubr.bf16.mxu0 0
        %8070 = vmatmul.mubr.bf16.gmra.mxu0 %v7987
        %v8071 = vpop.f32.mrf.mxu0
        %v8072 = vadd.f32 0.0, %v8071
        %v8073 = vpop.f32.mrf.mxu0
        %v8074 = vpop.f32.mrf.mxu0
        %v8075 = vpop.f32.mrf.mxu0
        %8076 = vdwg.mxu0
        %v8077 = vadd.f32 %v7962, %v8072
        %v8078 = vld [vmem:[#allocation2 + $0x4] sm:$0x7]
        %s8079 = scalar_lea.vmem %s1, 1984
        %v8080 = vld [vmem:[%s8079] sm:$0xf]
        %v8081 = vld [vmem:[%s8079 + $0x4] sm:$0xf]
        %v8082 = vld [vmem:[%s8079 + $0x8] sm:$0xf]
        %v8083 = vld [vmem:[%s8079 + $0xc] sm:$0xf]
        %v8084 = vld [vmem:[%s8079 + $0x10] sm:$0xf]
        %v8085 = vld [vmem:[%s8079 + $0x14] sm:$0xf]
        %v8086 = vld [vmem:[%s8079 + $0x18] sm:$0xf]
        %v8087 = vld [vmem:[%s8079 + $0x1c] sm:$0xf]
        %v8088 = vld [vmem:[%s8079 + $0x20] sm:$0xf]
        %v8089 = vld [vmem:[%s8079 + $0x24] sm:$0xf]
        %v8090 = vld [vmem:[%s8079 + $0x28] sm:$0xf]
        %v8091 = vld [vmem:[%s8079 + $0x2c] sm:$0xf]
        %v8092 = vld [vmem:[%s8079 + $0x30] sm:$0xf]
        %v8093 = vld [vmem:[%s8079 + $0x34] sm:$0xf]
        %v8094 = vld [vmem:[%s8079 + $0x38] sm:$0xf]
        %v8095 = vld [vmem:[%s8079 + $0x3c] sm:$0xf]
        %v8097 = vunpack.c.l.b16 %v8078
        %v8098 = vpack.c.b16 %v8097, %v7984
        %v8100 = vshrl.u32 %v8098, 16
        %v8102 = vrot.slane %v8100, 2
        %v8103 = vshll.u32 %v8098, 16
        %v8105 = vrot.slane %v8103, 3
        %v8106 = vor.u32 %v8102, %v8105
        %v8124 = vunpack.c.l.b16 %v8080
        %v8125 = vunpack.c.l.b16 %v8081
        %v8126 = vunpack.c.l.b16 %v8082
        %v8127 = vunpack.c.l.b16 %v8083
        %v8128 = vunpack.c.l.b16 %v8084
        %v8129 = vunpack.c.l.b16 %v8085
        %v8130 = vunpack.c.l.b16 %v8086
        %v8131 = vunpack.c.l.b16 %v8087
        %v8132 = vunpack.c.l.b16 %v8088
        %v8133 = vunpack.c.l.b16 %v8089
        %v8134 = vunpack.c.l.b16 %v8090
        %v8135 = vunpack.c.l.b16 %v8091
        %v8136 = vunpack.c.l.b16 %v8092
        %v8137 = vunpack.c.l.b16 %v8093
        %v8138 = vunpack.c.l.b16 %v8094
        %v8139 = vunpack.c.l.b16 %v8095
        %v8140 = vpack.c.b16 %v8125, %v8124
        %v8141 = vpack.c.b16 %v8127, %v8126
        %v8142 = vpack.c.b16 %v8129, %v8128
        %v8143 = vpack.c.b16 %v8131, %v8130
        %v8144 = vpack.c.b16 %v8133, %v8132
        %v8145 = vpack.c.b16 %v8135, %v8134
        %v8146 = vpack.c.b16 %v8137, %v8136
        %v8147 = vpack.c.b16 %v8139, %v8138
        %8156 = vmatprep.subr.bf16.mxu0 0
        %8157 = vmatpush1.bf16.msra.mxu0 %v8147
        %8158 = vmatprep.subr.bf16.mxu0 0
        %8159 = vmatpush1.bf16.msra.mxu0 %v8146
        %8160 = vmatprep.subr.bf16.mxu0 0
        %8161 = vmatpush1.bf16.msra.mxu0 %v8145
        %8162 = vmatprep.subr.bf16.mxu0 0
        %8163 = vmatpush1.bf16.msra.mxu0 %v8144
        %8164 = vmatprep.subr.bf16.mxu0 0
        %8165 = vmatpush1.bf16.msra.mxu0 %v8143
        %8166 = vmatprep.subr.bf16.mxu0 0
        %8167 = vmatpush1.bf16.msra.mxu0 %v8142
        %8168 = vmatprep.subr.bf16.mxu0 0
        %8169 = vmatpush1.bf16.msra.mxu0 %v8141
        %8170 = vmatprep.subr.bf16.mxu0 0
        %8171 = vmatpush1.bf16.msra.mxu0 %v8140
        %8172 = vmatprep.subr.bf16.mxu0 0
        %8173 = vmatpush2.bf16.msra.mxu0 0
        %8174 = vmatprep.subr.bf16.mxu0 0
        %8175 = vmatpush2.bf16.msra.mxu0 0
        %8176 = vmatprep.subr.bf16.mxu0 0
        %8177 = vmatpush2.bf16.msra.mxu0 0
        %8178 = vmatprep.subr.bf16.mxu0 0
        %8179 = vmatpush2.bf16.msra.mxu0 0
        %8180 = vmatprep.subr.bf16.mxu0 0
        %8181 = vmatpush2.bf16.msra.mxu0 0
        %8182 = vmatprep.subr.bf16.mxu0 0
        %8183 = vmatpush2.bf16.msra.mxu0 0
        %8184 = vmatprep.subr.bf16.mxu0 0
        %8185 = vmatpush2.bf16.msra.mxu0 0
        %8186 = vmatprep.subr.bf16.mxu0 0
        %8187 = vmatpush2.bf16.msra.mxu0 0
        %8188 = vmatprep.mubr.bf16.mxu0 0
        %8189 = vmatmul.mubr.bf16.gmra.mxu0 %v8106
        %v8190 = vpop.f32.mrf.mxu0
        %v8191 = vadd.f32 0.0, %v8190
        %v8192 = vpop.f32.mrf.mxu0
        %v8193 = vpop.f32.mrf.mxu0
        %v8194 = vpop.f32.mrf.mxu0
        %8195 = vdwg.mxu0
        %v8196 = vadd.f32 %v8077, %v8191
        %v8197 = vld [vmem:[#allocation2] sm:$0x8]
        %s8198 = scalar_lea.vmem %s1, 2048
        %v8199 = vld [vmem:[%s8198] sm:$0xf]
        %v8200 = vld [vmem:[%s8198 + $0x4] sm:$0xf]
        %v8201 = vld [vmem:[%s8198 + $0x8] sm:$0xf]
        %v8202 = vld [vmem:[%s8198 + $0xc] sm:$0xf]
        %v8203 = vld [vmem:[%s8198 + $0x10] sm:$0xf]
        %v8204 = vld [vmem:[%s8198 + $0x14] sm:$0xf]
        %v8205 = vld [vmem:[%s8198 + $0x18] sm:$0xf]
        %v8206 = vld [vmem:[%s8198 + $0x1c] sm:$0xf]
        %v8207 = vld [vmem:[%s8198 + $0x20] sm:$0xf]
        %v8208 = vld [vmem:[%s8198 + $0x24] sm:$0xf]
        %v8209 = vld [vmem:[%s8198 + $0x28] sm:$0xf]
        %v8210 = vld [vmem:[%s8198 + $0x2c] sm:$0xf]
        %v8211 = vld [vmem:[%s8198 + $0x30] sm:$0xf]
        %v8212 = vld [vmem:[%s8198 + $0x34] sm:$0xf]
        %v8213 = vld [vmem:[%s8198 + $0x38] sm:$0xf]
        %v8214 = vld [vmem:[%s8198 + $0x3c] sm:$0xf]
        %v8216 = vunpack.c.l.b16 %v8197
        %v8217 = vpack.c.b16 %v8097, %v8216
        %v8218 = vrot.slane %v8217, 3
        %v8236 = vunpack.c.l.b16 %v8199
        %v8237 = vunpack.c.l.b16 %v8200
        %v8238 = vunpack.c.l.b16 %v8201
        %v8239 = vunpack.c.l.b16 %v8202
        %v8240 = vunpack.c.l.b16 %v8203
        %v8241 = vunpack.c.l.b16 %v8204
        %v8242 = vunpack.c.l.b16 %v8205
        %v8243 = vunpack.c.l.b16 %v8206
        %v8244 = vunpack.c.l.b16 %v8207
        %v8245 = vunpack.c.l.b16 %v8208
        %v8246 = vunpack.c.l.b16 %v8209
        %v8247 = vunpack.c.l.b16 %v8210
        %v8248 = vunpack.c.l.b16 %v8211
        %v8249 = vunpack.c.l.b16 %v8212
        %v8250 = vunpack.c.l.b16 %v8213
        %v8251 = vunpack.c.l.b16 %v8214
        %v8252 = vpack.c.b16 %v8237, %v8236
        %v8253 = vpack.c.b16 %v8239, %v8238
        %v8254 = vpack.c.b16 %v8241, %v8240
        %v8255 = vpack.c.b16 %v8243, %v8242
        %v8256 = vpack.c.b16 %v8245, %v8244
        %v8257 = vpack.c.b16 %v8247, %v8246
        %v8258 = vpack.c.b16 %v8249, %v8248
        %v8259 = vpack.c.b16 %v8251, %v8250
        %8268 = vmatprep.subr.bf16.mxu0 0
        %8269 = vmatpush1.bf16.msra.mxu0 %v8259
        %8270 = vmatprep.subr.bf16.mxu0 0
        %8271 = vmatpush1.bf16.msra.mxu0 %v8258
        %8272 = vmatprep.subr.bf16.mxu0 0
        %8273 = vmatpush1.bf16.msra.mxu0 %v8257
        %8274 = vmatprep.subr.bf16.mxu0 0
        %8275 = vmatpush1.bf16.msra.mxu0 %v8256
        %8276 = vmatprep.subr.bf16.mxu0 0
        %8277 = vmatpush1.bf16.msra.mxu0 %v8255
        %8278 = vmatprep.subr.bf16.mxu0 0
        %8279 = vmatpush1.bf16.msra.mxu0 %v8254
        %8280 = vmatprep.subr.bf16.mxu0 0
        %8281 = vmatpush1.bf16.msra.mxu0 %v8253
        %8282 = vmatprep.subr.bf16.mxu0 0
        %8283 = vmatpush1.bf16.msra.mxu0 %v8252
        %8284 = vmatprep.subr.bf16.mxu0 0
        %8285 = vmatpush2.bf16.msra.mxu0 0
        %8286 = vmatprep.subr.bf16.mxu0 0
        %8287 = vmatpush2.bf16.msra.mxu0 0
        %8288 = vmatprep.subr.bf16.mxu0 0
        %8289 = vmatpush2.bf16.msra.mxu0 0
        %8290 = vmatprep.subr.bf16.mxu0 0
        %8291 = vmatpush2.bf16.msra.mxu0 0
        %8292 = vmatprep.subr.bf16.mxu0 0
        %8293 = vmatpush2.bf16.msra.mxu0 0
        %8294 = vmatprep.subr.bf16.mxu0 0
        %8295 = vmatpush2.bf16.msra.mxu0 0
        %8296 = vmatprep.subr.bf16.mxu0 0
        %8297 = vmatpush2.bf16.msra.mxu0 0
        %8298 = vmatprep.subr.bf16.mxu0 0
        %8299 = vmatpush2.bf16.msra.mxu0 0
        %8300 = vmatprep.mubr.bf16.mxu0 0
        %8301 = vmatmul.mubr.bf16.gmra.mxu0 %v8218
        %v8302 = vpop.f32.mrf.mxu0
        %v8303 = vadd.f32 0.0, %v8302
        %v8304 = vpop.f32.mrf.mxu0
        %v8305 = vpop.f32.mrf.mxu0
        %v8306 = vpop.f32.mrf.mxu0
        %8307 = vdwg.mxu0
        %v8308 = vadd.f32 %v8196, %v8303
        %v8309 = vld [vmem:[#allocation2 + $0x4] sm:$0xf]
        %s8310 = scalar_lea.vmem %s1, 2112
        %v8311 = vld [vmem:[%s8310] sm:$0xf]
        %v8312 = vld [vmem:[%s8310 + $0x4] sm:$0xf]
        %v8313 = vld [vmem:[%s8310 + $0x8] sm:$0xf]
        %v8314 = vld [vmem:[%s8310 + $0xc] sm:$0xf]
        %v8315 = vld [vmem:[%s8310 + $0x10] sm:$0xf]
        %v8316 = vld [vmem:[%s8310 + $0x14] sm:$0xf]
        %v8317 = vld [vmem:[%s8310 + $0x18] sm:$0xf]
        %v8318 = vld [vmem:[%s8310 + $0x1c] sm:$0xf]
        %v8319 = vld [vmem:[%s8310 + $0x20] sm:$0xf]
        %v8320 = vld [vmem:[%s8310 + $0x24] sm:$0xf]
        %v8321 = vld [vmem:[%s8310 + $0x28] sm:$0xf]
        %v8322 = vld [vmem:[%s8310 + $0x2c] sm:$0xf]
        %v8323 = vld [vmem:[%s8310 + $0x30] sm:$0xf]
        %v8324 = vld [vmem:[%s8310 + $0x34] sm:$0xf]
        %v8325 = vld [vmem:[%s8310 + $0x38] sm:$0xf]
        %v8326 = vld [vmem:[%s8310 + $0x3c] sm:$0xf]
        %v8343 = vunpack.c.l.b16 %v8311
        %v8344 = vunpack.c.l.b16 %v8312
        %v8345 = vunpack.c.l.b16 %v8313
        %v8346 = vunpack.c.l.b16 %v8314
        %v8347 = vunpack.c.l.b16 %v8315
        %v8348 = vunpack.c.l.b16 %v8316
        %v8349 = vunpack.c.l.b16 %v8317
        %v8350 = vunpack.c.l.b16 %v8318
        %v8351 = vunpack.c.l.b16 %v8319
        %v8352 = vunpack.c.l.b16 %v8320
        %v8353 = vunpack.c.l.b16 %v8321
        %v8354 = vunpack.c.l.b16 %v8322
        %v8355 = vunpack.c.l.b16 %v8323
        %v8356 = vunpack.c.l.b16 %v8324
        %v8357 = vunpack.c.l.b16 %v8325
        %v8358 = vunpack.c.l.b16 %v8326
        %v8359 = vpack.c.b16 %v8344, %v8343
        %v8360 = vpack.c.b16 %v8346, %v8345
        %v8361 = vpack.c.b16 %v8348, %v8347
        %v8362 = vpack.c.b16 %v8350, %v8349
        %v8363 = vpack.c.b16 %v8352, %v8351
        %v8364 = vpack.c.b16 %v8354, %v8353
        %v8365 = vpack.c.b16 %v8356, %v8355
        %v8366 = vpack.c.b16 %v8358, %v8357
        %8375 = vmatprep.subr.bf16.mxu0 0
        %8376 = vmatpush1.bf16.msra.mxu0 %v8366
        %8377 = vmatprep.subr.bf16.mxu0 0
        %8378 = vmatpush1.bf16.msra.mxu0 %v8365
        %8379 = vmatprep.subr.bf16.mxu0 0
        %8380 = vmatpush1.bf16.msra.mxu0 %v8364
        %8381 = vmatprep.subr.bf16.mxu0 0
        %8382 = vmatpush1.bf16.msra.mxu0 %v8363
        %8383 = vmatprep.subr.bf16.mxu0 0
        %8384 = vmatpush1.bf16.msra.mxu0 %v8362
        %8385 = vmatprep.subr.bf16.mxu0 0
        %8386 = vmatpush1.bf16.msra.mxu0 %v8361
        %8387 = vmatprep.subr.bf16.mxu0 0
        %8388 = vmatpush1.bf16.msra.mxu0 %v8360
        %8389 = vmatprep.subr.bf16.mxu0 0
        %8390 = vmatpush1.bf16.msra.mxu0 %v8359
        %8391 = vmatprep.subr.bf16.mxu0 0
        %8392 = vmatpush2.bf16.msra.mxu0 0
        %8393 = vmatprep.subr.bf16.mxu0 0
        %8394 = vmatpush2.bf16.msra.mxu0 0
        %8395 = vmatprep.subr.bf16.mxu0 0
        %8396 = vmatpush2.bf16.msra.mxu0 0
        %8397 = vmatprep.subr.bf16.mxu0 0
        %8398 = vmatpush2.bf16.msra.mxu0 0
        %8399 = vmatprep.subr.bf16.mxu0 0
        %8400 = vmatpush2.bf16.msra.mxu0 0
        %8401 = vmatprep.subr.bf16.mxu0 0
        %8402 = vmatpush2.bf16.msra.mxu0 0
        %8403 = vmatprep.subr.bf16.mxu0 0
        %8404 = vmatpush2.bf16.msra.mxu0 0
        %8405 = vmatprep.subr.bf16.mxu0 0
        %8406 = vmatpush2.bf16.msra.mxu0 0
        %8407 = vmatprep.mubr.bf16.mxu0 0
        %8408 = vmatmul.mubr.bf16.gmra.mxu0 %v8309
        %v8409 = vpop.f32.mrf.mxu0
        %v8410 = vadd.f32 0.0, %v8409
        %v8411 = vpop.f32.mrf.mxu0
        %v8412 = vpop.f32.mrf.mxu0
        %v8413 = vpop.f32.mrf.mxu0
        %8414 = vdwg.mxu0
        %v8415 = vadd.f32 %v8308, %v8410
        %v8416 = vld [vmem:[#allocation2 + $0x4] sm:$0xf]
        %v8417 = vld [vmem:[#allocation2 + $0x8] sm:$0x1]
        %s8418 = scalar_lea.vmem %s1, 2176
        %v8419 = vld [vmem:[%s8418] sm:$0xf]
        %v8420 = vld [vmem:[%s8418 + $0x4] sm:$0xf]
        %v8421 = vld [vmem:[%s8418 + $0x8] sm:$0xf]
        %v8422 = vld [vmem:[%s8418 + $0xc] sm:$0xf]
        %v8423 = vld [vmem:[%s8418 + $0x10] sm:$0xf]
        %v8424 = vld [vmem:[%s8418 + $0x14] sm:$0xf]
        %v8425 = vld [vmem:[%s8418 + $0x18] sm:$0xf]
        %v8426 = vld [vmem:[%s8418 + $0x1c] sm:$0xf]
        %v8427 = vld [vmem:[%s8418 + $0x20] sm:$0xf]
        %v8428 = vld [vmem:[%s8418 + $0x24] sm:$0xf]
        %v8429 = vld [vmem:[%s8418 + $0x28] sm:$0xf]
        %v8430 = vld [vmem:[%s8418 + $0x2c] sm:$0xf]
        %v8431 = vld [vmem:[%s8418 + $0x30] sm:$0xf]
        %v8432 = vld [vmem:[%s8418 + $0x34] sm:$0xf]
        %v8433 = vld [vmem:[%s8418 + $0x38] sm:$0xf]
        %v8434 = vld [vmem:[%s8418 + $0x3c] sm:$0xf]
        %v8437 = vunpack.c.l.b16 %v8416
        %v8438 = vunpack.c.l.b16 %v8417
        %v8439 = vpack.c.b16 %v8438, %v8437
        %v8441 = vshrl.u32 %v8439, 16
        %v8443 = vshll.u32 %v8439, 16
        %v8445 = vrot.slane %v8443, 1
        %v8446 = vor.u32 %v8441, %v8445
        %v8464 = vunpack.c.l.b16 %v8419
        %v8465 = vunpack.c.l.b16 %v8420
        %v8466 = vunpack.c.l.b16 %v8421
        %v8467 = vunpack.c.l.b16 %v8422
        %v8468 = vunpack.c.l.b16 %v8423
        %v8469 = vunpack.c.l.b16 %v8424
        %v8470 = vunpack.c.l.b16 %v8425
        %v8471 = vunpack.c.l.b16 %v8426
        %v8472 = vunpack.c.l.b16 %v8427
        %v8473 = vunpack.c.l.b16 %v8428
        %v8474 = vunpack.c.l.b16 %v8429
        %v8475 = vunpack.c.l.b16 %v8430
        %v8476 = vunpack.c.l.b16 %v8431
        %v8477 = vunpack.c.l.b16 %v8432
        %v8478 = vunpack.c.l.b16 %v8433
        %v8479 = vunpack.c.l.b16 %v8434
        %v8480 = vpack.c.b16 %v8465, %v8464
        %v8481 = vpack.c.b16 %v8467, %v8466
        %v8482 = vpack.c.b16 %v8469, %v8468
        %v8483 = vpack.c.b16 %v8471, %v8470
        %v8484 = vpack.c.b16 %v8473, %v8472
        %v8485 = vpack.c.b16 %v8475, %v8474
        %v8486 = vpack.c.b16 %v8477, %v8476
        %v8487 = vpack.c.b16 %v8479, %v8478
        %8496 = vmatprep.subr.bf16.mxu0 0
        %8497 = vmatpush1.bf16.msra.mxu0 %v8487
        %8498 = vmatprep.subr.bf16.mxu0 0
        %8499 = vmatpush1.bf16.msra.mxu0 %v8486
        %8500 = vmatprep.subr.bf16.mxu0 0
        %8501 = vmatpush1.bf16.msra.mxu0 %v8485
        %8502 = vmatprep.subr.bf16.mxu0 0
        %8503 = vmatpush1.bf16.msra.mxu0 %v8484
        %8504 = vmatprep.subr.bf16.mxu0 0
        %8505 = vmatpush1.bf16.msra.mxu0 %v8483
        %8506 = vmatprep.subr.bf16.mxu0 0
        %8507 = vmatpush1.bf16.msra.mxu0 %v8482
        %8508 = vmatprep.subr.bf16.mxu0 0
        %8509 = vmatpush1.bf16.msra.mxu0 %v8481
        %8510 = vmatprep.subr.bf16.mxu0 0
        %8511 = vmatpush1.bf16.msra.mxu0 %v8480
        %8512 = vmatprep.subr.bf16.mxu0 0
        %8513 = vmatpush2.bf16.msra.mxu0 0
        %8514 = vmatprep.subr.bf16.mxu0 0
        %8515 = vmatpush2.bf16.msra.mxu0 0
        %8516 = vmatprep.subr.bf16.mxu0 0
        %8517 = vmatpush2.bf16.msra.mxu0 0
        %8518 = vmatprep.subr.bf16.mxu0 0
        %8519 = vmatpush2.bf16.msra.mxu0 0
        %8520 = vmatprep.subr.bf16.mxu0 0
        %8521 = vmatpush2.bf16.msra.mxu0 0
        %8522 = vmatprep.subr.bf16.mxu0 0
        %8523 = vmatpush2.bf16.msra.mxu0 0
        %8524 = vmatprep.subr.bf16.mxu0 0
        %8525 = vmatpush2.bf16.msra.mxu0 0
        %8526 = vmatprep.subr.bf16.mxu0 0
        %8527 = vmatpush2.bf16.msra.mxu0 0
        %8528 = vmatprep.mubr.bf16.mxu0 0
        %8529 = vmatmul.mubr.bf16.gmra.mxu0 %v8446
        %v8530 = vpop.f32.mrf.mxu0
        %v8531 = vadd.f32 0.0, %v8530
        %v8532 = vpop.f32.mrf.mxu0
        %v8533 = vpop.f32.mrf.mxu0
        %v8534 = vpop.f32.mrf.mxu0
        %8535 = vdwg.mxu0
        %v8536 = vadd.f32 %v8415, %v8531
        %v8537 = vld [vmem:[#allocation2 + $0x4] sm:$0xe]
        %s8538 = scalar_lea.vmem %s1, 2240
        %v8539 = vld [vmem:[%s8538] sm:$0xf]
        %v8540 = vld [vmem:[%s8538 + $0x4] sm:$0xf]
        %v8541 = vld [vmem:[%s8538 + $0x8] sm:$0xf]
        %v8542 = vld [vmem:[%s8538 + $0xc] sm:$0xf]
        %v8543 = vld [vmem:[%s8538 + $0x10] sm:$0xf]
        %v8544 = vld [vmem:[%s8538 + $0x14] sm:$0xf]
        %v8545 = vld [vmem:[%s8538 + $0x18] sm:$0xf]
        %v8546 = vld [vmem:[%s8538 + $0x1c] sm:$0xf]
        %v8547 = vld [vmem:[%s8538 + $0x20] sm:$0xf]
        %v8548 = vld [vmem:[%s8538 + $0x24] sm:$0xf]
        %v8549 = vld [vmem:[%s8538 + $0x28] sm:$0xf]
        %v8550 = vld [vmem:[%s8538 + $0x2c] sm:$0xf]
        %v8551 = vld [vmem:[%s8538 + $0x30] sm:$0xf]
        %v8552 = vld [vmem:[%s8538 + $0x34] sm:$0xf]
        %v8553 = vld [vmem:[%s8538 + $0x38] sm:$0xf]
        %v8554 = vld [vmem:[%s8538 + $0x3c] sm:$0xf]
        %v8556 = vunpack.c.l.b16 %v8537
        %v8557 = vpack.c.b16 %v8438, %v8556
        %v8558 = vrot.slane %v8557, 1
        %v8576 = vunpack.c.l.b16 %v8539
        %v8577 = vunpack.c.l.b16 %v8540
        %v8578 = vunpack.c.l.b16 %v8541
        %v8579 = vunpack.c.l.b16 %v8542
        %v8580 = vunpack.c.l.b16 %v8543
        %v8581 = vunpack.c.l.b16 %v8544
        %v8582 = vunpack.c.l.b16 %v8545
        %v8583 = vunpack.c.l.b16 %v8546
        %v8584 = vunpack.c.l.b16 %v8547
        %v8585 = vunpack.c.l.b16 %v8548
        %v8586 = vunpack.c.l.b16 %v8549
        %v8587 = vunpack.c.l.b16 %v8550
        %v8588 = vunpack.c.l.b16 %v8551
        %v8589 = vunpack.c.l.b16 %v8552
        %v8590 = vunpack.c.l.b16 %v8553
        %v8591 = vunpack.c.l.b16 %v8554
        %v8592 = vpack.c.b16 %v8577, %v8576
        %v8593 = vpack.c.b16 %v8579, %v8578
        %v8594 = vpack.c.b16 %v8581, %v8580
        %v8595 = vpack.c.b16 %v8583, %v8582
        %v8596 = vpack.c.b16 %v8585, %v8584
        %v8597 = vpack.c.b16 %v8587, %v8586
        %v8598 = vpack.c.b16 %v8589, %v8588
        %v8599 = vpack.c.b16 %v8591, %v8590
        %8608 = vmatprep.subr.bf16.mxu0 0
        %8609 = vmatpush1.bf16.msra.mxu0 %v8599
        %8610 = vmatprep.subr.bf16.mxu0 0
        %8611 = vmatpush1.bf16.msra.mxu0 %v8598
        %8612 = vmatprep.subr.bf16.mxu0 0
        %8613 = vmatpush1.bf16.msra.mxu0 %v8597
        %8614 = vmatprep.subr.bf16.mxu0 0
        %8615 = vmatpush1.bf16.msra.mxu0 %v8596
        %8616 = vmatprep.subr.bf16.mxu0 0
        %8617 = vmatpush1.bf16.msra.mxu0 %v8595
        %8618 = vmatprep.subr.bf16.mxu0 0
        %8619 = vmatpush1.bf16.msra.mxu0 %v8594
        %8620 = vmatprep.subr.bf16.mxu0 0
        %8621 = vmatpush1.bf16.msra.mxu0 %v8593
        %8622 = vmatprep.subr.bf16.mxu0 0
        %8623 = vmatpush1.bf16.msra.mxu0 %v8592
        %8624 = vmatprep.subr.bf16.mxu0 0
        %8625 = vmatpush2.bf16.msra.mxu0 0
        %8626 = vmatprep.subr.bf16.mxu0 0
        %8627 = vmatpush2.bf16.msra.mxu0 0
        %8628 = vmatprep.subr.bf16.mxu0 0
        %8629 = vmatpush2.bf16.msra.mxu0 0
        %8630 = vmatprep.subr.bf16.mxu0 0
        %8631 = vmatpush2.bf16.msra.mxu0 0
        %8632 = vmatprep.subr.bf16.mxu0 0
        %8633 = vmatpush2.bf16.msra.mxu0 0
        %8634 = vmatprep.subr.bf16.mxu0 0
        %8635 = vmatpush2.bf16.msra.mxu0 0
        %8636 = vmatprep.subr.bf16.mxu0 0
        %8637 = vmatpush2.bf16.msra.mxu0 0
        %8638 = vmatprep.subr.bf16.mxu0 0
        %8639 = vmatpush2.bf16.msra.mxu0 0
        %8640 = vmatprep.mubr.bf16.mxu0 0
        %8641 = vmatmul.mubr.bf16.gmra.mxu0 %v8558
        %v8642 = vpop.f32.mrf.mxu0
        %v8643 = vadd.f32 0.0, %v8642
        %v8644 = vpop.f32.mrf.mxu0
        %v8645 = vpop.f32.mrf.mxu0
        %v8646 = vpop.f32.mrf.mxu0
        %8647 = vdwg.mxu0
        %v8648 = vadd.f32 %v8536, %v8643
        %s8649 = scalar_lea.vmem %s2, 3
        %v8650 = vld [vmem:[%s8649] sm:$0x1]
        %v8652 = vlaneseq
        %v8653 = vshrl.u32 %v8652, 7
        %v8654 = vsub.s32 0, %v8653
        %v8655 = vrot.slane %v8650, %v8654
        %v8657 = vadd.f32 %v8648, %v8655
        %v8658 = vmax.f32 %v8657, 0.0
        %8659 = vst [vmem:[#allocation3] sm:$0xff] %v8658
        %v8660 = vld [vmem:[#allocation3] sm:$0x7]
        %v8661 = vld [vmem:[#allocation3 + $0x1] sm:$0x7]
        %v8662 = vmax.f32 %v8660, %v8661
        %v8663 = vld [vmem:[#allocation3 + $0x4] sm:$0x7]
        %v8664 = vld [vmem:[#allocation3 + $0x5] sm:$0x7]
        %v8665 = vmax.f32 %v8663, %v8664
        %v8666 = vmax.f32 %v8662, %v8665
        %8667 = vst [vmem:[#allocation3] sm:$0x7] %v8666
        %vm8668 = vcmask 1042432
        %vm8669 = vsmask.f32 2304
        %vm8670 = vmand %vm8668, %vm8669
        %v8671 = vld [vmem:[#allocation2] sm:$0x7]
        %v8672 = vsel %vm8670, 0, %v8671
        %8673 = vst [vmem:[#allocation2] sm:$0x7] %v8672
        %8674 = vst [vmem:[#allocation2] sm:$0x8] 0
        %vm8675 = vcmask 1041408
        %vm8676 = vsmask.f32 1280
        %vm8677 = vmand %vm8675, %vm8676
        %v8678 = vld [vmem:[#allocation2 + $0x4] sm:$0x3]
        %v8679 = vsel %vm8677, 0, %v8678
        %8680 = vst [vmem:[#allocation2 + $0x4] sm:$0x3] %v8679
        %v8681 = vld [vmem:[#allocation3 + $0x1] sm:$0x1]
        %v8682 = vpack.c.bf16 %v8681, %v8681
        %v8684 = vunpack.c.l.b16 %v8682
        %v8685 = vpack.c.b16 %v8684, %v8684
        %v8687 = vshll.u32 %v8685, 16
        %v8689 = vrot.slane %v8687, 6
        %vm8691 = vcmask 1042434
        %vm8692 = vsmask.f32 7946
        %vm8693 = vmand %vm8691, %vm8692
        %v8694 = vld [vmem:[#allocation2] sm:$0x4]
        %v8695 = vsel %vm8693, %v8689, %v8694
        %8696 = vst [vmem:[#allocation2] sm:$0x4] %v8695
        %v8697 = vld [vmem:[#allocation2] sm:$0xc]
        %v8698 = vunpack.c.l.bf16 %v8697
        %v8700 = vrot.slane %v8698, 4
        %vm8702 = vcmask 1042432
        %v8703 = vsel %vm8702, %v8700, 0.0
        %v8704 = vrot.slane %v8703, 4
        %v8705 = vadd.f32 %v8703, %v8704
        %v8706 = vrot.slane %v8705, 2
        %v8707 = vadd.f32 %v8705, %v8706
        %v8708 = vrot.slane %v8707, 1
        %v8709 = vadd.f32 %v8707, %v8708
        %v8710 = vpack.c.bf16 %v8709, %v8709
        %v8711 = vld [vmem:[%s3] sm:$0xf]
        %v8712 = vld [vmem:[%s3 + $0x4] sm:$0xf]
        %v8713 = vld [vmem:[%s3 + $0x8] sm:$0xf]
        %v8714 = vld [vmem:[%s3 + $0xc] sm:$0xf]
        %v8715 = vld [vmem:[%s3 + $0x10] sm:$0xf]
        %v8716 = vld [vmem:[%s3 + $0x14] sm:$0xf]
        %v8717 = vld [vmem:[%s3 + $0x18] sm:$0xf]
        %v8718 = vld [vmem:[%s3 + $0x1c] sm:$0xf]
        %v8719 = vld [vmem:[%s3 + $0x20] sm:$0xf]
        %v8720 = vld [vmem:[%s3 + $0x24] sm:$0xf]
        %v8721 = vld [vmem:[%s3 + $0x28] sm:$0xf]
        %v8722 = vld [vmem:[%s3 + $0x2c] sm:$0xf]
        %v8723 = vld [vmem:[%s3 + $0x30] sm:$0xf]
        %v8724 = vld [vmem:[%s3 + $0x34] sm:$0xf]
        %v8725 = vld [vmem:[%s3 + $0x38] sm:$0xf]
        %v8726 = vld [vmem:[%s3 + $0x3c] sm:$0xf]
        %v8727 = vld [vmem:[%s4] sm:$0x1]
        %v8744 = vunpack.c.l.b16 %v8711
        %v8745 = vunpack.c.l.b16 %v8712
        %v8746 = vunpack.c.l.b16 %v8713
        %v8747 = vunpack.c.l.b16 %v8714
        %v8748 = vunpack.c.l.b16 %v8715
        %v8749 = vunpack.c.l.b16 %v8716
        %v8750 = vunpack.c.l.b16 %v8717
        %v8751 = vunpack.c.l.b16 %v8718
        %v8752 = vunpack.c.l.b16 %v8719
        %v8753 = vunpack.c.l.b16 %v8720
        %v8754 = vunpack.c.l.b16 %v8721
        %v8755 = vunpack.c.l.b16 %v8722
        %v8756 = vunpack.c.l.b16 %v8723
        %v8757 = vunpack.c.l.b16 %v8724
        %v8758 = vunpack.c.l.b16 %v8725
        %v8759 = vunpack.c.l.b16 %v8726
        %v8760 = vpack.c.b16 %v8745, %v8744
        %v8761 = vpack.c.b16 %v8747, %v8746
        %v8762 = vpack.c.b16 %v8749, %v8748
        %v8763 = vpack.c.b16 %v8751, %v8750
        %v8764 = vpack.c.b16 %v8753, %v8752
        %v8765 = vpack.c.b16 %v8755, %v8754
        %v8766 = vpack.c.b16 %v8757, %v8756
        %v8767 = vpack.c.b16 %v8759, %v8758
        %8776 = vmatprep.subr.bf16.mxu0 0
        %8777 = vmatpush1.bf16.msra.mxu0 %v8767
        %8778 = vmatprep.subr.bf16.mxu0 0
        %8779 = vmatpush1.bf16.msra.mxu0 %v8766
        %8780 = vmatprep.subr.bf16.mxu0 0
        %8781 = vmatpush1.bf16.msra.mxu0 %v8765
        %8782 = vmatprep.subr.bf16.mxu0 0
        %8783 = vmatpush1.bf16.msra.mxu0 %v8764
        %8784 = vmatprep.subr.bf16.mxu0 0
        %8785 = vmatpush1.bf16.msra.mxu0 %v8763
        %8786 = vmatprep.subr.bf16.mxu0 0
        %8787 = vmatpush1.bf16.msra.mxu0 %v8762
        %8788 = vmatprep.subr.bf16.mxu0 0
        %8789 = vmatpush1.bf16.msra.mxu0 %v8761
        %8790 = vmatprep.subr.bf16.mxu0 0
        %8791 = vmatpush1.bf16.msra.mxu0 %v8760
        %8792 = vmatprep.subr.bf16.mxu0 0
        %8793 = vmatpush2.bf16.msra.mxu0 0
        %8794 = vmatprep.subr.bf16.mxu0 0
        %8795 = vmatpush2.bf16.msra.mxu0 0
        %8796 = vmatprep.subr.bf16.mxu0 0
        %8797 = vmatpush2.bf16.msra.mxu0 0
        %8798 = vmatprep.subr.bf16.mxu0 0
        %8799 = vmatpush2.bf16.msra.mxu0 0
        %8800 = vmatprep.subr.bf16.mxu0 0
        %8801 = vmatpush2.bf16.msra.mxu0 0
        %8802 = vmatprep.subr.bf16.mxu0 0
        %8803 = vmatpush2.bf16.msra.mxu0 0
        %8804 = vmatprep.subr.bf16.mxu0 0
        %8805 = vmatpush2.bf16.msra.mxu0 0
        %8806 = vmatprep.subr.bf16.mxu0 0
        %8807 = vmatpush2.bf16.msra.mxu0 0
        %8808 = vmatprep.mubr.bf16.mxu0 0
        %8809 = vmatmul.mubr.bf16.gmra.mxu0 %v8710
        %v8810 = vpop.f32.mrf.mxu0
        %v8811 = vadd.f32 %v8727, %v8810
        %v8812 = vpop.f32.mrf.mxu0
        %v8813 = vpop.f32.mrf.mxu0
        %v8814 = vpop.f32.mrf.mxu0
        %8815 = vdwg.mxu0
        %8816 = vst [vmem:[%s253] sm:$0x1] %v8709
        %8817 = vst [vmem:[%s247] sm:$0x1] %v8811
        %s8818 = sand.u32 %s142, 1
        %s8819 = scalar_lea.sflag [#allocation5], %s8818
        %s8820 = sand.u32 %s142, 1
        %s8821 = scalar_lea.vmem [#allocation4], %s8820
        %s8822 = sand.u32 %s168, 1
        %s8823 = scalar_lea.sflag [#allocation7], %s8822
        %s8824 = sand.u32 %s168, 1
        %s8825 = scalar_lea.vmem [#allocation6], %s8824
        // Predicated region
        $region41: #{classifier_forward.1} parent=39 // pred_check
          %p8826 = pneg %p152
        $region42: #{classifier_forward.1} parent=39 // pred_check_branch
          %8828 = sbr.rel (%p8826) target = $region44
        $region43: #{classifier_forward.1} parent=39 // pred_region
          %s8830 = ssub.s32 16, 16
          %8831 = vsyncadd %s8819, %s8830
          %s8832 = smul.addr %s24, 16
          %s8833 = scalar_lea.hbm %s5, %s8832
          %s8835 = sshll.u32 %s8821, 4
          %s8836 = int_to_ptr.vmem [resolvable:$true] %s8835
          %8838 = dma.vmem_to_hbm [thread:$0]  %s8836, 16, %s8833, %s8819
        $region44: #{classifier_forward.1} parent=39 // pred_fallthru
          _
        // Predicated region
        $region45: #{classifier_forward.1} parent=39 // pred_check
          %p8839 = pneg %p178
        $region46: #{classifier_forward.1} parent=39 // pred_check_branch
          %8841 = sbr.rel (%p8839) target = $region48
        $region47: #{classifier_forward.1} parent=39 // pred_region
          %s8843 = ssub.s32 16, 16
          %8844 = vsyncadd %s8823, %s8843
          %s8845 = smul.addr %s24, 16
          %s8846 = scalar_lea.hbm %s6, %s8845
          %s8848 = sshll.u32 %s8825, 4
          %s8849 = int_to_ptr.vmem [resolvable:$true] %s8848
          %8851 = dma.vmem_to_hbm [thread:$0]  %s8849, 16, %s8846, %s8823
        $region48: #{classifier_forward.1} parent=39 // pred_fallthru
          _
      $region40: #{classifier_forward.1} parent=5 // pred_fallthru
        _
      %p8852 = scmp.le.s32.totalorder 2, %s19
      // Predicated region
      $region49: #{classifier_forward.1} parent=5 // pred_check
        %p8853 = pneg %p8852
      $region50: #{classifier_forward.1} parent=5 // pred_check_branch
        %8855 = sbr.rel (%p8853) target = $region52
      $region51: #{classifier_forward.1} parent=5 // pred_region
        %s8856 = ssub.s32 %s19, 2
        // Predicated region
        $region53: #{classifier_forward.1} parent=51 // pred_check
          %p8857 = pneg %p158
        $region54: #{classifier_forward.1} parent=51 // pred_check_branch
          %8859 = sbr.rel (%p8857) target = $region56
        $region55: #{classifier_forward.1} parent=51 // pred_region
          %s8860 = sand.u32 %s143, 1
          %s8861 = scalar_lea.sflag [#allocation5], %s8860
          %s8862 = sand.u32 %s143, 1
          %s8863 = scalar_lea.vmem [#allocation4], %s8862
          %8864 = dma.done %s8861, 16
        $region56: #{classifier_forward.1} parent=51 // pred_fallthru
          _
        // Predicated region
        $region57: #{classifier_forward.1} parent=51 // pred_check
          %p8865 = pneg %p184
        $region58: #{classifier_forward.1} parent=51 // pred_check_branch
          %8867 = sbr.rel (%p8865) target = $region60
        $region59: #{classifier_forward.1} parent=51 // pred_region
          %s8868 = sand.u32 %s169, 1
          %s8869 = scalar_lea.sflag [#allocation7], %s8868
          %s8870 = sand.u32 %s169, 1
          %s8871 = scalar_lea.vmem [#allocation6], %s8870
          %8872 = dma.done %s8869, 16
        $region60: #{classifier_forward.1} parent=51 // pred_fallthru
          _
      $region52: #{classifier_forward.1} parent=5 // pred_fallthru
        _
    $region6: #{classifier_forward.1} parent=1 // loop_footer
      %s23 = sadd.s32 1, %s19
    $region7: #{classifier_forward.1} parent=1 // loop_footer_branch
      %18 = sbr.rel target = $region3
    $region8: #{classifier_forward.1} parent=1 // loop_exit
      _
    %8873 = vsyncpa [#allocation5], 1
    %s8874 = scalar_lea.sflag [#allocation5], 1
    %8875 = vsyncpa %s8874, 1
    %8876 = vsyncpa [#allocation7], 1
    %s8877 = scalar_lea.sflag [#allocation7], 1
    %8878 = vsyncpa %s8877, 1

</llo_original>
